<compile_context>
chip_gen: v7x
topology: tpu7x:2x2x1
jax: 0.10.0
libtpu: 0.0.40
codegen_flags: <defaults>
</compile_context>

<pallas_src>
import numpy as np
import jax
import jax.numpy as jnp
from jax.experimental import pallas as pl
from jax.experimental.pallas import tpu as pltpu


# ----------------------------------------------------------------------------
# Pallas kernel: frequency encoding + prior MLP + fused tiny_mlp/combine
# ----------------------------------------------------------------------------
def _sdf_fused_kernel(feat_ref, hx_ref, wenc_ref, b0_ref, w1_ref,
                      wh_ref, wx_ref, bcomb_ref, e0_ref, o_ref):
    feat = feat_ref[...]                                   # (TN, 13) f32
    # cols 0..5 = phase, cols 6..11 = phase + pi/2 (so sin gives cos),
    # col 12 carries z; wenc row 12 is zero so sin(z) never contributes.
    enc = jnp.sin(feat)                                    # (TN, 13) f32

    # prior_network: FullyFusedMLP (2 hidden layers, 64 neurons, Sigmoid).
    # tcnn pads the 12-dim encoding to 16 with ones; that padding is folded
    # into b0 = sum(W0[12:16]) on the host side.  bf16 MXU, f32 accumulate,
    # activations kept in f32.
    h = jnp.dot(enc.astype(jnp.bfloat16), wenc_ref[...],
                preferred_element_type=jnp.float32) + b0_ref[...]   # (TN, 64)
    h = 0.5 * jnp.tanh(0.5 * h) + 0.5                      # sigmoid (1 EUP op)
    h = jnp.dot(h.astype(jnp.bfloat16), w1_ref[...],
                preferred_element_type=jnp.float32)
    h = 0.5 * jnp.tanh(0.5 * h) + 0.5                      # (TN, 64)

    # Fused combine into the final 65-wide output:
    #   col 0      = z - (hx @ Wt[:, 0] + bt[0]) / scale - h @ W2
    #   cols 1..64 = hx @ Wt[:, 1:] + bt[1:]
    out = jnp.dot(hx_ref[...], wx_ref[...],
                  preferred_element_type=jnp.float32)                # (TN, 65)
    out = out + jnp.dot(h.astype(jnp.bfloat16), wh_ref[...],
                        preferred_element_type=jnp.float32)
    o_ref[...] = out + bcomb_ref[...] + feat[:, 12:13] * e0_ref[...]


# ----------------------------------------------------------------------------
# Hash-grid encoding glue (gather stays in plain JAX; single vectorized take)
# TODO(synk): tcnn indexes small coarse levels densely, uses its own hash
#             constants / corner order and clamps negative coords differently,
#             so this standard xor-hash math is not bit-exact vs. the tcnn
#             HashGrid.
# ----------------------------------------------------------------------------
def hash_encode(xy, tables, base_resolution, per_level_scale=1.5):
    n_levels, T, F = tables.shape
    res = np.floor(base_resolution *
                   per_level_scale ** np.arange(n_levels)).astype(np.float32)
    pos = xy[:, None, :] * jnp.asarray(res)[None, :, None]        # (N, L, 2)
    pos0 = jnp.floor(pos)
    frac = pos - pos0
    pos0 = pos0.astype(jnp.int32)

    offs = jnp.asarray([[0, 0], [0, 1], [1, 0], [1, 1]], jnp.int32)   # (4, 2)
    corner = pos0[:, :, None, :] + offs[None, None, :, :]         # (N, L, 4, 2)
    cx = corner[..., 0].astype(jnp.uint32)
    cy = corner[..., 1].astype(jnp.uint32)
    prime = jnp.uint32(2654435761)
    # T is a power of two -> mask instead of modulo (no integer divide)
    idx = (jnp.bitwise_xor(cx, cy * prime) &
           jnp.uint32(T - 1)).astype(jnp.int32)                   # (N, L, 4)
    lvl_off = (jnp.arange(n_levels, dtype=jnp.int32) * T)[None, :, None]

    flat = tables.reshape(n_levels * T, F)                        # (L*T, F)
    g = jnp.take(flat, idx + lvl_off, axis=0)                     # (N, L, 4, F)

    w = jnp.where(offs[None, None, :, :] == 1,
                  frac[:, :, None, :], 1.0 - frac[:, :, None, :]) # (N, L, 4, 2)
    w = w[..., 0] * w[..., 1]                                     # (N, L, 4)
    feat = jnp.sum(g.astype(jnp.float32) * w[..., None], axis=2)  # (N, L, F)
    return feat.reshape(xy.shape[0], n_levels * F)                # (N, 32)


# ----------------------------------------------------------------------------
# Parameters (deterministic, synthetic)
# ----------------------------------------------------------------------------
def init_params(key, base_resolution=16, log2_hashmap_size=19,
                n_levels=16, n_feats_per_level=2, n_neurons=64):
    ks = jax.random.split(key, 6)
    T = 1 << log2_hashmap_size
    # tcnn hash grids init uniform(-1e-4, 1e-4); stored bf16 to halve the
    # gather bandwidth (interpolation still accumulates in f32).
    tables = jax.random.uniform(ks[0], (n_levels, T, n_feats_per_level),
                                jnp.float32, -1e-4, 1e-4).astype(jnp.bfloat16)
    # prior FullyFusedMLP: input padded to 16 (12 freq dims + 4 ones), no bias
    W0 = jax.random.normal(ks[1], (16, n_neurons), jnp.float32) * 0.1
    W1 = jax.random.normal(ks[2], (n_neurons, n_neurons), jnp.float32) * 0.1
    W2 = jax.random.normal(ks[3], (n_neurons, 1), jnp.float32) * 0.1
    # tiny_mlp = nn.Linear(32, 65): uniform(-1/sqrt(32), 1/sqrt(32))
    lim = 1.0 / np.sqrt(32.0)
    Wt = jax.random.uniform(ks[4], (32, 65), jnp.float32, -lim, lim)
    bt = jax.random.uniform(ks[5], (1, 65), jnp.float32, -lim, lim)
    return dict(tables=tables, W0=W0, W1=W1, W2=W2, Wt=Wt, bt=bt,
                base_resolution=base_resolution)


def _pick_block_n(n, requested):
    """Row-tile size: >=4 grid steps when possible (so each of v7x's two
    TensorCores pipelines >=2 steps), rows a multiple of 8 (sublane), and a
    512-2048 range for large N to amortize the ~0.35us per-grid-step cost."""
    bn = min(int(requested), 2048)
    bn = min(bn, max(128, -(-n // 4)))        # aim for >= 4 blocks
    return max(8, (bn + 7) // 8 * 8)


# ----------------------------------------------------------------------------
# Forward wrapper (matches forward(inputs) with default flags)
# ----------------------------------------------------------------------------
def sdf_network_forward(params, inputs, scale=1.0, block_n=1024):
    N = inputs.shape[0]
    block_n = _pick_block_n(N, block_n)
    n_blocks = max(1, -(-N // block_n))
    Np = n_blocks * block_n

    inputs = inputs.astype(jnp.float32)
    xy = inputs[:, :2]                       # raw coords feed the prior net
    z = inputs[:, 2:3]                       # raw z (height)

    # --- hash features (XLA gather; tables far too big for per-step VMEM) ---
    hx = hash_encode((xy * scale) / 30.0 + 0.5, params["tables"],
                     params["base_resolution"])            # (N, 32) f32
    hx = hx.astype(jnp.bfloat16)   # halve the hash-feature DMA stream

    # --- frequency phases, precomputed on host ------------------------------
    # cols 0..5  = [pi*x, pi*y, 2pi*x, 2pi*y, 4pi*x, 4pi*y]
    # cols 6..11 = same + pi/2   (so sin() of them == cos of cols 0..5)
    pi = np.pi
    fmat = np.zeros((2, 12), np.float32)
    fmat[0, 0::2] = [pi, 2 * pi, 4 * pi] * 2
    fmat[1, 1::2] = [pi, 2 * pi, 4 * pi] * 2
    shift = np.concatenate([np.zeros(6, np.float32),
                            np.full(6, pi / 2, np.float32)])
    phase = xy @ jnp.asarray(fmat) + jnp.asarray(shift)[None, :]   # (N, 12)
    feat = jnp.concatenate([phase, z], axis=-1)                    # (N, 13)

    # --- host-side weight folding (bf16 for every MXU operand) --------------
    W0, W1, W2 = params["W0"], params["W1"], params["W2"]
    Wt, bt = params["Wt"], params["bt"]
    inv_s = 1.0 / float(scale)
    nh = W0.shape[1]

    # encoding layer: 12 sin/cos rows + a zero row so the z lane is inert
    wenc = jnp.concatenate(
        [W0[:12], jnp.zeros((1, nh), jnp.float32)], axis=0
    ).astype(jnp.bfloat16)                                         # (13, 64)
    b0 = jnp.sum(W0[12:16], axis=0, keepdims=True)                 # (1, 64) f32
    w1 = W1.astype(jnp.bfloat16)                                   # (64, 64)

    # combine weights mapping straight onto the 65-wide output
    wh = jnp.zeros((nh, 65), jnp.float32).at[:, 0].set(-W2[:, 0])  # prior head
    wh = wh.astype(jnp.bfloat16)                                   # (64, 65)
    wx = jnp.concatenate([-Wt[:, :1] * inv_s, Wt[:, 1:]], axis=1)
    wx = wx.astype(jnp.bfloat16)                                   # (32, 65)
    bcomb = jnp.concatenate([-bt[:, :1] * inv_s, bt[:, 1:]], axis=1)  # (1,65) f32
    e0 = jnp.zeros((1, 65), jnp.float32).at[0, 0].set(1.0)         # z -> col 0

    # pad the batch to a tile multiple
    if Np != N:
        feat = jnp.pad(feat, ((0, Np - N), (0, 0)))
        hx = jnp.pad(hx, ((0, Np - N), (0, 0)))

    out = pl.pallas_call(
        _sdf_fused_kernel,
        out_shape=jax.ShapeDtypeStruct((Np, 65), jnp.float32),
        grid_spec=pltpu.PrefetchScalarGridSpec(
            num_scalar_prefetch=0,
            grid=(n_blocks,),
            in_specs=[
                pl.BlockSpec((block_n, 13), lambda i: (i, 0)),   # [phase, z] f32
                pl.BlockSpec((block_n, 32), lambda i: (i, 0)),   # hash feats bf16
                pl.BlockSpec((13, 64), lambda i: (0, 0)),        # wenc bf16
                pl.BlockSpec((1, 64), lambda i: (0, 0)),         # b0 f32
                pl.BlockSpec((64, 64), lambda i: (0, 0)),        # W1 bf16
                pl.BlockSpec((64, 65), lambda i: (0, 0)),        # wh (-W2 -> col0)
                pl.BlockSpec((32, 65), lambda i: (0, 0)),        # wx (Wt remapped)
                pl.BlockSpec((1, 65), lambda i: (0, 0)),         # bcomb f32
                pl.BlockSpec((1, 65), lambda i: (0, 0)),         # e0 one-hot f32
            ],
            out_specs=pl.BlockSpec((block_n, 65), lambda i: (i, 0)),
        ),
        compiler_params=pltpu.CompilerParams(
            dimension_semantics=("parallel",)),
    )(feat, hx, wenc, b0, w1, wh, wx, bcomb, e0)

    return out if Np == N else out[:N]


# ----------------------------------------------------------------------------
# Pure-JAX reference (same math, no Pallas) for a sanity check
# ----------------------------------------------------------------------------
def _reference_forward(params, inputs, scale=1.0):
    inputs = inputs.astype(jnp.float32)
    xy = inputs[:, :2]
    z = inputs[:, 2:3]
    hx = hash_encode((xy * scale) / 30.0 + 0.5, params["tables"],
                     params["base_resolution"])
    pi = np.pi
    fmat = jnp.asarray([[pi, 0.0, 2 * pi, 0.0, 4 * pi, 0.0],
                        [0.0, pi, 0.0, 2 * pi, 0.0, 4 * pi]], jnp.float32)
    phase = xy @ fmat
    enc = jnp.concatenate([jnp.sin(phase), jnp.cos(phase)], axis=-1)
    W0 = params["W0"]
    h = enc @ W0[:12] + jnp.sum(W0[12:16], axis=0, keepdims=True)
    h = jax.nn.sigmoid(h)
    h = jax.nn.sigmoid(h @ params["W1"])
    prior_z = h @ params["W2"]
    y = hx @ params["Wt"] + params["bt"]
    return jnp.concatenate([z - y[:, :1] / scale - prior_z, y[:, 1:]], axis=-1)


if __name__ == "__main__":
    key = jax.random.PRNGKey(0)
    k_in, k_par = jax.random.split(key)

    N = 2048          # -> 4 tiles of 512 rows (>= 2 pipelined steps per v7x TC)
    # inputs: (N, 3) = (x, y, z); xy feeds prior + hash encodings, z is height
    inputs = jax.random.uniform(k_in, (N, 3), jnp.float32, -10.0, 10.0)

    params = init_params(k_par, base_resolution=16)

    out = sdf_network_forward(params, inputs, scale=1.0)
    out = jax.block_until_ready(out)

    assert out.shape == (N, 65), out.shape
    assert out.dtype == jnp.float32
    assert bool(jnp.all(jnp.isfinite(out)))

    # sanity check vs. pure-JAX f32 reference: SDF column checked separately
    # (it carries the bf16 prior-MLP path), hidden columns checked tightly
    ref = jax.block_until_ready(_reference_forward(params, inputs, scale=1.0))
    sdf_diff = float(jnp.max(jnp.abs(out[:, 0] - ref[:, 0])))
    rest_diff = float(jnp.max(jnp.abs(out[:, 1:] - ref[:, 1:])))
    assert sdf_diff < 0.2, f"SDF col max |kernel - ref| = {sdf_diff}"
    assert rest_diff < 0.02, f"hidden cols max |kernel - ref| = {rest_diff}"

    print("KERNEL_OK")
</pallas_src>

<mosaic_0001>
module attributes {stable_mosaic.version = 11 : i64} {
  func.func @_sdf_fused_kernel(%arg0: i32, %arg1: memref<512x13xf32, #tpu.memory_space<vmem>>, %arg2: memref<512x32xbf16, #tpu.memory_space<vmem>>, %arg3: memref<13x64xbf16, #tpu.memory_space<vmem>>, %arg4: memref<1x64xf32, #tpu.memory_space<vmem>>, %arg5: memref<64x64xbf16, #tpu.memory_space<vmem>>, %arg6: memref<64x65xbf16, #tpu.memory_space<vmem>>, %arg7: memref<32x65xbf16, #tpu.memory_space<vmem>>, %arg8: memref<1x65xf32, #tpu.memory_space<vmem>>, %arg9: memref<1x65xf32, #tpu.memory_space<vmem>>, %arg10: memref<512x65xf32, #tpu.memory_space<vmem>>) attributes {dimension_semantics = [#tpu.dimension_semantics<parallel>], iteration_bounds = array<i64: 4>, scalar_prefetch = 0 : i64, scratch_operands = 0 : i64, tpu.core_type = #tpu.core_type<tc>, window_params = [{transform_indices = @transform_0, window_bounds = array<i64: 512, 13>}, {transform_indices = @transform_1, window_bounds = array<i64: 512, 32>}, {pipeline_mode = #tpu.pipeline_mode<synchronous>, transform_indices = @transform_2, window_bounds = array<i64: 13, 64>}, {pipeline_mode = #tpu.pipeline_mode<synchronous>, transform_indices = @transform_3, window_bounds = array<i64: 1, 64>}, {pipeline_mode = #tpu.pipeline_mode<synchronous>, transform_indices = @transform_4, window_bounds = array<i64: 64, 64>}, {pipeline_mode = #tpu.pipeline_mode<synchronous>, transform_indices = @transform_5, window_bounds = array<i64: 64, 65>}, {pipeline_mode = #tpu.pipeline_mode<synchronous>, transform_indices = @transform_6, window_bounds = array<i64: 32, 65>}, {pipeline_mode = #tpu.pipeline_mode<synchronous>, transform_indices = @transform_7, window_bounds = array<i64: 1, 65>}, {pipeline_mode = #tpu.pipeline_mode<synchronous>, transform_indices = @transform_8, window_bounds = array<i64: 1, 65>}, {transform_indices = @transform_9, window_bounds = array<i64: 512, 65>}]} {
    %c0 = arith.constant 0 : index
    %c0_0 = arith.constant 0 : index
    %0 = vector.load %arg1[%c0, %c0_0] : memref<512x13xf32, #tpu.memory_space<vmem>>, vector<512x13xf32>
    %1 = math.sin %0 : vector<512x13xf32>
    %2 = arith.truncf %1 : vector<512x13xf32> to vector<512x13xbf16>
    %c0_1 = arith.constant 0 : index
    %c0_2 = arith.constant 0 : index
    %3 = vector.load %arg3[%c0_1, %c0_2] : memref<13x64xbf16, #tpu.memory_space<vmem>>, vector<13x64xbf16>
    %cst = arith.constant dense<0.000000e+00> : vector<512x64xf32>
    %4 = tpu.matmul %2, %3, %cst {dimension_numbers = #tpu.dot_dimension_numbers<[1], [0], [0], [1], [0, 0, 1, 1], [], []>} : vector<512x13xbf16>, vector<13x64xbf16>, vector<512x64xf32> -> vector<512x64xf32>
    %c0_3 = arith.constant 0 : index
    %c0_4 = arith.constant 0 : index
    %5 = vector.load %arg4[%c0_3, %c0_4] : memref<1x64xf32, #tpu.memory_space<vmem>>, vector<1x64xf32>
    %6 = vector.broadcast %5 : vector<1x64xf32> to vector<512x64xf32>
    %7 = arith.addf %4, %6 : vector<512x64xf32>
    %cst_5 = arith.constant 5.000000e-01 : f32
    %8 = vector.broadcast %cst_5 : f32 to vector<512x64xf32>
    %9 = arith.mulf %8, %7 : vector<512x64xf32>
    %10 = math.tanh %9 : vector<512x64xf32>
    %cst_6 = arith.constant 5.000000e-01 : f32
    %11 = vector.broadcast %cst_6 : f32 to vector<512x64xf32>
    %12 = arith.mulf %11, %10 : vector<512x64xf32>
    %cst_7 = arith.constant 5.000000e-01 : f32
    %13 = vector.broadcast %cst_7 : f32 to vector<512x64xf32>
    %14 = arith.addf %12, %13 : vector<512x64xf32>
    %15 = arith.truncf %14 : vector<512x64xf32> to vector<512x64xbf16>
    %c0_8 = arith.constant 0 : index
    %c0_9 = arith.constant 0 : index
    %16 = vector.load %arg5[%c0_8, %c0_9] : memref<64x64xbf16, #tpu.memory_space<vmem>>, vector<64x64xbf16>
    %cst_10 = arith.constant dense<0.000000e+00> : vector<512x64xf32>
    %17 = tpu.matmul %15, %16, %cst_10 {dimension_numbers = #tpu.dot_dimension_numbers<[1], [0], [0], [1], [0, 0, 1, 1], [], []>} : vector<512x64xbf16>, vector<64x64xbf16>, vector<512x64xf32> -> vector<512x64xf32>
    %cst_11 = arith.constant 5.000000e-01 : f32
    %18 = vector.broadcast %cst_11 : f32 to vector<512x64xf32>
    %19 = arith.mulf %18, %17 : vector<512x64xf32>
    %20 = math.tanh %19 : vector<512x64xf32>
    %cst_12 = arith.constant 5.000000e-01 : f32
    %21 = vector.broadcast %cst_12 : f32 to vector<512x64xf32>
    %22 = arith.mulf %21, %20 : vector<512x64xf32>
    %cst_13 = arith.constant 5.000000e-01 : f32
    %23 = vector.broadcast %cst_13 : f32 to vector<512x64xf32>
    %24 = arith.addf %22, %23 : vector<512x64xf32>
    %c0_14 = arith.constant 0 : index
    %c0_15 = arith.constant 0 : index
    %25 = vector.load %arg2[%c0_14, %c0_15] : memref<512x32xbf16, #tpu.memory_space<vmem>>, vector<512x32xbf16>
    %c0_16 = arith.constant 0 : index
    %c0_17 = arith.constant 0 : index
    %26 = vector.load %arg7[%c0_16, %c0_17] : memref<32x65xbf16, #tpu.memory_space<vmem>>, vector<32x65xbf16>
    %cst_18 = arith.constant dense<0.000000e+00> : vector<512x65xf32>
    %27 = tpu.matmul %25, %26, %cst_18 {dimension_numbers = #tpu.dot_dimension_numbers<[1], [0], [0], [1], [0, 0, 1, 1], [], []>} : vector<512x32xbf16>, vector<32x65xbf16>, vector<512x65xf32> -> vector<512x65xf32>
    %28 = arith.truncf %24 : vector<512x64xf32> to vector<512x64xbf16>
    %c0_19 = arith.constant 0 : index
    %c0_20 = arith.constant 0 : index
    %29 = vector.load %arg6[%c0_19, %c0_20] : memref<64x65xbf16, #tpu.memory_space<vmem>>, vector<64x65xbf16>
    %cst_21 = arith.constant dense<0.000000e+00> : vector<512x65xf32>
    %30 = tpu.matmul %28, %29, %cst_21 {dimension_numbers = #tpu.dot_dimension_numbers<[1], [0], [0], [1], [0, 0, 1, 1], [], []>} : vector<512x64xbf16>, vector<64x65xbf16>, vector<512x65xf32> -> vector<512x65xf32>
    %31 = arith.addf %27, %30 : vector<512x65xf32>
    %c0_22 = arith.constant 0 : index
    %c0_23 = arith.constant 0 : index
    %32 = vector.load %arg8[%c0_22, %c0_23] : memref<1x65xf32, #tpu.memory_space<vmem>>, vector<1x65xf32>
    %33 = vector.broadcast %32 : vector<1x65xf32> to vector<512x65xf32>
    %34 = arith.addf %31, %33 : vector<512x65xf32>
    %35 = vector.extract_strided_slice %0 {offsets = [0, 12], sizes = [512, 1], strides = [1, 1]} : vector<512x13xf32> to vector<512x1xf32>
    %c0_24 = arith.constant 0 : index
    %c0_25 = arith.constant 0 : index
    %36 = vector.load %arg9[%c0_24, %c0_25] : memref<1x65xf32, #tpu.memory_space<vmem>>, vector<1x65xf32>
    %37 = vector.broadcast %35 : vector<512x1xf32> to vector<512x65xf32>
    %38 = vector.broadcast %36 : vector<1x65xf32> to vector<512x65xf32>
    %39 = arith.mulf %37, %38 : vector<512x65xf32>
    %40 = arith.addf %34, %39 : vector<512x65xf32>
    %c0_26 = arith.constant 0 : index
    %c0_27 = arith.constant 0 : index
    %41 = vector.load %arg10[%c0_26, %c0_27] : memref<512x65xf32, #tpu.memory_space<vmem>>, vector<512x65xf32>
    tpu.vector_store %arg10[%c0_26, %c0_27], %40 {strides = array<i32>} : memref<512x65xf32, #tpu.memory_space<vmem>>, vector<512x65xf32>,
    return
  }
  func.func @transform_0(%arg0: i32) -> (i32, i32) {
    %c0_i32 = arith.constant 0 : i32
    %c0_i32_0 = arith.constant 0 : i32
    return %arg0, %c0_i32 : i32, i32
  }
  func.func @transform_1(%arg0: i32) -> (i32, i32) {
    %c0_i32 = arith.constant 0 : i32
    %c0_i32_0 = arith.constant 0 : i32
    return %arg0, %c0_i32 : i32, i32
  }
  func.func @transform_2(%arg0: i32) -> (i32, i32) {
    %c0_i32 = arith.constant 0 : i32
    %c0_i32_0 = arith.constant 0 : i32
    %c0_i32_1 = arith.constant 0 : i32
    return %c0_i32, %c0_i32_0 : i32, i32
  }
  func.func @transform_3(%arg0: i32) -> (i32, i32) {
    %c0_i32 = arith.constant 0 : i32
    %c0_i32_0 = arith.constant 0 : i32
    %c0_i32_1 = arith.constant 0 : i32
    return %c0_i32, %c0_i32_0 : i32, i32
  }
  func.func @transform_4(%arg0: i32) -> (i32, i32) {
    %c0_i32 = arith.constant 0 : i32
    %c0_i32_0 = arith.constant 0 : i32
    %c0_i32_1 = arith.constant 0 : i32
    return %c0_i32, %c0_i32_0 : i32, i32
  }
  func.func @transform_5(%arg0: i32) -> (i32, i32) {
    %c0_i32 = arith.constant 0 : i32
    %c0_i32_0 = arith.constant 0 : i32
    %c0_i32_1 = arith.constant 0 : i32
    return %c0_i32, %c0_i32_0 : i32, i32
  }
  func.func @transform_6(%arg0: i32) -> (i32, i32) {
    %c0_i32 = arith.constant 0 : i32
    %c0_i32_0 = arith.constant 0 : i32
    %c0_i32_1 = arith.constant 0 : i32
    return %c0_i32, %c0_i32_0 : i32, i32
  }
  func.func @transform_7(%arg0: i32) -> (i32, i32) {
    %c0_i32 = arith.constant 0 : i32
    %c0_i32_0 = arith.constant 0 : i32
    %c0_i32_1 = arith.constant 0 : i32
    return %c0_i32, %c0_i32_0 : i32, i32
  }
  func.func @transform_8(%arg0: i32) -> (i32, i32) {
    %c0_i32 = arith.constant 0 : i32
    %c0_i32_0 = arith.constant 0 : i32
    %c0_i32_1 = arith.constant 0 : i32
    return %c0_i32, %c0_i32_0 : i32, i32
  }
  func.func @transform_9(%arg0: i32) -> (i32, i32) {
    %c0_i32 = arith.constant 0 : i32
    %c0_i32_0 = arith.constant 0 : i32
    return %arg0, %c0_i32 : i32, i32
  }
}

</mosaic_0001>

<llo_original>
// kernel: tpu_custom_call.1
$region0: #{tpu_custom_call.1}
  #allocation0 [shape = 'u32[]', space=smem, size = 0x4, offset = 0x4, fixed_abs, tag = 'smem constant byte address 0x4 - core index']
  #allocation1 [shape = 'u32[144,128]{1,0:T(1,128)}', space=vmem, size = 0x12000, scoped, tag = 'internal scratch']
  %s0 = inlined_call_operand.vmem [shape: f32[2048,13], index: 0, kind: input, shape index: {}]
  %s1 = inlined_call_operand.vmem [shape: bf16[2048,32], index: 1, kind: input, shape index: {}]
  %s2 = inlined_call_operand.vmem [shape: bf16[13,64], index: 2, kind: input, shape index: {}]
  %s3 = inlined_call_operand.vmem [shape: f32[1,64], index: 3, kind: input, shape index: {}]
  %s4 = inlined_call_operand.vmem [shape: bf16[64,64], index: 4, kind: input, shape index: {}]
  %s5 = inlined_call_operand.vmem [shape: bf16[64,65], index: 5, kind: input, shape index: {}]
  %s6 = inlined_call_operand.vmem [shape: bf16[32,65], index: 6, kind: input, shape index: {}]
  %s7 = inlined_call_operand.vmem [shape: f32[1,65], index: 7, kind: input, shape index: {}]
  %s8 = inlined_call_operand.vmem [shape: f32[1,65], index: 8, kind: input, shape index: {}]
  %s9 = inlined_call_operand.vmem [shape: f32[2048,65], index: 9, kind: output, shape index: {}]
  %s10 = sld [smem:[#allocation0]]
  $region69: #{tpu_custom_call.1} parent=0
    _
  %s12 = ssub.s32 1, %s10
  %s13 = scalar_select 0, %s12, %s10
  loop: start=0, step=1, limit=6
  $region2: #{tpu_custom_call.1} parent=0 // loop_pre_header
    _
  $region3: #{tpu_custom_call.1} parent=0 // loop_header
    %s15 = sphi 0, %s19
    %p16 = scmp.ge.s32.totalorder %s15, 6
    %s25 = sphi 0, %s27
    %s28 = sphi 0, %s25
    %s29 = sphi 0, %s28
    %s45 = sphi 0, %s29
    %s51 = sphi 0, %s53
    %s54 = sphi 0, %s51
    %s55 = sphi 0, %s54
    %s71 = sphi 0, %s55
    %s75 = sphi 0, %s75
    %s77 = sphi 0, %s75
    %s78 = sphi 0, %s77
    %s92 = sphi 0, %s78
    %s96 = sphi 0, %s96
    %s98 = sphi 0, %s96
    %s99 = sphi 0, %s98
    %s113 = sphi 0, %s99
    %s117 = sphi 0, %s117
    %s119 = sphi 0, %s117
    %s120 = sphi 0, %s119
    %s134 = sphi 0, %s120
    %s138 = sphi 0, %s138
    %s140 = sphi 0, %s138
    %s141 = sphi 0, %s140
    %s155 = sphi 0, %s141
    %s159 = sphi 0, %s159
    %s161 = sphi 0, %s159
    %s162 = sphi 0, %s161
    %s176 = sphi 0, %s162
    %s180 = sphi 0, %s180
    %s182 = sphi 0, %s180
    %s183 = sphi 0, %s182
    %s197 = sphi 0, %s183
    %s201 = sphi 0, %s201
    %s203 = sphi 0, %s201
    %s204 = sphi 0, %s203
    %s218 = sphi 0, %s204
    %s224 = sphi 0, %s226
    %s227 = sphi 0, %s224
    %s228 = sphi 0, %s227
    %s244 = sphi 0, %s228
  $region4: #{tpu_custom_call.1} parent=0 // loop_header_branch
    %18 = sbr.rel (%p16) target = $region8
  $region5: #{tpu_custom_call.1} parent=0 // loop_body
    %s20 = ssub.s32 %s15, 1
    %s21 = ssub.s32 %s15, 2
    %s22 = sadd.s32 %s15, 1
    %s23 = ssub.s32 %s15, %s22
    %p24 = scmp.eq.s32.totalorder %s23, 0
    %s26 = sadd.s32 %s25, 1
    %s27 = scalar_select %p24, %s25, %s26
    %p30 = pneg %p24
    %p31 = scmp.eq.s32.totalorder %s15, 3
    %p32 = por %p30, %p31
    %p33 = scmp.ne.s32.totalorder %s25, %s28
    %p34 = scmp.eq.s32.totalorder %s15, 0
    %p35 = por %p33, %p34
    %p36 = scmp.ne.s32.totalorder %s25, %s28
    %p37 = scmp.eq.s32.totalorder %s20, 3
    %p38 = por %p36, %p37
    %p39 = scmp.ne.s32.totalorder %s28, %s29
    %p40 = scmp.eq.s32.totalorder %s20, 0
    %p41 = por %p39, %p40
    %p42 = scmp.ne.s32.totalorder %s28, %s29
    %p43 = scmp.eq.s32.totalorder %s21, 3
    %p44 = por %p42, %p43
    %p46 = scmp.ne.s32.totalorder %s29, %s45
    %p47 = scmp.eq.s32.totalorder %s21, 0
    %p48 = por %p46, %p47
    %s49 = ssub.s32 %s15, %s22
    %p50 = scmp.eq.s32.totalorder %s49, 0
    %s52 = sadd.s32 %s51, 1
    %s53 = scalar_select %p50, %s51, %s52
    %p56 = pneg %p50
    %p57 = scmp.eq.s32.totalorder %s15, 3
    %p58 = por %p56, %p57
    %p59 = scmp.ne.s32.totalorder %s51, %s54
    %p60 = scmp.eq.s32.totalorder %s15, 0
    %p61 = por %p59, %p60
    %p62 = scmp.ne.s32.totalorder %s51, %s54
    %p63 = scmp.eq.s32.totalorder %s20, 3
    %p64 = por %p62, %p63
    %p65 = scmp.ne.s32.totalorder %s54, %s55
    %p66 = scmp.eq.s32.totalorder %s20, 0
    %p67 = por %p65, %p66
    %p68 = scmp.ne.s32.totalorder %s54, %s55
    %p69 = scmp.eq.s32.totalorder %s21, 3
    %p70 = por %p68, %p69
    %p72 = scmp.ne.s32.totalorder %s55, %s71
    %p73 = scmp.eq.s32.totalorder %s21, 0
    %p74 = por %p72, %p73
    %s76 = sadd.s32 %s75, 1
    %p79 = scmp.eq.s32.totalorder %s15, 3
    %p80 = scmp.ne.s32.totalorder %s75, %s77
    %p81 = scmp.eq.s32.totalorder %s15, 0
    %p82 = por %p80, %p81
    %p83 = scmp.ne.s32.totalorder %s75, %s77
    %p84 = scmp.eq.s32.totalorder %s20, 3
    %p85 = por %p83, %p84
    %p86 = scmp.ne.s32.totalorder %s77, %s78
    %p87 = scmp.eq.s32.totalorder %s20, 0
    %p88 = por %p86, %p87
    %p89 = scmp.ne.s32.totalorder %s77, %s78
    %p90 = scmp.eq.s32.totalorder %s21, 3
    %p91 = por %p89, %p90
    %p93 = scmp.ne.s32.totalorder %s78, %s92
    %p94 = scmp.eq.s32.totalorder %s21, 0
    %p95 = por %p93, %p94
    %s97 = sadd.s32 %s96, 1
    %p100 = scmp.eq.s32.totalorder %s15, 3
    %p101 = scmp.ne.s32.totalorder %s96, %s98
    %p102 = scmp.eq.s32.totalorder %s15, 0
    %p103 = por %p101, %p102
    %p104 = scmp.ne.s32.totalorder %s96, %s98
    %p105 = scmp.eq.s32.totalorder %s20, 3
    %p106 = por %p104, %p105
    %p107 = scmp.ne.s32.totalorder %s98, %s99
    %p108 = scmp.eq.s32.totalorder %s20, 0
    %p109 = por %p107, %p108
    %p110 = scmp.ne.s32.totalorder %s98, %s99
    %p111 = scmp.eq.s32.totalorder %s21, 3
    %p112 = por %p110, %p111
    %p114 = scmp.ne.s32.totalorder %s99, %s113
    %p115 = scmp.eq.s32.totalorder %s21, 0
    %p116 = por %p114, %p115
    %s118 = sadd.s32 %s117, 1
    %p121 = scmp.eq.s32.totalorder %s15, 3
    %p122 = scmp.ne.s32.totalorder %s117, %s119
    %p123 = scmp.eq.s32.totalorder %s15, 0
    %p124 = por %p122, %p123
    %p125 = scmp.ne.s32.totalorder %s117, %s119
    %p126 = scmp.eq.s32.totalorder %s20, 3
    %p127 = por %p125, %p126
    %p128 = scmp.ne.s32.totalorder %s119, %s120
    %p129 = scmp.eq.s32.totalorder %s20, 0
    %p130 = por %p128, %p129
    %p131 = scmp.ne.s32.totalorder %s119, %s120
    %p132 = scmp.eq.s32.totalorder %s21, 3
    %p133 = por %p131, %p132
    %p135 = scmp.ne.s32.totalorder %s120, %s134
    %p136 = scmp.eq.s32.totalorder %s21, 0
    %p137 = por %p135, %p136
    %s139 = sadd.s32 %s138, 1
    %p142 = scmp.eq.s32.totalorder %s15, 3
    %p143 = scmp.ne.s32.totalorder %s138, %s140
    %p144 = scmp.eq.s32.totalorder %s15, 0
    %p145 = por %p143, %p144
    %p146 = scmp.ne.s32.totalorder %s138, %s140
    %p147 = scmp.eq.s32.totalorder %s20, 3
    %p148 = por %p146, %p147
    %p149 = scmp.ne.s32.totalorder %s140, %s141
    %p150 = scmp.eq.s32.totalorder %s20, 0
    %p151 = por %p149, %p150
    %p152 = scmp.ne.s32.totalorder %s140, %s141
    %p153 = scmp.eq.s32.totalorder %s21, 3
    %p154 = por %p152, %p153
    %p156 = scmp.ne.s32.totalorder %s141, %s155
    %p157 = scmp.eq.s32.totalorder %s21, 0
    %p158 = por %p156, %p157
    %s160 = sadd.s32 %s159, 1
    %p163 = scmp.eq.s32.totalorder %s15, 3
    %p164 = scmp.ne.s32.totalorder %s159, %s161
    %p165 = scmp.eq.s32.totalorder %s15, 0
    %p166 = por %p164, %p165
    %p167 = scmp.ne.s32.totalorder %s159, %s161
    %p168 = scmp.eq.s32.totalorder %s20, 3
    %p169 = por %p167, %p168
    %p170 = scmp.ne.s32.totalorder %s161, %s162
    %p171 = scmp.eq.s32.totalorder %s20, 0
    %p172 = por %p170, %p171
    %p173 = scmp.ne.s32.totalorder %s161, %s162
    %p174 = scmp.eq.s32.totalorder %s21, 3
    %p175 = por %p173, %p174
    %p177 = scmp.ne.s32.totalorder %s162, %s176
    %p178 = scmp.eq.s32.totalorder %s21, 0
    %p179 = por %p177, %p178
    %s181 = sadd.s32 %s180, 1
    %p184 = scmp.eq.s32.totalorder %s15, 3
    %p185 = scmp.ne.s32.totalorder %s180, %s182
    %p186 = scmp.eq.s32.totalorder %s15, 0
    %p187 = por %p185, %p186
    %p188 = scmp.ne.s32.totalorder %s180, %s182
    %p189 = scmp.eq.s32.totalorder %s20, 3
    %p190 = por %p188, %p189
    %p191 = scmp.ne.s32.totalorder %s182, %s183
    %p192 = scmp.eq.s32.totalorder %s20, 0
    %p193 = por %p191, %p192
    %p194 = scmp.ne.s32.totalorder %s182, %s183
    %p195 = scmp.eq.s32.totalorder %s21, 3
    %p196 = por %p194, %p195
    %p198 = scmp.ne.s32.totalorder %s183, %s197
    %p199 = scmp.eq.s32.totalorder %s21, 0
    %p200 = por %p198, %p199
    %s202 = sadd.s32 %s201, 1
    %p205 = scmp.eq.s32.totalorder %s15, 3
    %p206 = scmp.ne.s32.totalorder %s201, %s203
    %p207 = scmp.eq.s32.totalorder %s15, 0
    %p208 = por %p206, %p207
    %p209 = scmp.ne.s32.totalorder %s201, %s203
    %p210 = scmp.eq.s32.totalorder %s20, 3
    %p211 = por %p209, %p210
    %p212 = scmp.ne.s32.totalorder %s203, %s204
    %p213 = scmp.eq.s32.totalorder %s20, 0
    %p214 = por %p212, %p213
    %p215 = scmp.ne.s32.totalorder %s203, %s204
    %p216 = scmp.eq.s32.totalorder %s21, 3
    %p217 = por %p215, %p216
    %p219 = scmp.ne.s32.totalorder %s204, %s218
    %p220 = scmp.eq.s32.totalorder %s21, 0
    %p221 = por %p219, %p220
    %s222 = ssub.s32 %s15, %s22
    %p223 = scmp.eq.s32.totalorder %s222, 0
    %s225 = sadd.s32 %s224, 1
    %s226 = scalar_select %p223, %s224, %s225
    %p229 = pneg %p223
    %p230 = scmp.eq.s32.totalorder %s15, 3
    %p231 = por %p229, %p230
    %p232 = scmp.ne.s32.totalorder %s224, %s227
    %p233 = scmp.eq.s32.totalorder %s15, 0
    %p234 = por %p232, %p233
    %p235 = scmp.ne.s32.totalorder %s224, %s227
    %p236 = scmp.eq.s32.totalorder %s20, 3
    %p237 = por %p235, %p236
    %p238 = scmp.ne.s32.totalorder %s227, %s228
    %p239 = scmp.eq.s32.totalorder %s20, 0
    %p240 = por %p238, %p239
    %p241 = scmp.ne.s32.totalorder %s227, %s228
    %p242 = scmp.eq.s32.totalorder %s21, 3
    %p243 = por %p241, %p242
    %p245 = scmp.ne.s32.totalorder %s228, %s244
    %p246 = scmp.eq.s32.totalorder %s21, 0
    %p247 = por %p245, %p246
    %p248 = scmp.le.s32.totalorder 1, %s15
    %p249 = scmp.lt.s32.totalorder %s15, 5
    %p250 = pnand %p248, %p249
    %p251 = pneg %p250
    // Predicated region
    $region9: #{tpu_custom_call.1} parent=5 // pred_check
      _
    $region10: #{tpu_custom_call.1} parent=5 // pred_check_branch
      %253 = sbr.rel (%p250) target = $region12
    $region11: #{tpu_custom_call.1} parent=5 // pred_region
      %s254 = ssub.s32 %s15, 1
      // Predicated region
      $region13: #{tpu_custom_call.1} parent=11 // pred_check
        %p255 = pneg %p88
      $region14: #{tpu_custom_call.1} parent=11 // pred_check_branch
        %257 = sbr.rel (%p255) target = $region16
      $region15: #{tpu_custom_call.1} parent=11 // pred_region
        _
      $region16: #{tpu_custom_call.1} parent=11 // pred_fallthru
        _
      // Predicated region
      $region17: #{tpu_custom_call.1} parent=11 // pred_check
        %p258 = pneg %p109
      $region18: #{tpu_custom_call.1} parent=11 // pred_check_branch
        %260 = sbr.rel (%p258) target = $region20
      $region19: #{tpu_custom_call.1} parent=11 // pred_region
        _
      $region20: #{tpu_custom_call.1} parent=11 // pred_fallthru
        _
      // Predicated region
      $region21: #{tpu_custom_call.1} parent=11 // pred_check
        %p261 = pneg %p130
      $region22: #{tpu_custom_call.1} parent=11 // pred_check_branch
        %263 = sbr.rel (%p261) target = $region24
      $region23: #{tpu_custom_call.1} parent=11 // pred_region
        _
      $region24: #{tpu_custom_call.1} parent=11 // pred_fallthru
        _
      // Predicated region
      $region25: #{tpu_custom_call.1} parent=11 // pred_check
        %p264 = pneg %p151
      $region26: #{tpu_custom_call.1} parent=11 // pred_check_branch
        %266 = sbr.rel (%p264) target = $region28
      $region27: #{tpu_custom_call.1} parent=11 // pred_region
        _
      $region28: #{tpu_custom_call.1} parent=11 // pred_fallthru
        _
      // Predicated region
      $region29: #{tpu_custom_call.1} parent=11 // pred_check
        %p267 = pneg %p172
      $region30: #{tpu_custom_call.1} parent=11 // pred_check_branch
        %269 = sbr.rel (%p267) target = $region32
      $region31: #{tpu_custom_call.1} parent=11 // pred_region
        _
      $region32: #{tpu_custom_call.1} parent=11 // pred_fallthru
        _
      // Predicated region
      $region33: #{tpu_custom_call.1} parent=11 // pred_check
        %p270 = pneg %p193
      $region34: #{tpu_custom_call.1} parent=11 // pred_check_branch
        %272 = sbr.rel (%p270) target = $region36
      $region35: #{tpu_custom_call.1} parent=11 // pred_region
        _
      $region36: #{tpu_custom_call.1} parent=11 // pred_fallthru
        _
      // Predicated region
      $region37: #{tpu_custom_call.1} parent=11 // pred_check
        %p273 = pneg %p214
      $region38: #{tpu_custom_call.1} parent=11 // pred_check_branch
        %275 = sbr.rel (%p273) target = $region40
      $region39: #{tpu_custom_call.1} parent=11 // pred_region
        _
      $region40: #{tpu_custom_call.1} parent=11 // pred_fallthru
        _
    $region12: #{tpu_custom_call.1} parent=5 // pred_fallthru
      _
    %p276 = scmp.lt.s32.totalorder %s15, 4
    // Predicated region
    $region41: #{tpu_custom_call.1} parent=5 // pred_check
      %p277 = pneg %p276
    $region42: #{tpu_custom_call.1} parent=5 // pred_check_branch
      %279 = sbr.rel (%p277) target = $region44
    $region43: #{tpu_custom_call.1} parent=5 // pred_region
      // Predicated region
      $region45: #{tpu_custom_call.1} parent=43 // pred_check
        %p280 = pneg %p35
      $region46: #{tpu_custom_call.1} parent=43 // pred_check_branch
        %282 = sbr.rel (%p280) target = $region48
      $region47: #{tpu_custom_call.1} parent=43 // pred_region
        %s283 = smul.u32 64, %s15
        %p284 = scmp.lt.s32.totalorder %s283, 255
        %s285 = scalar_select %p284, %s283, 255
        %s286 = smul.addr %s285, 8
        %s287 = scalar_lea.vmem %s0, %s286
        %s288 = smul.u32 64, %s15
      $region48: #{tpu_custom_call.1} parent=43 // pred_fallthru
        _
      // Predicated region
      $region49: #{tpu_custom_call.1} parent=43 // pred_check
        %p289 = pneg %p61
      $region50: #{tpu_custom_call.1} parent=43 // pred_check_branch
        %291 = sbr.rel (%p289) target = $region52
      $region51: #{tpu_custom_call.1} parent=43 // pred_region
        %s292 = smul.u32 64, %s15
        %p293 = scmp.lt.s32.totalorder %s292, 255
        %s294 = scalar_select %p293, %s292, 255
        %s295 = smul.addr %s294, 4
        %s296 = scalar_lea.vmem %s1, %s295
        %s297 = smul.u32 64, %s15
      $region52: #{tpu_custom_call.1} parent=43 // pred_fallthru
        _
    $region44: #{tpu_custom_call.1} parent=5 // pred_fallthru
      _
    %p298 = scmp.le.s32.totalorder 1, %s15
    %p299 = scmp.lt.s32.totalorder %s15, 5
    %p300 = pnand %p298, %p299
    %p301 = pneg %p300
    // Predicated region
    $region53: #{tpu_custom_call.1} parent=5 // pred_check
      _
    $region54: #{tpu_custom_call.1} parent=5 // pred_check_branch
      %303 = sbr.rel (%p300) target = $region56
    $region55: #{tpu_custom_call.1} parent=5 // pred_region
      %s304 = ssub.s32 %s15, 1
      %s305 = smul.u32 64, %s20
      %p306 = scmp.lt.s32.totalorder %s305, 255
      %s307 = scalar_select %p306, %s305, 255
      %s308 = smul.addr %s307, 8
      %s309 = scalar_lea.vmem %s0, %s308
      %p310 = pneg %p41
      %p311 = pneg %p38
      %s312 = smul.u32 64, %s20
      %p313 = scmp.lt.s32.totalorder %s312, 255
      %s314 = scalar_select %p313, %s312, 255
      %s315 = smul.addr %s314, 4
      %s316 = scalar_lea.vmem %s1, %s315
      %p317 = pneg %p67
      %p318 = pneg %p64
      %p319 = pneg %p88
      %p320 = pneg %p85
      %p321 = pneg %p109
      %p322 = pneg %p106
      %p323 = pneg %p130
      %p324 = pneg %p127
      %p325 = pneg %p151
      %p326 = pneg %p148
      %p327 = pneg %p172
      %p328 = pneg %p169
      %p329 = pneg %p193
      %p330 = pneg %p190
      %p331 = pneg %p214
      %p332 = pneg %p211
      %p333 = pneg %p240
      %p334 = pneg %p237
      %s335 = smul.u32 64, %s20
      %p336 = scmp.lt.s32.totalorder %s335, 255
      %s337 = scalar_select %p336, %s335, 255
      %s338 = smul.addr %s337, 8
      %s339 = scalar_lea.vmem %s9, %s338
      %s340 = smul.u32 64, %s20
      %p341 = scmp.lt.s32.totalorder %s340, 255
      %s342 = scalar_select %p341, %s340, 255
      %s343 = smul.addr %s342, 8
      %s344 = scalar_lea.vmem %s0, %s343
      %s345 = smul.u32 64, %s20
      %s346 = smul.u32 64, %s20
      %p347 = scmp.lt.s32.totalorder %s346, 255
      %s348 = scalar_select %p347, %s346, 255
      %s349 = smul.addr %s348, 4
      %s350 = scalar_lea.vmem %s1, %s349
      %s351 = smul.u32 64, %s20
      %s352 = smul.u32 64, %s20
      %p353 = scmp.lt.s32.totalorder %s352, 255
      %s354 = scalar_select %p353, %s352, 255
      %s355 = smul.addr %s354, 8
      %s356 = scalar_lea.vmem %s9, %s355
      %s357 = smul.u32 64, %s20
      %v359 = vld [vmem:[%s344] sm:$0xff]
      %v360 = vld [vmem:[%s344 + $0x8] sm:$0xff]
      %v361 = vld [vmem:[%s344 + $0x10] sm:$0xff]
      %v362 = vld [vmem:[%s344 + $0x18] sm:$0xff]
      %v363 = vld [vmem:[%s344 + $0x20] sm:$0xff]
      %v364 = vld [vmem:[%s344 + $0x28] sm:$0xff]
      %v365 = vld [vmem:[%s344 + $0x30] sm:$0xff]
      %v366 = vld [vmem:[%s344 + $0x38] sm:$0xff]
      %v367 = vld [vmem:[%s344 + $0x40] sm:$0xff]
      %v368 = vld [vmem:[%s344 + $0x48] sm:$0xff]
      %v369 = vld [vmem:[%s344 + $0x50] sm:$0xff]
      %v370 = vld [vmem:[%s344 + $0x58] sm:$0xff]
      %v371 = vld [vmem:[%s344 + $0x60] sm:$0xff]
      %v372 = vld [vmem:[%s344 + $0x68] sm:$0xff]
      %v373 = vld [vmem:[%s344 + $0x70] sm:$0xff]
      %v374 = vld [vmem:[%s344 + $0x78] sm:$0xff]
      %v375 = vld [vmem:[%s344 + $0x80] sm:$0xff]
      %v376 = vld [vmem:[%s344 + $0x88] sm:$0xff]
      %v377 = vld [vmem:[%s344 + $0x90] sm:$0xff]
      %v378 = vld [vmem:[%s344 + $0x98] sm:$0xff]
      %v379 = vld [vmem:[%s344 + $0xa0] sm:$0xff]
      %v380 = vld [vmem:[%s344 + $0xa8] sm:$0xff]
      %v381 = vld [vmem:[%s344 + $0xb0] sm:$0xff]
      %v382 = vld [vmem:[%s344 + $0xb8] sm:$0xff]
      %v383 = vld [vmem:[%s344 + $0xc0] sm:$0xff]
      %v384 = vld [vmem:[%s344 + $0xc8] sm:$0xff]
      %v385 = vld [vmem:[%s344 + $0xd0] sm:$0xff]
      %v386 = vld [vmem:[%s344 + $0xd8] sm:$0xff]
      %v387 = vld [vmem:[%s344 + $0xe0] sm:$0xff]
      %v388 = vld [vmem:[%s344 + $0xe8] sm:$0xff]
      %v389 = vld [vmem:[%s344 + $0xf0] sm:$0xff]
      %v390 = vld [vmem:[%s344 + $0xf8] sm:$0xff]
      %v391 = vld [vmem:[%s344 + $0x100] sm:$0xff]
      %v392 = vld [vmem:[%s344 + $0x108] sm:$0xff]
      %v393 = vld [vmem:[%s344 + $0x110] sm:$0xff]
      %v394 = vld [vmem:[%s344 + $0x118] sm:$0xff]
      %v395 = vld [vmem:[%s344 + $0x120] sm:$0xff]
      %v396 = vld [vmem:[%s344 + $0x128] sm:$0xff]
      %v397 = vld [vmem:[%s344 + $0x130] sm:$0xff]
      %v398 = vld [vmem:[%s344 + $0x138] sm:$0xff]
      %v399 = vld [vmem:[%s344 + $0x140] sm:$0xff]
      %v400 = vld [vmem:[%s344 + $0x148] sm:$0xff]
      %v401 = vld [vmem:[%s344 + $0x150] sm:$0xff]
      %v402 = vld [vmem:[%s344 + $0x158] sm:$0xff]
      %v403 = vld [vmem:[%s344 + $0x160] sm:$0xff]
      %v404 = vld [vmem:[%s344 + $0x168] sm:$0xff]
      %v405 = vld [vmem:[%s344 + $0x170] sm:$0xff]
      %v406 = vld [vmem:[%s344 + $0x178] sm:$0xff]
      %v407 = vld [vmem:[%s344 + $0x180] sm:$0xff]
      %v408 = vld [vmem:[%s344 + $0x188] sm:$0xff]
      %v409 = vld [vmem:[%s344 + $0x190] sm:$0xff]
      %v410 = vld [vmem:[%s344 + $0x198] sm:$0xff]
      %v411 = vld [vmem:[%s344 + $0x1a0] sm:$0xff]
      %v412 = vld [vmem:[%s344 + $0x1a8] sm:$0xff]
      %v413 = vld [vmem:[%s344 + $0x1b0] sm:$0xff]
      %v414 = vld [vmem:[%s344 + $0x1b8] sm:$0xff]
      %v415 = vld [vmem:[%s344 + $0x1c0] sm:$0xff]
      %v416 = vld [vmem:[%s344 + $0x1c8] sm:$0xff]
      %v417 = vld [vmem:[%s344 + $0x1d0] sm:$0xff]
      %v418 = vld [vmem:[%s344 + $0x1d8] sm:$0xff]
      %v419 = vld [vmem:[%s344 + $0x1e0] sm:$0xff]
      %v420 = vld [vmem:[%s344 + $0x1e8] sm:$0xff]
      %v421 = vld [vmem:[%s344 + $0x1f0] sm:$0xff]
      %v422 = vld [vmem:[%s344 + $0x1f8] sm:$0xff]
      %v423 = vand.u32 2147483647, %v359
      %vm424 = vcmp.le.f32.partialorder %v423, 0.7853982
      %vm425 = vcmp.lt.s32.totalorder %v359, 0
      %v426 = vand.u32 %v359, 2139095040
      %v427 = vshrl.u32 %v426, 23
      %v428 = vsub.s32 %v427, 127
      %v429 = vand.u32 2147483647, %v359
      %v430 = vand.u32 %v429, 8388607
      %v431 = vor.u32 %v430, 8388608
      %v432 = vsub.s32 0, %v431
      %v433 = vadd.s32 %v428, 1
      %vm434 = vcmp.gt.s32.totalorder %v433, 0
      %v435 = vsel %vm434, %v433, 0
      %v436 = vshrl.u32 %v435, 5
      %v437 = vand.u32 %v435, 31
      %v438 = vsub.s32 32, %v437
      %v439 = vshrl.u32 683565275, %v438
      %v440 = vshll.u32 683565275, %v437
      %v441 = vshrl.u32 2475754826, %v438
      %v442 = vor.u32 %v440, %v441
      %v443 = vshll.u32 2475754826, %v437
      %v444 = vshrl.u32 2131351028, %v438
      %v445 = vor.u32 %v443, %v444
      %v446 = vshll.u32 2131351028, %v437
      %v447 = vshrl.u32 2102212464, %v438
      %v448 = vor.u32 %v446, %v447
      %v449 = vshll.u32 2102212464, %v437
      %v450 = vshrl.u32 920167782, %v438
      %v451 = vor.u32 %v449, %v450
      %v452 = vshll.u32 920167782, %v437
      %v453 = vshrl.u32 1326507024, %v438
      %v454 = vor.u32 %v452, %v453
      %vm455 = vcmp.lt.s32.totalorder %v436, 1
      %vm456 = vcmp.lt.s32.totalorder %v436, 2
      %vm457 = vcmp.lt.s32.totalorder %v436, 3
      %vm458 = vcmp.lt.s32.totalorder %v436, 4
      %v459 = vsel %vm455, %v439, %v442
      %v460 = vsel %vm458, %v448, 2102212464
      %v461 = vsel %vm457, %v445, %v460
      %v462 = vsel %vm456, %v459, %v461
      %v463 = vsel %vm455, %v442, %v445
      %v464 = vsel %vm458, %v451, 920167782
      %v465 = vsel %vm457, %v448, %v464
      %v466 = vsel %vm456, %v463, %v465
      %v467 = vsel %vm455, %v445, %v448
      %v468 = vsel %vm458, %v454, 1326507024
      %v469 = vsel %vm457, %v451, %v468
      %v470 = vsel %vm456, %v467, %v469
      %v471 = vshll.u32 %v431, 8
      %v472 = vmul.u32.u64.compose %v471, %v470
      %v473 = vextract.low.u32 %v472
      %v474 = vextract.high.u32 %v472
      %v475 = vmul.u32.u64.compose %v471, %v466
      %v476 = vextract.low.u32 %v475
      %v477 = vextract.high.u32 %v475
      %v478 = vmul.u32 %v471, %v462
      %v479 = vadd.s32 %v474, %v476
      %vm480 = vc.u32 %v474, %v476
      %v481 = vadd.s32 %v477, 1
      %v482 = vsel %vm480, %v481, %v477
      %v483 = vadd.s32 %v478, %v482
      %v484 = vadd.s32 %v483, 536870912
      %v485 = vshrl.u32 %v484, 30
      %v486 = vshll.u32 %v485, 30
      %v487 = vsub.s32 %v483, %v486
      %vm488 = vcmp.lt.s32.totalorder %v487, 0
      %v489 = vsub.s32 0, %v487
      %v490 = vsel %vm488, %v489, %v487
      %v491 = vclz %v490
      %v492 = vsub.s32 %v491, 2
      %vm493 = vcmp.gt.s32.totalorder 0, %v492
      %v494 = vsel %vm493, 0, %v492
      %v495 = vsub.s32 32, %v494
      %v496 = vshll.u32 %v487, %v494
      %v497 = vshrl.u32 %v479, %v495
      %v498 = vor.u32 %v496, %v497
      %v499 = vsub.s32 4294967266, %v494
      %v500 = vadd.s32 %v499, 127
      %v501 = vshll.u32 %v500, 23
      %v502 = vor.u32 4788187, %v501
      %v503 = vand.u32 2147483647, %v502
      %v505 = vcvt.s32.f32 %v498
      %v506 = vmul.f32 %v505, %v503
      %v507 = vxor.u32 %v506, 2147483648
      %v508 = vsel %vm425, %v507, %v506
      %v509 = vsub.s32 4, %v485
      %v510 = vsel %vm425, %v509, %v485
      %v511 = vsel %vm424, %v359, %v508
      %v512 = vsel %vm424, 0, %v510
      %v513 = vcosq.f32.pop %v511
      %v514 = vsinq.f32.pop %v511
      %vm515 = vweird.f32 %v359
      %v516 = vadd.s32 %v512, 3
      %v517 = vand.u32 %v516, 3
      %vm518 = vcmp.lt.s32.totalorder %v517, 2
      %vm519 = vcmp.eq.s32.totalorder %v517, 0
      %v520 = vxor.u32 %v514, 2147483648
      %v521 = vsel %vm519, %v513, %v520
      %vm522 = vcmp.eq.s32.totalorder %v517, 2
      %v523 = vxor.u32 %v513, 2147483648
      %v524 = vsel %vm522, %v523, %v514
      %v525 = vsel %vm518, %v521, %v524
      %v526 = vsel %vm515, nan, %v525
      %v527 = vand.u32 2147483647, %v360
      %vm528 = vcmp.le.f32.partialorder %v527, 0.7853982
      %vm529 = vcmp.lt.s32.totalorder %v360, 0
      %v530 = vand.u32 %v360, 2139095040
      %v531 = vshrl.u32 %v530, 23
      %v532 = vsub.s32 %v531, 127
      %v533 = vand.u32 2147483647, %v360
      %v534 = vand.u32 %v533, 8388607
      %v535 = vor.u32 %v534, 8388608
      %v536 = vsub.s32 0, %v535
      %v537 = vadd.s32 %v532, 1
      %vm538 = vcmp.gt.s32.totalorder %v537, 0
      %v539 = vsel %vm538, %v537, 0
      %v540 = vshrl.u32 %v539, 5
      %v541 = vand.u32 %v539, 31
      %v542 = vsub.s32 32, %v541
      %v543 = vshrl.u32 683565275, %v542
      %v544 = vshll.u32 683565275, %v541
      %v545 = vshrl.u32 2475754826, %v542
      %v546 = vor.u32 %v544, %v545
      %v547 = vshll.u32 2475754826, %v541
      %v548 = vshrl.u32 2131351028, %v542
      %v549 = vor.u32 %v547, %v548
      %v550 = vshll.u32 2131351028, %v541
      %v551 = vshrl.u32 2102212464, %v542
      %v552 = vor.u32 %v550, %v551
      %v553 = vshll.u32 2102212464, %v541
      %v554 = vshrl.u32 920167782, %v542
      %v555 = vor.u32 %v553, %v554
      %v556 = vshll.u32 920167782, %v541
      %v557 = vshrl.u32 1326507024, %v542
      %v558 = vor.u32 %v556, %v557
      %vm559 = vcmp.lt.s32.totalorder %v540, 1
      %vm560 = vcmp.lt.s32.totalorder %v540, 2
      %vm561 = vcmp.lt.s32.totalorder %v540, 3
      %vm562 = vcmp.lt.s32.totalorder %v540, 4
      %v563 = vsel %vm559, %v543, %v546
      %v564 = vsel %vm562, %v552, 2102212464
      %v565 = vsel %vm561, %v549, %v564
      %v566 = vsel %vm560, %v563, %v565
      %v567 = vsel %vm559, %v546, %v549
      %v568 = vsel %vm562, %v555, 920167782
      %v569 = vsel %vm561, %v552, %v568
      %v570 = vsel %vm560, %v567, %v569
      %v571 = vsel %vm559, %v549, %v552
      %v572 = vsel %vm562, %v558, 1326507024
      %v573 = vsel %vm561, %v555, %v572
      %v574 = vsel %vm560, %v571, %v573
      %v575 = vshll.u32 %v535, 8
      %v576 = vmul.u32.u64.compose %v575, %v574
      %v577 = vextract.low.u32 %v576
      %v578 = vextract.high.u32 %v576
      %v579 = vmul.u32.u64.compose %v575, %v570
      %v580 = vextract.low.u32 %v579
      %v581 = vextract.high.u32 %v579
      %v582 = vmul.u32 %v575, %v566
      %v583 = vadd.s32 %v578, %v580
      %vm584 = vc.u32 %v578, %v580
      %v585 = vadd.s32 %v581, 1
      %v586 = vsel %vm584, %v585, %v581
      %v587 = vadd.s32 %v582, %v586
      %v588 = vadd.s32 %v587, 536870912
      %v589 = vshrl.u32 %v588, 30
      %v590 = vshll.u32 %v589, 30
      %v591 = vsub.s32 %v587, %v590
      %vm592 = vcmp.lt.s32.totalorder %v591, 0
      %v593 = vsub.s32 0, %v591
      %v594 = vsel %vm592, %v593, %v591
      %v595 = vclz %v594
      %v596 = vsub.s32 %v595, 2
      %vm597 = vcmp.gt.s32.totalorder 0, %v596
      %v598 = vsel %vm597, 0, %v596
      %v599 = vsub.s32 32, %v598
      %v600 = vshll.u32 %v591, %v598
      %v601 = vshrl.u32 %v583, %v599
      %v602 = vor.u32 %v600, %v601
      %v603 = vsub.s32 4294967266, %v598
      %v604 = vadd.s32 %v603, 127
      %v605 = vshll.u32 %v604, 23
      %v606 = vor.u32 4788187, %v605
      %v607 = vand.u32 2147483647, %v606
      %v609 = vcvt.s32.f32 %v602
      %v610 = vmul.f32 %v609, %v607
      %v611 = vxor.u32 %v610, 2147483648
      %v612 = vsel %vm529, %v611, %v610
      %v613 = vsub.s32 4, %v589
      %v614 = vsel %vm529, %v613, %v589
      %v615 = vsel %vm528, %v360, %v612
      %v616 = vsel %vm528, 0, %v614
      %v617 = vcosq.f32.pop %v615
      %v618 = vsinq.f32.pop %v615
      %vm619 = vweird.f32 %v360
      %v620 = vadd.s32 %v616, 3
      %v621 = vand.u32 %v620, 3
      %vm622 = vcmp.lt.s32.totalorder %v621, 2
      %vm623 = vcmp.eq.s32.totalorder %v621, 0
      %v624 = vxor.u32 %v618, 2147483648
      %v625 = vsel %vm623, %v617, %v624
      %vm626 = vcmp.eq.s32.totalorder %v621, 2
      %v627 = vxor.u32 %v617, 2147483648
      %v628 = vsel %vm626, %v627, %v618
      %v629 = vsel %vm622, %v625, %v628
      %v630 = vsel %vm619, nan, %v629
      %v631 = vand.u32 2147483647, %v361
      %vm632 = vcmp.le.f32.partialorder %v631, 0.7853982
      %vm633 = vcmp.lt.s32.totalorder %v361, 0
      %v634 = vand.u32 %v361, 2139095040
      %v635 = vshrl.u32 %v634, 23
      %v636 = vsub.s32 %v635, 127
      %v637 = vand.u32 2147483647, %v361
      %v638 = vand.u32 %v637, 8388607
      %v639 = vor.u32 %v638, 8388608
      %v640 = vsub.s32 0, %v639
      %v641 = vadd.s32 %v636, 1
      %vm642 = vcmp.gt.s32.totalorder %v641, 0
      %v643 = vsel %vm642, %v641, 0
      %v644 = vshrl.u32 %v643, 5
      %v645 = vand.u32 %v643, 31
      %v646 = vsub.s32 32, %v645
      %v647 = vshrl.u32 683565275, %v646
      %v648 = vshll.u32 683565275, %v645
      %v649 = vshrl.u32 2475754826, %v646
      %v650 = vor.u32 %v648, %v649
      %v651 = vshll.u32 2475754826, %v645
      %v652 = vshrl.u32 2131351028, %v646
      %v653 = vor.u32 %v651, %v652
      %v654 = vshll.u32 2131351028, %v645
      %v655 = vshrl.u32 2102212464, %v646
      %v656 = vor.u32 %v654, %v655
      %v657 = vshll.u32 2102212464, %v645
      %v658 = vshrl.u32 920167782, %v646
      %v659 = vor.u32 %v657, %v658
      %v660 = vshll.u32 920167782, %v645
      %v661 = vshrl.u32 1326507024, %v646
      %v662 = vor.u32 %v660, %v661
      %vm663 = vcmp.lt.s32.totalorder %v644, 1
      %vm664 = vcmp.lt.s32.totalorder %v644, 2
      %vm665 = vcmp.lt.s32.totalorder %v644, 3
      %vm666 = vcmp.lt.s32.totalorder %v644, 4
      %v667 = vsel %vm663, %v647, %v650
      %v668 = vsel %vm666, %v656, 2102212464
      %v669 = vsel %vm665, %v653, %v668
      %v670 = vsel %vm664, %v667, %v669
      %v671 = vsel %vm663, %v650, %v653
      %v672 = vsel %vm666, %v659, 920167782
      %v673 = vsel %vm665, %v656, %v672
      %v674 = vsel %vm664, %v671, %v673
      %v675 = vsel %vm663, %v653, %v656
      %v676 = vsel %vm666, %v662, 1326507024
      %v677 = vsel %vm665, %v659, %v676
      %v678 = vsel %vm664, %v675, %v677
      %v679 = vshll.u32 %v639, 8
      %v680 = vmul.u32.u64.compose %v679, %v678
      %v681 = vextract.low.u32 %v680
      %v682 = vextract.high.u32 %v680
      %v683 = vmul.u32.u64.compose %v679, %v674
      %v684 = vextract.low.u32 %v683
      %v685 = vextract.high.u32 %v683
      %v686 = vmul.u32 %v679, %v670
      %v687 = vadd.s32 %v682, %v684
      %vm688 = vc.u32 %v682, %v684
      %v689 = vadd.s32 %v685, 1
      %v690 = vsel %vm688, %v689, %v685
      %v691 = vadd.s32 %v686, %v690
      %v692 = vadd.s32 %v691, 536870912
      %v693 = vshrl.u32 %v692, 30
      %v694 = vshll.u32 %v693, 30
      %v695 = vsub.s32 %v691, %v694
      %vm696 = vcmp.lt.s32.totalorder %v695, 0
      %v697 = vsub.s32 0, %v695
      %v698 = vsel %vm696, %v697, %v695
      %v699 = vclz %v698
      %v700 = vsub.s32 %v699, 2
      %vm701 = vcmp.gt.s32.totalorder 0, %v700
      %v702 = vsel %vm701, 0, %v700
      %v703 = vsub.s32 32, %v702
      %v704 = vshll.u32 %v695, %v702
      %v705 = vshrl.u32 %v687, %v703
      %v706 = vor.u32 %v704, %v705
      %v707 = vsub.s32 4294967266, %v702
      %v708 = vadd.s32 %v707, 127
      %v709 = vshll.u32 %v708, 23
      %v710 = vor.u32 4788187, %v709
      %v711 = vand.u32 2147483647, %v710
      %v713 = vcvt.s32.f32 %v706
      %v714 = vmul.f32 %v713, %v711
      %v715 = vxor.u32 %v714, 2147483648
      %v716 = vsel %vm633, %v715, %v714
      %v717 = vsub.s32 4, %v693
      %v718 = vsel %vm633, %v717, %v693
      %v719 = vsel %vm632, %v361, %v716
      %v720 = vsel %vm632, 0, %v718
      %v721 = vcosq.f32.pop %v719
      %v722 = vsinq.f32.pop %v719
      %vm723 = vweird.f32 %v361
      %v724 = vadd.s32 %v720, 3
      %v725 = vand.u32 %v724, 3
      %vm726 = vcmp.lt.s32.totalorder %v725, 2
      %vm727 = vcmp.eq.s32.totalorder %v725, 0
      %v728 = vxor.u32 %v722, 2147483648
      %v729 = vsel %vm727, %v721, %v728
      %vm730 = vcmp.eq.s32.totalorder %v725, 2
      %v731 = vxor.u32 %v721, 2147483648
      %v732 = vsel %vm730, %v731, %v722
      %v733 = vsel %vm726, %v729, %v732
      %v734 = vsel %vm723, nan, %v733
      %v735 = vand.u32 2147483647, %v362
      %vm736 = vcmp.le.f32.partialorder %v735, 0.7853982
      %vm737 = vcmp.lt.s32.totalorder %v362, 0
      %v738 = vand.u32 %v362, 2139095040
      %v739 = vshrl.u32 %v738, 23
      %v740 = vsub.s32 %v739, 127
      %v741 = vand.u32 2147483647, %v362
      %v742 = vand.u32 %v741, 8388607
      %v743 = vor.u32 %v742, 8388608
      %v744 = vsub.s32 0, %v743
      %v745 = vadd.s32 %v740, 1
      %vm746 = vcmp.gt.s32.totalorder %v745, 0
      %v747 = vsel %vm746, %v745, 0
      %v748 = vshrl.u32 %v747, 5
      %v749 = vand.u32 %v747, 31
      %v750 = vsub.s32 32, %v749
      %v751 = vshrl.u32 683565275, %v750
      %v752 = vshll.u32 683565275, %v749
      %v753 = vshrl.u32 2475754826, %v750
      %v754 = vor.u32 %v752, %v753
      %v755 = vshll.u32 2475754826, %v749
      %v756 = vshrl.u32 2131351028, %v750
      %v757 = vor.u32 %v755, %v756
      %v758 = vshll.u32 2131351028, %v749
      %v759 = vshrl.u32 2102212464, %v750
      %v760 = vor.u32 %v758, %v759
      %v761 = vshll.u32 2102212464, %v749
      %v762 = vshrl.u32 920167782, %v750
      %v763 = vor.u32 %v761, %v762
      %v764 = vshll.u32 920167782, %v749
      %v765 = vshrl.u32 1326507024, %v750
      %v766 = vor.u32 %v764, %v765
      %vm767 = vcmp.lt.s32.totalorder %v748, 1
      %vm768 = vcmp.lt.s32.totalorder %v748, 2
      %vm769 = vcmp.lt.s32.totalorder %v748, 3
      %vm770 = vcmp.lt.s32.totalorder %v748, 4
      %v771 = vsel %vm767, %v751, %v754
      %v772 = vsel %vm770, %v760, 2102212464
      %v773 = vsel %vm769, %v757, %v772
      %v774 = vsel %vm768, %v771, %v773
      %v775 = vsel %vm767, %v754, %v757
      %v776 = vsel %vm770, %v763, 920167782
      %v777 = vsel %vm769, %v760, %v776
      %v778 = vsel %vm768, %v775, %v777
      %v779 = vsel %vm767, %v757, %v760
      %v780 = vsel %vm770, %v766, 1326507024
      %v781 = vsel %vm769, %v763, %v780
      %v782 = vsel %vm768, %v779, %v781
      %v783 = vshll.u32 %v743, 8
      %v784 = vmul.u32.u64.compose %v783, %v782
      %v785 = vextract.low.u32 %v784
      %v786 = vextract.high.u32 %v784
      %v787 = vmul.u32.u64.compose %v783, %v778
      %v788 = vextract.low.u32 %v787
      %v789 = vextract.high.u32 %v787
      %v790 = vmul.u32 %v783, %v774
      %v791 = vadd.s32 %v786, %v788
      %vm792 = vc.u32 %v786, %v788
      %v793 = vadd.s32 %v789, 1
      %v794 = vsel %vm792, %v793, %v789
      %v795 = vadd.s32 %v790, %v794
      %v796 = vadd.s32 %v795, 536870912
      %v797 = vshrl.u32 %v796, 30
      %v798 = vshll.u32 %v797, 30
      %v799 = vsub.s32 %v795, %v798
      %vm800 = vcmp.lt.s32.totalorder %v799, 0
      %v801 = vsub.s32 0, %v799
      %v802 = vsel %vm800, %v801, %v799
      %v803 = vclz %v802
      %v804 = vsub.s32 %v803, 2
      %vm805 = vcmp.gt.s32.totalorder 0, %v804
      %v806 = vsel %vm805, 0, %v804
      %v807 = vsub.s32 32, %v806
      %v808 = vshll.u32 %v799, %v806
      %v809 = vshrl.u32 %v791, %v807
      %v810 = vor.u32 %v808, %v809
      %v811 = vsub.s32 4294967266, %v806
      %v812 = vadd.s32 %v811, 127
      %v813 = vshll.u32 %v812, 23
      %v814 = vor.u32 4788187, %v813
      %v815 = vand.u32 2147483647, %v814
      %v817 = vcvt.s32.f32 %v810
      %v818 = vmul.f32 %v817, %v815
      %v819 = vxor.u32 %v818, 2147483648
      %v820 = vsel %vm737, %v819, %v818
      %v821 = vsub.s32 4, %v797
      %v822 = vsel %vm737, %v821, %v797
      %v823 = vsel %vm736, %v362, %v820
      %v824 = vsel %vm736, 0, %v822
      %v825 = vcosq.f32.pop %v823
      %v826 = vsinq.f32.pop %v823
      %vm827 = vweird.f32 %v362
      %v828 = vadd.s32 %v824, 3
      %v829 = vand.u32 %v828, 3
      %vm830 = vcmp.lt.s32.totalorder %v829, 2
      %vm831 = vcmp.eq.s32.totalorder %v829, 0
      %v832 = vxor.u32 %v826, 2147483648
      %v833 = vsel %vm831, %v825, %v832
      %vm834 = vcmp.eq.s32.totalorder %v829, 2
      %v835 = vxor.u32 %v825, 2147483648
      %v836 = vsel %vm834, %v835, %v826
      %v837 = vsel %vm830, %v833, %v836
      %v838 = vsel %vm827, nan, %v837
      %v839 = vand.u32 2147483647, %v363
      %vm840 = vcmp.le.f32.partialorder %v839, 0.7853982
      %vm841 = vcmp.lt.s32.totalorder %v363, 0
      %v842 = vand.u32 %v363, 2139095040
      %v843 = vshrl.u32 %v842, 23
      %v844 = vsub.s32 %v843, 127
      %v845 = vand.u32 2147483647, %v363
      %v846 = vand.u32 %v845, 8388607
      %v847 = vor.u32 %v846, 8388608
      %v848 = vsub.s32 0, %v847
      %v849 = vadd.s32 %v844, 1
      %vm850 = vcmp.gt.s32.totalorder %v849, 0
      %v851 = vsel %vm850, %v849, 0
      %v852 = vshrl.u32 %v851, 5
      %v853 = vand.u32 %v851, 31
      %v854 = vsub.s32 32, %v853
      %v855 = vshrl.u32 683565275, %v854
      %v856 = vshll.u32 683565275, %v853
      %v857 = vshrl.u32 2475754826, %v854
      %v858 = vor.u32 %v856, %v857
      %v859 = vshll.u32 2475754826, %v853
      %v860 = vshrl.u32 2131351028, %v854
      %v861 = vor.u32 %v859, %v860
      %v862 = vshll.u32 2131351028, %v853
      %v863 = vshrl.u32 2102212464, %v854
      %v864 = vor.u32 %v862, %v863
      %v865 = vshll.u32 2102212464, %v853
      %v866 = vshrl.u32 920167782, %v854
      %v867 = vor.u32 %v865, %v866
      %v868 = vshll.u32 920167782, %v853
      %v869 = vshrl.u32 1326507024, %v854
      %v870 = vor.u32 %v868, %v869
      %vm871 = vcmp.lt.s32.totalorder %v852, 1
      %vm872 = vcmp.lt.s32.totalorder %v852, 2
      %vm873 = vcmp.lt.s32.totalorder %v852, 3
      %vm874 = vcmp.lt.s32.totalorder %v852, 4
      %v875 = vsel %vm871, %v855, %v858
      %v876 = vsel %vm874, %v864, 2102212464
      %v877 = vsel %vm873, %v861, %v876
      %v878 = vsel %vm872, %v875, %v877
      %v879 = vsel %vm871, %v858, %v861
      %v880 = vsel %vm874, %v867, 920167782
      %v881 = vsel %vm873, %v864, %v880
      %v882 = vsel %vm872, %v879, %v881
      %v883 = vsel %vm871, %v861, %v864
      %v884 = vsel %vm874, %v870, 1326507024
      %v885 = vsel %vm873, %v867, %v884
      %v886 = vsel %vm872, %v883, %v885
      %v887 = vshll.u32 %v847, 8
      %v888 = vmul.u32.u64.compose %v887, %v886
      %v889 = vextract.low.u32 %v888
      %v890 = vextract.high.u32 %v888
      %v891 = vmul.u32.u64.compose %v887, %v882
      %v892 = vextract.low.u32 %v891
      %v893 = vextract.high.u32 %v891
      %v894 = vmul.u32 %v887, %v878
      %v895 = vadd.s32 %v890, %v892
      %vm896 = vc.u32 %v890, %v892
      %v897 = vadd.s32 %v893, 1
      %v898 = vsel %vm896, %v897, %v893
      %v899 = vadd.s32 %v894, %v898
      %v900 = vadd.s32 %v899, 536870912
      %v901 = vshrl.u32 %v900, 30
      %v902 = vshll.u32 %v901, 30
      %v903 = vsub.s32 %v899, %v902
      %vm904 = vcmp.lt.s32.totalorder %v903, 0
      %v905 = vsub.s32 0, %v903
      %v906 = vsel %vm904, %v905, %v903
      %v907 = vclz %v906
      %v908 = vsub.s32 %v907, 2
      %vm909 = vcmp.gt.s32.totalorder 0, %v908
      %v910 = vsel %vm909, 0, %v908
      %v911 = vsub.s32 32, %v910
      %v912 = vshll.u32 %v903, %v910
      %v913 = vshrl.u32 %v895, %v911
      %v914 = vor.u32 %v912, %v913
      %v915 = vsub.s32 4294967266, %v910
      %v916 = vadd.s32 %v915, 127
      %v917 = vshll.u32 %v916, 23
      %v918 = vor.u32 4788187, %v917
      %v919 = vand.u32 2147483647, %v918
      %v921 = vcvt.s32.f32 %v914
      %v922 = vmul.f32 %v921, %v919
      %v923 = vxor.u32 %v922, 2147483648
      %v924 = vsel %vm841, %v923, %v922
      %v925 = vsub.s32 4, %v901
      %v926 = vsel %vm841, %v925, %v901
      %v927 = vsel %vm840, %v363, %v924
      %v928 = vsel %vm840, 0, %v926
      %v929 = vcosq.f32.pop %v927
      %v930 = vsinq.f32.pop %v927
      %vm931 = vweird.f32 %v363
      %v932 = vadd.s32 %v928, 3
      %v933 = vand.u32 %v932, 3
      %vm934 = vcmp.lt.s32.totalorder %v933, 2
      %vm935 = vcmp.eq.s32.totalorder %v933, 0
      %v936 = vxor.u32 %v930, 2147483648
      %v937 = vsel %vm935, %v929, %v936
      %vm938 = vcmp.eq.s32.totalorder %v933, 2
      %v939 = vxor.u32 %v929, 2147483648
      %v940 = vsel %vm938, %v939, %v930
      %v941 = vsel %vm934, %v937, %v940
      %v942 = vsel %vm931, nan, %v941
      %v943 = vand.u32 2147483647, %v364
      %vm944 = vcmp.le.f32.partialorder %v943, 0.7853982
      %vm945 = vcmp.lt.s32.totalorder %v364, 0
      %v946 = vand.u32 %v364, 2139095040
      %v947 = vshrl.u32 %v946, 23
      %v948 = vsub.s32 %v947, 127
      %v949 = vand.u32 2147483647, %v364
      %v950 = vand.u32 %v949, 8388607
      %v951 = vor.u32 %v950, 8388608
      %v952 = vsub.s32 0, %v951
      %v953 = vadd.s32 %v948, 1
      %vm954 = vcmp.gt.s32.totalorder %v953, 0
      %v955 = vsel %vm954, %v953, 0
      %v956 = vshrl.u32 %v955, 5
      %v957 = vand.u32 %v955, 31
      %v958 = vsub.s32 32, %v957
      %v959 = vshrl.u32 683565275, %v958
      %v960 = vshll.u32 683565275, %v957
      %v961 = vshrl.u32 2475754826, %v958
      %v962 = vor.u32 %v960, %v961
      %v963 = vshll.u32 2475754826, %v957
      %v964 = vshrl.u32 2131351028, %v958
      %v965 = vor.u32 %v963, %v964
      %v966 = vshll.u32 2131351028, %v957
      %v967 = vshrl.u32 2102212464, %v958
      %v968 = vor.u32 %v966, %v967
      %v969 = vshll.u32 2102212464, %v957
      %v970 = vshrl.u32 920167782, %v958
      %v971 = vor.u32 %v969, %v970
      %v972 = vshll.u32 920167782, %v957
      %v973 = vshrl.u32 1326507024, %v958
      %v974 = vor.u32 %v972, %v973
      %vm975 = vcmp.lt.s32.totalorder %v956, 1
      %vm976 = vcmp.lt.s32.totalorder %v956, 2
      %vm977 = vcmp.lt.s32.totalorder %v956, 3
      %vm978 = vcmp.lt.s32.totalorder %v956, 4
      %v979 = vsel %vm975, %v959, %v962
      %v980 = vsel %vm978, %v968, 2102212464
      %v981 = vsel %vm977, %v965, %v980
      %v982 = vsel %vm976, %v979, %v981
      %v983 = vsel %vm975, %v962, %v965
      %v984 = vsel %vm978, %v971, 920167782
      %v985 = vsel %vm977, %v968, %v984
      %v986 = vsel %vm976, %v983, %v985
      %v987 = vsel %vm975, %v965, %v968
      %v988 = vsel %vm978, %v974, 1326507024
      %v989 = vsel %vm977, %v971, %v988
      %v990 = vsel %vm976, %v987, %v989
      %v991 = vshll.u32 %v951, 8
      %v992 = vmul.u32.u64.compose %v991, %v990
      %v993 = vextract.low.u32 %v992
      %v994 = vextract.high.u32 %v992
      %v995 = vmul.u32.u64.compose %v991, %v986
      %v996 = vextract.low.u32 %v995
      %v997 = vextract.high.u32 %v995
      %v998 = vmul.u32 %v991, %v982
      %v999 = vadd.s32 %v994, %v996
      %vm1000 = vc.u32 %v994, %v996
      %v1001 = vadd.s32 %v997, 1
      %v1002 = vsel %vm1000, %v1001, %v997
      %v1003 = vadd.s32 %v998, %v1002
      %v1004 = vadd.s32 %v1003, 536870912
      %v1005 = vshrl.u32 %v1004, 30
      %v1006 = vshll.u32 %v1005, 30
      %v1007 = vsub.s32 %v1003, %v1006
      %vm1008 = vcmp.lt.s32.totalorder %v1007, 0
      %v1009 = vsub.s32 0, %v1007
      %v1010 = vsel %vm1008, %v1009, %v1007
      %v1011 = vclz %v1010
      %v1012 = vsub.s32 %v1011, 2
      %vm1013 = vcmp.gt.s32.totalorder 0, %v1012
      %v1014 = vsel %vm1013, 0, %v1012
      %v1015 = vsub.s32 32, %v1014
      %v1016 = vshll.u32 %v1007, %v1014
      %v1017 = vshrl.u32 %v999, %v1015
      %v1018 = vor.u32 %v1016, %v1017
      %v1019 = vsub.s32 4294967266, %v1014
      %v1020 = vadd.s32 %v1019, 127
      %v1021 = vshll.u32 %v1020, 23
      %v1022 = vor.u32 4788187, %v1021
      %v1023 = vand.u32 2147483647, %v1022
      %v1025 = vcvt.s32.f32 %v1018
      %v1026 = vmul.f32 %v1025, %v1023
      %v1027 = vxor.u32 %v1026, 2147483648
      %v1028 = vsel %vm945, %v1027, %v1026
      %v1029 = vsub.s32 4, %v1005
      %v1030 = vsel %vm945, %v1029, %v1005
      %v1031 = vsel %vm944, %v364, %v1028
      %v1032 = vsel %vm944, 0, %v1030
      %v1033 = vcosq.f32.pop %v1031
      %v1034 = vsinq.f32.pop %v1031
      %vm1035 = vweird.f32 %v364
      %v1036 = vadd.s32 %v1032, 3
      %v1037 = vand.u32 %v1036, 3
      %vm1038 = vcmp.lt.s32.totalorder %v1037, 2
      %vm1039 = vcmp.eq.s32.totalorder %v1037, 0
      %v1040 = vxor.u32 %v1034, 2147483648
      %v1041 = vsel %vm1039, %v1033, %v1040
      %vm1042 = vcmp.eq.s32.totalorder %v1037, 2
      %v1043 = vxor.u32 %v1033, 2147483648
      %v1044 = vsel %vm1042, %v1043, %v1034
      %v1045 = vsel %vm1038, %v1041, %v1044
      %v1046 = vsel %vm1035, nan, %v1045
      %v1047 = vand.u32 2147483647, %v365
      %vm1048 = vcmp.le.f32.partialorder %v1047, 0.7853982
      %vm1049 = vcmp.lt.s32.totalorder %v365, 0
      %v1050 = vand.u32 %v365, 2139095040
      %v1051 = vshrl.u32 %v1050, 23
      %v1052 = vsub.s32 %v1051, 127
      %v1053 = vand.u32 2147483647, %v365
      %v1054 = vand.u32 %v1053, 8388607
      %v1055 = vor.u32 %v1054, 8388608
      %v1056 = vsub.s32 0, %v1055
      %v1057 = vadd.s32 %v1052, 1
      %vm1058 = vcmp.gt.s32.totalorder %v1057, 0
      %v1059 = vsel %vm1058, %v1057, 0
      %v1060 = vshrl.u32 %v1059, 5
      %v1061 = vand.u32 %v1059, 31
      %v1062 = vsub.s32 32, %v1061
      %v1063 = vshrl.u32 683565275, %v1062
      %v1064 = vshll.u32 683565275, %v1061
      %v1065 = vshrl.u32 2475754826, %v1062
      %v1066 = vor.u32 %v1064, %v1065
      %v1067 = vshll.u32 2475754826, %v1061
      %v1068 = vshrl.u32 2131351028, %v1062
      %v1069 = vor.u32 %v1067, %v1068
      %v1070 = vshll.u32 2131351028, %v1061
      %v1071 = vshrl.u32 2102212464, %v1062
      %v1072 = vor.u32 %v1070, %v1071
      %v1073 = vshll.u32 2102212464, %v1061
      %v1074 = vshrl.u32 920167782, %v1062
      %v1075 = vor.u32 %v1073, %v1074
      %v1076 = vshll.u32 920167782, %v1061
      %v1077 = vshrl.u32 1326507024, %v1062
      %v1078 = vor.u32 %v1076, %v1077
      %vm1079 = vcmp.lt.s32.totalorder %v1060, 1
      %vm1080 = vcmp.lt.s32.totalorder %v1060, 2
      %vm1081 = vcmp.lt.s32.totalorder %v1060, 3
      %vm1082 = vcmp.lt.s32.totalorder %v1060, 4
      %v1083 = vsel %vm1079, %v1063, %v1066
      %v1084 = vsel %vm1082, %v1072, 2102212464
      %v1085 = vsel %vm1081, %v1069, %v1084
      %v1086 = vsel %vm1080, %v1083, %v1085
      %v1087 = vsel %vm1079, %v1066, %v1069
      %v1088 = vsel %vm1082, %v1075, 920167782
      %v1089 = vsel %vm1081, %v1072, %v1088
      %v1090 = vsel %vm1080, %v1087, %v1089
      %v1091 = vsel %vm1079, %v1069, %v1072
      %v1092 = vsel %vm1082, %v1078, 1326507024
      %v1093 = vsel %vm1081, %v1075, %v1092
      %v1094 = vsel %vm1080, %v1091, %v1093
      %v1095 = vshll.u32 %v1055, 8
      %v1096 = vmul.u32.u64.compose %v1095, %v1094
      %v1097 = vextract.low.u32 %v1096
      %v1098 = vextract.high.u32 %v1096
      %v1099 = vmul.u32.u64.compose %v1095, %v1090
      %v1100 = vextract.low.u32 %v1099
      %v1101 = vextract.high.u32 %v1099
      %v1102 = vmul.u32 %v1095, %v1086
      %v1103 = vadd.s32 %v1098, %v1100
      %vm1104 = vc.u32 %v1098, %v1100
      %v1105 = vadd.s32 %v1101, 1
      %v1106 = vsel %vm1104, %v1105, %v1101
      %v1107 = vadd.s32 %v1102, %v1106
      %v1108 = vadd.s32 %v1107, 536870912
      %v1109 = vshrl.u32 %v1108, 30
      %v1110 = vshll.u32 %v1109, 30
      %v1111 = vsub.s32 %v1107, %v1110
      %vm1112 = vcmp.lt.s32.totalorder %v1111, 0
      %v1113 = vsub.s32 0, %v1111
      %v1114 = vsel %vm1112, %v1113, %v1111
      %v1115 = vclz %v1114
      %v1116 = vsub.s32 %v1115, 2
      %vm1117 = vcmp.gt.s32.totalorder 0, %v1116
      %v1118 = vsel %vm1117, 0, %v1116
      %v1119 = vsub.s32 32, %v1118
      %v1120 = vshll.u32 %v1111, %v1118
      %v1121 = vshrl.u32 %v1103, %v1119
      %v1122 = vor.u32 %v1120, %v1121
      %v1123 = vsub.s32 4294967266, %v1118
      %v1124 = vadd.s32 %v1123, 127
      %v1125 = vshll.u32 %v1124, 23
      %v1126 = vor.u32 4788187, %v1125
      %v1127 = vand.u32 2147483647, %v1126
      %v1129 = vcvt.s32.f32 %v1122
      %v1130 = vmul.f32 %v1129, %v1127
      %v1131 = vxor.u32 %v1130, 2147483648
      %v1132 = vsel %vm1049, %v1131, %v1130
      %v1133 = vsub.s32 4, %v1109
      %v1134 = vsel %vm1049, %v1133, %v1109
      %v1135 = vsel %vm1048, %v365, %v1132
      %v1136 = vsel %vm1048, 0, %v1134
      %v1137 = vcosq.f32.pop %v1135
      %v1138 = vsinq.f32.pop %v1135
      %vm1139 = vweird.f32 %v365
      %v1140 = vadd.s32 %v1136, 3
      %v1141 = vand.u32 %v1140, 3
      %vm1142 = vcmp.lt.s32.totalorder %v1141, 2
      %vm1143 = vcmp.eq.s32.totalorder %v1141, 0
      %v1144 = vxor.u32 %v1138, 2147483648
      %v1145 = vsel %vm1143, %v1137, %v1144
      %vm1146 = vcmp.eq.s32.totalorder %v1141, 2
      %v1147 = vxor.u32 %v1137, 2147483648
      %v1148 = vsel %vm1146, %v1147, %v1138
      %v1149 = vsel %vm1142, %v1145, %v1148
      %v1150 = vsel %vm1139, nan, %v1149
      %v1151 = vand.u32 2147483647, %v366
      %vm1152 = vcmp.le.f32.partialorder %v1151, 0.7853982
      %vm1153 = vcmp.lt.s32.totalorder %v366, 0
      %v1154 = vand.u32 %v366, 2139095040
      %v1155 = vshrl.u32 %v1154, 23
      %v1156 = vsub.s32 %v1155, 127
      %v1157 = vand.u32 2147483647, %v366
      %v1158 = vand.u32 %v1157, 8388607
      %v1159 = vor.u32 %v1158, 8388608
      %v1160 = vsub.s32 0, %v1159
      %v1161 = vadd.s32 %v1156, 1
      %vm1162 = vcmp.gt.s32.totalorder %v1161, 0
      %v1163 = vsel %vm1162, %v1161, 0
      %v1164 = vshrl.u32 %v1163, 5
      %v1165 = vand.u32 %v1163, 31
      %v1166 = vsub.s32 32, %v1165
      %v1167 = vshrl.u32 683565275, %v1166
      %v1168 = vshll.u32 683565275, %v1165
      %v1169 = vshrl.u32 2475754826, %v1166
      %v1170 = vor.u32 %v1168, %v1169
      %v1171 = vshll.u32 2475754826, %v1165
      %v1172 = vshrl.u32 2131351028, %v1166
      %v1173 = vor.u32 %v1171, %v1172
      %v1174 = vshll.u32 2131351028, %v1165
      %v1175 = vshrl.u32 2102212464, %v1166
      %v1176 = vor.u32 %v1174, %v1175
      %v1177 = vshll.u32 2102212464, %v1165
      %v1178 = vshrl.u32 920167782, %v1166
      %v1179 = vor.u32 %v1177, %v1178
      %v1180 = vshll.u32 920167782, %v1165
      %v1181 = vshrl.u32 1326507024, %v1166
      %v1182 = vor.u32 %v1180, %v1181
      %vm1183 = vcmp.lt.s32.totalorder %v1164, 1
      %vm1184 = vcmp.lt.s32.totalorder %v1164, 2
      %vm1185 = vcmp.lt.s32.totalorder %v1164, 3
      %vm1186 = vcmp.lt.s32.totalorder %v1164, 4
      %v1187 = vsel %vm1183, %v1167, %v1170
      %v1188 = vsel %vm1186, %v1176, 2102212464
      %v1189 = vsel %vm1185, %v1173, %v1188
      %v1190 = vsel %vm1184, %v1187, %v1189
      %v1191 = vsel %vm1183, %v1170, %v1173
      %v1192 = vsel %vm1186, %v1179, 920167782
      %v1193 = vsel %vm1185, %v1176, %v1192
      %v1194 = vsel %vm1184, %v1191, %v1193
      %v1195 = vsel %vm1183, %v1173, %v1176
      %v1196 = vsel %vm1186, %v1182, 1326507024
      %v1197 = vsel %vm1185, %v1179, %v1196
      %v1198 = vsel %vm1184, %v1195, %v1197
      %v1199 = vshll.u32 %v1159, 8
      %v1200 = vmul.u32.u64.compose %v1199, %v1198
      %v1201 = vextract.low.u32 %v1200
      %v1202 = vextract.high.u32 %v1200
      %v1203 = vmul.u32.u64.compose %v1199, %v1194
      %v1204 = vextract.low.u32 %v1203
      %v1205 = vextract.high.u32 %v1203
      %v1206 = vmul.u32 %v1199, %v1190
      %v1207 = vadd.s32 %v1202, %v1204
      %vm1208 = vc.u32 %v1202, %v1204
      %v1209 = vadd.s32 %v1205, 1
      %v1210 = vsel %vm1208, %v1209, %v1205
      %v1211 = vadd.s32 %v1206, %v1210
      %v1212 = vadd.s32 %v1211, 536870912
      %v1213 = vshrl.u32 %v1212, 30
      %v1214 = vshll.u32 %v1213, 30
      %v1215 = vsub.s32 %v1211, %v1214
      %vm1216 = vcmp.lt.s32.totalorder %v1215, 0
      %v1217 = vsub.s32 0, %v1215
      %v1218 = vsel %vm1216, %v1217, %v1215
      %v1219 = vclz %v1218
      %v1220 = vsub.s32 %v1219, 2
      %vm1221 = vcmp.gt.s32.totalorder 0, %v1220
      %v1222 = vsel %vm1221, 0, %v1220
      %v1223 = vsub.s32 32, %v1222
      %v1224 = vshll.u32 %v1215, %v1222
      %v1225 = vshrl.u32 %v1207, %v1223
      %v1226 = vor.u32 %v1224, %v1225
      %v1227 = vsub.s32 4294967266, %v1222
      %v1228 = vadd.s32 %v1227, 127
      %v1229 = vshll.u32 %v1228, 23
      %v1230 = vor.u32 4788187, %v1229
      %v1231 = vand.u32 2147483647, %v1230
      %v1233 = vcvt.s32.f32 %v1226
      %v1234 = vmul.f32 %v1233, %v1231
      %v1235 = vxor.u32 %v1234, 2147483648
      %v1236 = vsel %vm1153, %v1235, %v1234
      %v1237 = vsub.s32 4, %v1213
      %v1238 = vsel %vm1153, %v1237, %v1213
      %v1239 = vsel %vm1152, %v366, %v1236
      %v1240 = vsel %vm1152, 0, %v1238
      %v1241 = vcosq.f32.pop %v1239
      %v1242 = vsinq.f32.pop %v1239
      %vm1243 = vweird.f32 %v366
      %v1244 = vadd.s32 %v1240, 3
      %v1245 = vand.u32 %v1244, 3
      %vm1246 = vcmp.lt.s32.totalorder %v1245, 2
      %vm1247 = vcmp.eq.s32.totalorder %v1245, 0
      %v1248 = vxor.u32 %v1242, 2147483648
      %v1249 = vsel %vm1247, %v1241, %v1248
      %vm1250 = vcmp.eq.s32.totalorder %v1245, 2
      %v1251 = vxor.u32 %v1241, 2147483648
      %v1252 = vsel %vm1250, %v1251, %v1242
      %v1253 = vsel %vm1246, %v1249, %v1252
      %v1254 = vsel %vm1243, nan, %v1253
      %v1255 = vand.u32 2147483647, %v367
      %vm1256 = vcmp.le.f32.partialorder %v1255, 0.7853982
      %vm1257 = vcmp.lt.s32.totalorder %v367, 0
      %v1258 = vand.u32 %v367, 2139095040
      %v1259 = vshrl.u32 %v1258, 23
      %v1260 = vsub.s32 %v1259, 127
      %v1261 = vand.u32 2147483647, %v367
      %v1262 = vand.u32 %v1261, 8388607
      %v1263 = vor.u32 %v1262, 8388608
      %v1264 = vsub.s32 0, %v1263
      %v1265 = vadd.s32 %v1260, 1
      %vm1266 = vcmp.gt.s32.totalorder %v1265, 0
      %v1267 = vsel %vm1266, %v1265, 0
      %v1268 = vshrl.u32 %v1267, 5
      %v1269 = vand.u32 %v1267, 31
      %v1270 = vsub.s32 32, %v1269
      %v1271 = vshrl.u32 683565275, %v1270
      %v1272 = vshll.u32 683565275, %v1269
      %v1273 = vshrl.u32 2475754826, %v1270
      %v1274 = vor.u32 %v1272, %v1273
      %v1275 = vshll.u32 2475754826, %v1269
      %v1276 = vshrl.u32 2131351028, %v1270
      %v1277 = vor.u32 %v1275, %v1276
      %v1278 = vshll.u32 2131351028, %v1269
      %v1279 = vshrl.u32 2102212464, %v1270
      %v1280 = vor.u32 %v1278, %v1279
      %v1281 = vshll.u32 2102212464, %v1269
      %v1282 = vshrl.u32 920167782, %v1270
      %v1283 = vor.u32 %v1281, %v1282
      %v1284 = vshll.u32 920167782, %v1269
      %v1285 = vshrl.u32 1326507024, %v1270
      %v1286 = vor.u32 %v1284, %v1285
      %vm1287 = vcmp.lt.s32.totalorder %v1268, 1
      %vm1288 = vcmp.lt.s32.totalorder %v1268, 2
      %vm1289 = vcmp.lt.s32.totalorder %v1268, 3
      %vm1290 = vcmp.lt.s32.totalorder %v1268, 4
      %v1291 = vsel %vm1287, %v1271, %v1274
      %v1292 = vsel %vm1290, %v1280, 2102212464
      %v1293 = vsel %vm1289, %v1277, %v1292
      %v1294 = vsel %vm1288, %v1291, %v1293
      %v1295 = vsel %vm1287, %v1274, %v1277
      %v1296 = vsel %vm1290, %v1283, 920167782
      %v1297 = vsel %vm1289, %v1280, %v1296
      %v1298 = vsel %vm1288, %v1295, %v1297
      %v1299 = vsel %vm1287, %v1277, %v1280
      %v1300 = vsel %vm1290, %v1286, 1326507024
      %v1301 = vsel %vm1289, %v1283, %v1300
      %v1302 = vsel %vm1288, %v1299, %v1301
      %v1303 = vshll.u32 %v1263, 8
      %v1304 = vmul.u32.u64.compose %v1303, %v1302
      %v1305 = vextract.low.u32 %v1304
      %v1306 = vextract.high.u32 %v1304
      %v1307 = vmul.u32.u64.compose %v1303, %v1298
      %v1308 = vextract.low.u32 %v1307
      %v1309 = vextract.high.u32 %v1307
      %v1310 = vmul.u32 %v1303, %v1294
      %v1311 = vadd.s32 %v1306, %v1308
      %vm1312 = vc.u32 %v1306, %v1308
      %v1313 = vadd.s32 %v1309, 1
      %v1314 = vsel %vm1312, %v1313, %v1309
      %v1315 = vadd.s32 %v1310, %v1314
      %v1316 = vadd.s32 %v1315, 536870912
      %v1317 = vshrl.u32 %v1316, 30
      %v1318 = vshll.u32 %v1317, 30
      %v1319 = vsub.s32 %v1315, %v1318
      %vm1320 = vcmp.lt.s32.totalorder %v1319, 0
      %v1321 = vsub.s32 0, %v1319
      %v1322 = vsel %vm1320, %v1321, %v1319
      %v1323 = vclz %v1322
      %v1324 = vsub.s32 %v1323, 2
      %vm1325 = vcmp.gt.s32.totalorder 0, %v1324
      %v1326 = vsel %vm1325, 0, %v1324
      %v1327 = vsub.s32 32, %v1326
      %v1328 = vshll.u32 %v1319, %v1326
      %v1329 = vshrl.u32 %v1311, %v1327
      %v1330 = vor.u32 %v1328, %v1329
      %v1331 = vsub.s32 4294967266, %v1326
      %v1332 = vadd.s32 %v1331, 127
      %v1333 = vshll.u32 %v1332, 23
      %v1334 = vor.u32 4788187, %v1333
      %v1335 = vand.u32 2147483647, %v1334
      %v1337 = vcvt.s32.f32 %v1330
      %v1338 = vmul.f32 %v1337, %v1335
      %v1339 = vxor.u32 %v1338, 2147483648
      %v1340 = vsel %vm1257, %v1339, %v1338
      %v1341 = vsub.s32 4, %v1317
      %v1342 = vsel %vm1257, %v1341, %v1317
      %v1343 = vsel %vm1256, %v367, %v1340
      %v1344 = vsel %vm1256, 0, %v1342
      %v1345 = vcosq.f32.pop %v1343
      %v1346 = vsinq.f32.pop %v1343
      %vm1347 = vweird.f32 %v367
      %v1348 = vadd.s32 %v1344, 3
      %v1349 = vand.u32 %v1348, 3
      %vm1350 = vcmp.lt.s32.totalorder %v1349, 2
      %vm1351 = vcmp.eq.s32.totalorder %v1349, 0
      %v1352 = vxor.u32 %v1346, 2147483648
      %v1353 = vsel %vm1351, %v1345, %v1352
      %vm1354 = vcmp.eq.s32.totalorder %v1349, 2
      %v1355 = vxor.u32 %v1345, 2147483648
      %v1356 = vsel %vm1354, %v1355, %v1346
      %v1357 = vsel %vm1350, %v1353, %v1356
      %v1358 = vsel %vm1347, nan, %v1357
      %v1359 = vand.u32 2147483647, %v368
      %vm1360 = vcmp.le.f32.partialorder %v1359, 0.7853982
      %vm1361 = vcmp.lt.s32.totalorder %v368, 0
      %v1362 = vand.u32 %v368, 2139095040
      %v1363 = vshrl.u32 %v1362, 23
      %v1364 = vsub.s32 %v1363, 127
      %v1365 = vand.u32 2147483647, %v368
      %v1366 = vand.u32 %v1365, 8388607
      %v1367 = vor.u32 %v1366, 8388608
      %v1368 = vsub.s32 0, %v1367
      %v1369 = vadd.s32 %v1364, 1
      %vm1370 = vcmp.gt.s32.totalorder %v1369, 0
      %v1371 = vsel %vm1370, %v1369, 0
      %v1372 = vshrl.u32 %v1371, 5
      %v1373 = vand.u32 %v1371, 31
      %v1374 = vsub.s32 32, %v1373
      %v1375 = vshrl.u32 683565275, %v1374
      %v1376 = vshll.u32 683565275, %v1373
      %v1377 = vshrl.u32 2475754826, %v1374
      %v1378 = vor.u32 %v1376, %v1377
      %v1379 = vshll.u32 2475754826, %v1373
      %v1380 = vshrl.u32 2131351028, %v1374
      %v1381 = vor.u32 %v1379, %v1380
      %v1382 = vshll.u32 2131351028, %v1373
      %v1383 = vshrl.u32 2102212464, %v1374
      %v1384 = vor.u32 %v1382, %v1383
      %v1385 = vshll.u32 2102212464, %v1373
      %v1386 = vshrl.u32 920167782, %v1374
      %v1387 = vor.u32 %v1385, %v1386
      %v1388 = vshll.u32 920167782, %v1373
      %v1389 = vshrl.u32 1326507024, %v1374
      %v1390 = vor.u32 %v1388, %v1389
      %vm1391 = vcmp.lt.s32.totalorder %v1372, 1
      %vm1392 = vcmp.lt.s32.totalorder %v1372, 2
      %vm1393 = vcmp.lt.s32.totalorder %v1372, 3
      %vm1394 = vcmp.lt.s32.totalorder %v1372, 4
      %v1395 = vsel %vm1391, %v1375, %v1378
      %v1396 = vsel %vm1394, %v1384, 2102212464
      %v1397 = vsel %vm1393, %v1381, %v1396
      %v1398 = vsel %vm1392, %v1395, %v1397
      %v1399 = vsel %vm1391, %v1378, %v1381
      %v1400 = vsel %vm1394, %v1387, 920167782
      %v1401 = vsel %vm1393, %v1384, %v1400
      %v1402 = vsel %vm1392, %v1399, %v1401
      %v1403 = vsel %vm1391, %v1381, %v1384
      %v1404 = vsel %vm1394, %v1390, 1326507024
      %v1405 = vsel %vm1393, %v1387, %v1404
      %v1406 = vsel %vm1392, %v1403, %v1405
      %v1407 = vshll.u32 %v1367, 8
      %v1408 = vmul.u32.u64.compose %v1407, %v1406
      %v1409 = vextract.low.u32 %v1408
      %v1410 = vextract.high.u32 %v1408
      %v1411 = vmul.u32.u64.compose %v1407, %v1402
      %v1412 = vextract.low.u32 %v1411
      %v1413 = vextract.high.u32 %v1411
      %v1414 = vmul.u32 %v1407, %v1398
      %v1415 = vadd.s32 %v1410, %v1412
      %vm1416 = vc.u32 %v1410, %v1412
      %v1417 = vadd.s32 %v1413, 1
      %v1418 = vsel %vm1416, %v1417, %v1413
      %v1419 = vadd.s32 %v1414, %v1418
      %v1420 = vadd.s32 %v1419, 536870912
      %v1421 = vshrl.u32 %v1420, 30
      %v1422 = vshll.u32 %v1421, 30
      %v1423 = vsub.s32 %v1419, %v1422
      %vm1424 = vcmp.lt.s32.totalorder %v1423, 0
      %v1425 = vsub.s32 0, %v1423
      %v1426 = vsel %vm1424, %v1425, %v1423
      %v1427 = vclz %v1426
      %v1428 = vsub.s32 %v1427, 2
      %vm1429 = vcmp.gt.s32.totalorder 0, %v1428
      %v1430 = vsel %vm1429, 0, %v1428
      %v1431 = vsub.s32 32, %v1430
      %v1432 = vshll.u32 %v1423, %v1430
      %v1433 = vshrl.u32 %v1415, %v1431
      %v1434 = vor.u32 %v1432, %v1433
      %v1435 = vsub.s32 4294967266, %v1430
      %v1436 = vadd.s32 %v1435, 127
      %v1437 = vshll.u32 %v1436, 23
      %v1438 = vor.u32 4788187, %v1437
      %v1439 = vand.u32 2147483647, %v1438
      %v1441 = vcvt.s32.f32 %v1434
      %v1442 = vmul.f32 %v1441, %v1439
      %v1443 = vxor.u32 %v1442, 2147483648
      %v1444 = vsel %vm1361, %v1443, %v1442
      %v1445 = vsub.s32 4, %v1421
      %v1446 = vsel %vm1361, %v1445, %v1421
      %v1447 = vsel %vm1360, %v368, %v1444
      %v1448 = vsel %vm1360, 0, %v1446
      %v1449 = vcosq.f32.pop %v1447
      %v1450 = vsinq.f32.pop %v1447
      %vm1451 = vweird.f32 %v368
      %v1452 = vadd.s32 %v1448, 3
      %v1453 = vand.u32 %v1452, 3
      %vm1454 = vcmp.lt.s32.totalorder %v1453, 2
      %vm1455 = vcmp.eq.s32.totalorder %v1453, 0
      %v1456 = vxor.u32 %v1450, 2147483648
      %v1457 = vsel %vm1455, %v1449, %v1456
      %vm1458 = vcmp.eq.s32.totalorder %v1453, 2
      %v1459 = vxor.u32 %v1449, 2147483648
      %v1460 = vsel %vm1458, %v1459, %v1450
      %v1461 = vsel %vm1454, %v1457, %v1460
      %v1462 = vsel %vm1451, nan, %v1461
      %v1463 = vand.u32 2147483647, %v369
      %vm1464 = vcmp.le.f32.partialorder %v1463, 0.7853982
      %vm1465 = vcmp.lt.s32.totalorder %v369, 0
      %v1466 = vand.u32 %v369, 2139095040
      %v1467 = vshrl.u32 %v1466, 23
      %v1468 = vsub.s32 %v1467, 127
      %v1469 = vand.u32 2147483647, %v369
      %v1470 = vand.u32 %v1469, 8388607
      %v1471 = vor.u32 %v1470, 8388608
      %v1472 = vsub.s32 0, %v1471
      %v1473 = vadd.s32 %v1468, 1
      %vm1474 = vcmp.gt.s32.totalorder %v1473, 0
      %v1475 = vsel %vm1474, %v1473, 0
      %v1476 = vshrl.u32 %v1475, 5
      %v1477 = vand.u32 %v1475, 31
      %v1478 = vsub.s32 32, %v1477
      %v1479 = vshrl.u32 683565275, %v1478
      %v1480 = vshll.u32 683565275, %v1477
      %v1481 = vshrl.u32 2475754826, %v1478
      %v1482 = vor.u32 %v1480, %v1481
      %v1483 = vshll.u32 2475754826, %v1477
      %v1484 = vshrl.u32 2131351028, %v1478
      %v1485 = vor.u32 %v1483, %v1484
      %v1486 = vshll.u32 2131351028, %v1477
      %v1487 = vshrl.u32 2102212464, %v1478
      %v1488 = vor.u32 %v1486, %v1487
      %v1489 = vshll.u32 2102212464, %v1477
      %v1490 = vshrl.u32 920167782, %v1478
      %v1491 = vor.u32 %v1489, %v1490
      %v1492 = vshll.u32 920167782, %v1477
      %v1493 = vshrl.u32 1326507024, %v1478
      %v1494 = vor.u32 %v1492, %v1493
      %vm1495 = vcmp.lt.s32.totalorder %v1476, 1
      %vm1496 = vcmp.lt.s32.totalorder %v1476, 2
      %vm1497 = vcmp.lt.s32.totalorder %v1476, 3
      %vm1498 = vcmp.lt.s32.totalorder %v1476, 4
      %v1499 = vsel %vm1495, %v1479, %v1482
      %v1500 = vsel %vm1498, %v1488, 2102212464
      %v1501 = vsel %vm1497, %v1485, %v1500
      %v1502 = vsel %vm1496, %v1499, %v1501
      %v1503 = vsel %vm1495, %v1482, %v1485
      %v1504 = vsel %vm1498, %v1491, 920167782
      %v1505 = vsel %vm1497, %v1488, %v1504
      %v1506 = vsel %vm1496, %v1503, %v1505
      %v1507 = vsel %vm1495, %v1485, %v1488
      %v1508 = vsel %vm1498, %v1494, 1326507024
      %v1509 = vsel %vm1497, %v1491, %v1508
      %v1510 = vsel %vm1496, %v1507, %v1509
      %v1511 = vshll.u32 %v1471, 8
      %v1512 = vmul.u32.u64.compose %v1511, %v1510
      %v1513 = vextract.low.u32 %v1512
      %v1514 = vextract.high.u32 %v1512
      %v1515 = vmul.u32.u64.compose %v1511, %v1506
      %v1516 = vextract.low.u32 %v1515
      %v1517 = vextract.high.u32 %v1515
      %v1518 = vmul.u32 %v1511, %v1502
      %v1519 = vadd.s32 %v1514, %v1516
      %vm1520 = vc.u32 %v1514, %v1516
      %v1521 = vadd.s32 %v1517, 1
      %v1522 = vsel %vm1520, %v1521, %v1517
      %v1523 = vadd.s32 %v1518, %v1522
      %v1524 = vadd.s32 %v1523, 536870912
      %v1525 = vshrl.u32 %v1524, 30
      %v1526 = vshll.u32 %v1525, 30
      %v1527 = vsub.s32 %v1523, %v1526
      %vm1528 = vcmp.lt.s32.totalorder %v1527, 0
      %v1529 = vsub.s32 0, %v1527
      %v1530 = vsel %vm1528, %v1529, %v1527
      %v1531 = vclz %v1530
      %v1532 = vsub.s32 %v1531, 2
      %vm1533 = vcmp.gt.s32.totalorder 0, %v1532
      %v1534 = vsel %vm1533, 0, %v1532
      %v1535 = vsub.s32 32, %v1534
      %v1536 = vshll.u32 %v1527, %v1534
      %v1537 = vshrl.u32 %v1519, %v1535
      %v1538 = vor.u32 %v1536, %v1537
      %v1539 = vsub.s32 4294967266, %v1534
      %v1540 = vadd.s32 %v1539, 127
      %v1541 = vshll.u32 %v1540, 23
      %v1542 = vor.u32 4788187, %v1541
      %v1543 = vand.u32 2147483647, %v1542
      %v1545 = vcvt.s32.f32 %v1538
      %v1546 = vmul.f32 %v1545, %v1543
      %v1547 = vxor.u32 %v1546, 2147483648
      %v1548 = vsel %vm1465, %v1547, %v1546
      %v1549 = vsub.s32 4, %v1525
      %v1550 = vsel %vm1465, %v1549, %v1525
      %v1551 = vsel %vm1464, %v369, %v1548
      %v1552 = vsel %vm1464, 0, %v1550
      %v1553 = vcosq.f32.pop %v1551
      %v1554 = vsinq.f32.pop %v1551
      %vm1555 = vweird.f32 %v369
      %v1556 = vadd.s32 %v1552, 3
      %v1557 = vand.u32 %v1556, 3
      %vm1558 = vcmp.lt.s32.totalorder %v1557, 2
      %vm1559 = vcmp.eq.s32.totalorder %v1557, 0
      %v1560 = vxor.u32 %v1554, 2147483648
      %v1561 = vsel %vm1559, %v1553, %v1560
      %vm1562 = vcmp.eq.s32.totalorder %v1557, 2
      %v1563 = vxor.u32 %v1553, 2147483648
      %v1564 = vsel %vm1562, %v1563, %v1554
      %v1565 = vsel %vm1558, %v1561, %v1564
      %v1566 = vsel %vm1555, nan, %v1565
      %v1567 = vand.u32 2147483647, %v370
      %vm1568 = vcmp.le.f32.partialorder %v1567, 0.7853982
      %vm1569 = vcmp.lt.s32.totalorder %v370, 0
      %v1570 = vand.u32 %v370, 2139095040
      %v1571 = vshrl.u32 %v1570, 23
      %v1572 = vsub.s32 %v1571, 127
      %v1573 = vand.u32 2147483647, %v370
      %v1574 = vand.u32 %v1573, 8388607
      %v1575 = vor.u32 %v1574, 8388608
      %v1576 = vsub.s32 0, %v1575
      %v1577 = vadd.s32 %v1572, 1
      %vm1578 = vcmp.gt.s32.totalorder %v1577, 0
      %v1579 = vsel %vm1578, %v1577, 0
      %v1580 = vshrl.u32 %v1579, 5
      %v1581 = vand.u32 %v1579, 31
      %v1582 = vsub.s32 32, %v1581
      %v1583 = vshrl.u32 683565275, %v1582
      %v1584 = vshll.u32 683565275, %v1581
      %v1585 = vshrl.u32 2475754826, %v1582
      %v1586 = vor.u32 %v1584, %v1585
      %v1587 = vshll.u32 2475754826, %v1581
      %v1588 = vshrl.u32 2131351028, %v1582
      %v1589 = vor.u32 %v1587, %v1588
      %v1590 = vshll.u32 2131351028, %v1581
      %v1591 = vshrl.u32 2102212464, %v1582
      %v1592 = vor.u32 %v1590, %v1591
      %v1593 = vshll.u32 2102212464, %v1581
      %v1594 = vshrl.u32 920167782, %v1582
      %v1595 = vor.u32 %v1593, %v1594
      %v1596 = vshll.u32 920167782, %v1581
      %v1597 = vshrl.u32 1326507024, %v1582
      %v1598 = vor.u32 %v1596, %v1597
      %vm1599 = vcmp.lt.s32.totalorder %v1580, 1
      %vm1600 = vcmp.lt.s32.totalorder %v1580, 2
      %vm1601 = vcmp.lt.s32.totalorder %v1580, 3
      %vm1602 = vcmp.lt.s32.totalorder %v1580, 4
      %v1603 = vsel %vm1599, %v1583, %v1586
      %v1604 = vsel %vm1602, %v1592, 2102212464
      %v1605 = vsel %vm1601, %v1589, %v1604
      %v1606 = vsel %vm1600, %v1603, %v1605
      %v1607 = vsel %vm1599, %v1586, %v1589
      %v1608 = vsel %vm1602, %v1595, 920167782
      %v1609 = vsel %vm1601, %v1592, %v1608
      %v1610 = vsel %vm1600, %v1607, %v1609
      %v1611 = vsel %vm1599, %v1589, %v1592
      %v1612 = vsel %vm1602, %v1598, 1326507024
      %v1613 = vsel %vm1601, %v1595, %v1612
      %v1614 = vsel %vm1600, %v1611, %v1613
      %v1615 = vshll.u32 %v1575, 8
      %v1616 = vmul.u32.u64.compose %v1615, %v1614
      %v1617 = vextract.low.u32 %v1616
      %v1618 = vextract.high.u32 %v1616
      %v1619 = vmul.u32.u64.compose %v1615, %v1610
      %v1620 = vextract.low.u32 %v1619
      %v1621 = vextract.high.u32 %v1619
      %v1622 = vmul.u32 %v1615, %v1606
      %v1623 = vadd.s32 %v1618, %v1620
      %vm1624 = vc.u32 %v1618, %v1620
      %v1625 = vadd.s32 %v1621, 1
      %v1626 = vsel %vm1624, %v1625, %v1621
      %v1627 = vadd.s32 %v1622, %v1626
      %v1628 = vadd.s32 %v1627, 536870912
      %v1629 = vshrl.u32 %v1628, 30
      %v1630 = vshll.u32 %v1629, 30
      %v1631 = vsub.s32 %v1627, %v1630
      %vm1632 = vcmp.lt.s32.totalorder %v1631, 0
      %v1633 = vsub.s32 0, %v1631
      %v1634 = vsel %vm1632, %v1633, %v1631
      %v1635 = vclz %v1634
      %v1636 = vsub.s32 %v1635, 2
      %vm1637 = vcmp.gt.s32.totalorder 0, %v1636
      %v1638 = vsel %vm1637, 0, %v1636
      %v1639 = vsub.s32 32, %v1638
      %v1640 = vshll.u32 %v1631, %v1638
      %v1641 = vshrl.u32 %v1623, %v1639
      %v1642 = vor.u32 %v1640, %v1641
      %v1643 = vsub.s32 4294967266, %v1638
      %v1644 = vadd.s32 %v1643, 127
      %v1645 = vshll.u32 %v1644, 23
      %v1646 = vor.u32 4788187, %v1645
      %v1647 = vand.u32 2147483647, %v1646
      %v1649 = vcvt.s32.f32 %v1642
      %v1650 = vmul.f32 %v1649, %v1647
      %v1651 = vxor.u32 %v1650, 2147483648
      %v1652 = vsel %vm1569, %v1651, %v1650
      %v1653 = vsub.s32 4, %v1629
      %v1654 = vsel %vm1569, %v1653, %v1629
      %v1655 = vsel %vm1568, %v370, %v1652
      %v1656 = vsel %vm1568, 0, %v1654
      %v1657 = vcosq.f32.pop %v1655
      %v1658 = vsinq.f32.pop %v1655
      %vm1659 = vweird.f32 %v370
      %v1660 = vadd.s32 %v1656, 3
      %v1661 = vand.u32 %v1660, 3
      %vm1662 = vcmp.lt.s32.totalorder %v1661, 2
      %vm1663 = vcmp.eq.s32.totalorder %v1661, 0
      %v1664 = vxor.u32 %v1658, 2147483648
      %v1665 = vsel %vm1663, %v1657, %v1664
      %vm1666 = vcmp.eq.s32.totalorder %v1661, 2
      %v1667 = vxor.u32 %v1657, 2147483648
      %v1668 = vsel %vm1666, %v1667, %v1658
      %v1669 = vsel %vm1662, %v1665, %v1668
      %v1670 = vsel %vm1659, nan, %v1669
      %v1671 = vand.u32 2147483647, %v371
      %vm1672 = vcmp.le.f32.partialorder %v1671, 0.7853982
      %vm1673 = vcmp.lt.s32.totalorder %v371, 0
      %v1674 = vand.u32 %v371, 2139095040
      %v1675 = vshrl.u32 %v1674, 23
      %v1676 = vsub.s32 %v1675, 127
      %v1677 = vand.u32 2147483647, %v371
      %v1678 = vand.u32 %v1677, 8388607
      %v1679 = vor.u32 %v1678, 8388608
      %v1680 = vsub.s32 0, %v1679
      %v1681 = vadd.s32 %v1676, 1
      %vm1682 = vcmp.gt.s32.totalorder %v1681, 0
      %v1683 = vsel %vm1682, %v1681, 0
      %v1684 = vshrl.u32 %v1683, 5
      %v1685 = vand.u32 %v1683, 31
      %v1686 = vsub.s32 32, %v1685
      %v1687 = vshrl.u32 683565275, %v1686
      %v1688 = vshll.u32 683565275, %v1685
      %v1689 = vshrl.u32 2475754826, %v1686
      %v1690 = vor.u32 %v1688, %v1689
      %v1691 = vshll.u32 2475754826, %v1685
      %v1692 = vshrl.u32 2131351028, %v1686
      %v1693 = vor.u32 %v1691, %v1692
      %v1694 = vshll.u32 2131351028, %v1685
      %v1695 = vshrl.u32 2102212464, %v1686
      %v1696 = vor.u32 %v1694, %v1695
      %v1697 = vshll.u32 2102212464, %v1685
      %v1698 = vshrl.u32 920167782, %v1686
      %v1699 = vor.u32 %v1697, %v1698
      %v1700 = vshll.u32 920167782, %v1685
      %v1701 = vshrl.u32 1326507024, %v1686
      %v1702 = vor.u32 %v1700, %v1701
      %vm1703 = vcmp.lt.s32.totalorder %v1684, 1
      %vm1704 = vcmp.lt.s32.totalorder %v1684, 2
      %vm1705 = vcmp.lt.s32.totalorder %v1684, 3
      %vm1706 = vcmp.lt.s32.totalorder %v1684, 4
      %v1707 = vsel %vm1703, %v1687, %v1690
      %v1708 = vsel %vm1706, %v1696, 2102212464
      %v1709 = vsel %vm1705, %v1693, %v1708
      %v1710 = vsel %vm1704, %v1707, %v1709
      %v1711 = vsel %vm1703, %v1690, %v1693
      %v1712 = vsel %vm1706, %v1699, 920167782
      %v1713 = vsel %vm1705, %v1696, %v1712
      %v1714 = vsel %vm1704, %v1711, %v1713
      %v1715 = vsel %vm1703, %v1693, %v1696
      %v1716 = vsel %vm1706, %v1702, 1326507024
      %v1717 = vsel %vm1705, %v1699, %v1716
      %v1718 = vsel %vm1704, %v1715, %v1717
      %v1719 = vshll.u32 %v1679, 8
      %v1720 = vmul.u32.u64.compose %v1719, %v1718
      %v1721 = vextract.low.u32 %v1720
      %v1722 = vextract.high.u32 %v1720
      %v1723 = vmul.u32.u64.compose %v1719, %v1714
      %v1724 = vextract.low.u32 %v1723
      %v1725 = vextract.high.u32 %v1723
      %v1726 = vmul.u32 %v1719, %v1710
      %v1727 = vadd.s32 %v1722, %v1724
      %vm1728 = vc.u32 %v1722, %v1724
      %v1729 = vadd.s32 %v1725, 1
      %v1730 = vsel %vm1728, %v1729, %v1725
      %v1731 = vadd.s32 %v1726, %v1730
      %v1732 = vadd.s32 %v1731, 536870912
      %v1733 = vshrl.u32 %v1732, 30
      %v1734 = vshll.u32 %v1733, 30
      %v1735 = vsub.s32 %v1731, %v1734
      %vm1736 = vcmp.lt.s32.totalorder %v1735, 0
      %v1737 = vsub.s32 0, %v1735
      %v1738 = vsel %vm1736, %v1737, %v1735
      %v1739 = vclz %v1738
      %v1740 = vsub.s32 %v1739, 2
      %vm1741 = vcmp.gt.s32.totalorder 0, %v1740
      %v1742 = vsel %vm1741, 0, %v1740
      %v1743 = vsub.s32 32, %v1742
      %v1744 = vshll.u32 %v1735, %v1742
      %v1745 = vshrl.u32 %v1727, %v1743
      %v1746 = vor.u32 %v1744, %v1745
      %v1747 = vsub.s32 4294967266, %v1742
      %v1748 = vadd.s32 %v1747, 127
      %v1749 = vshll.u32 %v1748, 23
      %v1750 = vor.u32 4788187, %v1749
      %v1751 = vand.u32 2147483647, %v1750
      %v1753 = vcvt.s32.f32 %v1746
      %v1754 = vmul.f32 %v1753, %v1751
      %v1755 = vxor.u32 %v1754, 2147483648
      %v1756 = vsel %vm1673, %v1755, %v1754
      %v1757 = vsub.s32 4, %v1733
      %v1758 = vsel %vm1673, %v1757, %v1733
      %v1759 = vsel %vm1672, %v371, %v1756
      %v1760 = vsel %vm1672, 0, %v1758
      %v1761 = vcosq.f32.pop %v1759
      %v1762 = vsinq.f32.pop %v1759
      %vm1763 = vweird.f32 %v371
      %v1764 = vadd.s32 %v1760, 3
      %v1765 = vand.u32 %v1764, 3
      %vm1766 = vcmp.lt.s32.totalorder %v1765, 2
      %vm1767 = vcmp.eq.s32.totalorder %v1765, 0
      %v1768 = vxor.u32 %v1762, 2147483648
      %v1769 = vsel %vm1767, %v1761, %v1768
      %vm1770 = vcmp.eq.s32.totalorder %v1765, 2
      %v1771 = vxor.u32 %v1761, 2147483648
      %v1772 = vsel %vm1770, %v1771, %v1762
      %v1773 = vsel %vm1766, %v1769, %v1772
      %v1774 = vsel %vm1763, nan, %v1773
      %v1775 = vand.u32 2147483647, %v372
      %vm1776 = vcmp.le.f32.partialorder %v1775, 0.7853982
      %vm1777 = vcmp.lt.s32.totalorder %v372, 0
      %v1778 = vand.u32 %v372, 2139095040
      %v1779 = vshrl.u32 %v1778, 23
      %v1780 = vsub.s32 %v1779, 127
      %v1781 = vand.u32 2147483647, %v372
      %v1782 = vand.u32 %v1781, 8388607
      %v1783 = vor.u32 %v1782, 8388608
      %v1784 = vsub.s32 0, %v1783
      %v1785 = vadd.s32 %v1780, 1
      %vm1786 = vcmp.gt.s32.totalorder %v1785, 0
      %v1787 = vsel %vm1786, %v1785, 0
      %v1788 = vshrl.u32 %v1787, 5
      %v1789 = vand.u32 %v1787, 31
      %v1790 = vsub.s32 32, %v1789
      %v1791 = vshrl.u32 683565275, %v1790
      %v1792 = vshll.u32 683565275, %v1789
      %v1793 = vshrl.u32 2475754826, %v1790
      %v1794 = vor.u32 %v1792, %v1793
      %v1795 = vshll.u32 2475754826, %v1789
      %v1796 = vshrl.u32 2131351028, %v1790
      %v1797 = vor.u32 %v1795, %v1796
      %v1798 = vshll.u32 2131351028, %v1789
      %v1799 = vshrl.u32 2102212464, %v1790
      %v1800 = vor.u32 %v1798, %v1799
      %v1801 = vshll.u32 2102212464, %v1789
      %v1802 = vshrl.u32 920167782, %v1790
      %v1803 = vor.u32 %v1801, %v1802
      %v1804 = vshll.u32 920167782, %v1789
      %v1805 = vshrl.u32 1326507024, %v1790
      %v1806 = vor.u32 %v1804, %v1805
      %vm1807 = vcmp.lt.s32.totalorder %v1788, 1
      %vm1808 = vcmp.lt.s32.totalorder %v1788, 2
      %vm1809 = vcmp.lt.s32.totalorder %v1788, 3
      %vm1810 = vcmp.lt.s32.totalorder %v1788, 4
      %v1811 = vsel %vm1807, %v1791, %v1794
      %v1812 = vsel %vm1810, %v1800, 2102212464
      %v1813 = vsel %vm1809, %v1797, %v1812
      %v1814 = vsel %vm1808, %v1811, %v1813
      %v1815 = vsel %vm1807, %v1794, %v1797
      %v1816 = vsel %vm1810, %v1803, 920167782
      %v1817 = vsel %vm1809, %v1800, %v1816
      %v1818 = vsel %vm1808, %v1815, %v1817
      %v1819 = vsel %vm1807, %v1797, %v1800
      %v1820 = vsel %vm1810, %v1806, 1326507024
      %v1821 = vsel %vm1809, %v1803, %v1820
      %v1822 = vsel %vm1808, %v1819, %v1821
      %v1823 = vshll.u32 %v1783, 8
      %v1824 = vmul.u32.u64.compose %v1823, %v1822
      %v1825 = vextract.low.u32 %v1824
      %v1826 = vextract.high.u32 %v1824
      %v1827 = vmul.u32.u64.compose %v1823, %v1818
      %v1828 = vextract.low.u32 %v1827
      %v1829 = vextract.high.u32 %v1827
      %v1830 = vmul.u32 %v1823, %v1814
      %v1831 = vadd.s32 %v1826, %v1828
      %vm1832 = vc.u32 %v1826, %v1828
      %v1833 = vadd.s32 %v1829, 1
      %v1834 = vsel %vm1832, %v1833, %v1829
      %v1835 = vadd.s32 %v1830, %v1834
      %v1836 = vadd.s32 %v1835, 536870912
      %v1837 = vshrl.u32 %v1836, 30
      %v1838 = vshll.u32 %v1837, 30
      %v1839 = vsub.s32 %v1835, %v1838
      %vm1840 = vcmp.lt.s32.totalorder %v1839, 0
      %v1841 = vsub.s32 0, %v1839
      %v1842 = vsel %vm1840, %v1841, %v1839
      %v1843 = vclz %v1842
      %v1844 = vsub.s32 %v1843, 2
      %vm1845 = vcmp.gt.s32.totalorder 0, %v1844
      %v1846 = vsel %vm1845, 0, %v1844
      %v1847 = vsub.s32 32, %v1846
      %v1848 = vshll.u32 %v1839, %v1846
      %v1849 = vshrl.u32 %v1831, %v1847
      %v1850 = vor.u32 %v1848, %v1849
      %v1851 = vsub.s32 4294967266, %v1846
      %v1852 = vadd.s32 %v1851, 127
      %v1853 = vshll.u32 %v1852, 23
      %v1854 = vor.u32 4788187, %v1853
      %v1855 = vand.u32 2147483647, %v1854
      %v1857 = vcvt.s32.f32 %v1850
      %v1858 = vmul.f32 %v1857, %v1855
      %v1859 = vxor.u32 %v1858, 2147483648
      %v1860 = vsel %vm1777, %v1859, %v1858
      %v1861 = vsub.s32 4, %v1837
      %v1862 = vsel %vm1777, %v1861, %v1837
      %v1863 = vsel %vm1776, %v372, %v1860
      %v1864 = vsel %vm1776, 0, %v1862
      %v1865 = vcosq.f32.pop %v1863
      %v1866 = vsinq.f32.pop %v1863
      %vm1867 = vweird.f32 %v372
      %v1868 = vadd.s32 %v1864, 3
      %v1869 = vand.u32 %v1868, 3
      %vm1870 = vcmp.lt.s32.totalorder %v1869, 2
      %vm1871 = vcmp.eq.s32.totalorder %v1869, 0
      %v1872 = vxor.u32 %v1866, 2147483648
      %v1873 = vsel %vm1871, %v1865, %v1872
      %vm1874 = vcmp.eq.s32.totalorder %v1869, 2
      %v1875 = vxor.u32 %v1865, 2147483648
      %v1876 = vsel %vm1874, %v1875, %v1866
      %v1877 = vsel %vm1870, %v1873, %v1876
      %v1878 = vsel %vm1867, nan, %v1877
      %v1879 = vand.u32 2147483647, %v373
      %vm1880 = vcmp.le.f32.partialorder %v1879, 0.7853982
      %vm1881 = vcmp.lt.s32.totalorder %v373, 0
      %v1882 = vand.u32 %v373, 2139095040
      %v1883 = vshrl.u32 %v1882, 23
      %v1884 = vsub.s32 %v1883, 127
      %v1885 = vand.u32 2147483647, %v373
      %v1886 = vand.u32 %v1885, 8388607
      %v1887 = vor.u32 %v1886, 8388608
      %v1888 = vsub.s32 0, %v1887
      %v1889 = vadd.s32 %v1884, 1
      %vm1890 = vcmp.gt.s32.totalorder %v1889, 0
      %v1891 = vsel %vm1890, %v1889, 0
      %v1892 = vshrl.u32 %v1891, 5
      %v1893 = vand.u32 %v1891, 31
      %v1894 = vsub.s32 32, %v1893
      %v1895 = vshrl.u32 683565275, %v1894
      %v1896 = vshll.u32 683565275, %v1893
      %v1897 = vshrl.u32 2475754826, %v1894
      %v1898 = vor.u32 %v1896, %v1897
      %v1899 = vshll.u32 2475754826, %v1893
      %v1900 = vshrl.u32 2131351028, %v1894
      %v1901 = vor.u32 %v1899, %v1900
      %v1902 = vshll.u32 2131351028, %v1893
      %v1903 = vshrl.u32 2102212464, %v1894
      %v1904 = vor.u32 %v1902, %v1903
      %v1905 = vshll.u32 2102212464, %v1893
      %v1906 = vshrl.u32 920167782, %v1894
      %v1907 = vor.u32 %v1905, %v1906
      %v1908 = vshll.u32 920167782, %v1893
      %v1909 = vshrl.u32 1326507024, %v1894
      %v1910 = vor.u32 %v1908, %v1909
      %vm1911 = vcmp.lt.s32.totalorder %v1892, 1
      %vm1912 = vcmp.lt.s32.totalorder %v1892, 2
      %vm1913 = vcmp.lt.s32.totalorder %v1892, 3
      %vm1914 = vcmp.lt.s32.totalorder %v1892, 4
      %v1915 = vsel %vm1911, %v1895, %v1898
      %v1916 = vsel %vm1914, %v1904, 2102212464
      %v1917 = vsel %vm1913, %v1901, %v1916
      %v1918 = vsel %vm1912, %v1915, %v1917
      %v1919 = vsel %vm1911, %v1898, %v1901
      %v1920 = vsel %vm1914, %v1907, 920167782
      %v1921 = vsel %vm1913, %v1904, %v1920
      %v1922 = vsel %vm1912, %v1919, %v1921
      %v1923 = vsel %vm1911, %v1901, %v1904
      %v1924 = vsel %vm1914, %v1910, 1326507024
      %v1925 = vsel %vm1913, %v1907, %v1924
      %v1926 = vsel %vm1912, %v1923, %v1925
      %v1927 = vshll.u32 %v1887, 8
      %v1928 = vmul.u32.u64.compose %v1927, %v1926
      %v1929 = vextract.low.u32 %v1928
      %v1930 = vextract.high.u32 %v1928
      %v1931 = vmul.u32.u64.compose %v1927, %v1922
      %v1932 = vextract.low.u32 %v1931
      %v1933 = vextract.high.u32 %v1931
      %v1934 = vmul.u32 %v1927, %v1918
      %v1935 = vadd.s32 %v1930, %v1932
      %vm1936 = vc.u32 %v1930, %v1932
      %v1937 = vadd.s32 %v1933, 1
      %v1938 = vsel %vm1936, %v1937, %v1933
      %v1939 = vadd.s32 %v1934, %v1938
      %v1940 = vadd.s32 %v1939, 536870912
      %v1941 = vshrl.u32 %v1940, 30
      %v1942 = vshll.u32 %v1941, 30
      %v1943 = vsub.s32 %v1939, %v1942
      %vm1944 = vcmp.lt.s32.totalorder %v1943, 0
      %v1945 = vsub.s32 0, %v1943
      %v1946 = vsel %vm1944, %v1945, %v1943
      %v1947 = vclz %v1946
      %v1948 = vsub.s32 %v1947, 2
      %vm1949 = vcmp.gt.s32.totalorder 0, %v1948
      %v1950 = vsel %vm1949, 0, %v1948
      %v1951 = vsub.s32 32, %v1950
      %v1952 = vshll.u32 %v1943, %v1950
      %v1953 = vshrl.u32 %v1935, %v1951
      %v1954 = vor.u32 %v1952, %v1953
      %v1955 = vsub.s32 4294967266, %v1950
      %v1956 = vadd.s32 %v1955, 127
      %v1957 = vshll.u32 %v1956, 23
      %v1958 = vor.u32 4788187, %v1957
      %v1959 = vand.u32 2147483647, %v1958
      %v1961 = vcvt.s32.f32 %v1954
      %v1962 = vmul.f32 %v1961, %v1959
      %v1963 = vxor.u32 %v1962, 2147483648
      %v1964 = vsel %vm1881, %v1963, %v1962
      %v1965 = vsub.s32 4, %v1941
      %v1966 = vsel %vm1881, %v1965, %v1941
      %v1967 = vsel %vm1880, %v373, %v1964
      %v1968 = vsel %vm1880, 0, %v1966
      %v1969 = vcosq.f32.pop %v1967
      %v1970 = vsinq.f32.pop %v1967
      %vm1971 = vweird.f32 %v373
      %v1972 = vadd.s32 %v1968, 3
      %v1973 = vand.u32 %v1972, 3
      %vm1974 = vcmp.lt.s32.totalorder %v1973, 2
      %vm1975 = vcmp.eq.s32.totalorder %v1973, 0
      %v1976 = vxor.u32 %v1970, 2147483648
      %v1977 = vsel %vm1975, %v1969, %v1976
      %vm1978 = vcmp.eq.s32.totalorder %v1973, 2
      %v1979 = vxor.u32 %v1969, 2147483648
      %v1980 = vsel %vm1978, %v1979, %v1970
      %v1981 = vsel %vm1974, %v1977, %v1980
      %v1982 = vsel %vm1971, nan, %v1981
      %v1983 = vand.u32 2147483647, %v374
      %vm1984 = vcmp.le.f32.partialorder %v1983, 0.7853982
      %vm1985 = vcmp.lt.s32.totalorder %v374, 0
      %v1986 = vand.u32 %v374, 2139095040
      %v1987 = vshrl.u32 %v1986, 23
      %v1988 = vsub.s32 %v1987, 127
      %v1989 = vand.u32 2147483647, %v374
      %v1990 = vand.u32 %v1989, 8388607
      %v1991 = vor.u32 %v1990, 8388608
      %v1992 = vsub.s32 0, %v1991
      %v1993 = vadd.s32 %v1988, 1
      %vm1994 = vcmp.gt.s32.totalorder %v1993, 0
      %v1995 = vsel %vm1994, %v1993, 0
      %v1996 = vshrl.u32 %v1995, 5
      %v1997 = vand.u32 %v1995, 31
      %v1998 = vsub.s32 32, %v1997
      %v1999 = vshrl.u32 683565275, %v1998
      %v2000 = vshll.u32 683565275, %v1997
      %v2001 = vshrl.u32 2475754826, %v1998
      %v2002 = vor.u32 %v2000, %v2001
      %v2003 = vshll.u32 2475754826, %v1997
      %v2004 = vshrl.u32 2131351028, %v1998
      %v2005 = vor.u32 %v2003, %v2004
      %v2006 = vshll.u32 2131351028, %v1997
      %v2007 = vshrl.u32 2102212464, %v1998
      %v2008 = vor.u32 %v2006, %v2007
      %v2009 = vshll.u32 2102212464, %v1997
      %v2010 = vshrl.u32 920167782, %v1998
      %v2011 = vor.u32 %v2009, %v2010
      %v2012 = vshll.u32 920167782, %v1997
      %v2013 = vshrl.u32 1326507024, %v1998
      %v2014 = vor.u32 %v2012, %v2013
      %vm2015 = vcmp.lt.s32.totalorder %v1996, 1
      %vm2016 = vcmp.lt.s32.totalorder %v1996, 2
      %vm2017 = vcmp.lt.s32.totalorder %v1996, 3
      %vm2018 = vcmp.lt.s32.totalorder %v1996, 4
      %v2019 = vsel %vm2015, %v1999, %v2002
      %v2020 = vsel %vm2018, %v2008, 2102212464
      %v2021 = vsel %vm2017, %v2005, %v2020
      %v2022 = vsel %vm2016, %v2019, %v2021
      %v2023 = vsel %vm2015, %v2002, %v2005
      %v2024 = vsel %vm2018, %v2011, 920167782
      %v2025 = vsel %vm2017, %v2008, %v2024
      %v2026 = vsel %vm2016, %v2023, %v2025
      %v2027 = vsel %vm2015, %v2005, %v2008
      %v2028 = vsel %vm2018, %v2014, 1326507024
      %v2029 = vsel %vm2017, %v2011, %v2028
      %v2030 = vsel %vm2016, %v2027, %v2029
      %v2031 = vshll.u32 %v1991, 8
      %v2032 = vmul.u32.u64.compose %v2031, %v2030
      %v2033 = vextract.low.u32 %v2032
      %v2034 = vextract.high.u32 %v2032
      %v2035 = vmul.u32.u64.compose %v2031, %v2026
      %v2036 = vextract.low.u32 %v2035
      %v2037 = vextract.high.u32 %v2035
      %v2038 = vmul.u32 %v2031, %v2022
      %v2039 = vadd.s32 %v2034, %v2036
      %vm2040 = vc.u32 %v2034, %v2036
      %v2041 = vadd.s32 %v2037, 1
      %v2042 = vsel %vm2040, %v2041, %v2037
      %v2043 = vadd.s32 %v2038, %v2042
      %v2044 = vadd.s32 %v2043, 536870912
      %v2045 = vshrl.u32 %v2044, 30
      %v2046 = vshll.u32 %v2045, 30
      %v2047 = vsub.s32 %v2043, %v2046
      %vm2048 = vcmp.lt.s32.totalorder %v2047, 0
      %v2049 = vsub.s32 0, %v2047
      %v2050 = vsel %vm2048, %v2049, %v2047
      %v2051 = vclz %v2050
      %v2052 = vsub.s32 %v2051, 2
      %vm2053 = vcmp.gt.s32.totalorder 0, %v2052
      %v2054 = vsel %vm2053, 0, %v2052
      %v2055 = vsub.s32 32, %v2054
      %v2056 = vshll.u32 %v2047, %v2054
      %v2057 = vshrl.u32 %v2039, %v2055
      %v2058 = vor.u32 %v2056, %v2057
      %v2059 = vsub.s32 4294967266, %v2054
      %v2060 = vadd.s32 %v2059, 127
      %v2061 = vshll.u32 %v2060, 23
      %v2062 = vor.u32 4788187, %v2061
      %v2063 = vand.u32 2147483647, %v2062
      %v2065 = vcvt.s32.f32 %v2058
      %v2066 = vmul.f32 %v2065, %v2063
      %v2067 = vxor.u32 %v2066, 2147483648
      %v2068 = vsel %vm1985, %v2067, %v2066
      %v2069 = vsub.s32 4, %v2045
      %v2070 = vsel %vm1985, %v2069, %v2045
      %v2071 = vsel %vm1984, %v374, %v2068
      %v2072 = vsel %vm1984, 0, %v2070
      %v2073 = vcosq.f32.pop %v2071
      %v2074 = vsinq.f32.pop %v2071
      %vm2075 = vweird.f32 %v374
      %v2076 = vadd.s32 %v2072, 3
      %v2077 = vand.u32 %v2076, 3
      %vm2078 = vcmp.lt.s32.totalorder %v2077, 2
      %vm2079 = vcmp.eq.s32.totalorder %v2077, 0
      %v2080 = vxor.u32 %v2074, 2147483648
      %v2081 = vsel %vm2079, %v2073, %v2080
      %vm2082 = vcmp.eq.s32.totalorder %v2077, 2
      %v2083 = vxor.u32 %v2073, 2147483648
      %v2084 = vsel %vm2082, %v2083, %v2074
      %v2085 = vsel %vm2078, %v2081, %v2084
      %v2086 = vsel %vm2075, nan, %v2085
      %v2087 = vand.u32 2147483647, %v375
      %vm2088 = vcmp.le.f32.partialorder %v2087, 0.7853982
      %vm2089 = vcmp.lt.s32.totalorder %v375, 0
      %v2090 = vand.u32 %v375, 2139095040
      %v2091 = vshrl.u32 %v2090, 23
      %v2092 = vsub.s32 %v2091, 127
      %v2093 = vand.u32 2147483647, %v375
      %v2094 = vand.u32 %v2093, 8388607
      %v2095 = vor.u32 %v2094, 8388608
      %v2096 = vsub.s32 0, %v2095
      %v2097 = vadd.s32 %v2092, 1
      %vm2098 = vcmp.gt.s32.totalorder %v2097, 0
      %v2099 = vsel %vm2098, %v2097, 0
      %v2100 = vshrl.u32 %v2099, 5
      %v2101 = vand.u32 %v2099, 31
      %v2102 = vsub.s32 32, %v2101
      %v2103 = vshrl.u32 683565275, %v2102
      %v2104 = vshll.u32 683565275, %v2101
      %v2105 = vshrl.u32 2475754826, %v2102
      %v2106 = vor.u32 %v2104, %v2105
      %v2107 = vshll.u32 2475754826, %v2101
      %v2108 = vshrl.u32 2131351028, %v2102
      %v2109 = vor.u32 %v2107, %v2108
      %v2110 = vshll.u32 2131351028, %v2101
      %v2111 = vshrl.u32 2102212464, %v2102
      %v2112 = vor.u32 %v2110, %v2111
      %v2113 = vshll.u32 2102212464, %v2101
      %v2114 = vshrl.u32 920167782, %v2102
      %v2115 = vor.u32 %v2113, %v2114
      %v2116 = vshll.u32 920167782, %v2101
      %v2117 = vshrl.u32 1326507024, %v2102
      %v2118 = vor.u32 %v2116, %v2117
      %vm2119 = vcmp.lt.s32.totalorder %v2100, 1
      %vm2120 = vcmp.lt.s32.totalorder %v2100, 2
      %vm2121 = vcmp.lt.s32.totalorder %v2100, 3
      %vm2122 = vcmp.lt.s32.totalorder %v2100, 4
      %v2123 = vsel %vm2119, %v2103, %v2106
      %v2124 = vsel %vm2122, %v2112, 2102212464
      %v2125 = vsel %vm2121, %v2109, %v2124
      %v2126 = vsel %vm2120, %v2123, %v2125
      %v2127 = vsel %vm2119, %v2106, %v2109
      %v2128 = vsel %vm2122, %v2115, 920167782
      %v2129 = vsel %vm2121, %v2112, %v2128
      %v2130 = vsel %vm2120, %v2127, %v2129
      %v2131 = vsel %vm2119, %v2109, %v2112
      %v2132 = vsel %vm2122, %v2118, 1326507024
      %v2133 = vsel %vm2121, %v2115, %v2132
      %v2134 = vsel %vm2120, %v2131, %v2133
      %v2135 = vshll.u32 %v2095, 8
      %v2136 = vmul.u32.u64.compose %v2135, %v2134
      %v2137 = vextract.low.u32 %v2136
      %v2138 = vextract.high.u32 %v2136
      %v2139 = vmul.u32.u64.compose %v2135, %v2130
      %v2140 = vextract.low.u32 %v2139
      %v2141 = vextract.high.u32 %v2139
      %v2142 = vmul.u32 %v2135, %v2126
      %v2143 = vadd.s32 %v2138, %v2140
      %vm2144 = vc.u32 %v2138, %v2140
      %v2145 = vadd.s32 %v2141, 1
      %v2146 = vsel %vm2144, %v2145, %v2141
      %v2147 = vadd.s32 %v2142, %v2146
      %v2148 = vadd.s32 %v2147, 536870912
      %v2149 = vshrl.u32 %v2148, 30
      %v2150 = vshll.u32 %v2149, 30
      %v2151 = vsub.s32 %v2147, %v2150
      %vm2152 = vcmp.lt.s32.totalorder %v2151, 0
      %v2153 = vsub.s32 0, %v2151
      %v2154 = vsel %vm2152, %v2153, %v2151
      %v2155 = vclz %v2154
      %v2156 = vsub.s32 %v2155, 2
      %vm2157 = vcmp.gt.s32.totalorder 0, %v2156
      %v2158 = vsel %vm2157, 0, %v2156
      %v2159 = vsub.s32 32, %v2158
      %v2160 = vshll.u32 %v2151, %v2158
      %v2161 = vshrl.u32 %v2143, %v2159
      %v2162 = vor.u32 %v2160, %v2161
      %v2163 = vsub.s32 4294967266, %v2158
      %v2164 = vadd.s32 %v2163, 127
      %v2165 = vshll.u32 %v2164, 23
      %v2166 = vor.u32 4788187, %v2165
      %v2167 = vand.u32 2147483647, %v2166
      %v2169 = vcvt.s32.f32 %v2162
      %v2170 = vmul.f32 %v2169, %v2167
      %v2171 = vxor.u32 %v2170, 2147483648
      %v2172 = vsel %vm2089, %v2171, %v2170
      %v2173 = vsub.s32 4, %v2149
      %v2174 = vsel %vm2089, %v2173, %v2149
      %v2175 = vsel %vm2088, %v375, %v2172
      %v2176 = vsel %vm2088, 0, %v2174
      %v2177 = vcosq.f32.pop %v2175
      %v2178 = vsinq.f32.pop %v2175
      %vm2179 = vweird.f32 %v375
      %v2180 = vadd.s32 %v2176, 3
      %v2181 = vand.u32 %v2180, 3
      %vm2182 = vcmp.lt.s32.totalorder %v2181, 2
      %vm2183 = vcmp.eq.s32.totalorder %v2181, 0
      %v2184 = vxor.u32 %v2178, 2147483648
      %v2185 = vsel %vm2183, %v2177, %v2184
      %vm2186 = vcmp.eq.s32.totalorder %v2181, 2
      %v2187 = vxor.u32 %v2177, 2147483648
      %v2188 = vsel %vm2186, %v2187, %v2178
      %v2189 = vsel %vm2182, %v2185, %v2188
      %v2190 = vsel %vm2179, nan, %v2189
      %v2191 = vand.u32 2147483647, %v376
      %vm2192 = vcmp.le.f32.partialorder %v2191, 0.7853982
      %vm2193 = vcmp.lt.s32.totalorder %v376, 0
      %v2194 = vand.u32 %v376, 2139095040
      %v2195 = vshrl.u32 %v2194, 23
      %v2196 = vsub.s32 %v2195, 127
      %v2197 = vand.u32 2147483647, %v376
      %v2198 = vand.u32 %v2197, 8388607
      %v2199 = vor.u32 %v2198, 8388608
      %v2200 = vsub.s32 0, %v2199
      %v2201 = vadd.s32 %v2196, 1
      %vm2202 = vcmp.gt.s32.totalorder %v2201, 0
      %v2203 = vsel %vm2202, %v2201, 0
      %v2204 = vshrl.u32 %v2203, 5
      %v2205 = vand.u32 %v2203, 31
      %v2206 = vsub.s32 32, %v2205
      %v2207 = vshrl.u32 683565275, %v2206
      %v2208 = vshll.u32 683565275, %v2205
      %v2209 = vshrl.u32 2475754826, %v2206
      %v2210 = vor.u32 %v2208, %v2209
      %v2211 = vshll.u32 2475754826, %v2205
      %v2212 = vshrl.u32 2131351028, %v2206
      %v2213 = vor.u32 %v2211, %v2212
      %v2214 = vshll.u32 2131351028, %v2205
      %v2215 = vshrl.u32 2102212464, %v2206
      %v2216 = vor.u32 %v2214, %v2215
      %v2217 = vshll.u32 2102212464, %v2205
      %v2218 = vshrl.u32 920167782, %v2206
      %v2219 = vor.u32 %v2217, %v2218
      %v2220 = vshll.u32 920167782, %v2205
      %v2221 = vshrl.u32 1326507024, %v2206
      %v2222 = vor.u32 %v2220, %v2221
      %vm2223 = vcmp.lt.s32.totalorder %v2204, 1
      %vm2224 = vcmp.lt.s32.totalorder %v2204, 2
      %vm2225 = vcmp.lt.s32.totalorder %v2204, 3
      %vm2226 = vcmp.lt.s32.totalorder %v2204, 4
      %v2227 = vsel %vm2223, %v2207, %v2210
      %v2228 = vsel %vm2226, %v2216, 2102212464
      %v2229 = vsel %vm2225, %v2213, %v2228
      %v2230 = vsel %vm2224, %v2227, %v2229
      %v2231 = vsel %vm2223, %v2210, %v2213
      %v2232 = vsel %vm2226, %v2219, 920167782
      %v2233 = vsel %vm2225, %v2216, %v2232
      %v2234 = vsel %vm2224, %v2231, %v2233
      %v2235 = vsel %vm2223, %v2213, %v2216
      %v2236 = vsel %vm2226, %v2222, 1326507024
      %v2237 = vsel %vm2225, %v2219, %v2236
      %v2238 = vsel %vm2224, %v2235, %v2237
      %v2239 = vshll.u32 %v2199, 8
      %v2240 = vmul.u32.u64.compose %v2239, %v2238
      %v2241 = vextract.low.u32 %v2240
      %v2242 = vextract.high.u32 %v2240
      %v2243 = vmul.u32.u64.compose %v2239, %v2234
      %v2244 = vextract.low.u32 %v2243
      %v2245 = vextract.high.u32 %v2243
      %v2246 = vmul.u32 %v2239, %v2230
      %v2247 = vadd.s32 %v2242, %v2244
      %vm2248 = vc.u32 %v2242, %v2244
      %v2249 = vadd.s32 %v2245, 1
      %v2250 = vsel %vm2248, %v2249, %v2245
      %v2251 = vadd.s32 %v2246, %v2250
      %v2252 = vadd.s32 %v2251, 536870912
      %v2253 = vshrl.u32 %v2252, 30
      %v2254 = vshll.u32 %v2253, 30
      %v2255 = vsub.s32 %v2251, %v2254
      %vm2256 = vcmp.lt.s32.totalorder %v2255, 0
      %v2257 = vsub.s32 0, %v2255
      %v2258 = vsel %vm2256, %v2257, %v2255
      %v2259 = vclz %v2258
      %v2260 = vsub.s32 %v2259, 2
      %vm2261 = vcmp.gt.s32.totalorder 0, %v2260
      %v2262 = vsel %vm2261, 0, %v2260
      %v2263 = vsub.s32 32, %v2262
      %v2264 = vshll.u32 %v2255, %v2262
      %v2265 = vshrl.u32 %v2247, %v2263
      %v2266 = vor.u32 %v2264, %v2265
      %v2267 = vsub.s32 4294967266, %v2262
      %v2268 = vadd.s32 %v2267, 127
      %v2269 = vshll.u32 %v2268, 23
      %v2270 = vor.u32 4788187, %v2269
      %v2271 = vand.u32 2147483647, %v2270
      %v2273 = vcvt.s32.f32 %v2266
      %v2274 = vmul.f32 %v2273, %v2271
      %v2275 = vxor.u32 %v2274, 2147483648
      %v2276 = vsel %vm2193, %v2275, %v2274
      %v2277 = vsub.s32 4, %v2253
      %v2278 = vsel %vm2193, %v2277, %v2253
      %v2279 = vsel %vm2192, %v376, %v2276
      %v2280 = vsel %vm2192, 0, %v2278
      %v2281 = vcosq.f32.pop %v2279
      %v2282 = vsinq.f32.pop %v2279
      %vm2283 = vweird.f32 %v376
      %v2284 = vadd.s32 %v2280, 3
      %v2285 = vand.u32 %v2284, 3
      %vm2286 = vcmp.lt.s32.totalorder %v2285, 2
      %vm2287 = vcmp.eq.s32.totalorder %v2285, 0
      %v2288 = vxor.u32 %v2282, 2147483648
      %v2289 = vsel %vm2287, %v2281, %v2288
      %vm2290 = vcmp.eq.s32.totalorder %v2285, 2
      %v2291 = vxor.u32 %v2281, 2147483648
      %v2292 = vsel %vm2290, %v2291, %v2282
      %v2293 = vsel %vm2286, %v2289, %v2292
      %v2294 = vsel %vm2283, nan, %v2293
      %v2295 = vand.u32 2147483647, %v377
      %vm2296 = vcmp.le.f32.partialorder %v2295, 0.7853982
      %vm2297 = vcmp.lt.s32.totalorder %v377, 0
      %v2298 = vand.u32 %v377, 2139095040
      %v2299 = vshrl.u32 %v2298, 23
      %v2300 = vsub.s32 %v2299, 127
      %v2301 = vand.u32 2147483647, %v377
      %v2302 = vand.u32 %v2301, 8388607
      %v2303 = vor.u32 %v2302, 8388608
      %v2304 = vsub.s32 0, %v2303
      %v2305 = vadd.s32 %v2300, 1
      %vm2306 = vcmp.gt.s32.totalorder %v2305, 0
      %v2307 = vsel %vm2306, %v2305, 0
      %v2308 = vshrl.u32 %v2307, 5
      %v2309 = vand.u32 %v2307, 31
      %v2310 = vsub.s32 32, %v2309
      %v2311 = vshrl.u32 683565275, %v2310
      %v2312 = vshll.u32 683565275, %v2309
      %v2313 = vshrl.u32 2475754826, %v2310
      %v2314 = vor.u32 %v2312, %v2313
      %v2315 = vshll.u32 2475754826, %v2309
      %v2316 = vshrl.u32 2131351028, %v2310
      %v2317 = vor.u32 %v2315, %v2316
      %v2318 = vshll.u32 2131351028, %v2309
      %v2319 = vshrl.u32 2102212464, %v2310
      %v2320 = vor.u32 %v2318, %v2319
      %v2321 = vshll.u32 2102212464, %v2309
      %v2322 = vshrl.u32 920167782, %v2310
      %v2323 = vor.u32 %v2321, %v2322
      %v2324 = vshll.u32 920167782, %v2309
      %v2325 = vshrl.u32 1326507024, %v2310
      %v2326 = vor.u32 %v2324, %v2325
      %vm2327 = vcmp.lt.s32.totalorder %v2308, 1
      %vm2328 = vcmp.lt.s32.totalorder %v2308, 2
      %vm2329 = vcmp.lt.s32.totalorder %v2308, 3
      %vm2330 = vcmp.lt.s32.totalorder %v2308, 4
      %v2331 = vsel %vm2327, %v2311, %v2314
      %v2332 = vsel %vm2330, %v2320, 2102212464
      %v2333 = vsel %vm2329, %v2317, %v2332
      %v2334 = vsel %vm2328, %v2331, %v2333
      %v2335 = vsel %vm2327, %v2314, %v2317
      %v2336 = vsel %vm2330, %v2323, 920167782
      %v2337 = vsel %vm2329, %v2320, %v2336
      %v2338 = vsel %vm2328, %v2335, %v2337
      %v2339 = vsel %vm2327, %v2317, %v2320
      %v2340 = vsel %vm2330, %v2326, 1326507024
      %v2341 = vsel %vm2329, %v2323, %v2340
      %v2342 = vsel %vm2328, %v2339, %v2341
      %v2343 = vshll.u32 %v2303, 8
      %v2344 = vmul.u32.u64.compose %v2343, %v2342
      %v2345 = vextract.low.u32 %v2344
      %v2346 = vextract.high.u32 %v2344
      %v2347 = vmul.u32.u64.compose %v2343, %v2338
      %v2348 = vextract.low.u32 %v2347
      %v2349 = vextract.high.u32 %v2347
      %v2350 = vmul.u32 %v2343, %v2334
      %v2351 = vadd.s32 %v2346, %v2348
      %vm2352 = vc.u32 %v2346, %v2348
      %v2353 = vadd.s32 %v2349, 1
      %v2354 = vsel %vm2352, %v2353, %v2349
      %v2355 = vadd.s32 %v2350, %v2354
      %v2356 = vadd.s32 %v2355, 536870912
      %v2357 = vshrl.u32 %v2356, 30
      %v2358 = vshll.u32 %v2357, 30
      %v2359 = vsub.s32 %v2355, %v2358
      %vm2360 = vcmp.lt.s32.totalorder %v2359, 0
      %v2361 = vsub.s32 0, %v2359
      %v2362 = vsel %vm2360, %v2361, %v2359
      %v2363 = vclz %v2362
      %v2364 = vsub.s32 %v2363, 2
      %vm2365 = vcmp.gt.s32.totalorder 0, %v2364
      %v2366 = vsel %vm2365, 0, %v2364
      %v2367 = vsub.s32 32, %v2366
      %v2368 = vshll.u32 %v2359, %v2366
      %v2369 = vshrl.u32 %v2351, %v2367
      %v2370 = vor.u32 %v2368, %v2369
      %v2371 = vsub.s32 4294967266, %v2366
      %v2372 = vadd.s32 %v2371, 127
      %v2373 = vshll.u32 %v2372, 23
      %v2374 = vor.u32 4788187, %v2373
      %v2375 = vand.u32 2147483647, %v2374
      %v2377 = vcvt.s32.f32 %v2370
      %v2378 = vmul.f32 %v2377, %v2375
      %v2379 = vxor.u32 %v2378, 2147483648
      %v2380 = vsel %vm2297, %v2379, %v2378
      %v2381 = vsub.s32 4, %v2357
      %v2382 = vsel %vm2297, %v2381, %v2357
      %v2383 = vsel %vm2296, %v377, %v2380
      %v2384 = vsel %vm2296, 0, %v2382
      %v2385 = vcosq.f32.pop %v2383
      %v2386 = vsinq.f32.pop %v2383
      %vm2387 = vweird.f32 %v377
      %v2388 = vadd.s32 %v2384, 3
      %v2389 = vand.u32 %v2388, 3
      %vm2390 = vcmp.lt.s32.totalorder %v2389, 2
      %vm2391 = vcmp.eq.s32.totalorder %v2389, 0
      %v2392 = vxor.u32 %v2386, 2147483648
      %v2393 = vsel %vm2391, %v2385, %v2392
      %vm2394 = vcmp.eq.s32.totalorder %v2389, 2
      %v2395 = vxor.u32 %v2385, 2147483648
      %v2396 = vsel %vm2394, %v2395, %v2386
      %v2397 = vsel %vm2390, %v2393, %v2396
      %v2398 = vsel %vm2387, nan, %v2397
      %v2399 = vand.u32 2147483647, %v378
      %vm2400 = vcmp.le.f32.partialorder %v2399, 0.7853982
      %vm2401 = vcmp.lt.s32.totalorder %v378, 0
      %v2402 = vand.u32 %v378, 2139095040
      %v2403 = vshrl.u32 %v2402, 23
      %v2404 = vsub.s32 %v2403, 127
      %v2405 = vand.u32 2147483647, %v378
      %v2406 = vand.u32 %v2405, 8388607
      %v2407 = vor.u32 %v2406, 8388608
      %v2408 = vsub.s32 0, %v2407
      %v2409 = vadd.s32 %v2404, 1
      %vm2410 = vcmp.gt.s32.totalorder %v2409, 0
      %v2411 = vsel %vm2410, %v2409, 0
      %v2412 = vshrl.u32 %v2411, 5
      %v2413 = vand.u32 %v2411, 31
      %v2414 = vsub.s32 32, %v2413
      %v2415 = vshrl.u32 683565275, %v2414
      %v2416 = vshll.u32 683565275, %v2413
      %v2417 = vshrl.u32 2475754826, %v2414
      %v2418 = vor.u32 %v2416, %v2417
      %v2419 = vshll.u32 2475754826, %v2413
      %v2420 = vshrl.u32 2131351028, %v2414
      %v2421 = vor.u32 %v2419, %v2420
      %v2422 = vshll.u32 2131351028, %v2413
      %v2423 = vshrl.u32 2102212464, %v2414
      %v2424 = vor.u32 %v2422, %v2423
      %v2425 = vshll.u32 2102212464, %v2413
      %v2426 = vshrl.u32 920167782, %v2414
      %v2427 = vor.u32 %v2425, %v2426
      %v2428 = vshll.u32 920167782, %v2413
      %v2429 = vshrl.u32 1326507024, %v2414
      %v2430 = vor.u32 %v2428, %v2429
      %vm2431 = vcmp.lt.s32.totalorder %v2412, 1
      %vm2432 = vcmp.lt.s32.totalorder %v2412, 2
      %vm2433 = vcmp.lt.s32.totalorder %v2412, 3
      %vm2434 = vcmp.lt.s32.totalorder %v2412, 4
      %v2435 = vsel %vm2431, %v2415, %v2418
      %v2436 = vsel %vm2434, %v2424, 2102212464
      %v2437 = vsel %vm2433, %v2421, %v2436
      %v2438 = vsel %vm2432, %v2435, %v2437
      %v2439 = vsel %vm2431, %v2418, %v2421
      %v2440 = vsel %vm2434, %v2427, 920167782
      %v2441 = vsel %vm2433, %v2424, %v2440
      %v2442 = vsel %vm2432, %v2439, %v2441
      %v2443 = vsel %vm2431, %v2421, %v2424
      %v2444 = vsel %vm2434, %v2430, 1326507024
      %v2445 = vsel %vm2433, %v2427, %v2444
      %v2446 = vsel %vm2432, %v2443, %v2445
      %v2447 = vshll.u32 %v2407, 8
      %v2448 = vmul.u32.u64.compose %v2447, %v2446
      %v2449 = vextract.low.u32 %v2448
      %v2450 = vextract.high.u32 %v2448
      %v2451 = vmul.u32.u64.compose %v2447, %v2442
      %v2452 = vextract.low.u32 %v2451
      %v2453 = vextract.high.u32 %v2451
      %v2454 = vmul.u32 %v2447, %v2438
      %v2455 = vadd.s32 %v2450, %v2452
      %vm2456 = vc.u32 %v2450, %v2452
      %v2457 = vadd.s32 %v2453, 1
      %v2458 = vsel %vm2456, %v2457, %v2453
      %v2459 = vadd.s32 %v2454, %v2458
      %v2460 = vadd.s32 %v2459, 536870912
      %v2461 = vshrl.u32 %v2460, 30
      %v2462 = vshll.u32 %v2461, 30
      %v2463 = vsub.s32 %v2459, %v2462
      %vm2464 = vcmp.lt.s32.totalorder %v2463, 0
      %v2465 = vsub.s32 0, %v2463
      %v2466 = vsel %vm2464, %v2465, %v2463
      %v2467 = vclz %v2466
      %v2468 = vsub.s32 %v2467, 2
      %vm2469 = vcmp.gt.s32.totalorder 0, %v2468
      %v2470 = vsel %vm2469, 0, %v2468
      %v2471 = vsub.s32 32, %v2470
      %v2472 = vshll.u32 %v2463, %v2470
      %v2473 = vshrl.u32 %v2455, %v2471
      %v2474 = vor.u32 %v2472, %v2473
      %v2475 = vsub.s32 4294967266, %v2470
      %v2476 = vadd.s32 %v2475, 127
      %v2477 = vshll.u32 %v2476, 23
      %v2478 = vor.u32 4788187, %v2477
      %v2479 = vand.u32 2147483647, %v2478
      %v2481 = vcvt.s32.f32 %v2474
      %v2482 = vmul.f32 %v2481, %v2479
      %v2483 = vxor.u32 %v2482, 2147483648
      %v2484 = vsel %vm2401, %v2483, %v2482
      %v2485 = vsub.s32 4, %v2461
      %v2486 = vsel %vm2401, %v2485, %v2461
      %v2487 = vsel %vm2400, %v378, %v2484
      %v2488 = vsel %vm2400, 0, %v2486
      %v2489 = vcosq.f32.pop %v2487
      %v2490 = vsinq.f32.pop %v2487
      %vm2491 = vweird.f32 %v378
      %v2492 = vadd.s32 %v2488, 3
      %v2493 = vand.u32 %v2492, 3
      %vm2494 = vcmp.lt.s32.totalorder %v2493, 2
      %vm2495 = vcmp.eq.s32.totalorder %v2493, 0
      %v2496 = vxor.u32 %v2490, 2147483648
      %v2497 = vsel %vm2495, %v2489, %v2496
      %vm2498 = vcmp.eq.s32.totalorder %v2493, 2
      %v2499 = vxor.u32 %v2489, 2147483648
      %v2500 = vsel %vm2498, %v2499, %v2490
      %v2501 = vsel %vm2494, %v2497, %v2500
      %v2502 = vsel %vm2491, nan, %v2501
      %v2503 = vand.u32 2147483647, %v379
      %vm2504 = vcmp.le.f32.partialorder %v2503, 0.7853982
      %vm2505 = vcmp.lt.s32.totalorder %v379, 0
      %v2506 = vand.u32 %v379, 2139095040
      %v2507 = vshrl.u32 %v2506, 23
      %v2508 = vsub.s32 %v2507, 127
      %v2509 = vand.u32 2147483647, %v379
      %v2510 = vand.u32 %v2509, 8388607
      %v2511 = vor.u32 %v2510, 8388608
      %v2512 = vsub.s32 0, %v2511
      %v2513 = vadd.s32 %v2508, 1
      %vm2514 = vcmp.gt.s32.totalorder %v2513, 0
      %v2515 = vsel %vm2514, %v2513, 0
      %v2516 = vshrl.u32 %v2515, 5
      %v2517 = vand.u32 %v2515, 31
      %v2518 = vsub.s32 32, %v2517
      %v2519 = vshrl.u32 683565275, %v2518
      %v2520 = vshll.u32 683565275, %v2517
      %v2521 = vshrl.u32 2475754826, %v2518
      %v2522 = vor.u32 %v2520, %v2521
      %v2523 = vshll.u32 2475754826, %v2517
      %v2524 = vshrl.u32 2131351028, %v2518
      %v2525 = vor.u32 %v2523, %v2524
      %v2526 = vshll.u32 2131351028, %v2517
      %v2527 = vshrl.u32 2102212464, %v2518
      %v2528 = vor.u32 %v2526, %v2527
      %v2529 = vshll.u32 2102212464, %v2517
      %v2530 = vshrl.u32 920167782, %v2518
      %v2531 = vor.u32 %v2529, %v2530
      %v2532 = vshll.u32 920167782, %v2517
      %v2533 = vshrl.u32 1326507024, %v2518
      %v2534 = vor.u32 %v2532, %v2533
      %vm2535 = vcmp.lt.s32.totalorder %v2516, 1
      %vm2536 = vcmp.lt.s32.totalorder %v2516, 2
      %vm2537 = vcmp.lt.s32.totalorder %v2516, 3
      %vm2538 = vcmp.lt.s32.totalorder %v2516, 4
      %v2539 = vsel %vm2535, %v2519, %v2522
      %v2540 = vsel %vm2538, %v2528, 2102212464
      %v2541 = vsel %vm2537, %v2525, %v2540
      %v2542 = vsel %vm2536, %v2539, %v2541
      %v2543 = vsel %vm2535, %v2522, %v2525
      %v2544 = vsel %vm2538, %v2531, 920167782
      %v2545 = vsel %vm2537, %v2528, %v2544
      %v2546 = vsel %vm2536, %v2543, %v2545
      %v2547 = vsel %vm2535, %v2525, %v2528
      %v2548 = vsel %vm2538, %v2534, 1326507024
      %v2549 = vsel %vm2537, %v2531, %v2548
      %v2550 = vsel %vm2536, %v2547, %v2549
      %v2551 = vshll.u32 %v2511, 8
      %v2552 = vmul.u32.u64.compose %v2551, %v2550
      %v2553 = vextract.low.u32 %v2552
      %v2554 = vextract.high.u32 %v2552
      %v2555 = vmul.u32.u64.compose %v2551, %v2546
      %v2556 = vextract.low.u32 %v2555
      %v2557 = vextract.high.u32 %v2555
      %v2558 = vmul.u32 %v2551, %v2542
      %v2559 = vadd.s32 %v2554, %v2556
      %vm2560 = vc.u32 %v2554, %v2556
      %v2561 = vadd.s32 %v2557, 1
      %v2562 = vsel %vm2560, %v2561, %v2557
      %v2563 = vadd.s32 %v2558, %v2562
      %v2564 = vadd.s32 %v2563, 536870912
      %v2565 = vshrl.u32 %v2564, 30
      %v2566 = vshll.u32 %v2565, 30
      %v2567 = vsub.s32 %v2563, %v2566
      %vm2568 = vcmp.lt.s32.totalorder %v2567, 0
      %v2569 = vsub.s32 0, %v2567
      %v2570 = vsel %vm2568, %v2569, %v2567
      %v2571 = vclz %v2570
      %v2572 = vsub.s32 %v2571, 2
      %vm2573 = vcmp.gt.s32.totalorder 0, %v2572
      %v2574 = vsel %vm2573, 0, %v2572
      %v2575 = vsub.s32 32, %v2574
      %v2576 = vshll.u32 %v2567, %v2574
      %v2577 = vshrl.u32 %v2559, %v2575
      %v2578 = vor.u32 %v2576, %v2577
      %v2579 = vsub.s32 4294967266, %v2574
      %v2580 = vadd.s32 %v2579, 127
      %v2581 = vshll.u32 %v2580, 23
      %v2582 = vor.u32 4788187, %v2581
      %v2583 = vand.u32 2147483647, %v2582
      %v2585 = vcvt.s32.f32 %v2578
      %v2586 = vmul.f32 %v2585, %v2583
      %v2587 = vxor.u32 %v2586, 2147483648
      %v2588 = vsel %vm2505, %v2587, %v2586
      %v2589 = vsub.s32 4, %v2565
      %v2590 = vsel %vm2505, %v2589, %v2565
      %v2591 = vsel %vm2504, %v379, %v2588
      %v2592 = vsel %vm2504, 0, %v2590
      %v2593 = vcosq.f32.pop %v2591
      %v2594 = vsinq.f32.pop %v2591
      %vm2595 = vweird.f32 %v379
      %v2596 = vadd.s32 %v2592, 3
      %v2597 = vand.u32 %v2596, 3
      %vm2598 = vcmp.lt.s32.totalorder %v2597, 2
      %vm2599 = vcmp.eq.s32.totalorder %v2597, 0
      %v2600 = vxor.u32 %v2594, 2147483648
      %v2601 = vsel %vm2599, %v2593, %v2600
      %vm2602 = vcmp.eq.s32.totalorder %v2597, 2
      %v2603 = vxor.u32 %v2593, 2147483648
      %v2604 = vsel %vm2602, %v2603, %v2594
      %v2605 = vsel %vm2598, %v2601, %v2604
      %v2606 = vsel %vm2595, nan, %v2605
      %v2607 = vand.u32 2147483647, %v380
      %vm2608 = vcmp.le.f32.partialorder %v2607, 0.7853982
      %vm2609 = vcmp.lt.s32.totalorder %v380, 0
      %v2610 = vand.u32 %v380, 2139095040
      %v2611 = vshrl.u32 %v2610, 23
      %v2612 = vsub.s32 %v2611, 127
      %v2613 = vand.u32 2147483647, %v380
      %v2614 = vand.u32 %v2613, 8388607
      %v2615 = vor.u32 %v2614, 8388608
      %v2616 = vsub.s32 0, %v2615
      %v2617 = vadd.s32 %v2612, 1
      %vm2618 = vcmp.gt.s32.totalorder %v2617, 0
      %v2619 = vsel %vm2618, %v2617, 0
      %v2620 = vshrl.u32 %v2619, 5
      %v2621 = vand.u32 %v2619, 31
      %v2622 = vsub.s32 32, %v2621
      %v2623 = vshrl.u32 683565275, %v2622
      %v2624 = vshll.u32 683565275, %v2621
      %v2625 = vshrl.u32 2475754826, %v2622
      %v2626 = vor.u32 %v2624, %v2625
      %v2627 = vshll.u32 2475754826, %v2621
      %v2628 = vshrl.u32 2131351028, %v2622
      %v2629 = vor.u32 %v2627, %v2628
      %v2630 = vshll.u32 2131351028, %v2621
      %v2631 = vshrl.u32 2102212464, %v2622
      %v2632 = vor.u32 %v2630, %v2631
      %v2633 = vshll.u32 2102212464, %v2621
      %v2634 = vshrl.u32 920167782, %v2622
      %v2635 = vor.u32 %v2633, %v2634
      %v2636 = vshll.u32 920167782, %v2621
      %v2637 = vshrl.u32 1326507024, %v2622
      %v2638 = vor.u32 %v2636, %v2637
      %vm2639 = vcmp.lt.s32.totalorder %v2620, 1
      %vm2640 = vcmp.lt.s32.totalorder %v2620, 2
      %vm2641 = vcmp.lt.s32.totalorder %v2620, 3
      %vm2642 = vcmp.lt.s32.totalorder %v2620, 4
      %v2643 = vsel %vm2639, %v2623, %v2626
      %v2644 = vsel %vm2642, %v2632, 2102212464
      %v2645 = vsel %vm2641, %v2629, %v2644
      %v2646 = vsel %vm2640, %v2643, %v2645
      %v2647 = vsel %vm2639, %v2626, %v2629
      %v2648 = vsel %vm2642, %v2635, 920167782
      %v2649 = vsel %vm2641, %v2632, %v2648
      %v2650 = vsel %vm2640, %v2647, %v2649
      %v2651 = vsel %vm2639, %v2629, %v2632
      %v2652 = vsel %vm2642, %v2638, 1326507024
      %v2653 = vsel %vm2641, %v2635, %v2652
      %v2654 = vsel %vm2640, %v2651, %v2653
      %v2655 = vshll.u32 %v2615, 8
      %v2656 = vmul.u32.u64.compose %v2655, %v2654
      %v2657 = vextract.low.u32 %v2656
      %v2658 = vextract.high.u32 %v2656
      %v2659 = vmul.u32.u64.compose %v2655, %v2650
      %v2660 = vextract.low.u32 %v2659
      %v2661 = vextract.high.u32 %v2659
      %v2662 = vmul.u32 %v2655, %v2646
      %v2663 = vadd.s32 %v2658, %v2660
      %vm2664 = vc.u32 %v2658, %v2660
      %v2665 = vadd.s32 %v2661, 1
      %v2666 = vsel %vm2664, %v2665, %v2661
      %v2667 = vadd.s32 %v2662, %v2666
      %v2668 = vadd.s32 %v2667, 536870912
      %v2669 = vshrl.u32 %v2668, 30
      %v2670 = vshll.u32 %v2669, 30
      %v2671 = vsub.s32 %v2667, %v2670
      %vm2672 = vcmp.lt.s32.totalorder %v2671, 0
      %v2673 = vsub.s32 0, %v2671
      %v2674 = vsel %vm2672, %v2673, %v2671
      %v2675 = vclz %v2674
      %v2676 = vsub.s32 %v2675, 2
      %vm2677 = vcmp.gt.s32.totalorder 0, %v2676
      %v2678 = vsel %vm2677, 0, %v2676
      %v2679 = vsub.s32 32, %v2678
      %v2680 = vshll.u32 %v2671, %v2678
      %v2681 = vshrl.u32 %v2663, %v2679
      %v2682 = vor.u32 %v2680, %v2681
      %v2683 = vsub.s32 4294967266, %v2678
      %v2684 = vadd.s32 %v2683, 127
      %v2685 = vshll.u32 %v2684, 23
      %v2686 = vor.u32 4788187, %v2685
      %v2687 = vand.u32 2147483647, %v2686
      %v2689 = vcvt.s32.f32 %v2682
      %v2690 = vmul.f32 %v2689, %v2687
      %v2691 = vxor.u32 %v2690, 2147483648
      %v2692 = vsel %vm2609, %v2691, %v2690
      %v2693 = vsub.s32 4, %v2669
      %v2694 = vsel %vm2609, %v2693, %v2669
      %v2695 = vsel %vm2608, %v380, %v2692
      %v2696 = vsel %vm2608, 0, %v2694
      %v2697 = vcosq.f32.pop %v2695
      %v2698 = vsinq.f32.pop %v2695
      %vm2699 = vweird.f32 %v380
      %v2700 = vadd.s32 %v2696, 3
      %v2701 = vand.u32 %v2700, 3
      %vm2702 = vcmp.lt.s32.totalorder %v2701, 2
      %vm2703 = vcmp.eq.s32.totalorder %v2701, 0
      %v2704 = vxor.u32 %v2698, 2147483648
      %v2705 = vsel %vm2703, %v2697, %v2704
      %vm2706 = vcmp.eq.s32.totalorder %v2701, 2
      %v2707 = vxor.u32 %v2697, 2147483648
      %v2708 = vsel %vm2706, %v2707, %v2698
      %v2709 = vsel %vm2702, %v2705, %v2708
      %v2710 = vsel %vm2699, nan, %v2709
      %v2711 = vand.u32 2147483647, %v381
      %vm2712 = vcmp.le.f32.partialorder %v2711, 0.7853982
      %vm2713 = vcmp.lt.s32.totalorder %v381, 0
      %v2714 = vand.u32 %v381, 2139095040
      %v2715 = vshrl.u32 %v2714, 23
      %v2716 = vsub.s32 %v2715, 127
      %v2717 = vand.u32 2147483647, %v381
      %v2718 = vand.u32 %v2717, 8388607
      %v2719 = vor.u32 %v2718, 8388608
      %v2720 = vsub.s32 0, %v2719
      %v2721 = vadd.s32 %v2716, 1
      %vm2722 = vcmp.gt.s32.totalorder %v2721, 0
      %v2723 = vsel %vm2722, %v2721, 0
      %v2724 = vshrl.u32 %v2723, 5
      %v2725 = vand.u32 %v2723, 31
      %v2726 = vsub.s32 32, %v2725
      %v2727 = vshrl.u32 683565275, %v2726
      %v2728 = vshll.u32 683565275, %v2725
      %v2729 = vshrl.u32 2475754826, %v2726
      %v2730 = vor.u32 %v2728, %v2729
      %v2731 = vshll.u32 2475754826, %v2725
      %v2732 = vshrl.u32 2131351028, %v2726
      %v2733 = vor.u32 %v2731, %v2732
      %v2734 = vshll.u32 2131351028, %v2725
      %v2735 = vshrl.u32 2102212464, %v2726
      %v2736 = vor.u32 %v2734, %v2735
      %v2737 = vshll.u32 2102212464, %v2725
      %v2738 = vshrl.u32 920167782, %v2726
      %v2739 = vor.u32 %v2737, %v2738
      %v2740 = vshll.u32 920167782, %v2725
      %v2741 = vshrl.u32 1326507024, %v2726
      %v2742 = vor.u32 %v2740, %v2741
      %vm2743 = vcmp.lt.s32.totalorder %v2724, 1
      %vm2744 = vcmp.lt.s32.totalorder %v2724, 2
      %vm2745 = vcmp.lt.s32.totalorder %v2724, 3
      %vm2746 = vcmp.lt.s32.totalorder %v2724, 4
      %v2747 = vsel %vm2743, %v2727, %v2730
      %v2748 = vsel %vm2746, %v2736, 2102212464
      %v2749 = vsel %vm2745, %v2733, %v2748
      %v2750 = vsel %vm2744, %v2747, %v2749
      %v2751 = vsel %vm2743, %v2730, %v2733
      %v2752 = vsel %vm2746, %v2739, 920167782
      %v2753 = vsel %vm2745, %v2736, %v2752
      %v2754 = vsel %vm2744, %v2751, %v2753
      %v2755 = vsel %vm2743, %v2733, %v2736
      %v2756 = vsel %vm2746, %v2742, 1326507024
      %v2757 = vsel %vm2745, %v2739, %v2756
      %v2758 = vsel %vm2744, %v2755, %v2757
      %v2759 = vshll.u32 %v2719, 8
      %v2760 = vmul.u32.u64.compose %v2759, %v2758
      %v2761 = vextract.low.u32 %v2760
      %v2762 = vextract.high.u32 %v2760
      %v2763 = vmul.u32.u64.compose %v2759, %v2754
      %v2764 = vextract.low.u32 %v2763
      %v2765 = vextract.high.u32 %v2763
      %v2766 = vmul.u32 %v2759, %v2750
      %v2767 = vadd.s32 %v2762, %v2764
      %vm2768 = vc.u32 %v2762, %v2764
      %v2769 = vadd.s32 %v2765, 1
      %v2770 = vsel %vm2768, %v2769, %v2765
      %v2771 = vadd.s32 %v2766, %v2770
      %v2772 = vadd.s32 %v2771, 536870912
      %v2773 = vshrl.u32 %v2772, 30
      %v2774 = vshll.u32 %v2773, 30
      %v2775 = vsub.s32 %v2771, %v2774
      %vm2776 = vcmp.lt.s32.totalorder %v2775, 0
      %v2777 = vsub.s32 0, %v2775
      %v2778 = vsel %vm2776, %v2777, %v2775
      %v2779 = vclz %v2778
      %v2780 = vsub.s32 %v2779, 2
      %vm2781 = vcmp.gt.s32.totalorder 0, %v2780
      %v2782 = vsel %vm2781, 0, %v2780
      %v2783 = vsub.s32 32, %v2782
      %v2784 = vshll.u32 %v2775, %v2782
      %v2785 = vshrl.u32 %v2767, %v2783
      %v2786 = vor.u32 %v2784, %v2785
      %v2787 = vsub.s32 4294967266, %v2782
      %v2788 = vadd.s32 %v2787, 127
      %v2789 = vshll.u32 %v2788, 23
      %v2790 = vor.u32 4788187, %v2789
      %v2791 = vand.u32 2147483647, %v2790
      %v2793 = vcvt.s32.f32 %v2786
      %v2794 = vmul.f32 %v2793, %v2791
      %v2795 = vxor.u32 %v2794, 2147483648
      %v2796 = vsel %vm2713, %v2795, %v2794
      %v2797 = vsub.s32 4, %v2773
      %v2798 = vsel %vm2713, %v2797, %v2773
      %v2799 = vsel %vm2712, %v381, %v2796
      %v2800 = vsel %vm2712, 0, %v2798
      %v2801 = vcosq.f32.pop %v2799
      %v2802 = vsinq.f32.pop %v2799
      %vm2803 = vweird.f32 %v381
      %v2804 = vadd.s32 %v2800, 3
      %v2805 = vand.u32 %v2804, 3
      %vm2806 = vcmp.lt.s32.totalorder %v2805, 2
      %vm2807 = vcmp.eq.s32.totalorder %v2805, 0
      %v2808 = vxor.u32 %v2802, 2147483648
      %v2809 = vsel %vm2807, %v2801, %v2808
      %vm2810 = vcmp.eq.s32.totalorder %v2805, 2
      %v2811 = vxor.u32 %v2801, 2147483648
      %v2812 = vsel %vm2810, %v2811, %v2802
      %v2813 = vsel %vm2806, %v2809, %v2812
      %v2814 = vsel %vm2803, nan, %v2813
      %v2815 = vand.u32 2147483647, %v382
      %vm2816 = vcmp.le.f32.partialorder %v2815, 0.7853982
      %vm2817 = vcmp.lt.s32.totalorder %v382, 0
      %v2818 = vand.u32 %v382, 2139095040
      %v2819 = vshrl.u32 %v2818, 23
      %v2820 = vsub.s32 %v2819, 127
      %v2821 = vand.u32 2147483647, %v382
      %v2822 = vand.u32 %v2821, 8388607
      %v2823 = vor.u32 %v2822, 8388608
      %v2824 = vsub.s32 0, %v2823
      %v2825 = vadd.s32 %v2820, 1
      %vm2826 = vcmp.gt.s32.totalorder %v2825, 0
      %v2827 = vsel %vm2826, %v2825, 0
      %v2828 = vshrl.u32 %v2827, 5
      %v2829 = vand.u32 %v2827, 31
      %v2830 = vsub.s32 32, %v2829
      %v2831 = vshrl.u32 683565275, %v2830
      %v2832 = vshll.u32 683565275, %v2829
      %v2833 = vshrl.u32 2475754826, %v2830
      %v2834 = vor.u32 %v2832, %v2833
      %v2835 = vshll.u32 2475754826, %v2829
      %v2836 = vshrl.u32 2131351028, %v2830
      %v2837 = vor.u32 %v2835, %v2836
      %v2838 = vshll.u32 2131351028, %v2829
      %v2839 = vshrl.u32 2102212464, %v2830
      %v2840 = vor.u32 %v2838, %v2839
      %v2841 = vshll.u32 2102212464, %v2829
      %v2842 = vshrl.u32 920167782, %v2830
      %v2843 = vor.u32 %v2841, %v2842
      %v2844 = vshll.u32 920167782, %v2829
      %v2845 = vshrl.u32 1326507024, %v2830
      %v2846 = vor.u32 %v2844, %v2845
      %vm2847 = vcmp.lt.s32.totalorder %v2828, 1
      %vm2848 = vcmp.lt.s32.totalorder %v2828, 2
      %vm2849 = vcmp.lt.s32.totalorder %v2828, 3
      %vm2850 = vcmp.lt.s32.totalorder %v2828, 4
      %v2851 = vsel %vm2847, %v2831, %v2834
      %v2852 = vsel %vm2850, %v2840, 2102212464
      %v2853 = vsel %vm2849, %v2837, %v2852
      %v2854 = vsel %vm2848, %v2851, %v2853
      %v2855 = vsel %vm2847, %v2834, %v2837
      %v2856 = vsel %vm2850, %v2843, 920167782
      %v2857 = vsel %vm2849, %v2840, %v2856
      %v2858 = vsel %vm2848, %v2855, %v2857
      %v2859 = vsel %vm2847, %v2837, %v2840
      %v2860 = vsel %vm2850, %v2846, 1326507024
      %v2861 = vsel %vm2849, %v2843, %v2860
      %v2862 = vsel %vm2848, %v2859, %v2861
      %v2863 = vshll.u32 %v2823, 8
      %v2864 = vmul.u32.u64.compose %v2863, %v2862
      %v2865 = vextract.low.u32 %v2864
      %v2866 = vextract.high.u32 %v2864
      %v2867 = vmul.u32.u64.compose %v2863, %v2858
      %v2868 = vextract.low.u32 %v2867
      %v2869 = vextract.high.u32 %v2867
      %v2870 = vmul.u32 %v2863, %v2854
      %v2871 = vadd.s32 %v2866, %v2868
      %vm2872 = vc.u32 %v2866, %v2868
      %v2873 = vadd.s32 %v2869, 1
      %v2874 = vsel %vm2872, %v2873, %v2869
      %v2875 = vadd.s32 %v2870, %v2874
      %v2876 = vadd.s32 %v2875, 536870912
      %v2877 = vshrl.u32 %v2876, 30
      %v2878 = vshll.u32 %v2877, 30
      %v2879 = vsub.s32 %v2875, %v2878
      %vm2880 = vcmp.lt.s32.totalorder %v2879, 0
      %v2881 = vsub.s32 0, %v2879
      %v2882 = vsel %vm2880, %v2881, %v2879
      %v2883 = vclz %v2882
      %v2884 = vsub.s32 %v2883, 2
      %vm2885 = vcmp.gt.s32.totalorder 0, %v2884
      %v2886 = vsel %vm2885, 0, %v2884
      %v2887 = vsub.s32 32, %v2886
      %v2888 = vshll.u32 %v2879, %v2886
      %v2889 = vshrl.u32 %v2871, %v2887
      %v2890 = vor.u32 %v2888, %v2889
      %v2891 = vsub.s32 4294967266, %v2886
      %v2892 = vadd.s32 %v2891, 127
      %v2893 = vshll.u32 %v2892, 23
      %v2894 = vor.u32 4788187, %v2893
      %v2895 = vand.u32 2147483647, %v2894
      %v2897 = vcvt.s32.f32 %v2890
      %v2898 = vmul.f32 %v2897, %v2895
      %v2899 = vxor.u32 %v2898, 2147483648
      %v2900 = vsel %vm2817, %v2899, %v2898
      %v2901 = vsub.s32 4, %v2877
      %v2902 = vsel %vm2817, %v2901, %v2877
      %v2903 = vsel %vm2816, %v382, %v2900
      %v2904 = vsel %vm2816, 0, %v2902
      %v2905 = vcosq.f32.pop %v2903
      %v2906 = vsinq.f32.pop %v2903
      %vm2907 = vweird.f32 %v382
      %v2908 = vadd.s32 %v2904, 3
      %v2909 = vand.u32 %v2908, 3
      %vm2910 = vcmp.lt.s32.totalorder %v2909, 2
      %vm2911 = vcmp.eq.s32.totalorder %v2909, 0
      %v2912 = vxor.u32 %v2906, 2147483648
      %v2913 = vsel %vm2911, %v2905, %v2912
      %vm2914 = vcmp.eq.s32.totalorder %v2909, 2
      %v2915 = vxor.u32 %v2905, 2147483648
      %v2916 = vsel %vm2914, %v2915, %v2906
      %v2917 = vsel %vm2910, %v2913, %v2916
      %v2918 = vsel %vm2907, nan, %v2917
      %v2919 = vand.u32 2147483647, %v383
      %vm2920 = vcmp.le.f32.partialorder %v2919, 0.7853982
      %vm2921 = vcmp.lt.s32.totalorder %v383, 0
      %v2922 = vand.u32 %v383, 2139095040
      %v2923 = vshrl.u32 %v2922, 23
      %v2924 = vsub.s32 %v2923, 127
      %v2925 = vand.u32 2147483647, %v383
      %v2926 = vand.u32 %v2925, 8388607
      %v2927 = vor.u32 %v2926, 8388608
      %v2928 = vsub.s32 0, %v2927
      %v2929 = vadd.s32 %v2924, 1
      %vm2930 = vcmp.gt.s32.totalorder %v2929, 0
      %v2931 = vsel %vm2930, %v2929, 0
      %v2932 = vshrl.u32 %v2931, 5
      %v2933 = vand.u32 %v2931, 31
      %v2934 = vsub.s32 32, %v2933
      %v2935 = vshrl.u32 683565275, %v2934
      %v2936 = vshll.u32 683565275, %v2933
      %v2937 = vshrl.u32 2475754826, %v2934
      %v2938 = vor.u32 %v2936, %v2937
      %v2939 = vshll.u32 2475754826, %v2933
      %v2940 = vshrl.u32 2131351028, %v2934
      %v2941 = vor.u32 %v2939, %v2940
      %v2942 = vshll.u32 2131351028, %v2933
      %v2943 = vshrl.u32 2102212464, %v2934
      %v2944 = vor.u32 %v2942, %v2943
      %v2945 = vshll.u32 2102212464, %v2933
      %v2946 = vshrl.u32 920167782, %v2934
      %v2947 = vor.u32 %v2945, %v2946
      %v2948 = vshll.u32 920167782, %v2933
      %v2949 = vshrl.u32 1326507024, %v2934
      %v2950 = vor.u32 %v2948, %v2949
      %vm2951 = vcmp.lt.s32.totalorder %v2932, 1
      %vm2952 = vcmp.lt.s32.totalorder %v2932, 2
      %vm2953 = vcmp.lt.s32.totalorder %v2932, 3
      %vm2954 = vcmp.lt.s32.totalorder %v2932, 4
      %v2955 = vsel %vm2951, %v2935, %v2938
      %v2956 = vsel %vm2954, %v2944, 2102212464
      %v2957 = vsel %vm2953, %v2941, %v2956
      %v2958 = vsel %vm2952, %v2955, %v2957
      %v2959 = vsel %vm2951, %v2938, %v2941
      %v2960 = vsel %vm2954, %v2947, 920167782
      %v2961 = vsel %vm2953, %v2944, %v2960
      %v2962 = vsel %vm2952, %v2959, %v2961
      %v2963 = vsel %vm2951, %v2941, %v2944
      %v2964 = vsel %vm2954, %v2950, 1326507024
      %v2965 = vsel %vm2953, %v2947, %v2964
      %v2966 = vsel %vm2952, %v2963, %v2965
      %v2967 = vshll.u32 %v2927, 8
      %v2968 = vmul.u32.u64.compose %v2967, %v2966
      %v2969 = vextract.low.u32 %v2968
      %v2970 = vextract.high.u32 %v2968
      %v2971 = vmul.u32.u64.compose %v2967, %v2962
      %v2972 = vextract.low.u32 %v2971
      %v2973 = vextract.high.u32 %v2971
      %v2974 = vmul.u32 %v2967, %v2958
      %v2975 = vadd.s32 %v2970, %v2972
      %vm2976 = vc.u32 %v2970, %v2972
      %v2977 = vadd.s32 %v2973, 1
      %v2978 = vsel %vm2976, %v2977, %v2973
      %v2979 = vadd.s32 %v2974, %v2978
      %v2980 = vadd.s32 %v2979, 536870912
      %v2981 = vshrl.u32 %v2980, 30
      %v2982 = vshll.u32 %v2981, 30
      %v2983 = vsub.s32 %v2979, %v2982
      %vm2984 = vcmp.lt.s32.totalorder %v2983, 0
      %v2985 = vsub.s32 0, %v2983
      %v2986 = vsel %vm2984, %v2985, %v2983
      %v2987 = vclz %v2986
      %v2988 = vsub.s32 %v2987, 2
      %vm2989 = vcmp.gt.s32.totalorder 0, %v2988
      %v2990 = vsel %vm2989, 0, %v2988
      %v2991 = vsub.s32 32, %v2990
      %v2992 = vshll.u32 %v2983, %v2990
      %v2993 = vshrl.u32 %v2975, %v2991
      %v2994 = vor.u32 %v2992, %v2993
      %v2995 = vsub.s32 4294967266, %v2990
      %v2996 = vadd.s32 %v2995, 127
      %v2997 = vshll.u32 %v2996, 23
      %v2998 = vor.u32 4788187, %v2997
      %v2999 = vand.u32 2147483647, %v2998
      %v3001 = vcvt.s32.f32 %v2994
      %v3002 = vmul.f32 %v3001, %v2999
      %v3003 = vxor.u32 %v3002, 2147483648
      %v3004 = vsel %vm2921, %v3003, %v3002
      %v3005 = vsub.s32 4, %v2981
      %v3006 = vsel %vm2921, %v3005, %v2981
      %v3007 = vsel %vm2920, %v383, %v3004
      %v3008 = vsel %vm2920, 0, %v3006
      %v3009 = vcosq.f32.pop %v3007
      %v3010 = vsinq.f32.pop %v3007
      %vm3011 = vweird.f32 %v383
      %v3012 = vadd.s32 %v3008, 3
      %v3013 = vand.u32 %v3012, 3
      %vm3014 = vcmp.lt.s32.totalorder %v3013, 2
      %vm3015 = vcmp.eq.s32.totalorder %v3013, 0
      %v3016 = vxor.u32 %v3010, 2147483648
      %v3017 = vsel %vm3015, %v3009, %v3016
      %vm3018 = vcmp.eq.s32.totalorder %v3013, 2
      %v3019 = vxor.u32 %v3009, 2147483648
      %v3020 = vsel %vm3018, %v3019, %v3010
      %v3021 = vsel %vm3014, %v3017, %v3020
      %v3022 = vsel %vm3011, nan, %v3021
      %v3023 = vand.u32 2147483647, %v384
      %vm3024 = vcmp.le.f32.partialorder %v3023, 0.7853982
      %vm3025 = vcmp.lt.s32.totalorder %v384, 0
      %v3026 = vand.u32 %v384, 2139095040
      %v3027 = vshrl.u32 %v3026, 23
      %v3028 = vsub.s32 %v3027, 127
      %v3029 = vand.u32 2147483647, %v384
      %v3030 = vand.u32 %v3029, 8388607
      %v3031 = vor.u32 %v3030, 8388608
      %v3032 = vsub.s32 0, %v3031
      %v3033 = vadd.s32 %v3028, 1
      %vm3034 = vcmp.gt.s32.totalorder %v3033, 0
      %v3035 = vsel %vm3034, %v3033, 0
      %v3036 = vshrl.u32 %v3035, 5
      %v3037 = vand.u32 %v3035, 31
      %v3038 = vsub.s32 32, %v3037
      %v3039 = vshrl.u32 683565275, %v3038
      %v3040 = vshll.u32 683565275, %v3037
      %v3041 = vshrl.u32 2475754826, %v3038
      %v3042 = vor.u32 %v3040, %v3041
      %v3043 = vshll.u32 2475754826, %v3037
      %v3044 = vshrl.u32 2131351028, %v3038
      %v3045 = vor.u32 %v3043, %v3044
      %v3046 = vshll.u32 2131351028, %v3037
      %v3047 = vshrl.u32 2102212464, %v3038
      %v3048 = vor.u32 %v3046, %v3047
      %v3049 = vshll.u32 2102212464, %v3037
      %v3050 = vshrl.u32 920167782, %v3038
      %v3051 = vor.u32 %v3049, %v3050
      %v3052 = vshll.u32 920167782, %v3037
      %v3053 = vshrl.u32 1326507024, %v3038
      %v3054 = vor.u32 %v3052, %v3053
      %vm3055 = vcmp.lt.s32.totalorder %v3036, 1
      %vm3056 = vcmp.lt.s32.totalorder %v3036, 2
      %vm3057 = vcmp.lt.s32.totalorder %v3036, 3
      %vm3058 = vcmp.lt.s32.totalorder %v3036, 4
      %v3059 = vsel %vm3055, %v3039, %v3042
      %v3060 = vsel %vm3058, %v3048, 2102212464
      %v3061 = vsel %vm3057, %v3045, %v3060
      %v3062 = vsel %vm3056, %v3059, %v3061
      %v3063 = vsel %vm3055, %v3042, %v3045
      %v3064 = vsel %vm3058, %v3051, 920167782
      %v3065 = vsel %vm3057, %v3048, %v3064
      %v3066 = vsel %vm3056, %v3063, %v3065
      %v3067 = vsel %vm3055, %v3045, %v3048
      %v3068 = vsel %vm3058, %v3054, 1326507024
      %v3069 = vsel %vm3057, %v3051, %v3068
      %v3070 = vsel %vm3056, %v3067, %v3069
      %v3071 = vshll.u32 %v3031, 8
      %v3072 = vmul.u32.u64.compose %v3071, %v3070
      %v3073 = vextract.low.u32 %v3072
      %v3074 = vextract.high.u32 %v3072
      %v3075 = vmul.u32.u64.compose %v3071, %v3066
      %v3076 = vextract.low.u32 %v3075
      %v3077 = vextract.high.u32 %v3075
      %v3078 = vmul.u32 %v3071, %v3062
      %v3079 = vadd.s32 %v3074, %v3076
      %vm3080 = vc.u32 %v3074, %v3076
      %v3081 = vadd.s32 %v3077, 1
      %v3082 = vsel %vm3080, %v3081, %v3077
      %v3083 = vadd.s32 %v3078, %v3082
      %v3084 = vadd.s32 %v3083, 536870912
      %v3085 = vshrl.u32 %v3084, 30
      %v3086 = vshll.u32 %v3085, 30
      %v3087 = vsub.s32 %v3083, %v3086
      %vm3088 = vcmp.lt.s32.totalorder %v3087, 0
      %v3089 = vsub.s32 0, %v3087
      %v3090 = vsel %vm3088, %v3089, %v3087
      %v3091 = vclz %v3090
      %v3092 = vsub.s32 %v3091, 2
      %vm3093 = vcmp.gt.s32.totalorder 0, %v3092
      %v3094 = vsel %vm3093, 0, %v3092
      %v3095 = vsub.s32 32, %v3094
      %v3096 = vshll.u32 %v3087, %v3094
      %v3097 = vshrl.u32 %v3079, %v3095
      %v3098 = vor.u32 %v3096, %v3097
      %v3099 = vsub.s32 4294967266, %v3094
      %v3100 = vadd.s32 %v3099, 127
      %v3101 = vshll.u32 %v3100, 23
      %v3102 = vor.u32 4788187, %v3101
      %v3103 = vand.u32 2147483647, %v3102
      %v3105 = vcvt.s32.f32 %v3098
      %v3106 = vmul.f32 %v3105, %v3103
      %v3107 = vxor.u32 %v3106, 2147483648
      %v3108 = vsel %vm3025, %v3107, %v3106
      %v3109 = vsub.s32 4, %v3085
      %v3110 = vsel %vm3025, %v3109, %v3085
      %v3111 = vsel %vm3024, %v384, %v3108
      %v3112 = vsel %vm3024, 0, %v3110
      %v3113 = vcosq.f32.pop %v3111
      %v3114 = vsinq.f32.pop %v3111
      %vm3115 = vweird.f32 %v384
      %v3116 = vadd.s32 %v3112, 3
      %v3117 = vand.u32 %v3116, 3
      %vm3118 = vcmp.lt.s32.totalorder %v3117, 2
      %vm3119 = vcmp.eq.s32.totalorder %v3117, 0
      %v3120 = vxor.u32 %v3114, 2147483648
      %v3121 = vsel %vm3119, %v3113, %v3120
      %vm3122 = vcmp.eq.s32.totalorder %v3117, 2
      %v3123 = vxor.u32 %v3113, 2147483648
      %v3124 = vsel %vm3122, %v3123, %v3114
      %v3125 = vsel %vm3118, %v3121, %v3124
      %v3126 = vsel %vm3115, nan, %v3125
      %v3127 = vand.u32 2147483647, %v385
      %vm3128 = vcmp.le.f32.partialorder %v3127, 0.7853982
      %vm3129 = vcmp.lt.s32.totalorder %v385, 0
      %v3130 = vand.u32 %v385, 2139095040
      %v3131 = vshrl.u32 %v3130, 23
      %v3132 = vsub.s32 %v3131, 127
      %v3133 = vand.u32 2147483647, %v385
      %v3134 = vand.u32 %v3133, 8388607
      %v3135 = vor.u32 %v3134, 8388608
      %v3136 = vsub.s32 0, %v3135
      %v3137 = vadd.s32 %v3132, 1
      %vm3138 = vcmp.gt.s32.totalorder %v3137, 0
      %v3139 = vsel %vm3138, %v3137, 0
      %v3140 = vshrl.u32 %v3139, 5
      %v3141 = vand.u32 %v3139, 31
      %v3142 = vsub.s32 32, %v3141
      %v3143 = vshrl.u32 683565275, %v3142
      %v3144 = vshll.u32 683565275, %v3141
      %v3145 = vshrl.u32 2475754826, %v3142
      %v3146 = vor.u32 %v3144, %v3145
      %v3147 = vshll.u32 2475754826, %v3141
      %v3148 = vshrl.u32 2131351028, %v3142
      %v3149 = vor.u32 %v3147, %v3148
      %v3150 = vshll.u32 2131351028, %v3141
      %v3151 = vshrl.u32 2102212464, %v3142
      %v3152 = vor.u32 %v3150, %v3151
      %v3153 = vshll.u32 2102212464, %v3141
      %v3154 = vshrl.u32 920167782, %v3142
      %v3155 = vor.u32 %v3153, %v3154
      %v3156 = vshll.u32 920167782, %v3141
      %v3157 = vshrl.u32 1326507024, %v3142
      %v3158 = vor.u32 %v3156, %v3157
      %vm3159 = vcmp.lt.s32.totalorder %v3140, 1
      %vm3160 = vcmp.lt.s32.totalorder %v3140, 2
      %vm3161 = vcmp.lt.s32.totalorder %v3140, 3
      %vm3162 = vcmp.lt.s32.totalorder %v3140, 4
      %v3163 = vsel %vm3159, %v3143, %v3146
      %v3164 = vsel %vm3162, %v3152, 2102212464
      %v3165 = vsel %vm3161, %v3149, %v3164
      %v3166 = vsel %vm3160, %v3163, %v3165
      %v3167 = vsel %vm3159, %v3146, %v3149
      %v3168 = vsel %vm3162, %v3155, 920167782
      %v3169 = vsel %vm3161, %v3152, %v3168
      %v3170 = vsel %vm3160, %v3167, %v3169
      %v3171 = vsel %vm3159, %v3149, %v3152
      %v3172 = vsel %vm3162, %v3158, 1326507024
      %v3173 = vsel %vm3161, %v3155, %v3172
      %v3174 = vsel %vm3160, %v3171, %v3173
      %v3175 = vshll.u32 %v3135, 8
      %v3176 = vmul.u32.u64.compose %v3175, %v3174
      %v3177 = vextract.low.u32 %v3176
      %v3178 = vextract.high.u32 %v3176
      %v3179 = vmul.u32.u64.compose %v3175, %v3170
      %v3180 = vextract.low.u32 %v3179
      %v3181 = vextract.high.u32 %v3179
      %v3182 = vmul.u32 %v3175, %v3166
      %v3183 = vadd.s32 %v3178, %v3180
      %vm3184 = vc.u32 %v3178, %v3180
      %v3185 = vadd.s32 %v3181, 1
      %v3186 = vsel %vm3184, %v3185, %v3181
      %v3187 = vadd.s32 %v3182, %v3186
      %v3188 = vadd.s32 %v3187, 536870912
      %v3189 = vshrl.u32 %v3188, 30
      %v3190 = vshll.u32 %v3189, 30
      %v3191 = vsub.s32 %v3187, %v3190
      %vm3192 = vcmp.lt.s32.totalorder %v3191, 0
      %v3193 = vsub.s32 0, %v3191
      %v3194 = vsel %vm3192, %v3193, %v3191
      %v3195 = vclz %v3194
      %v3196 = vsub.s32 %v3195, 2
      %vm3197 = vcmp.gt.s32.totalorder 0, %v3196
      %v3198 = vsel %vm3197, 0, %v3196
      %v3199 = vsub.s32 32, %v3198
      %v3200 = vshll.u32 %v3191, %v3198
      %v3201 = vshrl.u32 %v3183, %v3199
      %v3202 = vor.u32 %v3200, %v3201
      %v3203 = vsub.s32 4294967266, %v3198
      %v3204 = vadd.s32 %v3203, 127
      %v3205 = vshll.u32 %v3204, 23
      %v3206 = vor.u32 4788187, %v3205
      %v3207 = vand.u32 2147483647, %v3206
      %v3209 = vcvt.s32.f32 %v3202
      %v3210 = vmul.f32 %v3209, %v3207
      %v3211 = vxor.u32 %v3210, 2147483648
      %v3212 = vsel %vm3129, %v3211, %v3210
      %v3213 = vsub.s32 4, %v3189
      %v3214 = vsel %vm3129, %v3213, %v3189
      %v3215 = vsel %vm3128, %v385, %v3212
      %v3216 = vsel %vm3128, 0, %v3214
      %v3217 = vcosq.f32.pop %v3215
      %v3218 = vsinq.f32.pop %v3215
      %vm3219 = vweird.f32 %v385
      %v3220 = vadd.s32 %v3216, 3
      %v3221 = vand.u32 %v3220, 3
      %vm3222 = vcmp.lt.s32.totalorder %v3221, 2
      %vm3223 = vcmp.eq.s32.totalorder %v3221, 0
      %v3224 = vxor.u32 %v3218, 2147483648
      %v3225 = vsel %vm3223, %v3217, %v3224
      %vm3226 = vcmp.eq.s32.totalorder %v3221, 2
      %v3227 = vxor.u32 %v3217, 2147483648
      %v3228 = vsel %vm3226, %v3227, %v3218
      %v3229 = vsel %vm3222, %v3225, %v3228
      %v3230 = vsel %vm3219, nan, %v3229
      %v3231 = vand.u32 2147483647, %v386
      %vm3232 = vcmp.le.f32.partialorder %v3231, 0.7853982
      %vm3233 = vcmp.lt.s32.totalorder %v386, 0
      %v3234 = vand.u32 %v386, 2139095040
      %v3235 = vshrl.u32 %v3234, 23
      %v3236 = vsub.s32 %v3235, 127
      %v3237 = vand.u32 2147483647, %v386
      %v3238 = vand.u32 %v3237, 8388607
      %v3239 = vor.u32 %v3238, 8388608
      %v3240 = vsub.s32 0, %v3239
      %v3241 = vadd.s32 %v3236, 1
      %vm3242 = vcmp.gt.s32.totalorder %v3241, 0
      %v3243 = vsel %vm3242, %v3241, 0
      %v3244 = vshrl.u32 %v3243, 5
      %v3245 = vand.u32 %v3243, 31
      %v3246 = vsub.s32 32, %v3245
      %v3247 = vshrl.u32 683565275, %v3246
      %v3248 = vshll.u32 683565275, %v3245
      %v3249 = vshrl.u32 2475754826, %v3246
      %v3250 = vor.u32 %v3248, %v3249
      %v3251 = vshll.u32 2475754826, %v3245
      %v3252 = vshrl.u32 2131351028, %v3246
      %v3253 = vor.u32 %v3251, %v3252
      %v3254 = vshll.u32 2131351028, %v3245
      %v3255 = vshrl.u32 2102212464, %v3246
      %v3256 = vor.u32 %v3254, %v3255
      %v3257 = vshll.u32 2102212464, %v3245
      %v3258 = vshrl.u32 920167782, %v3246
      %v3259 = vor.u32 %v3257, %v3258
      %v3260 = vshll.u32 920167782, %v3245
      %v3261 = vshrl.u32 1326507024, %v3246
      %v3262 = vor.u32 %v3260, %v3261
      %vm3263 = vcmp.lt.s32.totalorder %v3244, 1
      %vm3264 = vcmp.lt.s32.totalorder %v3244, 2
      %vm3265 = vcmp.lt.s32.totalorder %v3244, 3
      %vm3266 = vcmp.lt.s32.totalorder %v3244, 4
      %v3267 = vsel %vm3263, %v3247, %v3250
      %v3268 = vsel %vm3266, %v3256, 2102212464
      %v3269 = vsel %vm3265, %v3253, %v3268
      %v3270 = vsel %vm3264, %v3267, %v3269
      %v3271 = vsel %vm3263, %v3250, %v3253
      %v3272 = vsel %vm3266, %v3259, 920167782
      %v3273 = vsel %vm3265, %v3256, %v3272
      %v3274 = vsel %vm3264, %v3271, %v3273
      %v3275 = vsel %vm3263, %v3253, %v3256
      %v3276 = vsel %vm3266, %v3262, 1326507024
      %v3277 = vsel %vm3265, %v3259, %v3276
      %v3278 = vsel %vm3264, %v3275, %v3277
      %v3279 = vshll.u32 %v3239, 8
      %v3280 = vmul.u32.u64.compose %v3279, %v3278
      %v3281 = vextract.low.u32 %v3280
      %v3282 = vextract.high.u32 %v3280
      %v3283 = vmul.u32.u64.compose %v3279, %v3274
      %v3284 = vextract.low.u32 %v3283
      %v3285 = vextract.high.u32 %v3283
      %v3286 = vmul.u32 %v3279, %v3270
      %v3287 = vadd.s32 %v3282, %v3284
      %vm3288 = vc.u32 %v3282, %v3284
      %v3289 = vadd.s32 %v3285, 1
      %v3290 = vsel %vm3288, %v3289, %v3285
      %v3291 = vadd.s32 %v3286, %v3290
      %v3292 = vadd.s32 %v3291, 536870912
      %v3293 = vshrl.u32 %v3292, 30
      %v3294 = vshll.u32 %v3293, 30
      %v3295 = vsub.s32 %v3291, %v3294
      %vm3296 = vcmp.lt.s32.totalorder %v3295, 0
      %v3297 = vsub.s32 0, %v3295
      %v3298 = vsel %vm3296, %v3297, %v3295
      %v3299 = vclz %v3298
      %v3300 = vsub.s32 %v3299, 2
      %vm3301 = vcmp.gt.s32.totalorder 0, %v3300
      %v3302 = vsel %vm3301, 0, %v3300
      %v3303 = vsub.s32 32, %v3302
      %v3304 = vshll.u32 %v3295, %v3302
      %v3305 = vshrl.u32 %v3287, %v3303
      %v3306 = vor.u32 %v3304, %v3305
      %v3307 = vsub.s32 4294967266, %v3302
      %v3308 = vadd.s32 %v3307, 127
      %v3309 = vshll.u32 %v3308, 23
      %v3310 = vor.u32 4788187, %v3309
      %v3311 = vand.u32 2147483647, %v3310
      %v3313 = vcvt.s32.f32 %v3306
      %v3314 = vmul.f32 %v3313, %v3311
      %v3315 = vxor.u32 %v3314, 2147483648
      %v3316 = vsel %vm3233, %v3315, %v3314
      %v3317 = vsub.s32 4, %v3293
      %v3318 = vsel %vm3233, %v3317, %v3293
      %v3319 = vsel %vm3232, %v386, %v3316
      %v3320 = vsel %vm3232, 0, %v3318
      %v3321 = vcosq.f32.pop %v3319
      %v3322 = vsinq.f32.pop %v3319
      %vm3323 = vweird.f32 %v386
      %v3324 = vadd.s32 %v3320, 3
      %v3325 = vand.u32 %v3324, 3
      %vm3326 = vcmp.lt.s32.totalorder %v3325, 2
      %vm3327 = vcmp.eq.s32.totalorder %v3325, 0
      %v3328 = vxor.u32 %v3322, 2147483648
      %v3329 = vsel %vm3327, %v3321, %v3328
      %vm3330 = vcmp.eq.s32.totalorder %v3325, 2
      %v3331 = vxor.u32 %v3321, 2147483648
      %v3332 = vsel %vm3330, %v3331, %v3322
      %v3333 = vsel %vm3326, %v3329, %v3332
      %v3334 = vsel %vm3323, nan, %v3333
      %v3335 = vand.u32 2147483647, %v387
      %vm3336 = vcmp.le.f32.partialorder %v3335, 0.7853982
      %vm3337 = vcmp.lt.s32.totalorder %v387, 0
      %v3338 = vand.u32 %v387, 2139095040
      %v3339 = vshrl.u32 %v3338, 23
      %v3340 = vsub.s32 %v3339, 127
      %v3341 = vand.u32 2147483647, %v387
      %v3342 = vand.u32 %v3341, 8388607
      %v3343 = vor.u32 %v3342, 8388608
      %v3344 = vsub.s32 0, %v3343
      %v3345 = vadd.s32 %v3340, 1
      %vm3346 = vcmp.gt.s32.totalorder %v3345, 0
      %v3347 = vsel %vm3346, %v3345, 0
      %v3348 = vshrl.u32 %v3347, 5
      %v3349 = vand.u32 %v3347, 31
      %v3350 = vsub.s32 32, %v3349
      %v3351 = vshrl.u32 683565275, %v3350
      %v3352 = vshll.u32 683565275, %v3349
      %v3353 = vshrl.u32 2475754826, %v3350
      %v3354 = vor.u32 %v3352, %v3353
      %v3355 = vshll.u32 2475754826, %v3349
      %v3356 = vshrl.u32 2131351028, %v3350
      %v3357 = vor.u32 %v3355, %v3356
      %v3358 = vshll.u32 2131351028, %v3349
      %v3359 = vshrl.u32 2102212464, %v3350
      %v3360 = vor.u32 %v3358, %v3359
      %v3361 = vshll.u32 2102212464, %v3349
      %v3362 = vshrl.u32 920167782, %v3350
      %v3363 = vor.u32 %v3361, %v3362
      %v3364 = vshll.u32 920167782, %v3349
      %v3365 = vshrl.u32 1326507024, %v3350
      %v3366 = vor.u32 %v3364, %v3365
      %vm3367 = vcmp.lt.s32.totalorder %v3348, 1
      %vm3368 = vcmp.lt.s32.totalorder %v3348, 2
      %vm3369 = vcmp.lt.s32.totalorder %v3348, 3
      %vm3370 = vcmp.lt.s32.totalorder %v3348, 4
      %v3371 = vsel %vm3367, %v3351, %v3354
      %v3372 = vsel %vm3370, %v3360, 2102212464
      %v3373 = vsel %vm3369, %v3357, %v3372
      %v3374 = vsel %vm3368, %v3371, %v3373
      %v3375 = vsel %vm3367, %v3354, %v3357
      %v3376 = vsel %vm3370, %v3363, 920167782
      %v3377 = vsel %vm3369, %v3360, %v3376
      %v3378 = vsel %vm3368, %v3375, %v3377
      %v3379 = vsel %vm3367, %v3357, %v3360
      %v3380 = vsel %vm3370, %v3366, 1326507024
      %v3381 = vsel %vm3369, %v3363, %v3380
      %v3382 = vsel %vm3368, %v3379, %v3381
      %v3383 = vshll.u32 %v3343, 8
      %v3384 = vmul.u32.u64.compose %v3383, %v3382
      %v3385 = vextract.low.u32 %v3384
      %v3386 = vextract.high.u32 %v3384
      %v3387 = vmul.u32.u64.compose %v3383, %v3378
      %v3388 = vextract.low.u32 %v3387
      %v3389 = vextract.high.u32 %v3387
      %v3390 = vmul.u32 %v3383, %v3374
      %v3391 = vadd.s32 %v3386, %v3388
      %vm3392 = vc.u32 %v3386, %v3388
      %v3393 = vadd.s32 %v3389, 1
      %v3394 = vsel %vm3392, %v3393, %v3389
      %v3395 = vadd.s32 %v3390, %v3394
      %v3396 = vadd.s32 %v3395, 536870912
      %v3397 = vshrl.u32 %v3396, 30
      %v3398 = vshll.u32 %v3397, 30
      %v3399 = vsub.s32 %v3395, %v3398
      %vm3400 = vcmp.lt.s32.totalorder %v3399, 0
      %v3401 = vsub.s32 0, %v3399
      %v3402 = vsel %vm3400, %v3401, %v3399
      %v3403 = vclz %v3402
      %v3404 = vsub.s32 %v3403, 2
      %vm3405 = vcmp.gt.s32.totalorder 0, %v3404
      %v3406 = vsel %vm3405, 0, %v3404
      %v3407 = vsub.s32 32, %v3406
      %v3408 = vshll.u32 %v3399, %v3406
      %v3409 = vshrl.u32 %v3391, %v3407
      %v3410 = vor.u32 %v3408, %v3409
      %v3411 = vsub.s32 4294967266, %v3406
      %v3412 = vadd.s32 %v3411, 127
      %v3413 = vshll.u32 %v3412, 23
      %v3414 = vor.u32 4788187, %v3413
      %v3415 = vand.u32 2147483647, %v3414
      %v3417 = vcvt.s32.f32 %v3410
      %v3418 = vmul.f32 %v3417, %v3415
      %v3419 = vxor.u32 %v3418, 2147483648
      %v3420 = vsel %vm3337, %v3419, %v3418
      %v3421 = vsub.s32 4, %v3397
      %v3422 = vsel %vm3337, %v3421, %v3397
      %v3423 = vsel %vm3336, %v387, %v3420
      %v3424 = vsel %vm3336, 0, %v3422
      %v3425 = vcosq.f32.pop %v3423
      %v3426 = vsinq.f32.pop %v3423
      %vm3427 = vweird.f32 %v387
      %v3428 = vadd.s32 %v3424, 3
      %v3429 = vand.u32 %v3428, 3
      %vm3430 = vcmp.lt.s32.totalorder %v3429, 2
      %vm3431 = vcmp.eq.s32.totalorder %v3429, 0
      %v3432 = vxor.u32 %v3426, 2147483648
      %v3433 = vsel %vm3431, %v3425, %v3432
      %vm3434 = vcmp.eq.s32.totalorder %v3429, 2
      %v3435 = vxor.u32 %v3425, 2147483648
      %v3436 = vsel %vm3434, %v3435, %v3426
      %v3437 = vsel %vm3430, %v3433, %v3436
      %v3438 = vsel %vm3427, nan, %v3437
      %v3439 = vand.u32 2147483647, %v388
      %vm3440 = vcmp.le.f32.partialorder %v3439, 0.7853982
      %vm3441 = vcmp.lt.s32.totalorder %v388, 0
      %v3442 = vand.u32 %v388, 2139095040
      %v3443 = vshrl.u32 %v3442, 23
      %v3444 = vsub.s32 %v3443, 127
      %v3445 = vand.u32 2147483647, %v388
      %v3446 = vand.u32 %v3445, 8388607
      %v3447 = vor.u32 %v3446, 8388608
      %v3448 = vsub.s32 0, %v3447
      %v3449 = vadd.s32 %v3444, 1
      %vm3450 = vcmp.gt.s32.totalorder %v3449, 0
      %v3451 = vsel %vm3450, %v3449, 0
      %v3452 = vshrl.u32 %v3451, 5
      %v3453 = vand.u32 %v3451, 31
      %v3454 = vsub.s32 32, %v3453
      %v3455 = vshrl.u32 683565275, %v3454
      %v3456 = vshll.u32 683565275, %v3453
      %v3457 = vshrl.u32 2475754826, %v3454
      %v3458 = vor.u32 %v3456, %v3457
      %v3459 = vshll.u32 2475754826, %v3453
      %v3460 = vshrl.u32 2131351028, %v3454
      %v3461 = vor.u32 %v3459, %v3460
      %v3462 = vshll.u32 2131351028, %v3453
      %v3463 = vshrl.u32 2102212464, %v3454
      %v3464 = vor.u32 %v3462, %v3463
      %v3465 = vshll.u32 2102212464, %v3453
      %v3466 = vshrl.u32 920167782, %v3454
      %v3467 = vor.u32 %v3465, %v3466
      %v3468 = vshll.u32 920167782, %v3453
      %v3469 = vshrl.u32 1326507024, %v3454
      %v3470 = vor.u32 %v3468, %v3469
      %vm3471 = vcmp.lt.s32.totalorder %v3452, 1
      %vm3472 = vcmp.lt.s32.totalorder %v3452, 2
      %vm3473 = vcmp.lt.s32.totalorder %v3452, 3
      %vm3474 = vcmp.lt.s32.totalorder %v3452, 4
      %v3475 = vsel %vm3471, %v3455, %v3458
      %v3476 = vsel %vm3474, %v3464, 2102212464
      %v3477 = vsel %vm3473, %v3461, %v3476
      %v3478 = vsel %vm3472, %v3475, %v3477
      %v3479 = vsel %vm3471, %v3458, %v3461
      %v3480 = vsel %vm3474, %v3467, 920167782
      %v3481 = vsel %vm3473, %v3464, %v3480
      %v3482 = vsel %vm3472, %v3479, %v3481
      %v3483 = vsel %vm3471, %v3461, %v3464
      %v3484 = vsel %vm3474, %v3470, 1326507024
      %v3485 = vsel %vm3473, %v3467, %v3484
      %v3486 = vsel %vm3472, %v3483, %v3485
      %v3487 = vshll.u32 %v3447, 8
      %v3488 = vmul.u32.u64.compose %v3487, %v3486
      %v3489 = vextract.low.u32 %v3488
      %v3490 = vextract.high.u32 %v3488
      %v3491 = vmul.u32.u64.compose %v3487, %v3482
      %v3492 = vextract.low.u32 %v3491
      %v3493 = vextract.high.u32 %v3491
      %v3494 = vmul.u32 %v3487, %v3478
      %v3495 = vadd.s32 %v3490, %v3492
      %vm3496 = vc.u32 %v3490, %v3492
      %v3497 = vadd.s32 %v3493, 1
      %v3498 = vsel %vm3496, %v3497, %v3493
      %v3499 = vadd.s32 %v3494, %v3498
      %v3500 = vadd.s32 %v3499, 536870912
      %v3501 = vshrl.u32 %v3500, 30
      %v3502 = vshll.u32 %v3501, 30
      %v3503 = vsub.s32 %v3499, %v3502
      %vm3504 = vcmp.lt.s32.totalorder %v3503, 0
      %v3505 = vsub.s32 0, %v3503
      %v3506 = vsel %vm3504, %v3505, %v3503
      %v3507 = vclz %v3506
      %v3508 = vsub.s32 %v3507, 2
      %vm3509 = vcmp.gt.s32.totalorder 0, %v3508
      %v3510 = vsel %vm3509, 0, %v3508
      %v3511 = vsub.s32 32, %v3510
      %v3512 = vshll.u32 %v3503, %v3510
      %v3513 = vshrl.u32 %v3495, %v3511
      %v3514 = vor.u32 %v3512, %v3513
      %v3515 = vsub.s32 4294967266, %v3510
      %v3516 = vadd.s32 %v3515, 127
      %v3517 = vshll.u32 %v3516, 23
      %v3518 = vor.u32 4788187, %v3517
      %v3519 = vand.u32 2147483647, %v3518
      %v3521 = vcvt.s32.f32 %v3514
      %v3522 = vmul.f32 %v3521, %v3519
      %v3523 = vxor.u32 %v3522, 2147483648
      %v3524 = vsel %vm3441, %v3523, %v3522
      %v3525 = vsub.s32 4, %v3501
      %v3526 = vsel %vm3441, %v3525, %v3501
      %v3527 = vsel %vm3440, %v388, %v3524
      %v3528 = vsel %vm3440, 0, %v3526
      %v3529 = vcosq.f32.pop %v3527
      %v3530 = vsinq.f32.pop %v3527
      %vm3531 = vweird.f32 %v388
      %v3532 = vadd.s32 %v3528, 3
      %v3533 = vand.u32 %v3532, 3
      %vm3534 = vcmp.lt.s32.totalorder %v3533, 2
      %vm3535 = vcmp.eq.s32.totalorder %v3533, 0
      %v3536 = vxor.u32 %v3530, 2147483648
      %v3537 = vsel %vm3535, %v3529, %v3536
      %vm3538 = vcmp.eq.s32.totalorder %v3533, 2
      %v3539 = vxor.u32 %v3529, 2147483648
      %v3540 = vsel %vm3538, %v3539, %v3530
      %v3541 = vsel %vm3534, %v3537, %v3540
      %v3542 = vsel %vm3531, nan, %v3541
      %v3543 = vand.u32 2147483647, %v389
      %vm3544 = vcmp.le.f32.partialorder %v3543, 0.7853982
      %vm3545 = vcmp.lt.s32.totalorder %v389, 0
      %v3546 = vand.u32 %v389, 2139095040
      %v3547 = vshrl.u32 %v3546, 23
      %v3548 = vsub.s32 %v3547, 127
      %v3549 = vand.u32 2147483647, %v389
      %v3550 = vand.u32 %v3549, 8388607
      %v3551 = vor.u32 %v3550, 8388608
      %v3552 = vsub.s32 0, %v3551
      %v3553 = vadd.s32 %v3548, 1
      %vm3554 = vcmp.gt.s32.totalorder %v3553, 0
      %v3555 = vsel %vm3554, %v3553, 0
      %v3556 = vshrl.u32 %v3555, 5
      %v3557 = vand.u32 %v3555, 31
      %v3558 = vsub.s32 32, %v3557
      %v3559 = vshrl.u32 683565275, %v3558
      %v3560 = vshll.u32 683565275, %v3557
      %v3561 = vshrl.u32 2475754826, %v3558
      %v3562 = vor.u32 %v3560, %v3561
      %v3563 = vshll.u32 2475754826, %v3557
      %v3564 = vshrl.u32 2131351028, %v3558
      %v3565 = vor.u32 %v3563, %v3564
      %v3566 = vshll.u32 2131351028, %v3557
      %v3567 = vshrl.u32 2102212464, %v3558
      %v3568 = vor.u32 %v3566, %v3567
      %v3569 = vshll.u32 2102212464, %v3557
      %v3570 = vshrl.u32 920167782, %v3558
      %v3571 = vor.u32 %v3569, %v3570
      %v3572 = vshll.u32 920167782, %v3557
      %v3573 = vshrl.u32 1326507024, %v3558
      %v3574 = vor.u32 %v3572, %v3573
      %vm3575 = vcmp.lt.s32.totalorder %v3556, 1
      %vm3576 = vcmp.lt.s32.totalorder %v3556, 2
      %vm3577 = vcmp.lt.s32.totalorder %v3556, 3
      %vm3578 = vcmp.lt.s32.totalorder %v3556, 4
      %v3579 = vsel %vm3575, %v3559, %v3562
      %v3580 = vsel %vm3578, %v3568, 2102212464
      %v3581 = vsel %vm3577, %v3565, %v3580
      %v3582 = vsel %vm3576, %v3579, %v3581
      %v3583 = vsel %vm3575, %v3562, %v3565
      %v3584 = vsel %vm3578, %v3571, 920167782
      %v3585 = vsel %vm3577, %v3568, %v3584
      %v3586 = vsel %vm3576, %v3583, %v3585
      %v3587 = vsel %vm3575, %v3565, %v3568
      %v3588 = vsel %vm3578, %v3574, 1326507024
      %v3589 = vsel %vm3577, %v3571, %v3588
      %v3590 = vsel %vm3576, %v3587, %v3589
      %v3591 = vshll.u32 %v3551, 8
      %v3592 = vmul.u32.u64.compose %v3591, %v3590
      %v3593 = vextract.low.u32 %v3592
      %v3594 = vextract.high.u32 %v3592
      %v3595 = vmul.u32.u64.compose %v3591, %v3586
      %v3596 = vextract.low.u32 %v3595
      %v3597 = vextract.high.u32 %v3595
      %v3598 = vmul.u32 %v3591, %v3582
      %v3599 = vadd.s32 %v3594, %v3596
      %vm3600 = vc.u32 %v3594, %v3596
      %v3601 = vadd.s32 %v3597, 1
      %v3602 = vsel %vm3600, %v3601, %v3597
      %v3603 = vadd.s32 %v3598, %v3602
      %v3604 = vadd.s32 %v3603, 536870912
      %v3605 = vshrl.u32 %v3604, 30
      %v3606 = vshll.u32 %v3605, 30
      %v3607 = vsub.s32 %v3603, %v3606
      %vm3608 = vcmp.lt.s32.totalorder %v3607, 0
      %v3609 = vsub.s32 0, %v3607
      %v3610 = vsel %vm3608, %v3609, %v3607
      %v3611 = vclz %v3610
      %v3612 = vsub.s32 %v3611, 2
      %vm3613 = vcmp.gt.s32.totalorder 0, %v3612
      %v3614 = vsel %vm3613, 0, %v3612
      %v3615 = vsub.s32 32, %v3614
      %v3616 = vshll.u32 %v3607, %v3614
      %v3617 = vshrl.u32 %v3599, %v3615
      %v3618 = vor.u32 %v3616, %v3617
      %v3619 = vsub.s32 4294967266, %v3614
      %v3620 = vadd.s32 %v3619, 127
      %v3621 = vshll.u32 %v3620, 23
      %v3622 = vor.u32 4788187, %v3621
      %v3623 = vand.u32 2147483647, %v3622
      %v3625 = vcvt.s32.f32 %v3618
      %v3626 = vmul.f32 %v3625, %v3623
      %v3627 = vxor.u32 %v3626, 2147483648
      %v3628 = vsel %vm3545, %v3627, %v3626
      %v3629 = vsub.s32 4, %v3605
      %v3630 = vsel %vm3545, %v3629, %v3605
      %v3631 = vsel %vm3544, %v389, %v3628
      %v3632 = vsel %vm3544, 0, %v3630
      %v3633 = vcosq.f32.pop %v3631
      %v3634 = vsinq.f32.pop %v3631
      %vm3635 = vweird.f32 %v389
      %v3636 = vadd.s32 %v3632, 3
      %v3637 = vand.u32 %v3636, 3
      %vm3638 = vcmp.lt.s32.totalorder %v3637, 2
      %vm3639 = vcmp.eq.s32.totalorder %v3637, 0
      %v3640 = vxor.u32 %v3634, 2147483648
      %v3641 = vsel %vm3639, %v3633, %v3640
      %vm3642 = vcmp.eq.s32.totalorder %v3637, 2
      %v3643 = vxor.u32 %v3633, 2147483648
      %v3644 = vsel %vm3642, %v3643, %v3634
      %v3645 = vsel %vm3638, %v3641, %v3644
      %v3646 = vsel %vm3635, nan, %v3645
      %v3647 = vand.u32 2147483647, %v390
      %vm3648 = vcmp.le.f32.partialorder %v3647, 0.7853982
      %vm3649 = vcmp.lt.s32.totalorder %v390, 0
      %v3650 = vand.u32 %v390, 2139095040
      %v3651 = vshrl.u32 %v3650, 23
      %v3652 = vsub.s32 %v3651, 127
      %v3653 = vand.u32 2147483647, %v390
      %v3654 = vand.u32 %v3653, 8388607
      %v3655 = vor.u32 %v3654, 8388608
      %v3656 = vsub.s32 0, %v3655
      %v3657 = vadd.s32 %v3652, 1
      %vm3658 = vcmp.gt.s32.totalorder %v3657, 0
      %v3659 = vsel %vm3658, %v3657, 0
      %v3660 = vshrl.u32 %v3659, 5
      %v3661 = vand.u32 %v3659, 31
      %v3662 = vsub.s32 32, %v3661
      %v3663 = vshrl.u32 683565275, %v3662
      %v3664 = vshll.u32 683565275, %v3661
      %v3665 = vshrl.u32 2475754826, %v3662
      %v3666 = vor.u32 %v3664, %v3665
      %v3667 = vshll.u32 2475754826, %v3661
      %v3668 = vshrl.u32 2131351028, %v3662
      %v3669 = vor.u32 %v3667, %v3668
      %v3670 = vshll.u32 2131351028, %v3661
      %v3671 = vshrl.u32 2102212464, %v3662
      %v3672 = vor.u32 %v3670, %v3671
      %v3673 = vshll.u32 2102212464, %v3661
      %v3674 = vshrl.u32 920167782, %v3662
      %v3675 = vor.u32 %v3673, %v3674
      %v3676 = vshll.u32 920167782, %v3661
      %v3677 = vshrl.u32 1326507024, %v3662
      %v3678 = vor.u32 %v3676, %v3677
      %vm3679 = vcmp.lt.s32.totalorder %v3660, 1
      %vm3680 = vcmp.lt.s32.totalorder %v3660, 2
      %vm3681 = vcmp.lt.s32.totalorder %v3660, 3
      %vm3682 = vcmp.lt.s32.totalorder %v3660, 4
      %v3683 = vsel %vm3679, %v3663, %v3666
      %v3684 = vsel %vm3682, %v3672, 2102212464
      %v3685 = vsel %vm3681, %v3669, %v3684
      %v3686 = vsel %vm3680, %v3683, %v3685
      %v3687 = vsel %vm3679, %v3666, %v3669
      %v3688 = vsel %vm3682, %v3675, 920167782
      %v3689 = vsel %vm3681, %v3672, %v3688
      %v3690 = vsel %vm3680, %v3687, %v3689
      %v3691 = vsel %vm3679, %v3669, %v3672
      %v3692 = vsel %vm3682, %v3678, 1326507024
      %v3693 = vsel %vm3681, %v3675, %v3692
      %v3694 = vsel %vm3680, %v3691, %v3693
      %v3695 = vshll.u32 %v3655, 8
      %v3696 = vmul.u32.u64.compose %v3695, %v3694
      %v3697 = vextract.low.u32 %v3696
      %v3698 = vextract.high.u32 %v3696
      %v3699 = vmul.u32.u64.compose %v3695, %v3690
      %v3700 = vextract.low.u32 %v3699
      %v3701 = vextract.high.u32 %v3699
      %v3702 = vmul.u32 %v3695, %v3686
      %v3703 = vadd.s32 %v3698, %v3700
      %vm3704 = vc.u32 %v3698, %v3700
      %v3705 = vadd.s32 %v3701, 1
      %v3706 = vsel %vm3704, %v3705, %v3701
      %v3707 = vadd.s32 %v3702, %v3706
      %v3708 = vadd.s32 %v3707, 536870912
      %v3709 = vshrl.u32 %v3708, 30
      %v3710 = vshll.u32 %v3709, 30
      %v3711 = vsub.s32 %v3707, %v3710
      %vm3712 = vcmp.lt.s32.totalorder %v3711, 0
      %v3713 = vsub.s32 0, %v3711
      %v3714 = vsel %vm3712, %v3713, %v3711
      %v3715 = vclz %v3714
      %v3716 = vsub.s32 %v3715, 2
      %vm3717 = vcmp.gt.s32.totalorder 0, %v3716
      %v3718 = vsel %vm3717, 0, %v3716
      %v3719 = vsub.s32 32, %v3718
      %v3720 = vshll.u32 %v3711, %v3718
      %v3721 = vshrl.u32 %v3703, %v3719
      %v3722 = vor.u32 %v3720, %v3721
      %v3723 = vsub.s32 4294967266, %v3718
      %v3724 = vadd.s32 %v3723, 127
      %v3725 = vshll.u32 %v3724, 23
      %v3726 = vor.u32 4788187, %v3725
      %v3727 = vand.u32 2147483647, %v3726
      %v3729 = vcvt.s32.f32 %v3722
      %v3730 = vmul.f32 %v3729, %v3727
      %v3731 = vxor.u32 %v3730, 2147483648
      %v3732 = vsel %vm3649, %v3731, %v3730
      %v3733 = vsub.s32 4, %v3709
      %v3734 = vsel %vm3649, %v3733, %v3709
      %v3735 = vsel %vm3648, %v390, %v3732
      %v3736 = vsel %vm3648, 0, %v3734
      %v3737 = vcosq.f32.pop %v3735
      %v3738 = vsinq.f32.pop %v3735
      %vm3739 = vweird.f32 %v390
      %v3740 = vadd.s32 %v3736, 3
      %v3741 = vand.u32 %v3740, 3
      %vm3742 = vcmp.lt.s32.totalorder %v3741, 2
      %vm3743 = vcmp.eq.s32.totalorder %v3741, 0
      %v3744 = vxor.u32 %v3738, 2147483648
      %v3745 = vsel %vm3743, %v3737, %v3744
      %vm3746 = vcmp.eq.s32.totalorder %v3741, 2
      %v3747 = vxor.u32 %v3737, 2147483648
      %v3748 = vsel %vm3746, %v3747, %v3738
      %v3749 = vsel %vm3742, %v3745, %v3748
      %v3750 = vsel %vm3739, nan, %v3749
      %v3751 = vand.u32 2147483647, %v391
      %vm3752 = vcmp.le.f32.partialorder %v3751, 0.7853982
      %vm3753 = vcmp.lt.s32.totalorder %v391, 0
      %v3754 = vand.u32 %v391, 2139095040
      %v3755 = vshrl.u32 %v3754, 23
      %v3756 = vsub.s32 %v3755, 127
      %v3757 = vand.u32 2147483647, %v391
      %v3758 = vand.u32 %v3757, 8388607
      %v3759 = vor.u32 %v3758, 8388608
      %v3760 = vsub.s32 0, %v3759
      %v3761 = vadd.s32 %v3756, 1
      %vm3762 = vcmp.gt.s32.totalorder %v3761, 0
      %v3763 = vsel %vm3762, %v3761, 0
      %v3764 = vshrl.u32 %v3763, 5
      %v3765 = vand.u32 %v3763, 31
      %v3766 = vsub.s32 32, %v3765
      %v3767 = vshrl.u32 683565275, %v3766
      %v3768 = vshll.u32 683565275, %v3765
      %v3769 = vshrl.u32 2475754826, %v3766
      %v3770 = vor.u32 %v3768, %v3769
      %v3771 = vshll.u32 2475754826, %v3765
      %v3772 = vshrl.u32 2131351028, %v3766
      %v3773 = vor.u32 %v3771, %v3772
      %v3774 = vshll.u32 2131351028, %v3765
      %v3775 = vshrl.u32 2102212464, %v3766
      %v3776 = vor.u32 %v3774, %v3775
      %v3777 = vshll.u32 2102212464, %v3765
      %v3778 = vshrl.u32 920167782, %v3766
      %v3779 = vor.u32 %v3777, %v3778
      %v3780 = vshll.u32 920167782, %v3765
      %v3781 = vshrl.u32 1326507024, %v3766
      %v3782 = vor.u32 %v3780, %v3781
      %vm3783 = vcmp.lt.s32.totalorder %v3764, 1
      %vm3784 = vcmp.lt.s32.totalorder %v3764, 2
      %vm3785 = vcmp.lt.s32.totalorder %v3764, 3
      %vm3786 = vcmp.lt.s32.totalorder %v3764, 4
      %v3787 = vsel %vm3783, %v3767, %v3770
      %v3788 = vsel %vm3786, %v3776, 2102212464
      %v3789 = vsel %vm3785, %v3773, %v3788
      %v3790 = vsel %vm3784, %v3787, %v3789
      %v3791 = vsel %vm3783, %v3770, %v3773
      %v3792 = vsel %vm3786, %v3779, 920167782
      %v3793 = vsel %vm3785, %v3776, %v3792
      %v3794 = vsel %vm3784, %v3791, %v3793
      %v3795 = vsel %vm3783, %v3773, %v3776
      %v3796 = vsel %vm3786, %v3782, 1326507024
      %v3797 = vsel %vm3785, %v3779, %v3796
      %v3798 = vsel %vm3784, %v3795, %v3797
      %v3799 = vshll.u32 %v3759, 8
      %v3800 = vmul.u32.u64.compose %v3799, %v3798
      %v3801 = vextract.low.u32 %v3800
      %v3802 = vextract.high.u32 %v3800
      %v3803 = vmul.u32.u64.compose %v3799, %v3794
      %v3804 = vextract.low.u32 %v3803
      %v3805 = vextract.high.u32 %v3803
      %v3806 = vmul.u32 %v3799, %v3790
      %v3807 = vadd.s32 %v3802, %v3804
      %vm3808 = vc.u32 %v3802, %v3804
      %v3809 = vadd.s32 %v3805, 1
      %v3810 = vsel %vm3808, %v3809, %v3805
      %v3811 = vadd.s32 %v3806, %v3810
      %v3812 = vadd.s32 %v3811, 536870912
      %v3813 = vshrl.u32 %v3812, 30
      %v3814 = vshll.u32 %v3813, 30
      %v3815 = vsub.s32 %v3811, %v3814
      %vm3816 = vcmp.lt.s32.totalorder %v3815, 0
      %v3817 = vsub.s32 0, %v3815
      %v3818 = vsel %vm3816, %v3817, %v3815
      %v3819 = vclz %v3818
      %v3820 = vsub.s32 %v3819, 2
      %vm3821 = vcmp.gt.s32.totalorder 0, %v3820
      %v3822 = vsel %vm3821, 0, %v3820
      %v3823 = vsub.s32 32, %v3822
      %v3824 = vshll.u32 %v3815, %v3822
      %v3825 = vshrl.u32 %v3807, %v3823
      %v3826 = vor.u32 %v3824, %v3825
      %v3827 = vsub.s32 4294967266, %v3822
      %v3828 = vadd.s32 %v3827, 127
      %v3829 = vshll.u32 %v3828, 23
      %v3830 = vor.u32 4788187, %v3829
      %v3831 = vand.u32 2147483647, %v3830
      %v3833 = vcvt.s32.f32 %v3826
      %v3834 = vmul.f32 %v3833, %v3831
      %v3835 = vxor.u32 %v3834, 2147483648
      %v3836 = vsel %vm3753, %v3835, %v3834
      %v3837 = vsub.s32 4, %v3813
      %v3838 = vsel %vm3753, %v3837, %v3813
      %v3839 = vsel %vm3752, %v391, %v3836
      %v3840 = vsel %vm3752, 0, %v3838
      %v3841 = vcosq.f32.pop %v3839
      %v3842 = vsinq.f32.pop %v3839
      %vm3843 = vweird.f32 %v391
      %v3844 = vadd.s32 %v3840, 3
      %v3845 = vand.u32 %v3844, 3
      %vm3846 = vcmp.lt.s32.totalorder %v3845, 2
      %vm3847 = vcmp.eq.s32.totalorder %v3845, 0
      %v3848 = vxor.u32 %v3842, 2147483648
      %v3849 = vsel %vm3847, %v3841, %v3848
      %vm3850 = vcmp.eq.s32.totalorder %v3845, 2
      %v3851 = vxor.u32 %v3841, 2147483648
      %v3852 = vsel %vm3850, %v3851, %v3842
      %v3853 = vsel %vm3846, %v3849, %v3852
      %v3854 = vsel %vm3843, nan, %v3853
      %v3855 = vand.u32 2147483647, %v392
      %vm3856 = vcmp.le.f32.partialorder %v3855, 0.7853982
      %vm3857 = vcmp.lt.s32.totalorder %v392, 0
      %v3858 = vand.u32 %v392, 2139095040
      %v3859 = vshrl.u32 %v3858, 23
      %v3860 = vsub.s32 %v3859, 127
      %v3861 = vand.u32 2147483647, %v392
      %v3862 = vand.u32 %v3861, 8388607
      %v3863 = vor.u32 %v3862, 8388608
      %v3864 = vsub.s32 0, %v3863
      %v3865 = vadd.s32 %v3860, 1
      %vm3866 = vcmp.gt.s32.totalorder %v3865, 0
      %v3867 = vsel %vm3866, %v3865, 0
      %v3868 = vshrl.u32 %v3867, 5
      %v3869 = vand.u32 %v3867, 31
      %v3870 = vsub.s32 32, %v3869
      %v3871 = vshrl.u32 683565275, %v3870
      %v3872 = vshll.u32 683565275, %v3869
      %v3873 = vshrl.u32 2475754826, %v3870
      %v3874 = vor.u32 %v3872, %v3873
      %v3875 = vshll.u32 2475754826, %v3869
      %v3876 = vshrl.u32 2131351028, %v3870
      %v3877 = vor.u32 %v3875, %v3876
      %v3878 = vshll.u32 2131351028, %v3869
      %v3879 = vshrl.u32 2102212464, %v3870
      %v3880 = vor.u32 %v3878, %v3879
      %v3881 = vshll.u32 2102212464, %v3869
      %v3882 = vshrl.u32 920167782, %v3870
      %v3883 = vor.u32 %v3881, %v3882
      %v3884 = vshll.u32 920167782, %v3869
      %v3885 = vshrl.u32 1326507024, %v3870
      %v3886 = vor.u32 %v3884, %v3885
      %vm3887 = vcmp.lt.s32.totalorder %v3868, 1
      %vm3888 = vcmp.lt.s32.totalorder %v3868, 2
      %vm3889 = vcmp.lt.s32.totalorder %v3868, 3
      %vm3890 = vcmp.lt.s32.totalorder %v3868, 4
      %v3891 = vsel %vm3887, %v3871, %v3874
      %v3892 = vsel %vm3890, %v3880, 2102212464
      %v3893 = vsel %vm3889, %v3877, %v3892
      %v3894 = vsel %vm3888, %v3891, %v3893
      %v3895 = vsel %vm3887, %v3874, %v3877
      %v3896 = vsel %vm3890, %v3883, 920167782
      %v3897 = vsel %vm3889, %v3880, %v3896
      %v3898 = vsel %vm3888, %v3895, %v3897
      %v3899 = vsel %vm3887, %v3877, %v3880
      %v3900 = vsel %vm3890, %v3886, 1326507024
      %v3901 = vsel %vm3889, %v3883, %v3900
      %v3902 = vsel %vm3888, %v3899, %v3901
      %v3903 = vshll.u32 %v3863, 8
      %v3904 = vmul.u32.u64.compose %v3903, %v3902
      %v3905 = vextract.low.u32 %v3904
      %v3906 = vextract.high.u32 %v3904
      %v3907 = vmul.u32.u64.compose %v3903, %v3898
      %v3908 = vextract.low.u32 %v3907
      %v3909 = vextract.high.u32 %v3907
      %v3910 = vmul.u32 %v3903, %v3894
      %v3911 = vadd.s32 %v3906, %v3908
      %vm3912 = vc.u32 %v3906, %v3908
      %v3913 = vadd.s32 %v3909, 1
      %v3914 = vsel %vm3912, %v3913, %v3909
      %v3915 = vadd.s32 %v3910, %v3914
      %v3916 = vadd.s32 %v3915, 536870912
      %v3917 = vshrl.u32 %v3916, 30
      %v3918 = vshll.u32 %v3917, 30
      %v3919 = vsub.s32 %v3915, %v3918
      %vm3920 = vcmp.lt.s32.totalorder %v3919, 0
      %v3921 = vsub.s32 0, %v3919
      %v3922 = vsel %vm3920, %v3921, %v3919
      %v3923 = vclz %v3922
      %v3924 = vsub.s32 %v3923, 2
      %vm3925 = vcmp.gt.s32.totalorder 0, %v3924
      %v3926 = vsel %vm3925, 0, %v3924
      %v3927 = vsub.s32 32, %v3926
      %v3928 = vshll.u32 %v3919, %v3926
      %v3929 = vshrl.u32 %v3911, %v3927
      %v3930 = vor.u32 %v3928, %v3929
      %v3931 = vsub.s32 4294967266, %v3926
      %v3932 = vadd.s32 %v3931, 127
      %v3933 = vshll.u32 %v3932, 23
      %v3934 = vor.u32 4788187, %v3933
      %v3935 = vand.u32 2147483647, %v3934
      %v3937 = vcvt.s32.f32 %v3930
      %v3938 = vmul.f32 %v3937, %v3935
      %v3939 = vxor.u32 %v3938, 2147483648
      %v3940 = vsel %vm3857, %v3939, %v3938
      %v3941 = vsub.s32 4, %v3917
      %v3942 = vsel %vm3857, %v3941, %v3917
      %v3943 = vsel %vm3856, %v392, %v3940
      %v3944 = vsel %vm3856, 0, %v3942
      %v3945 = vcosq.f32.pop %v3943
      %v3946 = vsinq.f32.pop %v3943
      %vm3947 = vweird.f32 %v392
      %v3948 = vadd.s32 %v3944, 3
      %v3949 = vand.u32 %v3948, 3
      %vm3950 = vcmp.lt.s32.totalorder %v3949, 2
      %vm3951 = vcmp.eq.s32.totalorder %v3949, 0
      %v3952 = vxor.u32 %v3946, 2147483648
      %v3953 = vsel %vm3951, %v3945, %v3952
      %vm3954 = vcmp.eq.s32.totalorder %v3949, 2
      %v3955 = vxor.u32 %v3945, 2147483648
      %v3956 = vsel %vm3954, %v3955, %v3946
      %v3957 = vsel %vm3950, %v3953, %v3956
      %v3958 = vsel %vm3947, nan, %v3957
      %v3959 = vand.u32 2147483647, %v393
      %vm3960 = vcmp.le.f32.partialorder %v3959, 0.7853982
      %vm3961 = vcmp.lt.s32.totalorder %v393, 0
      %v3962 = vand.u32 %v393, 2139095040
      %v3963 = vshrl.u32 %v3962, 23
      %v3964 = vsub.s32 %v3963, 127
      %v3965 = vand.u32 2147483647, %v393
      %v3966 = vand.u32 %v3965, 8388607
      %v3967 = vor.u32 %v3966, 8388608
      %v3968 = vsub.s32 0, %v3967
      %v3969 = vadd.s32 %v3964, 1
      %vm3970 = vcmp.gt.s32.totalorder %v3969, 0
      %v3971 = vsel %vm3970, %v3969, 0
      %v3972 = vshrl.u32 %v3971, 5
      %v3973 = vand.u32 %v3971, 31
      %v3974 = vsub.s32 32, %v3973
      %v3975 = vshrl.u32 683565275, %v3974
      %v3976 = vshll.u32 683565275, %v3973
      %v3977 = vshrl.u32 2475754826, %v3974
      %v3978 = vor.u32 %v3976, %v3977
      %v3979 = vshll.u32 2475754826, %v3973
      %v3980 = vshrl.u32 2131351028, %v3974
      %v3981 = vor.u32 %v3979, %v3980
      %v3982 = vshll.u32 2131351028, %v3973
      %v3983 = vshrl.u32 2102212464, %v3974
      %v3984 = vor.u32 %v3982, %v3983
      %v3985 = vshll.u32 2102212464, %v3973
      %v3986 = vshrl.u32 920167782, %v3974
      %v3987 = vor.u32 %v3985, %v3986
      %v3988 = vshll.u32 920167782, %v3973
      %v3989 = vshrl.u32 1326507024, %v3974
      %v3990 = vor.u32 %v3988, %v3989
      %vm3991 = vcmp.lt.s32.totalorder %v3972, 1
      %vm3992 = vcmp.lt.s32.totalorder %v3972, 2
      %vm3993 = vcmp.lt.s32.totalorder %v3972, 3
      %vm3994 = vcmp.lt.s32.totalorder %v3972, 4
      %v3995 = vsel %vm3991, %v3975, %v3978
      %v3996 = vsel %vm3994, %v3984, 2102212464
      %v3997 = vsel %vm3993, %v3981, %v3996
      %v3998 = vsel %vm3992, %v3995, %v3997
      %v3999 = vsel %vm3991, %v3978, %v3981
      %v4000 = vsel %vm3994, %v3987, 920167782
      %v4001 = vsel %vm3993, %v3984, %v4000
      %v4002 = vsel %vm3992, %v3999, %v4001
      %v4003 = vsel %vm3991, %v3981, %v3984
      %v4004 = vsel %vm3994, %v3990, 1326507024
      %v4005 = vsel %vm3993, %v3987, %v4004
      %v4006 = vsel %vm3992, %v4003, %v4005
      %v4007 = vshll.u32 %v3967, 8
      %v4008 = vmul.u32.u64.compose %v4007, %v4006
      %v4009 = vextract.low.u32 %v4008
      %v4010 = vextract.high.u32 %v4008
      %v4011 = vmul.u32.u64.compose %v4007, %v4002
      %v4012 = vextract.low.u32 %v4011
      %v4013 = vextract.high.u32 %v4011
      %v4014 = vmul.u32 %v4007, %v3998
      %v4015 = vadd.s32 %v4010, %v4012
      %vm4016 = vc.u32 %v4010, %v4012
      %v4017 = vadd.s32 %v4013, 1
      %v4018 = vsel %vm4016, %v4017, %v4013
      %v4019 = vadd.s32 %v4014, %v4018
      %v4020 = vadd.s32 %v4019, 536870912
      %v4021 = vshrl.u32 %v4020, 30
      %v4022 = vshll.u32 %v4021, 30
      %v4023 = vsub.s32 %v4019, %v4022
      %vm4024 = vcmp.lt.s32.totalorder %v4023, 0
      %v4025 = vsub.s32 0, %v4023
      %v4026 = vsel %vm4024, %v4025, %v4023
      %v4027 = vclz %v4026
      %v4028 = vsub.s32 %v4027, 2
      %vm4029 = vcmp.gt.s32.totalorder 0, %v4028
      %v4030 = vsel %vm4029, 0, %v4028
      %v4031 = vsub.s32 32, %v4030
      %v4032 = vshll.u32 %v4023, %v4030
      %v4033 = vshrl.u32 %v4015, %v4031
      %v4034 = vor.u32 %v4032, %v4033
      %v4035 = vsub.s32 4294967266, %v4030
      %v4036 = vadd.s32 %v4035, 127
      %v4037 = vshll.u32 %v4036, 23
      %v4038 = vor.u32 4788187, %v4037
      %v4039 = vand.u32 2147483647, %v4038
      %v4041 = vcvt.s32.f32 %v4034
      %v4042 = vmul.f32 %v4041, %v4039
      %v4043 = vxor.u32 %v4042, 2147483648
      %v4044 = vsel %vm3961, %v4043, %v4042
      %v4045 = vsub.s32 4, %v4021
      %v4046 = vsel %vm3961, %v4045, %v4021
      %v4047 = vsel %vm3960, %v393, %v4044
      %v4048 = vsel %vm3960, 0, %v4046
      %v4049 = vcosq.f32.pop %v4047
      %v4050 = vsinq.f32.pop %v4047
      %vm4051 = vweird.f32 %v393
      %v4052 = vadd.s32 %v4048, 3
      %v4053 = vand.u32 %v4052, 3
      %vm4054 = vcmp.lt.s32.totalorder %v4053, 2
      %vm4055 = vcmp.eq.s32.totalorder %v4053, 0
      %v4056 = vxor.u32 %v4050, 2147483648
      %v4057 = vsel %vm4055, %v4049, %v4056
      %vm4058 = vcmp.eq.s32.totalorder %v4053, 2
      %v4059 = vxor.u32 %v4049, 2147483648
      %v4060 = vsel %vm4058, %v4059, %v4050
      %v4061 = vsel %vm4054, %v4057, %v4060
      %v4062 = vsel %vm4051, nan, %v4061
      %v4063 = vand.u32 2147483647, %v394
      %vm4064 = vcmp.le.f32.partialorder %v4063, 0.7853982
      %vm4065 = vcmp.lt.s32.totalorder %v394, 0
      %v4066 = vand.u32 %v394, 2139095040
      %v4067 = vshrl.u32 %v4066, 23
      %v4068 = vsub.s32 %v4067, 127
      %v4069 = vand.u32 2147483647, %v394
      %v4070 = vand.u32 %v4069, 8388607
      %v4071 = vor.u32 %v4070, 8388608
      %v4072 = vsub.s32 0, %v4071
      %v4073 = vadd.s32 %v4068, 1
      %vm4074 = vcmp.gt.s32.totalorder %v4073, 0
      %v4075 = vsel %vm4074, %v4073, 0
      %v4076 = vshrl.u32 %v4075, 5
      %v4077 = vand.u32 %v4075, 31
      %v4078 = vsub.s32 32, %v4077
      %v4079 = vshrl.u32 683565275, %v4078
      %v4080 = vshll.u32 683565275, %v4077
      %v4081 = vshrl.u32 2475754826, %v4078
      %v4082 = vor.u32 %v4080, %v4081
      %v4083 = vshll.u32 2475754826, %v4077
      %v4084 = vshrl.u32 2131351028, %v4078
      %v4085 = vor.u32 %v4083, %v4084
      %v4086 = vshll.u32 2131351028, %v4077
      %v4087 = vshrl.u32 2102212464, %v4078
      %v4088 = vor.u32 %v4086, %v4087
      %v4089 = vshll.u32 2102212464, %v4077
      %v4090 = vshrl.u32 920167782, %v4078
      %v4091 = vor.u32 %v4089, %v4090
      %v4092 = vshll.u32 920167782, %v4077
      %v4093 = vshrl.u32 1326507024, %v4078
      %v4094 = vor.u32 %v4092, %v4093
      %vm4095 = vcmp.lt.s32.totalorder %v4076, 1
      %vm4096 = vcmp.lt.s32.totalorder %v4076, 2
      %vm4097 = vcmp.lt.s32.totalorder %v4076, 3
      %vm4098 = vcmp.lt.s32.totalorder %v4076, 4
      %v4099 = vsel %vm4095, %v4079, %v4082
      %v4100 = vsel %vm4098, %v4088, 2102212464
      %v4101 = vsel %vm4097, %v4085, %v4100
      %v4102 = vsel %vm4096, %v4099, %v4101
      %v4103 = vsel %vm4095, %v4082, %v4085
      %v4104 = vsel %vm4098, %v4091, 920167782
      %v4105 = vsel %vm4097, %v4088, %v4104
      %v4106 = vsel %vm4096, %v4103, %v4105
      %v4107 = vsel %vm4095, %v4085, %v4088
      %v4108 = vsel %vm4098, %v4094, 1326507024
      %v4109 = vsel %vm4097, %v4091, %v4108
      %v4110 = vsel %vm4096, %v4107, %v4109
      %v4111 = vshll.u32 %v4071, 8
      %v4112 = vmul.u32.u64.compose %v4111, %v4110
      %v4113 = vextract.low.u32 %v4112
      %v4114 = vextract.high.u32 %v4112
      %v4115 = vmul.u32.u64.compose %v4111, %v4106
      %v4116 = vextract.low.u32 %v4115
      %v4117 = vextract.high.u32 %v4115
      %v4118 = vmul.u32 %v4111, %v4102
      %v4119 = vadd.s32 %v4114, %v4116
      %vm4120 = vc.u32 %v4114, %v4116
      %v4121 = vadd.s32 %v4117, 1
      %v4122 = vsel %vm4120, %v4121, %v4117
      %v4123 = vadd.s32 %v4118, %v4122
      %v4124 = vadd.s32 %v4123, 536870912
      %v4125 = vshrl.u32 %v4124, 30
      %v4126 = vshll.u32 %v4125, 30
      %v4127 = vsub.s32 %v4123, %v4126
      %vm4128 = vcmp.lt.s32.totalorder %v4127, 0
      %v4129 = vsub.s32 0, %v4127
      %v4130 = vsel %vm4128, %v4129, %v4127
      %v4131 = vclz %v4130
      %v4132 = vsub.s32 %v4131, 2
      %vm4133 = vcmp.gt.s32.totalorder 0, %v4132
      %v4134 = vsel %vm4133, 0, %v4132
      %v4135 = vsub.s32 32, %v4134
      %v4136 = vshll.u32 %v4127, %v4134
      %v4137 = vshrl.u32 %v4119, %v4135
      %v4138 = vor.u32 %v4136, %v4137
      %v4139 = vsub.s32 4294967266, %v4134
      %v4140 = vadd.s32 %v4139, 127
      %v4141 = vshll.u32 %v4140, 23
      %v4142 = vor.u32 4788187, %v4141
      %v4143 = vand.u32 2147483647, %v4142
      %v4145 = vcvt.s32.f32 %v4138
      %v4146 = vmul.f32 %v4145, %v4143
      %v4147 = vxor.u32 %v4146, 2147483648
      %v4148 = vsel %vm4065, %v4147, %v4146
      %v4149 = vsub.s32 4, %v4125
      %v4150 = vsel %vm4065, %v4149, %v4125
      %v4151 = vsel %vm4064, %v394, %v4148
      %v4152 = vsel %vm4064, 0, %v4150
      %v4153 = vcosq.f32.pop %v4151
      %v4154 = vsinq.f32.pop %v4151
      %vm4155 = vweird.f32 %v394
      %v4156 = vadd.s32 %v4152, 3
      %v4157 = vand.u32 %v4156, 3
      %vm4158 = vcmp.lt.s32.totalorder %v4157, 2
      %vm4159 = vcmp.eq.s32.totalorder %v4157, 0
      %v4160 = vxor.u32 %v4154, 2147483648
      %v4161 = vsel %vm4159, %v4153, %v4160
      %vm4162 = vcmp.eq.s32.totalorder %v4157, 2
      %v4163 = vxor.u32 %v4153, 2147483648
      %v4164 = vsel %vm4162, %v4163, %v4154
      %v4165 = vsel %vm4158, %v4161, %v4164
      %v4166 = vsel %vm4155, nan, %v4165
      %v4167 = vand.u32 2147483647, %v395
      %vm4168 = vcmp.le.f32.partialorder %v4167, 0.7853982
      %vm4169 = vcmp.lt.s32.totalorder %v395, 0
      %v4170 = vand.u32 %v395, 2139095040
      %v4171 = vshrl.u32 %v4170, 23
      %v4172 = vsub.s32 %v4171, 127
      %v4173 = vand.u32 2147483647, %v395
      %v4174 = vand.u32 %v4173, 8388607
      %v4175 = vor.u32 %v4174, 8388608
      %v4176 = vsub.s32 0, %v4175
      %v4177 = vadd.s32 %v4172, 1
      %vm4178 = vcmp.gt.s32.totalorder %v4177, 0
      %v4179 = vsel %vm4178, %v4177, 0
      %v4180 = vshrl.u32 %v4179, 5
      %v4181 = vand.u32 %v4179, 31
      %v4182 = vsub.s32 32, %v4181
      %v4183 = vshrl.u32 683565275, %v4182
      %v4184 = vshll.u32 683565275, %v4181
      %v4185 = vshrl.u32 2475754826, %v4182
      %v4186 = vor.u32 %v4184, %v4185
      %v4187 = vshll.u32 2475754826, %v4181
      %v4188 = vshrl.u32 2131351028, %v4182
      %v4189 = vor.u32 %v4187, %v4188
      %v4190 = vshll.u32 2131351028, %v4181
      %v4191 = vshrl.u32 2102212464, %v4182
      %v4192 = vor.u32 %v4190, %v4191
      %v4193 = vshll.u32 2102212464, %v4181
      %v4194 = vshrl.u32 920167782, %v4182
      %v4195 = vor.u32 %v4193, %v4194
      %v4196 = vshll.u32 920167782, %v4181
      %v4197 = vshrl.u32 1326507024, %v4182
      %v4198 = vor.u32 %v4196, %v4197
      %vm4199 = vcmp.lt.s32.totalorder %v4180, 1
      %vm4200 = vcmp.lt.s32.totalorder %v4180, 2
      %vm4201 = vcmp.lt.s32.totalorder %v4180, 3
      %vm4202 = vcmp.lt.s32.totalorder %v4180, 4
      %v4203 = vsel %vm4199, %v4183, %v4186
      %v4204 = vsel %vm4202, %v4192, 2102212464
      %v4205 = vsel %vm4201, %v4189, %v4204
      %v4206 = vsel %vm4200, %v4203, %v4205
      %v4207 = vsel %vm4199, %v4186, %v4189
      %v4208 = vsel %vm4202, %v4195, 920167782
      %v4209 = vsel %vm4201, %v4192, %v4208
      %v4210 = vsel %vm4200, %v4207, %v4209
      %v4211 = vsel %vm4199, %v4189, %v4192
      %v4212 = vsel %vm4202, %v4198, 1326507024
      %v4213 = vsel %vm4201, %v4195, %v4212
      %v4214 = vsel %vm4200, %v4211, %v4213
      %v4215 = vshll.u32 %v4175, 8
      %v4216 = vmul.u32.u64.compose %v4215, %v4214
      %v4217 = vextract.low.u32 %v4216
      %v4218 = vextract.high.u32 %v4216
      %v4219 = vmul.u32.u64.compose %v4215, %v4210
      %v4220 = vextract.low.u32 %v4219
      %v4221 = vextract.high.u32 %v4219
      %v4222 = vmul.u32 %v4215, %v4206
      %v4223 = vadd.s32 %v4218, %v4220
      %vm4224 = vc.u32 %v4218, %v4220
      %v4225 = vadd.s32 %v4221, 1
      %v4226 = vsel %vm4224, %v4225, %v4221
      %v4227 = vadd.s32 %v4222, %v4226
      %v4228 = vadd.s32 %v4227, 536870912
      %v4229 = vshrl.u32 %v4228, 30
      %v4230 = vshll.u32 %v4229, 30
      %v4231 = vsub.s32 %v4227, %v4230
      %vm4232 = vcmp.lt.s32.totalorder %v4231, 0
      %v4233 = vsub.s32 0, %v4231
      %v4234 = vsel %vm4232, %v4233, %v4231
      %v4235 = vclz %v4234
      %v4236 = vsub.s32 %v4235, 2
      %vm4237 = vcmp.gt.s32.totalorder 0, %v4236
      %v4238 = vsel %vm4237, 0, %v4236
      %v4239 = vsub.s32 32, %v4238
      %v4240 = vshll.u32 %v4231, %v4238
      %v4241 = vshrl.u32 %v4223, %v4239
      %v4242 = vor.u32 %v4240, %v4241
      %v4243 = vsub.s32 4294967266, %v4238
      %v4244 = vadd.s32 %v4243, 127
      %v4245 = vshll.u32 %v4244, 23
      %v4246 = vor.u32 4788187, %v4245
      %v4247 = vand.u32 2147483647, %v4246
      %v4249 = vcvt.s32.f32 %v4242
      %v4250 = vmul.f32 %v4249, %v4247
      %v4251 = vxor.u32 %v4250, 2147483648
      %v4252 = vsel %vm4169, %v4251, %v4250
      %v4253 = vsub.s32 4, %v4229
      %v4254 = vsel %vm4169, %v4253, %v4229
      %v4255 = vsel %vm4168, %v395, %v4252
      %v4256 = vsel %vm4168, 0, %v4254
      %v4257 = vcosq.f32.pop %v4255
      %v4258 = vsinq.f32.pop %v4255
      %vm4259 = vweird.f32 %v395
      %v4260 = vadd.s32 %v4256, 3
      %v4261 = vand.u32 %v4260, 3
      %vm4262 = vcmp.lt.s32.totalorder %v4261, 2
      %vm4263 = vcmp.eq.s32.totalorder %v4261, 0
      %v4264 = vxor.u32 %v4258, 2147483648
      %v4265 = vsel %vm4263, %v4257, %v4264
      %vm4266 = vcmp.eq.s32.totalorder %v4261, 2
      %v4267 = vxor.u32 %v4257, 2147483648
      %v4268 = vsel %vm4266, %v4267, %v4258
      %v4269 = vsel %vm4262, %v4265, %v4268
      %v4270 = vsel %vm4259, nan, %v4269
      %v4271 = vand.u32 2147483647, %v396
      %vm4272 = vcmp.le.f32.partialorder %v4271, 0.7853982
      %vm4273 = vcmp.lt.s32.totalorder %v396, 0
      %v4274 = vand.u32 %v396, 2139095040
      %v4275 = vshrl.u32 %v4274, 23
      %v4276 = vsub.s32 %v4275, 127
      %v4277 = vand.u32 2147483647, %v396
      %v4278 = vand.u32 %v4277, 8388607
      %v4279 = vor.u32 %v4278, 8388608
      %v4280 = vsub.s32 0, %v4279
      %v4281 = vadd.s32 %v4276, 1
      %vm4282 = vcmp.gt.s32.totalorder %v4281, 0
      %v4283 = vsel %vm4282, %v4281, 0
      %v4284 = vshrl.u32 %v4283, 5
      %v4285 = vand.u32 %v4283, 31
      %v4286 = vsub.s32 32, %v4285
      %v4287 = vshrl.u32 683565275, %v4286
      %v4288 = vshll.u32 683565275, %v4285
      %v4289 = vshrl.u32 2475754826, %v4286
      %v4290 = vor.u32 %v4288, %v4289
      %v4291 = vshll.u32 2475754826, %v4285
      %v4292 = vshrl.u32 2131351028, %v4286
      %v4293 = vor.u32 %v4291, %v4292
      %v4294 = vshll.u32 2131351028, %v4285
      %v4295 = vshrl.u32 2102212464, %v4286
      %v4296 = vor.u32 %v4294, %v4295
      %v4297 = vshll.u32 2102212464, %v4285
      %v4298 = vshrl.u32 920167782, %v4286
      %v4299 = vor.u32 %v4297, %v4298
      %v4300 = vshll.u32 920167782, %v4285
      %v4301 = vshrl.u32 1326507024, %v4286
      %v4302 = vor.u32 %v4300, %v4301
      %vm4303 = vcmp.lt.s32.totalorder %v4284, 1
      %vm4304 = vcmp.lt.s32.totalorder %v4284, 2
      %vm4305 = vcmp.lt.s32.totalorder %v4284, 3
      %vm4306 = vcmp.lt.s32.totalorder %v4284, 4
      %v4307 = vsel %vm4303, %v4287, %v4290
      %v4308 = vsel %vm4306, %v4296, 2102212464
      %v4309 = vsel %vm4305, %v4293, %v4308
      %v4310 = vsel %vm4304, %v4307, %v4309
      %v4311 = vsel %vm4303, %v4290, %v4293
      %v4312 = vsel %vm4306, %v4299, 920167782
      %v4313 = vsel %vm4305, %v4296, %v4312
      %v4314 = vsel %vm4304, %v4311, %v4313
      %v4315 = vsel %vm4303, %v4293, %v4296
      %v4316 = vsel %vm4306, %v4302, 1326507024
      %v4317 = vsel %vm4305, %v4299, %v4316
      %v4318 = vsel %vm4304, %v4315, %v4317
      %v4319 = vshll.u32 %v4279, 8
      %v4320 = vmul.u32.u64.compose %v4319, %v4318
      %v4321 = vextract.low.u32 %v4320
      %v4322 = vextract.high.u32 %v4320
      %v4323 = vmul.u32.u64.compose %v4319, %v4314
      %v4324 = vextract.low.u32 %v4323
      %v4325 = vextract.high.u32 %v4323
      %v4326 = vmul.u32 %v4319, %v4310
      %v4327 = vadd.s32 %v4322, %v4324
      %vm4328 = vc.u32 %v4322, %v4324
      %v4329 = vadd.s32 %v4325, 1
      %v4330 = vsel %vm4328, %v4329, %v4325
      %v4331 = vadd.s32 %v4326, %v4330
      %v4332 = vadd.s32 %v4331, 536870912
      %v4333 = vshrl.u32 %v4332, 30
      %v4334 = vshll.u32 %v4333, 30
      %v4335 = vsub.s32 %v4331, %v4334
      %vm4336 = vcmp.lt.s32.totalorder %v4335, 0
      %v4337 = vsub.s32 0, %v4335
      %v4338 = vsel %vm4336, %v4337, %v4335
      %v4339 = vclz %v4338
      %v4340 = vsub.s32 %v4339, 2
      %vm4341 = vcmp.gt.s32.totalorder 0, %v4340
      %v4342 = vsel %vm4341, 0, %v4340
      %v4343 = vsub.s32 32, %v4342
      %v4344 = vshll.u32 %v4335, %v4342
      %v4345 = vshrl.u32 %v4327, %v4343
      %v4346 = vor.u32 %v4344, %v4345
      %v4347 = vsub.s32 4294967266, %v4342
      %v4348 = vadd.s32 %v4347, 127
      %v4349 = vshll.u32 %v4348, 23
      %v4350 = vor.u32 4788187, %v4349
      %v4351 = vand.u32 2147483647, %v4350
      %v4353 = vcvt.s32.f32 %v4346
      %v4354 = vmul.f32 %v4353, %v4351
      %v4355 = vxor.u32 %v4354, 2147483648
      %v4356 = vsel %vm4273, %v4355, %v4354
      %v4357 = vsub.s32 4, %v4333
      %v4358 = vsel %vm4273, %v4357, %v4333
      %v4359 = vsel %vm4272, %v396, %v4356
      %v4360 = vsel %vm4272, 0, %v4358
      %v4361 = vcosq.f32.pop %v4359
      %v4362 = vsinq.f32.pop %v4359
      %vm4363 = vweird.f32 %v396
      %v4364 = vadd.s32 %v4360, 3
      %v4365 = vand.u32 %v4364, 3
      %vm4366 = vcmp.lt.s32.totalorder %v4365, 2
      %vm4367 = vcmp.eq.s32.totalorder %v4365, 0
      %v4368 = vxor.u32 %v4362, 2147483648
      %v4369 = vsel %vm4367, %v4361, %v4368
      %vm4370 = vcmp.eq.s32.totalorder %v4365, 2
      %v4371 = vxor.u32 %v4361, 2147483648
      %v4372 = vsel %vm4370, %v4371, %v4362
      %v4373 = vsel %vm4366, %v4369, %v4372
      %v4374 = vsel %vm4363, nan, %v4373
      %v4375 = vand.u32 2147483647, %v397
      %vm4376 = vcmp.le.f32.partialorder %v4375, 0.7853982
      %vm4377 = vcmp.lt.s32.totalorder %v397, 0
      %v4378 = vand.u32 %v397, 2139095040
      %v4379 = vshrl.u32 %v4378, 23
      %v4380 = vsub.s32 %v4379, 127
      %v4381 = vand.u32 2147483647, %v397
      %v4382 = vand.u32 %v4381, 8388607
      %v4383 = vor.u32 %v4382, 8388608
      %v4384 = vsub.s32 0, %v4383
      %v4385 = vadd.s32 %v4380, 1
      %vm4386 = vcmp.gt.s32.totalorder %v4385, 0
      %v4387 = vsel %vm4386, %v4385, 0
      %v4388 = vshrl.u32 %v4387, 5
      %v4389 = vand.u32 %v4387, 31
      %v4390 = vsub.s32 32, %v4389
      %v4391 = vshrl.u32 683565275, %v4390
      %v4392 = vshll.u32 683565275, %v4389
      %v4393 = vshrl.u32 2475754826, %v4390
      %v4394 = vor.u32 %v4392, %v4393
      %v4395 = vshll.u32 2475754826, %v4389
      %v4396 = vshrl.u32 2131351028, %v4390
      %v4397 = vor.u32 %v4395, %v4396
      %v4398 = vshll.u32 2131351028, %v4389
      %v4399 = vshrl.u32 2102212464, %v4390
      %v4400 = vor.u32 %v4398, %v4399
      %v4401 = vshll.u32 2102212464, %v4389
      %v4402 = vshrl.u32 920167782, %v4390
      %v4403 = vor.u32 %v4401, %v4402
      %v4404 = vshll.u32 920167782, %v4389
      %v4405 = vshrl.u32 1326507024, %v4390
      %v4406 = vor.u32 %v4404, %v4405
      %vm4407 = vcmp.lt.s32.totalorder %v4388, 1
      %vm4408 = vcmp.lt.s32.totalorder %v4388, 2
      %vm4409 = vcmp.lt.s32.totalorder %v4388, 3
      %vm4410 = vcmp.lt.s32.totalorder %v4388, 4
      %v4411 = vsel %vm4407, %v4391, %v4394
      %v4412 = vsel %vm4410, %v4400, 2102212464
      %v4413 = vsel %vm4409, %v4397, %v4412
      %v4414 = vsel %vm4408, %v4411, %v4413
      %v4415 = vsel %vm4407, %v4394, %v4397
      %v4416 = vsel %vm4410, %v4403, 920167782
      %v4417 = vsel %vm4409, %v4400, %v4416
      %v4418 = vsel %vm4408, %v4415, %v4417
      %v4419 = vsel %vm4407, %v4397, %v4400
      %v4420 = vsel %vm4410, %v4406, 1326507024
      %v4421 = vsel %vm4409, %v4403, %v4420
      %v4422 = vsel %vm4408, %v4419, %v4421
      %v4423 = vshll.u32 %v4383, 8
      %v4424 = vmul.u32.u64.compose %v4423, %v4422
      %v4425 = vextract.low.u32 %v4424
      %v4426 = vextract.high.u32 %v4424
      %v4427 = vmul.u32.u64.compose %v4423, %v4418
      %v4428 = vextract.low.u32 %v4427
      %v4429 = vextract.high.u32 %v4427
      %v4430 = vmul.u32 %v4423, %v4414
      %v4431 = vadd.s32 %v4426, %v4428
      %vm4432 = vc.u32 %v4426, %v4428
      %v4433 = vadd.s32 %v4429, 1
      %v4434 = vsel %vm4432, %v4433, %v4429
      %v4435 = vadd.s32 %v4430, %v4434
      %v4436 = vadd.s32 %v4435, 536870912
      %v4437 = vshrl.u32 %v4436, 30
      %v4438 = vshll.u32 %v4437, 30
      %v4439 = vsub.s32 %v4435, %v4438
      %vm4440 = vcmp.lt.s32.totalorder %v4439, 0
      %v4441 = vsub.s32 0, %v4439
      %v4442 = vsel %vm4440, %v4441, %v4439
      %v4443 = vclz %v4442
      %v4444 = vsub.s32 %v4443, 2
      %vm4445 = vcmp.gt.s32.totalorder 0, %v4444
      %v4446 = vsel %vm4445, 0, %v4444
      %v4447 = vsub.s32 32, %v4446
      %v4448 = vshll.u32 %v4439, %v4446
      %v4449 = vshrl.u32 %v4431, %v4447
      %v4450 = vor.u32 %v4448, %v4449
      %v4451 = vsub.s32 4294967266, %v4446
      %v4452 = vadd.s32 %v4451, 127
      %v4453 = vshll.u32 %v4452, 23
      %v4454 = vor.u32 4788187, %v4453
      %v4455 = vand.u32 2147483647, %v4454
      %v4457 = vcvt.s32.f32 %v4450
      %v4458 = vmul.f32 %v4457, %v4455
      %v4459 = vxor.u32 %v4458, 2147483648
      %v4460 = vsel %vm4377, %v4459, %v4458
      %v4461 = vsub.s32 4, %v4437
      %v4462 = vsel %vm4377, %v4461, %v4437
      %v4463 = vsel %vm4376, %v397, %v4460
      %v4464 = vsel %vm4376, 0, %v4462
      %v4465 = vcosq.f32.pop %v4463
      %v4466 = vsinq.f32.pop %v4463
      %vm4467 = vweird.f32 %v397
      %v4468 = vadd.s32 %v4464, 3
      %v4469 = vand.u32 %v4468, 3
      %vm4470 = vcmp.lt.s32.totalorder %v4469, 2
      %vm4471 = vcmp.eq.s32.totalorder %v4469, 0
      %v4472 = vxor.u32 %v4466, 2147483648
      %v4473 = vsel %vm4471, %v4465, %v4472
      %vm4474 = vcmp.eq.s32.totalorder %v4469, 2
      %v4475 = vxor.u32 %v4465, 2147483648
      %v4476 = vsel %vm4474, %v4475, %v4466
      %v4477 = vsel %vm4470, %v4473, %v4476
      %v4478 = vsel %vm4467, nan, %v4477
      %v4479 = vand.u32 2147483647, %v398
      %vm4480 = vcmp.le.f32.partialorder %v4479, 0.7853982
      %vm4481 = vcmp.lt.s32.totalorder %v398, 0
      %v4482 = vand.u32 %v398, 2139095040
      %v4483 = vshrl.u32 %v4482, 23
      %v4484 = vsub.s32 %v4483, 127
      %v4485 = vand.u32 2147483647, %v398
      %v4486 = vand.u32 %v4485, 8388607
      %v4487 = vor.u32 %v4486, 8388608
      %v4488 = vsub.s32 0, %v4487
      %v4489 = vadd.s32 %v4484, 1
      %vm4490 = vcmp.gt.s32.totalorder %v4489, 0
      %v4491 = vsel %vm4490, %v4489, 0
      %v4492 = vshrl.u32 %v4491, 5
      %v4493 = vand.u32 %v4491, 31
      %v4494 = vsub.s32 32, %v4493
      %v4495 = vshrl.u32 683565275, %v4494
      %v4496 = vshll.u32 683565275, %v4493
      %v4497 = vshrl.u32 2475754826, %v4494
      %v4498 = vor.u32 %v4496, %v4497
      %v4499 = vshll.u32 2475754826, %v4493
      %v4500 = vshrl.u32 2131351028, %v4494
      %v4501 = vor.u32 %v4499, %v4500
      %v4502 = vshll.u32 2131351028, %v4493
      %v4503 = vshrl.u32 2102212464, %v4494
      %v4504 = vor.u32 %v4502, %v4503
      %v4505 = vshll.u32 2102212464, %v4493
      %v4506 = vshrl.u32 920167782, %v4494
      %v4507 = vor.u32 %v4505, %v4506
      %v4508 = vshll.u32 920167782, %v4493
      %v4509 = vshrl.u32 1326507024, %v4494
      %v4510 = vor.u32 %v4508, %v4509
      %vm4511 = vcmp.lt.s32.totalorder %v4492, 1
      %vm4512 = vcmp.lt.s32.totalorder %v4492, 2
      %vm4513 = vcmp.lt.s32.totalorder %v4492, 3
      %vm4514 = vcmp.lt.s32.totalorder %v4492, 4
      %v4515 = vsel %vm4511, %v4495, %v4498
      %v4516 = vsel %vm4514, %v4504, 2102212464
      %v4517 = vsel %vm4513, %v4501, %v4516
      %v4518 = vsel %vm4512, %v4515, %v4517
      %v4519 = vsel %vm4511, %v4498, %v4501
      %v4520 = vsel %vm4514, %v4507, 920167782
      %v4521 = vsel %vm4513, %v4504, %v4520
      %v4522 = vsel %vm4512, %v4519, %v4521
      %v4523 = vsel %vm4511, %v4501, %v4504
      %v4524 = vsel %vm4514, %v4510, 1326507024
      %v4525 = vsel %vm4513, %v4507, %v4524
      %v4526 = vsel %vm4512, %v4523, %v4525
      %v4527 = vshll.u32 %v4487, 8
      %v4528 = vmul.u32.u64.compose %v4527, %v4526
      %v4529 = vextract.low.u32 %v4528
      %v4530 = vextract.high.u32 %v4528
      %v4531 = vmul.u32.u64.compose %v4527, %v4522
      %v4532 = vextract.low.u32 %v4531
      %v4533 = vextract.high.u32 %v4531
      %v4534 = vmul.u32 %v4527, %v4518
      %v4535 = vadd.s32 %v4530, %v4532
      %vm4536 = vc.u32 %v4530, %v4532
      %v4537 = vadd.s32 %v4533, 1
      %v4538 = vsel %vm4536, %v4537, %v4533
      %v4539 = vadd.s32 %v4534, %v4538
      %v4540 = vadd.s32 %v4539, 536870912
      %v4541 = vshrl.u32 %v4540, 30
      %v4542 = vshll.u32 %v4541, 30
      %v4543 = vsub.s32 %v4539, %v4542
      %vm4544 = vcmp.lt.s32.totalorder %v4543, 0
      %v4545 = vsub.s32 0, %v4543
      %v4546 = vsel %vm4544, %v4545, %v4543
      %v4547 = vclz %v4546
      %v4548 = vsub.s32 %v4547, 2
      %vm4549 = vcmp.gt.s32.totalorder 0, %v4548
      %v4550 = vsel %vm4549, 0, %v4548
      %v4551 = vsub.s32 32, %v4550
      %v4552 = vshll.u32 %v4543, %v4550
      %v4553 = vshrl.u32 %v4535, %v4551
      %v4554 = vor.u32 %v4552, %v4553
      %v4555 = vsub.s32 4294967266, %v4550
      %v4556 = vadd.s32 %v4555, 127
      %v4557 = vshll.u32 %v4556, 23
      %v4558 = vor.u32 4788187, %v4557
      %v4559 = vand.u32 2147483647, %v4558
      %v4561 = vcvt.s32.f32 %v4554
      %v4562 = vmul.f32 %v4561, %v4559
      %v4563 = vxor.u32 %v4562, 2147483648
      %v4564 = vsel %vm4481, %v4563, %v4562
      %v4565 = vsub.s32 4, %v4541
      %v4566 = vsel %vm4481, %v4565, %v4541
      %v4567 = vsel %vm4480, %v398, %v4564
      %v4568 = vsel %vm4480, 0, %v4566
      %v4569 = vcosq.f32.pop %v4567
      %v4570 = vsinq.f32.pop %v4567
      %vm4571 = vweird.f32 %v398
      %v4572 = vadd.s32 %v4568, 3
      %v4573 = vand.u32 %v4572, 3
      %vm4574 = vcmp.lt.s32.totalorder %v4573, 2
      %vm4575 = vcmp.eq.s32.totalorder %v4573, 0
      %v4576 = vxor.u32 %v4570, 2147483648
      %v4577 = vsel %vm4575, %v4569, %v4576
      %vm4578 = vcmp.eq.s32.totalorder %v4573, 2
      %v4579 = vxor.u32 %v4569, 2147483648
      %v4580 = vsel %vm4578, %v4579, %v4570
      %v4581 = vsel %vm4574, %v4577, %v4580
      %v4582 = vsel %vm4571, nan, %v4581
      %v4583 = vand.u32 2147483647, %v399
      %vm4584 = vcmp.le.f32.partialorder %v4583, 0.7853982
      %vm4585 = vcmp.lt.s32.totalorder %v399, 0
      %v4586 = vand.u32 %v399, 2139095040
      %v4587 = vshrl.u32 %v4586, 23
      %v4588 = vsub.s32 %v4587, 127
      %v4589 = vand.u32 2147483647, %v399
      %v4590 = vand.u32 %v4589, 8388607
      %v4591 = vor.u32 %v4590, 8388608
      %v4592 = vsub.s32 0, %v4591
      %v4593 = vadd.s32 %v4588, 1
      %vm4594 = vcmp.gt.s32.totalorder %v4593, 0
      %v4595 = vsel %vm4594, %v4593, 0
      %v4596 = vshrl.u32 %v4595, 5
      %v4597 = vand.u32 %v4595, 31
      %v4598 = vsub.s32 32, %v4597
      %v4599 = vshrl.u32 683565275, %v4598
      %v4600 = vshll.u32 683565275, %v4597
      %v4601 = vshrl.u32 2475754826, %v4598
      %v4602 = vor.u32 %v4600, %v4601
      %v4603 = vshll.u32 2475754826, %v4597
      %v4604 = vshrl.u32 2131351028, %v4598
      %v4605 = vor.u32 %v4603, %v4604
      %v4606 = vshll.u32 2131351028, %v4597
      %v4607 = vshrl.u32 2102212464, %v4598
      %v4608 = vor.u32 %v4606, %v4607
      %v4609 = vshll.u32 2102212464, %v4597
      %v4610 = vshrl.u32 920167782, %v4598
      %v4611 = vor.u32 %v4609, %v4610
      %v4612 = vshll.u32 920167782, %v4597
      %v4613 = vshrl.u32 1326507024, %v4598
      %v4614 = vor.u32 %v4612, %v4613
      %vm4615 = vcmp.lt.s32.totalorder %v4596, 1
      %vm4616 = vcmp.lt.s32.totalorder %v4596, 2
      %vm4617 = vcmp.lt.s32.totalorder %v4596, 3
      %vm4618 = vcmp.lt.s32.totalorder %v4596, 4
      %v4619 = vsel %vm4615, %v4599, %v4602
      %v4620 = vsel %vm4618, %v4608, 2102212464
      %v4621 = vsel %vm4617, %v4605, %v4620
      %v4622 = vsel %vm4616, %v4619, %v4621
      %v4623 = vsel %vm4615, %v4602, %v4605
      %v4624 = vsel %vm4618, %v4611, 920167782
      %v4625 = vsel %vm4617, %v4608, %v4624
      %v4626 = vsel %vm4616, %v4623, %v4625
      %v4627 = vsel %vm4615, %v4605, %v4608
      %v4628 = vsel %vm4618, %v4614, 1326507024
      %v4629 = vsel %vm4617, %v4611, %v4628
      %v4630 = vsel %vm4616, %v4627, %v4629
      %v4631 = vshll.u32 %v4591, 8
      %v4632 = vmul.u32.u64.compose %v4631, %v4630
      %v4633 = vextract.low.u32 %v4632
      %v4634 = vextract.high.u32 %v4632
      %v4635 = vmul.u32.u64.compose %v4631, %v4626
      %v4636 = vextract.low.u32 %v4635
      %v4637 = vextract.high.u32 %v4635
      %v4638 = vmul.u32 %v4631, %v4622
      %v4639 = vadd.s32 %v4634, %v4636
      %vm4640 = vc.u32 %v4634, %v4636
      %v4641 = vadd.s32 %v4637, 1
      %v4642 = vsel %vm4640, %v4641, %v4637
      %v4643 = vadd.s32 %v4638, %v4642
      %v4644 = vadd.s32 %v4643, 536870912
      %v4645 = vshrl.u32 %v4644, 30
      %v4646 = vshll.u32 %v4645, 30
      %v4647 = vsub.s32 %v4643, %v4646
      %vm4648 = vcmp.lt.s32.totalorder %v4647, 0
      %v4649 = vsub.s32 0, %v4647
      %v4650 = vsel %vm4648, %v4649, %v4647
      %v4651 = vclz %v4650
      %v4652 = vsub.s32 %v4651, 2
      %vm4653 = vcmp.gt.s32.totalorder 0, %v4652
      %v4654 = vsel %vm4653, 0, %v4652
      %v4655 = vsub.s32 32, %v4654
      %v4656 = vshll.u32 %v4647, %v4654
      %v4657 = vshrl.u32 %v4639, %v4655
      %v4658 = vor.u32 %v4656, %v4657
      %v4659 = vsub.s32 4294967266, %v4654
      %v4660 = vadd.s32 %v4659, 127
      %v4661 = vshll.u32 %v4660, 23
      %v4662 = vor.u32 4788187, %v4661
      %v4663 = vand.u32 2147483647, %v4662
      %v4665 = vcvt.s32.f32 %v4658
      %v4666 = vmul.f32 %v4665, %v4663
      %v4667 = vxor.u32 %v4666, 2147483648
      %v4668 = vsel %vm4585, %v4667, %v4666
      %v4669 = vsub.s32 4, %v4645
      %v4670 = vsel %vm4585, %v4669, %v4645
      %v4671 = vsel %vm4584, %v399, %v4668
      %v4672 = vsel %vm4584, 0, %v4670
      %v4673 = vcosq.f32.pop %v4671
      %v4674 = vsinq.f32.pop %v4671
      %vm4675 = vweird.f32 %v399
      %v4676 = vadd.s32 %v4672, 3
      %v4677 = vand.u32 %v4676, 3
      %vm4678 = vcmp.lt.s32.totalorder %v4677, 2
      %vm4679 = vcmp.eq.s32.totalorder %v4677, 0
      %v4680 = vxor.u32 %v4674, 2147483648
      %v4681 = vsel %vm4679, %v4673, %v4680
      %vm4682 = vcmp.eq.s32.totalorder %v4677, 2
      %v4683 = vxor.u32 %v4673, 2147483648
      %v4684 = vsel %vm4682, %v4683, %v4674
      %v4685 = vsel %vm4678, %v4681, %v4684
      %v4686 = vsel %vm4675, nan, %v4685
      %v4687 = vand.u32 2147483647, %v400
      %vm4688 = vcmp.le.f32.partialorder %v4687, 0.7853982
      %vm4689 = vcmp.lt.s32.totalorder %v400, 0
      %v4690 = vand.u32 %v400, 2139095040
      %v4691 = vshrl.u32 %v4690, 23
      %v4692 = vsub.s32 %v4691, 127
      %v4693 = vand.u32 2147483647, %v400
      %v4694 = vand.u32 %v4693, 8388607
      %v4695 = vor.u32 %v4694, 8388608
      %v4696 = vsub.s32 0, %v4695
      %v4697 = vadd.s32 %v4692, 1
      %vm4698 = vcmp.gt.s32.totalorder %v4697, 0
      %v4699 = vsel %vm4698, %v4697, 0
      %v4700 = vshrl.u32 %v4699, 5
      %v4701 = vand.u32 %v4699, 31
      %v4702 = vsub.s32 32, %v4701
      %v4703 = vshrl.u32 683565275, %v4702
      %v4704 = vshll.u32 683565275, %v4701
      %v4705 = vshrl.u32 2475754826, %v4702
      %v4706 = vor.u32 %v4704, %v4705
      %v4707 = vshll.u32 2475754826, %v4701
      %v4708 = vshrl.u32 2131351028, %v4702
      %v4709 = vor.u32 %v4707, %v4708
      %v4710 = vshll.u32 2131351028, %v4701
      %v4711 = vshrl.u32 2102212464, %v4702
      %v4712 = vor.u32 %v4710, %v4711
      %v4713 = vshll.u32 2102212464, %v4701
      %v4714 = vshrl.u32 920167782, %v4702
      %v4715 = vor.u32 %v4713, %v4714
      %v4716 = vshll.u32 920167782, %v4701
      %v4717 = vshrl.u32 1326507024, %v4702
      %v4718 = vor.u32 %v4716, %v4717
      %vm4719 = vcmp.lt.s32.totalorder %v4700, 1
      %vm4720 = vcmp.lt.s32.totalorder %v4700, 2
      %vm4721 = vcmp.lt.s32.totalorder %v4700, 3
      %vm4722 = vcmp.lt.s32.totalorder %v4700, 4
      %v4723 = vsel %vm4719, %v4703, %v4706
      %v4724 = vsel %vm4722, %v4712, 2102212464
      %v4725 = vsel %vm4721, %v4709, %v4724
      %v4726 = vsel %vm4720, %v4723, %v4725
      %v4727 = vsel %vm4719, %v4706, %v4709
      %v4728 = vsel %vm4722, %v4715, 920167782
      %v4729 = vsel %vm4721, %v4712, %v4728
      %v4730 = vsel %vm4720, %v4727, %v4729
      %v4731 = vsel %vm4719, %v4709, %v4712
      %v4732 = vsel %vm4722, %v4718, 1326507024
      %v4733 = vsel %vm4721, %v4715, %v4732
      %v4734 = vsel %vm4720, %v4731, %v4733
      %v4735 = vshll.u32 %v4695, 8
      %v4736 = vmul.u32.u64.compose %v4735, %v4734
      %v4737 = vextract.low.u32 %v4736
      %v4738 = vextract.high.u32 %v4736
      %v4739 = vmul.u32.u64.compose %v4735, %v4730
      %v4740 = vextract.low.u32 %v4739
      %v4741 = vextract.high.u32 %v4739
      %v4742 = vmul.u32 %v4735, %v4726
      %v4743 = vadd.s32 %v4738, %v4740
      %vm4744 = vc.u32 %v4738, %v4740
      %v4745 = vadd.s32 %v4741, 1
      %v4746 = vsel %vm4744, %v4745, %v4741
      %v4747 = vadd.s32 %v4742, %v4746
      %v4748 = vadd.s32 %v4747, 536870912
      %v4749 = vshrl.u32 %v4748, 30
      %v4750 = vshll.u32 %v4749, 30
      %v4751 = vsub.s32 %v4747, %v4750
      %vm4752 = vcmp.lt.s32.totalorder %v4751, 0
      %v4753 = vsub.s32 0, %v4751
      %v4754 = vsel %vm4752, %v4753, %v4751
      %v4755 = vclz %v4754
      %v4756 = vsub.s32 %v4755, 2
      %vm4757 = vcmp.gt.s32.totalorder 0, %v4756
      %v4758 = vsel %vm4757, 0, %v4756
      %v4759 = vsub.s32 32, %v4758
      %v4760 = vshll.u32 %v4751, %v4758
      %v4761 = vshrl.u32 %v4743, %v4759
      %v4762 = vor.u32 %v4760, %v4761
      %v4763 = vsub.s32 4294967266, %v4758
      %v4764 = vadd.s32 %v4763, 127
      %v4765 = vshll.u32 %v4764, 23
      %v4766 = vor.u32 4788187, %v4765
      %v4767 = vand.u32 2147483647, %v4766
      %v4769 = vcvt.s32.f32 %v4762
      %v4770 = vmul.f32 %v4769, %v4767
      %v4771 = vxor.u32 %v4770, 2147483648
      %v4772 = vsel %vm4689, %v4771, %v4770
      %v4773 = vsub.s32 4, %v4749
      %v4774 = vsel %vm4689, %v4773, %v4749
      %v4775 = vsel %vm4688, %v400, %v4772
      %v4776 = vsel %vm4688, 0, %v4774
      %v4777 = vcosq.f32.pop %v4775
      %v4778 = vsinq.f32.pop %v4775
      %vm4779 = vweird.f32 %v400
      %v4780 = vadd.s32 %v4776, 3
      %v4781 = vand.u32 %v4780, 3
      %vm4782 = vcmp.lt.s32.totalorder %v4781, 2
      %vm4783 = vcmp.eq.s32.totalorder %v4781, 0
      %v4784 = vxor.u32 %v4778, 2147483648
      %v4785 = vsel %vm4783, %v4777, %v4784
      %vm4786 = vcmp.eq.s32.totalorder %v4781, 2
      %v4787 = vxor.u32 %v4777, 2147483648
      %v4788 = vsel %vm4786, %v4787, %v4778
      %v4789 = vsel %vm4782, %v4785, %v4788
      %v4790 = vsel %vm4779, nan, %v4789
      %v4791 = vand.u32 2147483647, %v401
      %vm4792 = vcmp.le.f32.partialorder %v4791, 0.7853982
      %vm4793 = vcmp.lt.s32.totalorder %v401, 0
      %v4794 = vand.u32 %v401, 2139095040
      %v4795 = vshrl.u32 %v4794, 23
      %v4796 = vsub.s32 %v4795, 127
      %v4797 = vand.u32 2147483647, %v401
      %v4798 = vand.u32 %v4797, 8388607
      %v4799 = vor.u32 %v4798, 8388608
      %v4800 = vsub.s32 0, %v4799
      %v4801 = vadd.s32 %v4796, 1
      %vm4802 = vcmp.gt.s32.totalorder %v4801, 0
      %v4803 = vsel %vm4802, %v4801, 0
      %v4804 = vshrl.u32 %v4803, 5
      %v4805 = vand.u32 %v4803, 31
      %v4806 = vsub.s32 32, %v4805
      %v4807 = vshrl.u32 683565275, %v4806
      %v4808 = vshll.u32 683565275, %v4805
      %v4809 = vshrl.u32 2475754826, %v4806
      %v4810 = vor.u32 %v4808, %v4809
      %v4811 = vshll.u32 2475754826, %v4805
      %v4812 = vshrl.u32 2131351028, %v4806
      %v4813 = vor.u32 %v4811, %v4812
      %v4814 = vshll.u32 2131351028, %v4805
      %v4815 = vshrl.u32 2102212464, %v4806
      %v4816 = vor.u32 %v4814, %v4815
      %v4817 = vshll.u32 2102212464, %v4805
      %v4818 = vshrl.u32 920167782, %v4806
      %v4819 = vor.u32 %v4817, %v4818
      %v4820 = vshll.u32 920167782, %v4805
      %v4821 = vshrl.u32 1326507024, %v4806
      %v4822 = vor.u32 %v4820, %v4821
      %vm4823 = vcmp.lt.s32.totalorder %v4804, 1
      %vm4824 = vcmp.lt.s32.totalorder %v4804, 2
      %vm4825 = vcmp.lt.s32.totalorder %v4804, 3
      %vm4826 = vcmp.lt.s32.totalorder %v4804, 4
      %v4827 = vsel %vm4823, %v4807, %v4810
      %v4828 = vsel %vm4826, %v4816, 2102212464
      %v4829 = vsel %vm4825, %v4813, %v4828
      %v4830 = vsel %vm4824, %v4827, %v4829
      %v4831 = vsel %vm4823, %v4810, %v4813
      %v4832 = vsel %vm4826, %v4819, 920167782
      %v4833 = vsel %vm4825, %v4816, %v4832
      %v4834 = vsel %vm4824, %v4831, %v4833
      %v4835 = vsel %vm4823, %v4813, %v4816
      %v4836 = vsel %vm4826, %v4822, 1326507024
      %v4837 = vsel %vm4825, %v4819, %v4836
      %v4838 = vsel %vm4824, %v4835, %v4837
      %v4839 = vshll.u32 %v4799, 8
      %v4840 = vmul.u32.u64.compose %v4839, %v4838
      %v4841 = vextract.low.u32 %v4840
      %v4842 = vextract.high.u32 %v4840
      %v4843 = vmul.u32.u64.compose %v4839, %v4834
      %v4844 = vextract.low.u32 %v4843
      %v4845 = vextract.high.u32 %v4843
      %v4846 = vmul.u32 %v4839, %v4830
      %v4847 = vadd.s32 %v4842, %v4844
      %vm4848 = vc.u32 %v4842, %v4844
      %v4849 = vadd.s32 %v4845, 1
      %v4850 = vsel %vm4848, %v4849, %v4845
      %v4851 = vadd.s32 %v4846, %v4850
      %v4852 = vadd.s32 %v4851, 536870912
      %v4853 = vshrl.u32 %v4852, 30
      %v4854 = vshll.u32 %v4853, 30
      %v4855 = vsub.s32 %v4851, %v4854
      %vm4856 = vcmp.lt.s32.totalorder %v4855, 0
      %v4857 = vsub.s32 0, %v4855
      %v4858 = vsel %vm4856, %v4857, %v4855
      %v4859 = vclz %v4858
      %v4860 = vsub.s32 %v4859, 2
      %vm4861 = vcmp.gt.s32.totalorder 0, %v4860
      %v4862 = vsel %vm4861, 0, %v4860
      %v4863 = vsub.s32 32, %v4862
      %v4864 = vshll.u32 %v4855, %v4862
      %v4865 = vshrl.u32 %v4847, %v4863
      %v4866 = vor.u32 %v4864, %v4865
      %v4867 = vsub.s32 4294967266, %v4862
      %v4868 = vadd.s32 %v4867, 127
      %v4869 = vshll.u32 %v4868, 23
      %v4870 = vor.u32 4788187, %v4869
      %v4871 = vand.u32 2147483647, %v4870
      %v4873 = vcvt.s32.f32 %v4866
      %v4874 = vmul.f32 %v4873, %v4871
      %v4875 = vxor.u32 %v4874, 2147483648
      %v4876 = vsel %vm4793, %v4875, %v4874
      %v4877 = vsub.s32 4, %v4853
      %v4878 = vsel %vm4793, %v4877, %v4853
      %v4879 = vsel %vm4792, %v401, %v4876
      %v4880 = vsel %vm4792, 0, %v4878
      %v4881 = vcosq.f32.pop %v4879
      %v4882 = vsinq.f32.pop %v4879
      %vm4883 = vweird.f32 %v401
      %v4884 = vadd.s32 %v4880, 3
      %v4885 = vand.u32 %v4884, 3
      %vm4886 = vcmp.lt.s32.totalorder %v4885, 2
      %vm4887 = vcmp.eq.s32.totalorder %v4885, 0
      %v4888 = vxor.u32 %v4882, 2147483648
      %v4889 = vsel %vm4887, %v4881, %v4888
      %vm4890 = vcmp.eq.s32.totalorder %v4885, 2
      %v4891 = vxor.u32 %v4881, 2147483648
      %v4892 = vsel %vm4890, %v4891, %v4882
      %v4893 = vsel %vm4886, %v4889, %v4892
      %v4894 = vsel %vm4883, nan, %v4893
      %v4895 = vand.u32 2147483647, %v402
      %vm4896 = vcmp.le.f32.partialorder %v4895, 0.7853982
      %vm4897 = vcmp.lt.s32.totalorder %v402, 0
      %v4898 = vand.u32 %v402, 2139095040
      %v4899 = vshrl.u32 %v4898, 23
      %v4900 = vsub.s32 %v4899, 127
      %v4901 = vand.u32 2147483647, %v402
      %v4902 = vand.u32 %v4901, 8388607
      %v4903 = vor.u32 %v4902, 8388608
      %v4904 = vsub.s32 0, %v4903
      %v4905 = vadd.s32 %v4900, 1
      %vm4906 = vcmp.gt.s32.totalorder %v4905, 0
      %v4907 = vsel %vm4906, %v4905, 0
      %v4908 = vshrl.u32 %v4907, 5
      %v4909 = vand.u32 %v4907, 31
      %v4910 = vsub.s32 32, %v4909
      %v4911 = vshrl.u32 683565275, %v4910
      %v4912 = vshll.u32 683565275, %v4909
      %v4913 = vshrl.u32 2475754826, %v4910
      %v4914 = vor.u32 %v4912, %v4913
      %v4915 = vshll.u32 2475754826, %v4909
      %v4916 = vshrl.u32 2131351028, %v4910
      %v4917 = vor.u32 %v4915, %v4916
      %v4918 = vshll.u32 2131351028, %v4909
      %v4919 = vshrl.u32 2102212464, %v4910
      %v4920 = vor.u32 %v4918, %v4919
      %v4921 = vshll.u32 2102212464, %v4909
      %v4922 = vshrl.u32 920167782, %v4910
      %v4923 = vor.u32 %v4921, %v4922
      %v4924 = vshll.u32 920167782, %v4909
      %v4925 = vshrl.u32 1326507024, %v4910
      %v4926 = vor.u32 %v4924, %v4925
      %vm4927 = vcmp.lt.s32.totalorder %v4908, 1
      %vm4928 = vcmp.lt.s32.totalorder %v4908, 2
      %vm4929 = vcmp.lt.s32.totalorder %v4908, 3
      %vm4930 = vcmp.lt.s32.totalorder %v4908, 4
      %v4931 = vsel %vm4927, %v4911, %v4914
      %v4932 = vsel %vm4930, %v4920, 2102212464
      %v4933 = vsel %vm4929, %v4917, %v4932
      %v4934 = vsel %vm4928, %v4931, %v4933
      %v4935 = vsel %vm4927, %v4914, %v4917
      %v4936 = vsel %vm4930, %v4923, 920167782
      %v4937 = vsel %vm4929, %v4920, %v4936
      %v4938 = vsel %vm4928, %v4935, %v4937
      %v4939 = vsel %vm4927, %v4917, %v4920
      %v4940 = vsel %vm4930, %v4926, 1326507024
      %v4941 = vsel %vm4929, %v4923, %v4940
      %v4942 = vsel %vm4928, %v4939, %v4941
      %v4943 = vshll.u32 %v4903, 8
      %v4944 = vmul.u32.u64.compose %v4943, %v4942
      %v4945 = vextract.low.u32 %v4944
      %v4946 = vextract.high.u32 %v4944
      %v4947 = vmul.u32.u64.compose %v4943, %v4938
      %v4948 = vextract.low.u32 %v4947
      %v4949 = vextract.high.u32 %v4947
      %v4950 = vmul.u32 %v4943, %v4934
      %v4951 = vadd.s32 %v4946, %v4948
      %vm4952 = vc.u32 %v4946, %v4948
      %v4953 = vadd.s32 %v4949, 1
      %v4954 = vsel %vm4952, %v4953, %v4949
      %v4955 = vadd.s32 %v4950, %v4954
      %v4956 = vadd.s32 %v4955, 536870912
      %v4957 = vshrl.u32 %v4956, 30
      %v4958 = vshll.u32 %v4957, 30
      %v4959 = vsub.s32 %v4955, %v4958
      %vm4960 = vcmp.lt.s32.totalorder %v4959, 0
      %v4961 = vsub.s32 0, %v4959
      %v4962 = vsel %vm4960, %v4961, %v4959
      %v4963 = vclz %v4962
      %v4964 = vsub.s32 %v4963, 2
      %vm4965 = vcmp.gt.s32.totalorder 0, %v4964
      %v4966 = vsel %vm4965, 0, %v4964
      %v4967 = vsub.s32 32, %v4966
      %v4968 = vshll.u32 %v4959, %v4966
      %v4969 = vshrl.u32 %v4951, %v4967
      %v4970 = vor.u32 %v4968, %v4969
      %v4971 = vsub.s32 4294967266, %v4966
      %v4972 = vadd.s32 %v4971, 127
      %v4973 = vshll.u32 %v4972, 23
      %v4974 = vor.u32 4788187, %v4973
      %v4975 = vand.u32 2147483647, %v4974
      %v4977 = vcvt.s32.f32 %v4970
      %v4978 = vmul.f32 %v4977, %v4975
      %v4979 = vxor.u32 %v4978, 2147483648
      %v4980 = vsel %vm4897, %v4979, %v4978
      %v4981 = vsub.s32 4, %v4957
      %v4982 = vsel %vm4897, %v4981, %v4957
      %v4983 = vsel %vm4896, %v402, %v4980
      %v4984 = vsel %vm4896, 0, %v4982
      %v4985 = vcosq.f32.pop %v4983
      %v4986 = vsinq.f32.pop %v4983
      %vm4987 = vweird.f32 %v402
      %v4988 = vadd.s32 %v4984, 3
      %v4989 = vand.u32 %v4988, 3
      %vm4990 = vcmp.lt.s32.totalorder %v4989, 2
      %vm4991 = vcmp.eq.s32.totalorder %v4989, 0
      %v4992 = vxor.u32 %v4986, 2147483648
      %v4993 = vsel %vm4991, %v4985, %v4992
      %vm4994 = vcmp.eq.s32.totalorder %v4989, 2
      %v4995 = vxor.u32 %v4985, 2147483648
      %v4996 = vsel %vm4994, %v4995, %v4986
      %v4997 = vsel %vm4990, %v4993, %v4996
      %v4998 = vsel %vm4987, nan, %v4997
      %v4999 = vand.u32 2147483647, %v403
      %vm5000 = vcmp.le.f32.partialorder %v4999, 0.7853982
      %vm5001 = vcmp.lt.s32.totalorder %v403, 0
      %v5002 = vand.u32 %v403, 2139095040
      %v5003 = vshrl.u32 %v5002, 23
      %v5004 = vsub.s32 %v5003, 127
      %v5005 = vand.u32 2147483647, %v403
      %v5006 = vand.u32 %v5005, 8388607
      %v5007 = vor.u32 %v5006, 8388608
      %v5008 = vsub.s32 0, %v5007
      %v5009 = vadd.s32 %v5004, 1
      %vm5010 = vcmp.gt.s32.totalorder %v5009, 0
      %v5011 = vsel %vm5010, %v5009, 0
      %v5012 = vshrl.u32 %v5011, 5
      %v5013 = vand.u32 %v5011, 31
      %v5014 = vsub.s32 32, %v5013
      %v5015 = vshrl.u32 683565275, %v5014
      %v5016 = vshll.u32 683565275, %v5013
      %v5017 = vshrl.u32 2475754826, %v5014
      %v5018 = vor.u32 %v5016, %v5017
      %v5019 = vshll.u32 2475754826, %v5013
      %v5020 = vshrl.u32 2131351028, %v5014
      %v5021 = vor.u32 %v5019, %v5020
      %v5022 = vshll.u32 2131351028, %v5013
      %v5023 = vshrl.u32 2102212464, %v5014
      %v5024 = vor.u32 %v5022, %v5023
      %v5025 = vshll.u32 2102212464, %v5013
      %v5026 = vshrl.u32 920167782, %v5014
      %v5027 = vor.u32 %v5025, %v5026
      %v5028 = vshll.u32 920167782, %v5013
      %v5029 = vshrl.u32 1326507024, %v5014
      %v5030 = vor.u32 %v5028, %v5029
      %vm5031 = vcmp.lt.s32.totalorder %v5012, 1
      %vm5032 = vcmp.lt.s32.totalorder %v5012, 2
      %vm5033 = vcmp.lt.s32.totalorder %v5012, 3
      %vm5034 = vcmp.lt.s32.totalorder %v5012, 4
      %v5035 = vsel %vm5031, %v5015, %v5018
      %v5036 = vsel %vm5034, %v5024, 2102212464
      %v5037 = vsel %vm5033, %v5021, %v5036
      %v5038 = vsel %vm5032, %v5035, %v5037
      %v5039 = vsel %vm5031, %v5018, %v5021
      %v5040 = vsel %vm5034, %v5027, 920167782
      %v5041 = vsel %vm5033, %v5024, %v5040
      %v5042 = vsel %vm5032, %v5039, %v5041
      %v5043 = vsel %vm5031, %v5021, %v5024
      %v5044 = vsel %vm5034, %v5030, 1326507024
      %v5045 = vsel %vm5033, %v5027, %v5044
      %v5046 = vsel %vm5032, %v5043, %v5045
      %v5047 = vshll.u32 %v5007, 8
      %v5048 = vmul.u32.u64.compose %v5047, %v5046
      %v5049 = vextract.low.u32 %v5048
      %v5050 = vextract.high.u32 %v5048
      %v5051 = vmul.u32.u64.compose %v5047, %v5042
      %v5052 = vextract.low.u32 %v5051
      %v5053 = vextract.high.u32 %v5051
      %v5054 = vmul.u32 %v5047, %v5038
      %v5055 = vadd.s32 %v5050, %v5052
      %vm5056 = vc.u32 %v5050, %v5052
      %v5057 = vadd.s32 %v5053, 1
      %v5058 = vsel %vm5056, %v5057, %v5053
      %v5059 = vadd.s32 %v5054, %v5058
      %v5060 = vadd.s32 %v5059, 536870912
      %v5061 = vshrl.u32 %v5060, 30
      %v5062 = vshll.u32 %v5061, 30
      %v5063 = vsub.s32 %v5059, %v5062
      %vm5064 = vcmp.lt.s32.totalorder %v5063, 0
      %v5065 = vsub.s32 0, %v5063
      %v5066 = vsel %vm5064, %v5065, %v5063
      %v5067 = vclz %v5066
      %v5068 = vsub.s32 %v5067, 2
      %vm5069 = vcmp.gt.s32.totalorder 0, %v5068
      %v5070 = vsel %vm5069, 0, %v5068
      %v5071 = vsub.s32 32, %v5070
      %v5072 = vshll.u32 %v5063, %v5070
      %v5073 = vshrl.u32 %v5055, %v5071
      %v5074 = vor.u32 %v5072, %v5073
      %v5075 = vsub.s32 4294967266, %v5070
      %v5076 = vadd.s32 %v5075, 127
      %v5077 = vshll.u32 %v5076, 23
      %v5078 = vor.u32 4788187, %v5077
      %v5079 = vand.u32 2147483647, %v5078
      %v5081 = vcvt.s32.f32 %v5074
      %v5082 = vmul.f32 %v5081, %v5079
      %v5083 = vxor.u32 %v5082, 2147483648
      %v5084 = vsel %vm5001, %v5083, %v5082
      %v5085 = vsub.s32 4, %v5061
      %v5086 = vsel %vm5001, %v5085, %v5061
      %v5087 = vsel %vm5000, %v403, %v5084
      %v5088 = vsel %vm5000, 0, %v5086
      %v5089 = vcosq.f32.pop %v5087
      %v5090 = vsinq.f32.pop %v5087
      %vm5091 = vweird.f32 %v403
      %v5092 = vadd.s32 %v5088, 3
      %v5093 = vand.u32 %v5092, 3
      %vm5094 = vcmp.lt.s32.totalorder %v5093, 2
      %vm5095 = vcmp.eq.s32.totalorder %v5093, 0
      %v5096 = vxor.u32 %v5090, 2147483648
      %v5097 = vsel %vm5095, %v5089, %v5096
      %vm5098 = vcmp.eq.s32.totalorder %v5093, 2
      %v5099 = vxor.u32 %v5089, 2147483648
      %v5100 = vsel %vm5098, %v5099, %v5090
      %v5101 = vsel %vm5094, %v5097, %v5100
      %v5102 = vsel %vm5091, nan, %v5101
      %v5103 = vand.u32 2147483647, %v404
      %vm5104 = vcmp.le.f32.partialorder %v5103, 0.7853982
      %vm5105 = vcmp.lt.s32.totalorder %v404, 0
      %v5106 = vand.u32 %v404, 2139095040
      %v5107 = vshrl.u32 %v5106, 23
      %v5108 = vsub.s32 %v5107, 127
      %v5109 = vand.u32 2147483647, %v404
      %v5110 = vand.u32 %v5109, 8388607
      %v5111 = vor.u32 %v5110, 8388608
      %v5112 = vsub.s32 0, %v5111
      %v5113 = vadd.s32 %v5108, 1
      %vm5114 = vcmp.gt.s32.totalorder %v5113, 0
      %v5115 = vsel %vm5114, %v5113, 0
      %v5116 = vshrl.u32 %v5115, 5
      %v5117 = vand.u32 %v5115, 31
      %v5118 = vsub.s32 32, %v5117
      %v5119 = vshrl.u32 683565275, %v5118
      %v5120 = vshll.u32 683565275, %v5117
      %v5121 = vshrl.u32 2475754826, %v5118
      %v5122 = vor.u32 %v5120, %v5121
      %v5123 = vshll.u32 2475754826, %v5117
      %v5124 = vshrl.u32 2131351028, %v5118
      %v5125 = vor.u32 %v5123, %v5124
      %v5126 = vshll.u32 2131351028, %v5117
      %v5127 = vshrl.u32 2102212464, %v5118
      %v5128 = vor.u32 %v5126, %v5127
      %v5129 = vshll.u32 2102212464, %v5117
      %v5130 = vshrl.u32 920167782, %v5118
      %v5131 = vor.u32 %v5129, %v5130
      %v5132 = vshll.u32 920167782, %v5117
      %v5133 = vshrl.u32 1326507024, %v5118
      %v5134 = vor.u32 %v5132, %v5133
      %vm5135 = vcmp.lt.s32.totalorder %v5116, 1
      %vm5136 = vcmp.lt.s32.totalorder %v5116, 2
      %vm5137 = vcmp.lt.s32.totalorder %v5116, 3
      %vm5138 = vcmp.lt.s32.totalorder %v5116, 4
      %v5139 = vsel %vm5135, %v5119, %v5122
      %v5140 = vsel %vm5138, %v5128, 2102212464
      %v5141 = vsel %vm5137, %v5125, %v5140
      %v5142 = vsel %vm5136, %v5139, %v5141
      %v5143 = vsel %vm5135, %v5122, %v5125
      %v5144 = vsel %vm5138, %v5131, 920167782
      %v5145 = vsel %vm5137, %v5128, %v5144
      %v5146 = vsel %vm5136, %v5143, %v5145
      %v5147 = vsel %vm5135, %v5125, %v5128
      %v5148 = vsel %vm5138, %v5134, 1326507024
      %v5149 = vsel %vm5137, %v5131, %v5148
      %v5150 = vsel %vm5136, %v5147, %v5149
      %v5151 = vshll.u32 %v5111, 8
      %v5152 = vmul.u32.u64.compose %v5151, %v5150
      %v5153 = vextract.low.u32 %v5152
      %v5154 = vextract.high.u32 %v5152
      %v5155 = vmul.u32.u64.compose %v5151, %v5146
      %v5156 = vextract.low.u32 %v5155
      %v5157 = vextract.high.u32 %v5155
      %v5158 = vmul.u32 %v5151, %v5142
      %v5159 = vadd.s32 %v5154, %v5156
      %vm5160 = vc.u32 %v5154, %v5156
      %v5161 = vadd.s32 %v5157, 1
      %v5162 = vsel %vm5160, %v5161, %v5157
      %v5163 = vadd.s32 %v5158, %v5162
      %v5164 = vadd.s32 %v5163, 536870912
      %v5165 = vshrl.u32 %v5164, 30
      %v5166 = vshll.u32 %v5165, 30
      %v5167 = vsub.s32 %v5163, %v5166
      %vm5168 = vcmp.lt.s32.totalorder %v5167, 0
      %v5169 = vsub.s32 0, %v5167
      %v5170 = vsel %vm5168, %v5169, %v5167
      %v5171 = vclz %v5170
      %v5172 = vsub.s32 %v5171, 2
      %vm5173 = vcmp.gt.s32.totalorder 0, %v5172
      %v5174 = vsel %vm5173, 0, %v5172
      %v5175 = vsub.s32 32, %v5174
      %v5176 = vshll.u32 %v5167, %v5174
      %v5177 = vshrl.u32 %v5159, %v5175
      %v5178 = vor.u32 %v5176, %v5177
      %v5179 = vsub.s32 4294967266, %v5174
      %v5180 = vadd.s32 %v5179, 127
      %v5181 = vshll.u32 %v5180, 23
      %v5182 = vor.u32 4788187, %v5181
      %v5183 = vand.u32 2147483647, %v5182
      %v5185 = vcvt.s32.f32 %v5178
      %v5186 = vmul.f32 %v5185, %v5183
      %v5187 = vxor.u32 %v5186, 2147483648
      %v5188 = vsel %vm5105, %v5187, %v5186
      %v5189 = vsub.s32 4, %v5165
      %v5190 = vsel %vm5105, %v5189, %v5165
      %v5191 = vsel %vm5104, %v404, %v5188
      %v5192 = vsel %vm5104, 0, %v5190
      %v5193 = vcosq.f32.pop %v5191
      %v5194 = vsinq.f32.pop %v5191
      %vm5195 = vweird.f32 %v404
      %v5196 = vadd.s32 %v5192, 3
      %v5197 = vand.u32 %v5196, 3
      %vm5198 = vcmp.lt.s32.totalorder %v5197, 2
      %vm5199 = vcmp.eq.s32.totalorder %v5197, 0
      %v5200 = vxor.u32 %v5194, 2147483648
      %v5201 = vsel %vm5199, %v5193, %v5200
      %vm5202 = vcmp.eq.s32.totalorder %v5197, 2
      %v5203 = vxor.u32 %v5193, 2147483648
      %v5204 = vsel %vm5202, %v5203, %v5194
      %v5205 = vsel %vm5198, %v5201, %v5204
      %v5206 = vsel %vm5195, nan, %v5205
      %v5207 = vand.u32 2147483647, %v405
      %vm5208 = vcmp.le.f32.partialorder %v5207, 0.7853982
      %vm5209 = vcmp.lt.s32.totalorder %v405, 0
      %v5210 = vand.u32 %v405, 2139095040
      %v5211 = vshrl.u32 %v5210, 23
      %v5212 = vsub.s32 %v5211, 127
      %v5213 = vand.u32 2147483647, %v405
      %v5214 = vand.u32 %v5213, 8388607
      %v5215 = vor.u32 %v5214, 8388608
      %v5216 = vsub.s32 0, %v5215
      %v5217 = vadd.s32 %v5212, 1
      %vm5218 = vcmp.gt.s32.totalorder %v5217, 0
      %v5219 = vsel %vm5218, %v5217, 0
      %v5220 = vshrl.u32 %v5219, 5
      %v5221 = vand.u32 %v5219, 31
      %v5222 = vsub.s32 32, %v5221
      %v5223 = vshrl.u32 683565275, %v5222
      %v5224 = vshll.u32 683565275, %v5221
      %v5225 = vshrl.u32 2475754826, %v5222
      %v5226 = vor.u32 %v5224, %v5225
      %v5227 = vshll.u32 2475754826, %v5221
      %v5228 = vshrl.u32 2131351028, %v5222
      %v5229 = vor.u32 %v5227, %v5228
      %v5230 = vshll.u32 2131351028, %v5221
      %v5231 = vshrl.u32 2102212464, %v5222
      %v5232 = vor.u32 %v5230, %v5231
      %v5233 = vshll.u32 2102212464, %v5221
      %v5234 = vshrl.u32 920167782, %v5222
      %v5235 = vor.u32 %v5233, %v5234
      %v5236 = vshll.u32 920167782, %v5221
      %v5237 = vshrl.u32 1326507024, %v5222
      %v5238 = vor.u32 %v5236, %v5237
      %vm5239 = vcmp.lt.s32.totalorder %v5220, 1
      %vm5240 = vcmp.lt.s32.totalorder %v5220, 2
      %vm5241 = vcmp.lt.s32.totalorder %v5220, 3
      %vm5242 = vcmp.lt.s32.totalorder %v5220, 4
      %v5243 = vsel %vm5239, %v5223, %v5226
      %v5244 = vsel %vm5242, %v5232, 2102212464
      %v5245 = vsel %vm5241, %v5229, %v5244
      %v5246 = vsel %vm5240, %v5243, %v5245
      %v5247 = vsel %vm5239, %v5226, %v5229
      %v5248 = vsel %vm5242, %v5235, 920167782
      %v5249 = vsel %vm5241, %v5232, %v5248
      %v5250 = vsel %vm5240, %v5247, %v5249
      %v5251 = vsel %vm5239, %v5229, %v5232
      %v5252 = vsel %vm5242, %v5238, 1326507024
      %v5253 = vsel %vm5241, %v5235, %v5252
      %v5254 = vsel %vm5240, %v5251, %v5253
      %v5255 = vshll.u32 %v5215, 8
      %v5256 = vmul.u32.u64.compose %v5255, %v5254
      %v5257 = vextract.low.u32 %v5256
      %v5258 = vextract.high.u32 %v5256
      %v5259 = vmul.u32.u64.compose %v5255, %v5250
      %v5260 = vextract.low.u32 %v5259
      %v5261 = vextract.high.u32 %v5259
      %v5262 = vmul.u32 %v5255, %v5246
      %v5263 = vadd.s32 %v5258, %v5260
      %vm5264 = vc.u32 %v5258, %v5260
      %v5265 = vadd.s32 %v5261, 1
      %v5266 = vsel %vm5264, %v5265, %v5261
      %v5267 = vadd.s32 %v5262, %v5266
      %v5268 = vadd.s32 %v5267, 536870912
      %v5269 = vshrl.u32 %v5268, 30
      %v5270 = vshll.u32 %v5269, 30
      %v5271 = vsub.s32 %v5267, %v5270
      %vm5272 = vcmp.lt.s32.totalorder %v5271, 0
      %v5273 = vsub.s32 0, %v5271
      %v5274 = vsel %vm5272, %v5273, %v5271
      %v5275 = vclz %v5274
      %v5276 = vsub.s32 %v5275, 2
      %vm5277 = vcmp.gt.s32.totalorder 0, %v5276
      %v5278 = vsel %vm5277, 0, %v5276
      %v5279 = vsub.s32 32, %v5278
      %v5280 = vshll.u32 %v5271, %v5278
      %v5281 = vshrl.u32 %v5263, %v5279
      %v5282 = vor.u32 %v5280, %v5281
      %v5283 = vsub.s32 4294967266, %v5278
      %v5284 = vadd.s32 %v5283, 127
      %v5285 = vshll.u32 %v5284, 23
      %v5286 = vor.u32 4788187, %v5285
      %v5287 = vand.u32 2147483647, %v5286
      %v5289 = vcvt.s32.f32 %v5282
      %v5290 = vmul.f32 %v5289, %v5287
      %v5291 = vxor.u32 %v5290, 2147483648
      %v5292 = vsel %vm5209, %v5291, %v5290
      %v5293 = vsub.s32 4, %v5269
      %v5294 = vsel %vm5209, %v5293, %v5269
      %v5295 = vsel %vm5208, %v405, %v5292
      %v5296 = vsel %vm5208, 0, %v5294
      %v5297 = vcosq.f32.pop %v5295
      %v5298 = vsinq.f32.pop %v5295
      %vm5299 = vweird.f32 %v405
      %v5300 = vadd.s32 %v5296, 3
      %v5301 = vand.u32 %v5300, 3
      %vm5302 = vcmp.lt.s32.totalorder %v5301, 2
      %vm5303 = vcmp.eq.s32.totalorder %v5301, 0
      %v5304 = vxor.u32 %v5298, 2147483648
      %v5305 = vsel %vm5303, %v5297, %v5304
      %vm5306 = vcmp.eq.s32.totalorder %v5301, 2
      %v5307 = vxor.u32 %v5297, 2147483648
      %v5308 = vsel %vm5306, %v5307, %v5298
      %v5309 = vsel %vm5302, %v5305, %v5308
      %v5310 = vsel %vm5299, nan, %v5309
      %v5311 = vand.u32 2147483647, %v406
      %vm5312 = vcmp.le.f32.partialorder %v5311, 0.7853982
      %vm5313 = vcmp.lt.s32.totalorder %v406, 0
      %v5314 = vand.u32 %v406, 2139095040
      %v5315 = vshrl.u32 %v5314, 23
      %v5316 = vsub.s32 %v5315, 127
      %v5317 = vand.u32 2147483647, %v406
      %v5318 = vand.u32 %v5317, 8388607
      %v5319 = vor.u32 %v5318, 8388608
      %v5320 = vsub.s32 0, %v5319
      %v5321 = vadd.s32 %v5316, 1
      %vm5322 = vcmp.gt.s32.totalorder %v5321, 0
      %v5323 = vsel %vm5322, %v5321, 0
      %v5324 = vshrl.u32 %v5323, 5
      %v5325 = vand.u32 %v5323, 31
      %v5326 = vsub.s32 32, %v5325
      %v5327 = vshrl.u32 683565275, %v5326
      %v5328 = vshll.u32 683565275, %v5325
      %v5329 = vshrl.u32 2475754826, %v5326
      %v5330 = vor.u32 %v5328, %v5329
      %v5331 = vshll.u32 2475754826, %v5325
      %v5332 = vshrl.u32 2131351028, %v5326
      %v5333 = vor.u32 %v5331, %v5332
      %v5334 = vshll.u32 2131351028, %v5325
      %v5335 = vshrl.u32 2102212464, %v5326
      %v5336 = vor.u32 %v5334, %v5335
      %v5337 = vshll.u32 2102212464, %v5325
      %v5338 = vshrl.u32 920167782, %v5326
      %v5339 = vor.u32 %v5337, %v5338
      %v5340 = vshll.u32 920167782, %v5325
      %v5341 = vshrl.u32 1326507024, %v5326
      %v5342 = vor.u32 %v5340, %v5341
      %vm5343 = vcmp.lt.s32.totalorder %v5324, 1
      %vm5344 = vcmp.lt.s32.totalorder %v5324, 2
      %vm5345 = vcmp.lt.s32.totalorder %v5324, 3
      %vm5346 = vcmp.lt.s32.totalorder %v5324, 4
      %v5347 = vsel %vm5343, %v5327, %v5330
      %v5348 = vsel %vm5346, %v5336, 2102212464
      %v5349 = vsel %vm5345, %v5333, %v5348
      %v5350 = vsel %vm5344, %v5347, %v5349
      %v5351 = vsel %vm5343, %v5330, %v5333
      %v5352 = vsel %vm5346, %v5339, 920167782
      %v5353 = vsel %vm5345, %v5336, %v5352
      %v5354 = vsel %vm5344, %v5351, %v5353
      %v5355 = vsel %vm5343, %v5333, %v5336
      %v5356 = vsel %vm5346, %v5342, 1326507024
      %v5357 = vsel %vm5345, %v5339, %v5356
      %v5358 = vsel %vm5344, %v5355, %v5357
      %v5359 = vshll.u32 %v5319, 8
      %v5360 = vmul.u32.u64.compose %v5359, %v5358
      %v5361 = vextract.low.u32 %v5360
      %v5362 = vextract.high.u32 %v5360
      %v5363 = vmul.u32.u64.compose %v5359, %v5354
      %v5364 = vextract.low.u32 %v5363
      %v5365 = vextract.high.u32 %v5363
      %v5366 = vmul.u32 %v5359, %v5350
      %v5367 = vadd.s32 %v5362, %v5364
      %vm5368 = vc.u32 %v5362, %v5364
      %v5369 = vadd.s32 %v5365, 1
      %v5370 = vsel %vm5368, %v5369, %v5365
      %v5371 = vadd.s32 %v5366, %v5370
      %v5372 = vadd.s32 %v5371, 536870912
      %v5373 = vshrl.u32 %v5372, 30
      %v5374 = vshll.u32 %v5373, 30
      %v5375 = vsub.s32 %v5371, %v5374
      %vm5376 = vcmp.lt.s32.totalorder %v5375, 0
      %v5377 = vsub.s32 0, %v5375
      %v5378 = vsel %vm5376, %v5377, %v5375
      %v5379 = vclz %v5378
      %v5380 = vsub.s32 %v5379, 2
      %vm5381 = vcmp.gt.s32.totalorder 0, %v5380
      %v5382 = vsel %vm5381, 0, %v5380
      %v5383 = vsub.s32 32, %v5382
      %v5384 = vshll.u32 %v5375, %v5382
      %v5385 = vshrl.u32 %v5367, %v5383
      %v5386 = vor.u32 %v5384, %v5385
      %v5387 = vsub.s32 4294967266, %v5382
      %v5388 = vadd.s32 %v5387, 127
      %v5389 = vshll.u32 %v5388, 23
      %v5390 = vor.u32 4788187, %v5389
      %v5391 = vand.u32 2147483647, %v5390
      %v5393 = vcvt.s32.f32 %v5386
      %v5394 = vmul.f32 %v5393, %v5391
      %v5395 = vxor.u32 %v5394, 2147483648
      %v5396 = vsel %vm5313, %v5395, %v5394
      %v5397 = vsub.s32 4, %v5373
      %v5398 = vsel %vm5313, %v5397, %v5373
      %v5399 = vsel %vm5312, %v406, %v5396
      %v5400 = vsel %vm5312, 0, %v5398
      %v5401 = vcosq.f32.pop %v5399
      %v5402 = vsinq.f32.pop %v5399
      %vm5403 = vweird.f32 %v406
      %v5404 = vadd.s32 %v5400, 3
      %v5405 = vand.u32 %v5404, 3
      %vm5406 = vcmp.lt.s32.totalorder %v5405, 2
      %vm5407 = vcmp.eq.s32.totalorder %v5405, 0
      %v5408 = vxor.u32 %v5402, 2147483648
      %v5409 = vsel %vm5407, %v5401, %v5408
      %vm5410 = vcmp.eq.s32.totalorder %v5405, 2
      %v5411 = vxor.u32 %v5401, 2147483648
      %v5412 = vsel %vm5410, %v5411, %v5402
      %v5413 = vsel %vm5406, %v5409, %v5412
      %v5414 = vsel %vm5403, nan, %v5413
      %v5415 = vand.u32 2147483647, %v407
      %vm5416 = vcmp.le.f32.partialorder %v5415, 0.7853982
      %vm5417 = vcmp.lt.s32.totalorder %v407, 0
      %v5418 = vand.u32 %v407, 2139095040
      %v5419 = vshrl.u32 %v5418, 23
      %v5420 = vsub.s32 %v5419, 127
      %v5421 = vand.u32 2147483647, %v407
      %v5422 = vand.u32 %v5421, 8388607
      %v5423 = vor.u32 %v5422, 8388608
      %v5424 = vsub.s32 0, %v5423
      %v5425 = vadd.s32 %v5420, 1
      %vm5426 = vcmp.gt.s32.totalorder %v5425, 0
      %v5427 = vsel %vm5426, %v5425, 0
      %v5428 = vshrl.u32 %v5427, 5
      %v5429 = vand.u32 %v5427, 31
      %v5430 = vsub.s32 32, %v5429
      %v5431 = vshrl.u32 683565275, %v5430
      %v5432 = vshll.u32 683565275, %v5429
      %v5433 = vshrl.u32 2475754826, %v5430
      %v5434 = vor.u32 %v5432, %v5433
      %v5435 = vshll.u32 2475754826, %v5429
      %v5436 = vshrl.u32 2131351028, %v5430
      %v5437 = vor.u32 %v5435, %v5436
      %v5438 = vshll.u32 2131351028, %v5429
      %v5439 = vshrl.u32 2102212464, %v5430
      %v5440 = vor.u32 %v5438, %v5439
      %v5441 = vshll.u32 2102212464, %v5429
      %v5442 = vshrl.u32 920167782, %v5430
      %v5443 = vor.u32 %v5441, %v5442
      %v5444 = vshll.u32 920167782, %v5429
      %v5445 = vshrl.u32 1326507024, %v5430
      %v5446 = vor.u32 %v5444, %v5445
      %vm5447 = vcmp.lt.s32.totalorder %v5428, 1
      %vm5448 = vcmp.lt.s32.totalorder %v5428, 2
      %vm5449 = vcmp.lt.s32.totalorder %v5428, 3
      %vm5450 = vcmp.lt.s32.totalorder %v5428, 4
      %v5451 = vsel %vm5447, %v5431, %v5434
      %v5452 = vsel %vm5450, %v5440, 2102212464
      %v5453 = vsel %vm5449, %v5437, %v5452
      %v5454 = vsel %vm5448, %v5451, %v5453
      %v5455 = vsel %vm5447, %v5434, %v5437
      %v5456 = vsel %vm5450, %v5443, 920167782
      %v5457 = vsel %vm5449, %v5440, %v5456
      %v5458 = vsel %vm5448, %v5455, %v5457
      %v5459 = vsel %vm5447, %v5437, %v5440
      %v5460 = vsel %vm5450, %v5446, 1326507024
      %v5461 = vsel %vm5449, %v5443, %v5460
      %v5462 = vsel %vm5448, %v5459, %v5461
      %v5463 = vshll.u32 %v5423, 8
      %v5464 = vmul.u32.u64.compose %v5463, %v5462
      %v5465 = vextract.low.u32 %v5464
      %v5466 = vextract.high.u32 %v5464
      %v5467 = vmul.u32.u64.compose %v5463, %v5458
      %v5468 = vextract.low.u32 %v5467
      %v5469 = vextract.high.u32 %v5467
      %v5470 = vmul.u32 %v5463, %v5454
      %v5471 = vadd.s32 %v5466, %v5468
      %vm5472 = vc.u32 %v5466, %v5468
      %v5473 = vadd.s32 %v5469, 1
      %v5474 = vsel %vm5472, %v5473, %v5469
      %v5475 = vadd.s32 %v5470, %v5474
      %v5476 = vadd.s32 %v5475, 536870912
      %v5477 = vshrl.u32 %v5476, 30
      %v5478 = vshll.u32 %v5477, 30
      %v5479 = vsub.s32 %v5475, %v5478
      %vm5480 = vcmp.lt.s32.totalorder %v5479, 0
      %v5481 = vsub.s32 0, %v5479
      %v5482 = vsel %vm5480, %v5481, %v5479
      %v5483 = vclz %v5482
      %v5484 = vsub.s32 %v5483, 2
      %vm5485 = vcmp.gt.s32.totalorder 0, %v5484
      %v5486 = vsel %vm5485, 0, %v5484
      %v5487 = vsub.s32 32, %v5486
      %v5488 = vshll.u32 %v5479, %v5486
      %v5489 = vshrl.u32 %v5471, %v5487
      %v5490 = vor.u32 %v5488, %v5489
      %v5491 = vsub.s32 4294967266, %v5486
      %v5492 = vadd.s32 %v5491, 127
      %v5493 = vshll.u32 %v5492, 23
      %v5494 = vor.u32 4788187, %v5493
      %v5495 = vand.u32 2147483647, %v5494
      %v5497 = vcvt.s32.f32 %v5490
      %v5498 = vmul.f32 %v5497, %v5495
      %v5499 = vxor.u32 %v5498, 2147483648
      %v5500 = vsel %vm5417, %v5499, %v5498
      %v5501 = vsub.s32 4, %v5477
      %v5502 = vsel %vm5417, %v5501, %v5477
      %v5503 = vsel %vm5416, %v407, %v5500
      %v5504 = vsel %vm5416, 0, %v5502
      %v5505 = vcosq.f32.pop %v5503
      %v5506 = vsinq.f32.pop %v5503
      %vm5507 = vweird.f32 %v407
      %v5508 = vadd.s32 %v5504, 3
      %v5509 = vand.u32 %v5508, 3
      %vm5510 = vcmp.lt.s32.totalorder %v5509, 2
      %vm5511 = vcmp.eq.s32.totalorder %v5509, 0
      %v5512 = vxor.u32 %v5506, 2147483648
      %v5513 = vsel %vm5511, %v5505, %v5512
      %vm5514 = vcmp.eq.s32.totalorder %v5509, 2
      %v5515 = vxor.u32 %v5505, 2147483648
      %v5516 = vsel %vm5514, %v5515, %v5506
      %v5517 = vsel %vm5510, %v5513, %v5516
      %v5518 = vsel %vm5507, nan, %v5517
      %v5519 = vand.u32 2147483647, %v408
      %vm5520 = vcmp.le.f32.partialorder %v5519, 0.7853982
      %vm5521 = vcmp.lt.s32.totalorder %v408, 0
      %v5522 = vand.u32 %v408, 2139095040
      %v5523 = vshrl.u32 %v5522, 23
      %v5524 = vsub.s32 %v5523, 127
      %v5525 = vand.u32 2147483647, %v408
      %v5526 = vand.u32 %v5525, 8388607
      %v5527 = vor.u32 %v5526, 8388608
      %v5528 = vsub.s32 0, %v5527
      %v5529 = vadd.s32 %v5524, 1
      %vm5530 = vcmp.gt.s32.totalorder %v5529, 0
      %v5531 = vsel %vm5530, %v5529, 0
      %v5532 = vshrl.u32 %v5531, 5
      %v5533 = vand.u32 %v5531, 31
      %v5534 = vsub.s32 32, %v5533
      %v5535 = vshrl.u32 683565275, %v5534
      %v5536 = vshll.u32 683565275, %v5533
      %v5537 = vshrl.u32 2475754826, %v5534
      %v5538 = vor.u32 %v5536, %v5537
      %v5539 = vshll.u32 2475754826, %v5533
      %v5540 = vshrl.u32 2131351028, %v5534
      %v5541 = vor.u32 %v5539, %v5540
      %v5542 = vshll.u32 2131351028, %v5533
      %v5543 = vshrl.u32 2102212464, %v5534
      %v5544 = vor.u32 %v5542, %v5543
      %v5545 = vshll.u32 2102212464, %v5533
      %v5546 = vshrl.u32 920167782, %v5534
      %v5547 = vor.u32 %v5545, %v5546
      %v5548 = vshll.u32 920167782, %v5533
      %v5549 = vshrl.u32 1326507024, %v5534
      %v5550 = vor.u32 %v5548, %v5549
      %vm5551 = vcmp.lt.s32.totalorder %v5532, 1
      %vm5552 = vcmp.lt.s32.totalorder %v5532, 2
      %vm5553 = vcmp.lt.s32.totalorder %v5532, 3
      %vm5554 = vcmp.lt.s32.totalorder %v5532, 4
      %v5555 = vsel %vm5551, %v5535, %v5538
      %v5556 = vsel %vm5554, %v5544, 2102212464
      %v5557 = vsel %vm5553, %v5541, %v5556
      %v5558 = vsel %vm5552, %v5555, %v5557
      %v5559 = vsel %vm5551, %v5538, %v5541
      %v5560 = vsel %vm5554, %v5547, 920167782
      %v5561 = vsel %vm5553, %v5544, %v5560
      %v5562 = vsel %vm5552, %v5559, %v5561
      %v5563 = vsel %vm5551, %v5541, %v5544
      %v5564 = vsel %vm5554, %v5550, 1326507024
      %v5565 = vsel %vm5553, %v5547, %v5564
      %v5566 = vsel %vm5552, %v5563, %v5565
      %v5567 = vshll.u32 %v5527, 8
      %v5568 = vmul.u32.u64.compose %v5567, %v5566
      %v5569 = vextract.low.u32 %v5568
      %v5570 = vextract.high.u32 %v5568
      %v5571 = vmul.u32.u64.compose %v5567, %v5562
      %v5572 = vextract.low.u32 %v5571
      %v5573 = vextract.high.u32 %v5571
      %v5574 = vmul.u32 %v5567, %v5558
      %v5575 = vadd.s32 %v5570, %v5572
      %vm5576 = vc.u32 %v5570, %v5572
      %v5577 = vadd.s32 %v5573, 1
      %v5578 = vsel %vm5576, %v5577, %v5573
      %v5579 = vadd.s32 %v5574, %v5578
      %v5580 = vadd.s32 %v5579, 536870912
      %v5581 = vshrl.u32 %v5580, 30
      %v5582 = vshll.u32 %v5581, 30
      %v5583 = vsub.s32 %v5579, %v5582
      %vm5584 = vcmp.lt.s32.totalorder %v5583, 0
      %v5585 = vsub.s32 0, %v5583
      %v5586 = vsel %vm5584, %v5585, %v5583
      %v5587 = vclz %v5586
      %v5588 = vsub.s32 %v5587, 2
      %vm5589 = vcmp.gt.s32.totalorder 0, %v5588
      %v5590 = vsel %vm5589, 0, %v5588
      %v5591 = vsub.s32 32, %v5590
      %v5592 = vshll.u32 %v5583, %v5590
      %v5593 = vshrl.u32 %v5575, %v5591
      %v5594 = vor.u32 %v5592, %v5593
      %v5595 = vsub.s32 4294967266, %v5590
      %v5596 = vadd.s32 %v5595, 127
      %v5597 = vshll.u32 %v5596, 23
      %v5598 = vor.u32 4788187, %v5597
      %v5599 = vand.u32 2147483647, %v5598
      %v5601 = vcvt.s32.f32 %v5594
      %v5602 = vmul.f32 %v5601, %v5599
      %v5603 = vxor.u32 %v5602, 2147483648
      %v5604 = vsel %vm5521, %v5603, %v5602
      %v5605 = vsub.s32 4, %v5581
      %v5606 = vsel %vm5521, %v5605, %v5581
      %v5607 = vsel %vm5520, %v408, %v5604
      %v5608 = vsel %vm5520, 0, %v5606
      %v5609 = vcosq.f32.pop %v5607
      %v5610 = vsinq.f32.pop %v5607
      %vm5611 = vweird.f32 %v408
      %v5612 = vadd.s32 %v5608, 3
      %v5613 = vand.u32 %v5612, 3
      %vm5614 = vcmp.lt.s32.totalorder %v5613, 2
      %vm5615 = vcmp.eq.s32.totalorder %v5613, 0
      %v5616 = vxor.u32 %v5610, 2147483648
      %v5617 = vsel %vm5615, %v5609, %v5616
      %vm5618 = vcmp.eq.s32.totalorder %v5613, 2
      %v5619 = vxor.u32 %v5609, 2147483648
      %v5620 = vsel %vm5618, %v5619, %v5610
      %v5621 = vsel %vm5614, %v5617, %v5620
      %v5622 = vsel %vm5611, nan, %v5621
      %v5623 = vand.u32 2147483647, %v409
      %vm5624 = vcmp.le.f32.partialorder %v5623, 0.7853982
      %vm5625 = vcmp.lt.s32.totalorder %v409, 0
      %v5626 = vand.u32 %v409, 2139095040
      %v5627 = vshrl.u32 %v5626, 23
      %v5628 = vsub.s32 %v5627, 127
      %v5629 = vand.u32 2147483647, %v409
      %v5630 = vand.u32 %v5629, 8388607
      %v5631 = vor.u32 %v5630, 8388608
      %v5632 = vsub.s32 0, %v5631
      %v5633 = vadd.s32 %v5628, 1
      %vm5634 = vcmp.gt.s32.totalorder %v5633, 0
      %v5635 = vsel %vm5634, %v5633, 0
      %v5636 = vshrl.u32 %v5635, 5
      %v5637 = vand.u32 %v5635, 31
      %v5638 = vsub.s32 32, %v5637
      %v5639 = vshrl.u32 683565275, %v5638
      %v5640 = vshll.u32 683565275, %v5637
      %v5641 = vshrl.u32 2475754826, %v5638
      %v5642 = vor.u32 %v5640, %v5641
      %v5643 = vshll.u32 2475754826, %v5637
      %v5644 = vshrl.u32 2131351028, %v5638
      %v5645 = vor.u32 %v5643, %v5644
      %v5646 = vshll.u32 2131351028, %v5637
      %v5647 = vshrl.u32 2102212464, %v5638
      %v5648 = vor.u32 %v5646, %v5647
      %v5649 = vshll.u32 2102212464, %v5637
      %v5650 = vshrl.u32 920167782, %v5638
      %v5651 = vor.u32 %v5649, %v5650
      %v5652 = vshll.u32 920167782, %v5637
      %v5653 = vshrl.u32 1326507024, %v5638
      %v5654 = vor.u32 %v5652, %v5653
      %vm5655 = vcmp.lt.s32.totalorder %v5636, 1
      %vm5656 = vcmp.lt.s32.totalorder %v5636, 2
      %vm5657 = vcmp.lt.s32.totalorder %v5636, 3
      %vm5658 = vcmp.lt.s32.totalorder %v5636, 4
      %v5659 = vsel %vm5655, %v5639, %v5642
      %v5660 = vsel %vm5658, %v5648, 2102212464
      %v5661 = vsel %vm5657, %v5645, %v5660
      %v5662 = vsel %vm5656, %v5659, %v5661
      %v5663 = vsel %vm5655, %v5642, %v5645
      %v5664 = vsel %vm5658, %v5651, 920167782
      %v5665 = vsel %vm5657, %v5648, %v5664
      %v5666 = vsel %vm5656, %v5663, %v5665
      %v5667 = vsel %vm5655, %v5645, %v5648
      %v5668 = vsel %vm5658, %v5654, 1326507024
      %v5669 = vsel %vm5657, %v5651, %v5668
      %v5670 = vsel %vm5656, %v5667, %v5669
      %v5671 = vshll.u32 %v5631, 8
      %v5672 = vmul.u32.u64.compose %v5671, %v5670
      %v5673 = vextract.low.u32 %v5672
      %v5674 = vextract.high.u32 %v5672
      %v5675 = vmul.u32.u64.compose %v5671, %v5666
      %v5676 = vextract.low.u32 %v5675
      %v5677 = vextract.high.u32 %v5675
      %v5678 = vmul.u32 %v5671, %v5662
      %v5679 = vadd.s32 %v5674, %v5676
      %vm5680 = vc.u32 %v5674, %v5676
      %v5681 = vadd.s32 %v5677, 1
      %v5682 = vsel %vm5680, %v5681, %v5677
      %v5683 = vadd.s32 %v5678, %v5682
      %v5684 = vadd.s32 %v5683, 536870912
      %v5685 = vshrl.u32 %v5684, 30
      %v5686 = vshll.u32 %v5685, 30
      %v5687 = vsub.s32 %v5683, %v5686
      %vm5688 = vcmp.lt.s32.totalorder %v5687, 0
      %v5689 = vsub.s32 0, %v5687
      %v5690 = vsel %vm5688, %v5689, %v5687
      %v5691 = vclz %v5690
      %v5692 = vsub.s32 %v5691, 2
      %vm5693 = vcmp.gt.s32.totalorder 0, %v5692
      %v5694 = vsel %vm5693, 0, %v5692
      %v5695 = vsub.s32 32, %v5694
      %v5696 = vshll.u32 %v5687, %v5694
      %v5697 = vshrl.u32 %v5679, %v5695
      %v5698 = vor.u32 %v5696, %v5697
      %v5699 = vsub.s32 4294967266, %v5694
      %v5700 = vadd.s32 %v5699, 127
      %v5701 = vshll.u32 %v5700, 23
      %v5702 = vor.u32 4788187, %v5701
      %v5703 = vand.u32 2147483647, %v5702
      %v5705 = vcvt.s32.f32 %v5698
      %v5706 = vmul.f32 %v5705, %v5703
      %v5707 = vxor.u32 %v5706, 2147483648
      %v5708 = vsel %vm5625, %v5707, %v5706
      %v5709 = vsub.s32 4, %v5685
      %v5710 = vsel %vm5625, %v5709, %v5685
      %v5711 = vsel %vm5624, %v409, %v5708
      %v5712 = vsel %vm5624, 0, %v5710
      %v5713 = vcosq.f32.pop %v5711
      %v5714 = vsinq.f32.pop %v5711
      %vm5715 = vweird.f32 %v409
      %v5716 = vadd.s32 %v5712, 3
      %v5717 = vand.u32 %v5716, 3
      %vm5718 = vcmp.lt.s32.totalorder %v5717, 2
      %vm5719 = vcmp.eq.s32.totalorder %v5717, 0
      %v5720 = vxor.u32 %v5714, 2147483648
      %v5721 = vsel %vm5719, %v5713, %v5720
      %vm5722 = vcmp.eq.s32.totalorder %v5717, 2
      %v5723 = vxor.u32 %v5713, 2147483648
      %v5724 = vsel %vm5722, %v5723, %v5714
      %v5725 = vsel %vm5718, %v5721, %v5724
      %v5726 = vsel %vm5715, nan, %v5725
      %v5727 = vand.u32 2147483647, %v410
      %vm5728 = vcmp.le.f32.partialorder %v5727, 0.7853982
      %vm5729 = vcmp.lt.s32.totalorder %v410, 0
      %v5730 = vand.u32 %v410, 2139095040
      %v5731 = vshrl.u32 %v5730, 23
      %v5732 = vsub.s32 %v5731, 127
      %v5733 = vand.u32 2147483647, %v410
      %v5734 = vand.u32 %v5733, 8388607
      %v5735 = vor.u32 %v5734, 8388608
      %v5736 = vsub.s32 0, %v5735
      %v5737 = vadd.s32 %v5732, 1
      %vm5738 = vcmp.gt.s32.totalorder %v5737, 0
      %v5739 = vsel %vm5738, %v5737, 0
      %v5740 = vshrl.u32 %v5739, 5
      %v5741 = vand.u32 %v5739, 31
      %v5742 = vsub.s32 32, %v5741
      %v5743 = vshrl.u32 683565275, %v5742
      %v5744 = vshll.u32 683565275, %v5741
      %v5745 = vshrl.u32 2475754826, %v5742
      %v5746 = vor.u32 %v5744, %v5745
      %v5747 = vshll.u32 2475754826, %v5741
      %v5748 = vshrl.u32 2131351028, %v5742
      %v5749 = vor.u32 %v5747, %v5748
      %v5750 = vshll.u32 2131351028, %v5741
      %v5751 = vshrl.u32 2102212464, %v5742
      %v5752 = vor.u32 %v5750, %v5751
      %v5753 = vshll.u32 2102212464, %v5741
      %v5754 = vshrl.u32 920167782, %v5742
      %v5755 = vor.u32 %v5753, %v5754
      %v5756 = vshll.u32 920167782, %v5741
      %v5757 = vshrl.u32 1326507024, %v5742
      %v5758 = vor.u32 %v5756, %v5757
      %vm5759 = vcmp.lt.s32.totalorder %v5740, 1
      %vm5760 = vcmp.lt.s32.totalorder %v5740, 2
      %vm5761 = vcmp.lt.s32.totalorder %v5740, 3
      %vm5762 = vcmp.lt.s32.totalorder %v5740, 4
      %v5763 = vsel %vm5759, %v5743, %v5746
      %v5764 = vsel %vm5762, %v5752, 2102212464
      %v5765 = vsel %vm5761, %v5749, %v5764
      %v5766 = vsel %vm5760, %v5763, %v5765
      %v5767 = vsel %vm5759, %v5746, %v5749
      %v5768 = vsel %vm5762, %v5755, 920167782
      %v5769 = vsel %vm5761, %v5752, %v5768
      %v5770 = vsel %vm5760, %v5767, %v5769
      %v5771 = vsel %vm5759, %v5749, %v5752
      %v5772 = vsel %vm5762, %v5758, 1326507024
      %v5773 = vsel %vm5761, %v5755, %v5772
      %v5774 = vsel %vm5760, %v5771, %v5773
      %v5775 = vshll.u32 %v5735, 8
      %v5776 = vmul.u32.u64.compose %v5775, %v5774
      %v5777 = vextract.low.u32 %v5776
      %v5778 = vextract.high.u32 %v5776
      %v5779 = vmul.u32.u64.compose %v5775, %v5770
      %v5780 = vextract.low.u32 %v5779
      %v5781 = vextract.high.u32 %v5779
      %v5782 = vmul.u32 %v5775, %v5766
      %v5783 = vadd.s32 %v5778, %v5780
      %vm5784 = vc.u32 %v5778, %v5780
      %v5785 = vadd.s32 %v5781, 1
      %v5786 = vsel %vm5784, %v5785, %v5781
      %v5787 = vadd.s32 %v5782, %v5786
      %v5788 = vadd.s32 %v5787, 536870912
      %v5789 = vshrl.u32 %v5788, 30
      %v5790 = vshll.u32 %v5789, 30
      %v5791 = vsub.s32 %v5787, %v5790
      %vm5792 = vcmp.lt.s32.totalorder %v5791, 0
      %v5793 = vsub.s32 0, %v5791
      %v5794 = vsel %vm5792, %v5793, %v5791
      %v5795 = vclz %v5794
      %v5796 = vsub.s32 %v5795, 2
      %vm5797 = vcmp.gt.s32.totalorder 0, %v5796
      %v5798 = vsel %vm5797, 0, %v5796
      %v5799 = vsub.s32 32, %v5798
      %v5800 = vshll.u32 %v5791, %v5798
      %v5801 = vshrl.u32 %v5783, %v5799
      %v5802 = vor.u32 %v5800, %v5801
      %v5803 = vsub.s32 4294967266, %v5798
      %v5804 = vadd.s32 %v5803, 127
      %v5805 = vshll.u32 %v5804, 23
      %v5806 = vor.u32 4788187, %v5805
      %v5807 = vand.u32 2147483647, %v5806
      %v5809 = vcvt.s32.f32 %v5802
      %v5810 = vmul.f32 %v5809, %v5807
      %v5811 = vxor.u32 %v5810, 2147483648
      %v5812 = vsel %vm5729, %v5811, %v5810
      %v5813 = vsub.s32 4, %v5789
      %v5814 = vsel %vm5729, %v5813, %v5789
      %v5815 = vsel %vm5728, %v410, %v5812
      %v5816 = vsel %vm5728, 0, %v5814
      %v5817 = vcosq.f32.pop %v5815
      %v5818 = vsinq.f32.pop %v5815
      %vm5819 = vweird.f32 %v410
      %v5820 = vadd.s32 %v5816, 3
      %v5821 = vand.u32 %v5820, 3
      %vm5822 = vcmp.lt.s32.totalorder %v5821, 2
      %vm5823 = vcmp.eq.s32.totalorder %v5821, 0
      %v5824 = vxor.u32 %v5818, 2147483648
      %v5825 = vsel %vm5823, %v5817, %v5824
      %vm5826 = vcmp.eq.s32.totalorder %v5821, 2
      %v5827 = vxor.u32 %v5817, 2147483648
      %v5828 = vsel %vm5826, %v5827, %v5818
      %v5829 = vsel %vm5822, %v5825, %v5828
      %v5830 = vsel %vm5819, nan, %v5829
      %v5831 = vand.u32 2147483647, %v411
      %vm5832 = vcmp.le.f32.partialorder %v5831, 0.7853982
      %vm5833 = vcmp.lt.s32.totalorder %v411, 0
      %v5834 = vand.u32 %v411, 2139095040
      %v5835 = vshrl.u32 %v5834, 23
      %v5836 = vsub.s32 %v5835, 127
      %v5837 = vand.u32 2147483647, %v411
      %v5838 = vand.u32 %v5837, 8388607
      %v5839 = vor.u32 %v5838, 8388608
      %v5840 = vsub.s32 0, %v5839
      %v5841 = vadd.s32 %v5836, 1
      %vm5842 = vcmp.gt.s32.totalorder %v5841, 0
      %v5843 = vsel %vm5842, %v5841, 0
      %v5844 = vshrl.u32 %v5843, 5
      %v5845 = vand.u32 %v5843, 31
      %v5846 = vsub.s32 32, %v5845
      %v5847 = vshrl.u32 683565275, %v5846
      %v5848 = vshll.u32 683565275, %v5845
      %v5849 = vshrl.u32 2475754826, %v5846
      %v5850 = vor.u32 %v5848, %v5849
      %v5851 = vshll.u32 2475754826, %v5845
      %v5852 = vshrl.u32 2131351028, %v5846
      %v5853 = vor.u32 %v5851, %v5852
      %v5854 = vshll.u32 2131351028, %v5845
      %v5855 = vshrl.u32 2102212464, %v5846
      %v5856 = vor.u32 %v5854, %v5855
      %v5857 = vshll.u32 2102212464, %v5845
      %v5858 = vshrl.u32 920167782, %v5846
      %v5859 = vor.u32 %v5857, %v5858
      %v5860 = vshll.u32 920167782, %v5845
      %v5861 = vshrl.u32 1326507024, %v5846
      %v5862 = vor.u32 %v5860, %v5861
      %vm5863 = vcmp.lt.s32.totalorder %v5844, 1
      %vm5864 = vcmp.lt.s32.totalorder %v5844, 2
      %vm5865 = vcmp.lt.s32.totalorder %v5844, 3
      %vm5866 = vcmp.lt.s32.totalorder %v5844, 4
      %v5867 = vsel %vm5863, %v5847, %v5850
      %v5868 = vsel %vm5866, %v5856, 2102212464
      %v5869 = vsel %vm5865, %v5853, %v5868
      %v5870 = vsel %vm5864, %v5867, %v5869
      %v5871 = vsel %vm5863, %v5850, %v5853
      %v5872 = vsel %vm5866, %v5859, 920167782
      %v5873 = vsel %vm5865, %v5856, %v5872
      %v5874 = vsel %vm5864, %v5871, %v5873
      %v5875 = vsel %vm5863, %v5853, %v5856
      %v5876 = vsel %vm5866, %v5862, 1326507024
      %v5877 = vsel %vm5865, %v5859, %v5876
      %v5878 = vsel %vm5864, %v5875, %v5877
      %v5879 = vshll.u32 %v5839, 8
      %v5880 = vmul.u32.u64.compose %v5879, %v5878
      %v5881 = vextract.low.u32 %v5880
      %v5882 = vextract.high.u32 %v5880
      %v5883 = vmul.u32.u64.compose %v5879, %v5874
      %v5884 = vextract.low.u32 %v5883
      %v5885 = vextract.high.u32 %v5883
      %v5886 = vmul.u32 %v5879, %v5870
      %v5887 = vadd.s32 %v5882, %v5884
      %vm5888 = vc.u32 %v5882, %v5884
      %v5889 = vadd.s32 %v5885, 1
      %v5890 = vsel %vm5888, %v5889, %v5885
      %v5891 = vadd.s32 %v5886, %v5890
      %v5892 = vadd.s32 %v5891, 536870912
      %v5893 = vshrl.u32 %v5892, 30
      %v5894 = vshll.u32 %v5893, 30
      %v5895 = vsub.s32 %v5891, %v5894
      %vm5896 = vcmp.lt.s32.totalorder %v5895, 0
      %v5897 = vsub.s32 0, %v5895
      %v5898 = vsel %vm5896, %v5897, %v5895
      %v5899 = vclz %v5898
      %v5900 = vsub.s32 %v5899, 2
      %vm5901 = vcmp.gt.s32.totalorder 0, %v5900
      %v5902 = vsel %vm5901, 0, %v5900
      %v5903 = vsub.s32 32, %v5902
      %v5904 = vshll.u32 %v5895, %v5902
      %v5905 = vshrl.u32 %v5887, %v5903
      %v5906 = vor.u32 %v5904, %v5905
      %v5907 = vsub.s32 4294967266, %v5902
      %v5908 = vadd.s32 %v5907, 127
      %v5909 = vshll.u32 %v5908, 23
      %v5910 = vor.u32 4788187, %v5909
      %v5911 = vand.u32 2147483647, %v5910
      %v5913 = vcvt.s32.f32 %v5906
      %v5914 = vmul.f32 %v5913, %v5911
      %v5915 = vxor.u32 %v5914, 2147483648
      %v5916 = vsel %vm5833, %v5915, %v5914
      %v5917 = vsub.s32 4, %v5893
      %v5918 = vsel %vm5833, %v5917, %v5893
      %v5919 = vsel %vm5832, %v411, %v5916
      %v5920 = vsel %vm5832, 0, %v5918
      %v5921 = vcosq.f32.pop %v5919
      %v5922 = vsinq.f32.pop %v5919
      %vm5923 = vweird.f32 %v411
      %v5924 = vadd.s32 %v5920, 3
      %v5925 = vand.u32 %v5924, 3
      %vm5926 = vcmp.lt.s32.totalorder %v5925, 2
      %vm5927 = vcmp.eq.s32.totalorder %v5925, 0
      %v5928 = vxor.u32 %v5922, 2147483648
      %v5929 = vsel %vm5927, %v5921, %v5928
      %vm5930 = vcmp.eq.s32.totalorder %v5925, 2
      %v5931 = vxor.u32 %v5921, 2147483648
      %v5932 = vsel %vm5930, %v5931, %v5922
      %v5933 = vsel %vm5926, %v5929, %v5932
      %v5934 = vsel %vm5923, nan, %v5933
      %v5935 = vand.u32 2147483647, %v412
      %vm5936 = vcmp.le.f32.partialorder %v5935, 0.7853982
      %vm5937 = vcmp.lt.s32.totalorder %v412, 0
      %v5938 = vand.u32 %v412, 2139095040
      %v5939 = vshrl.u32 %v5938, 23
      %v5940 = vsub.s32 %v5939, 127
      %v5941 = vand.u32 2147483647, %v412
      %v5942 = vand.u32 %v5941, 8388607
      %v5943 = vor.u32 %v5942, 8388608
      %v5944 = vsub.s32 0, %v5943
      %v5945 = vadd.s32 %v5940, 1
      %vm5946 = vcmp.gt.s32.totalorder %v5945, 0
      %v5947 = vsel %vm5946, %v5945, 0
      %v5948 = vshrl.u32 %v5947, 5
      %v5949 = vand.u32 %v5947, 31
      %v5950 = vsub.s32 32, %v5949
      %v5951 = vshrl.u32 683565275, %v5950
      %v5952 = vshll.u32 683565275, %v5949
      %v5953 = vshrl.u32 2475754826, %v5950
      %v5954 = vor.u32 %v5952, %v5953
      %v5955 = vshll.u32 2475754826, %v5949
      %v5956 = vshrl.u32 2131351028, %v5950
      %v5957 = vor.u32 %v5955, %v5956
      %v5958 = vshll.u32 2131351028, %v5949
      %v5959 = vshrl.u32 2102212464, %v5950
      %v5960 = vor.u32 %v5958, %v5959
      %v5961 = vshll.u32 2102212464, %v5949
      %v5962 = vshrl.u32 920167782, %v5950
      %v5963 = vor.u32 %v5961, %v5962
      %v5964 = vshll.u32 920167782, %v5949
      %v5965 = vshrl.u32 1326507024, %v5950
      %v5966 = vor.u32 %v5964, %v5965
      %vm5967 = vcmp.lt.s32.totalorder %v5948, 1
      %vm5968 = vcmp.lt.s32.totalorder %v5948, 2
      %vm5969 = vcmp.lt.s32.totalorder %v5948, 3
      %vm5970 = vcmp.lt.s32.totalorder %v5948, 4
      %v5971 = vsel %vm5967, %v5951, %v5954
      %v5972 = vsel %vm5970, %v5960, 2102212464
      %v5973 = vsel %vm5969, %v5957, %v5972
      %v5974 = vsel %vm5968, %v5971, %v5973
      %v5975 = vsel %vm5967, %v5954, %v5957
      %v5976 = vsel %vm5970, %v5963, 920167782
      %v5977 = vsel %vm5969, %v5960, %v5976
      %v5978 = vsel %vm5968, %v5975, %v5977
      %v5979 = vsel %vm5967, %v5957, %v5960
      %v5980 = vsel %vm5970, %v5966, 1326507024
      %v5981 = vsel %vm5969, %v5963, %v5980
      %v5982 = vsel %vm5968, %v5979, %v5981
      %v5983 = vshll.u32 %v5943, 8
      %v5984 = vmul.u32.u64.compose %v5983, %v5982
      %v5985 = vextract.low.u32 %v5984
      %v5986 = vextract.high.u32 %v5984
      %v5987 = vmul.u32.u64.compose %v5983, %v5978
      %v5988 = vextract.low.u32 %v5987
      %v5989 = vextract.high.u32 %v5987
      %v5990 = vmul.u32 %v5983, %v5974
      %v5991 = vadd.s32 %v5986, %v5988
      %vm5992 = vc.u32 %v5986, %v5988
      %v5993 = vadd.s32 %v5989, 1
      %v5994 = vsel %vm5992, %v5993, %v5989
      %v5995 = vadd.s32 %v5990, %v5994
      %v5996 = vadd.s32 %v5995, 536870912
      %v5997 = vshrl.u32 %v5996, 30
      %v5998 = vshll.u32 %v5997, 30
      %v5999 = vsub.s32 %v5995, %v5998
      %vm6000 = vcmp.lt.s32.totalorder %v5999, 0
      %v6001 = vsub.s32 0, %v5999
      %v6002 = vsel %vm6000, %v6001, %v5999
      %v6003 = vclz %v6002
      %v6004 = vsub.s32 %v6003, 2
      %vm6005 = vcmp.gt.s32.totalorder 0, %v6004
      %v6006 = vsel %vm6005, 0, %v6004
      %v6007 = vsub.s32 32, %v6006
      %v6008 = vshll.u32 %v5999, %v6006
      %v6009 = vshrl.u32 %v5991, %v6007
      %v6010 = vor.u32 %v6008, %v6009
      %v6011 = vsub.s32 4294967266, %v6006
      %v6012 = vadd.s32 %v6011, 127
      %v6013 = vshll.u32 %v6012, 23
      %v6014 = vor.u32 4788187, %v6013
      %v6015 = vand.u32 2147483647, %v6014
      %v6017 = vcvt.s32.f32 %v6010
      %v6018 = vmul.f32 %v6017, %v6015
      %v6019 = vxor.u32 %v6018, 2147483648
      %v6020 = vsel %vm5937, %v6019, %v6018
      %v6021 = vsub.s32 4, %v5997
      %v6022 = vsel %vm5937, %v6021, %v5997
      %v6023 = vsel %vm5936, %v412, %v6020
      %v6024 = vsel %vm5936, 0, %v6022
      %v6025 = vcosq.f32.pop %v6023
      %v6026 = vsinq.f32.pop %v6023
      %vm6027 = vweird.f32 %v412
      %v6028 = vadd.s32 %v6024, 3
      %v6029 = vand.u32 %v6028, 3
      %vm6030 = vcmp.lt.s32.totalorder %v6029, 2
      %vm6031 = vcmp.eq.s32.totalorder %v6029, 0
      %v6032 = vxor.u32 %v6026, 2147483648
      %v6033 = vsel %vm6031, %v6025, %v6032
      %vm6034 = vcmp.eq.s32.totalorder %v6029, 2
      %v6035 = vxor.u32 %v6025, 2147483648
      %v6036 = vsel %vm6034, %v6035, %v6026
      %v6037 = vsel %vm6030, %v6033, %v6036
      %v6038 = vsel %vm6027, nan, %v6037
      %v6039 = vand.u32 2147483647, %v413
      %vm6040 = vcmp.le.f32.partialorder %v6039, 0.7853982
      %vm6041 = vcmp.lt.s32.totalorder %v413, 0
      %v6042 = vand.u32 %v413, 2139095040
      %v6043 = vshrl.u32 %v6042, 23
      %v6044 = vsub.s32 %v6043, 127
      %v6045 = vand.u32 2147483647, %v413
      %v6046 = vand.u32 %v6045, 8388607
      %v6047 = vor.u32 %v6046, 8388608
      %v6048 = vsub.s32 0, %v6047
      %v6049 = vadd.s32 %v6044, 1
      %vm6050 = vcmp.gt.s32.totalorder %v6049, 0
      %v6051 = vsel %vm6050, %v6049, 0
      %v6052 = vshrl.u32 %v6051, 5
      %v6053 = vand.u32 %v6051, 31
      %v6054 = vsub.s32 32, %v6053
      %v6055 = vshrl.u32 683565275, %v6054
      %v6056 = vshll.u32 683565275, %v6053
      %v6057 = vshrl.u32 2475754826, %v6054
      %v6058 = vor.u32 %v6056, %v6057
      %v6059 = vshll.u32 2475754826, %v6053
      %v6060 = vshrl.u32 2131351028, %v6054
      %v6061 = vor.u32 %v6059, %v6060
      %v6062 = vshll.u32 2131351028, %v6053
      %v6063 = vshrl.u32 2102212464, %v6054
      %v6064 = vor.u32 %v6062, %v6063
      %v6065 = vshll.u32 2102212464, %v6053
      %v6066 = vshrl.u32 920167782, %v6054
      %v6067 = vor.u32 %v6065, %v6066
      %v6068 = vshll.u32 920167782, %v6053
      %v6069 = vshrl.u32 1326507024, %v6054
      %v6070 = vor.u32 %v6068, %v6069
      %vm6071 = vcmp.lt.s32.totalorder %v6052, 1
      %vm6072 = vcmp.lt.s32.totalorder %v6052, 2
      %vm6073 = vcmp.lt.s32.totalorder %v6052, 3
      %vm6074 = vcmp.lt.s32.totalorder %v6052, 4
      %v6075 = vsel %vm6071, %v6055, %v6058
      %v6076 = vsel %vm6074, %v6064, 2102212464
      %v6077 = vsel %vm6073, %v6061, %v6076
      %v6078 = vsel %vm6072, %v6075, %v6077
      %v6079 = vsel %vm6071, %v6058, %v6061
      %v6080 = vsel %vm6074, %v6067, 920167782
      %v6081 = vsel %vm6073, %v6064, %v6080
      %v6082 = vsel %vm6072, %v6079, %v6081
      %v6083 = vsel %vm6071, %v6061, %v6064
      %v6084 = vsel %vm6074, %v6070, 1326507024
      %v6085 = vsel %vm6073, %v6067, %v6084
      %v6086 = vsel %vm6072, %v6083, %v6085
      %v6087 = vshll.u32 %v6047, 8
      %v6088 = vmul.u32.u64.compose %v6087, %v6086
      %v6089 = vextract.low.u32 %v6088
      %v6090 = vextract.high.u32 %v6088
      %v6091 = vmul.u32.u64.compose %v6087, %v6082
      %v6092 = vextract.low.u32 %v6091
      %v6093 = vextract.high.u32 %v6091
      %v6094 = vmul.u32 %v6087, %v6078
      %v6095 = vadd.s32 %v6090, %v6092
      %vm6096 = vc.u32 %v6090, %v6092
      %v6097 = vadd.s32 %v6093, 1
      %v6098 = vsel %vm6096, %v6097, %v6093
      %v6099 = vadd.s32 %v6094, %v6098
      %v6100 = vadd.s32 %v6099, 536870912
      %v6101 = vshrl.u32 %v6100, 30
      %v6102 = vshll.u32 %v6101, 30
      %v6103 = vsub.s32 %v6099, %v6102
      %vm6104 = vcmp.lt.s32.totalorder %v6103, 0
      %v6105 = vsub.s32 0, %v6103
      %v6106 = vsel %vm6104, %v6105, %v6103
      %v6107 = vclz %v6106
      %v6108 = vsub.s32 %v6107, 2
      %vm6109 = vcmp.gt.s32.totalorder 0, %v6108
      %v6110 = vsel %vm6109, 0, %v6108
      %v6111 = vsub.s32 32, %v6110
      %v6112 = vshll.u32 %v6103, %v6110
      %v6113 = vshrl.u32 %v6095, %v6111
      %v6114 = vor.u32 %v6112, %v6113
      %v6115 = vsub.s32 4294967266, %v6110
      %v6116 = vadd.s32 %v6115, 127
      %v6117 = vshll.u32 %v6116, 23
      %v6118 = vor.u32 4788187, %v6117
      %v6119 = vand.u32 2147483647, %v6118
      %v6121 = vcvt.s32.f32 %v6114
      %v6122 = vmul.f32 %v6121, %v6119
      %v6123 = vxor.u32 %v6122, 2147483648
      %v6124 = vsel %vm6041, %v6123, %v6122
      %v6125 = vsub.s32 4, %v6101
      %v6126 = vsel %vm6041, %v6125, %v6101
      %v6127 = vsel %vm6040, %v413, %v6124
      %v6128 = vsel %vm6040, 0, %v6126
      %v6129 = vcosq.f32.pop %v6127
      %v6130 = vsinq.f32.pop %v6127
      %vm6131 = vweird.f32 %v413
      %v6132 = vadd.s32 %v6128, 3
      %v6133 = vand.u32 %v6132, 3
      %vm6134 = vcmp.lt.s32.totalorder %v6133, 2
      %vm6135 = vcmp.eq.s32.totalorder %v6133, 0
      %v6136 = vxor.u32 %v6130, 2147483648
      %v6137 = vsel %vm6135, %v6129, %v6136
      %vm6138 = vcmp.eq.s32.totalorder %v6133, 2
      %v6139 = vxor.u32 %v6129, 2147483648
      %v6140 = vsel %vm6138, %v6139, %v6130
      %v6141 = vsel %vm6134, %v6137, %v6140
      %v6142 = vsel %vm6131, nan, %v6141
      %v6143 = vand.u32 2147483647, %v414
      %vm6144 = vcmp.le.f32.partialorder %v6143, 0.7853982
      %vm6145 = vcmp.lt.s32.totalorder %v414, 0
      %v6146 = vand.u32 %v414, 2139095040
      %v6147 = vshrl.u32 %v6146, 23
      %v6148 = vsub.s32 %v6147, 127
      %v6149 = vand.u32 2147483647, %v414
      %v6150 = vand.u32 %v6149, 8388607
      %v6151 = vor.u32 %v6150, 8388608
      %v6152 = vsub.s32 0, %v6151
      %v6153 = vadd.s32 %v6148, 1
      %vm6154 = vcmp.gt.s32.totalorder %v6153, 0
      %v6155 = vsel %vm6154, %v6153, 0
      %v6156 = vshrl.u32 %v6155, 5
      %v6157 = vand.u32 %v6155, 31
      %v6158 = vsub.s32 32, %v6157
      %v6159 = vshrl.u32 683565275, %v6158
      %v6160 = vshll.u32 683565275, %v6157
      %v6161 = vshrl.u32 2475754826, %v6158
      %v6162 = vor.u32 %v6160, %v6161
      %v6163 = vshll.u32 2475754826, %v6157
      %v6164 = vshrl.u32 2131351028, %v6158
      %v6165 = vor.u32 %v6163, %v6164
      %v6166 = vshll.u32 2131351028, %v6157
      %v6167 = vshrl.u32 2102212464, %v6158
      %v6168 = vor.u32 %v6166, %v6167
      %v6169 = vshll.u32 2102212464, %v6157
      %v6170 = vshrl.u32 920167782, %v6158
      %v6171 = vor.u32 %v6169, %v6170
      %v6172 = vshll.u32 920167782, %v6157
      %v6173 = vshrl.u32 1326507024, %v6158
      %v6174 = vor.u32 %v6172, %v6173
      %vm6175 = vcmp.lt.s32.totalorder %v6156, 1
      %vm6176 = vcmp.lt.s32.totalorder %v6156, 2
      %vm6177 = vcmp.lt.s32.totalorder %v6156, 3
      %vm6178 = vcmp.lt.s32.totalorder %v6156, 4
      %v6179 = vsel %vm6175, %v6159, %v6162
      %v6180 = vsel %vm6178, %v6168, 2102212464
      %v6181 = vsel %vm6177, %v6165, %v6180
      %v6182 = vsel %vm6176, %v6179, %v6181
      %v6183 = vsel %vm6175, %v6162, %v6165
      %v6184 = vsel %vm6178, %v6171, 920167782
      %v6185 = vsel %vm6177, %v6168, %v6184
      %v6186 = vsel %vm6176, %v6183, %v6185
      %v6187 = vsel %vm6175, %v6165, %v6168
      %v6188 = vsel %vm6178, %v6174, 1326507024
      %v6189 = vsel %vm6177, %v6171, %v6188
      %v6190 = vsel %vm6176, %v6187, %v6189
      %v6191 = vshll.u32 %v6151, 8
      %v6192 = vmul.u32.u64.compose %v6191, %v6190
      %v6193 = vextract.low.u32 %v6192
      %v6194 = vextract.high.u32 %v6192
      %v6195 = vmul.u32.u64.compose %v6191, %v6186
      %v6196 = vextract.low.u32 %v6195
      %v6197 = vextract.high.u32 %v6195
      %v6198 = vmul.u32 %v6191, %v6182
      %v6199 = vadd.s32 %v6194, %v6196
      %vm6200 = vc.u32 %v6194, %v6196
      %v6201 = vadd.s32 %v6197, 1
      %v6202 = vsel %vm6200, %v6201, %v6197
      %v6203 = vadd.s32 %v6198, %v6202
      %v6204 = vadd.s32 %v6203, 536870912
      %v6205 = vshrl.u32 %v6204, 30
      %v6206 = vshll.u32 %v6205, 30
      %v6207 = vsub.s32 %v6203, %v6206
      %vm6208 = vcmp.lt.s32.totalorder %v6207, 0
      %v6209 = vsub.s32 0, %v6207
      %v6210 = vsel %vm6208, %v6209, %v6207
      %v6211 = vclz %v6210
      %v6212 = vsub.s32 %v6211, 2
      %vm6213 = vcmp.gt.s32.totalorder 0, %v6212
      %v6214 = vsel %vm6213, 0, %v6212
      %v6215 = vsub.s32 32, %v6214
      %v6216 = vshll.u32 %v6207, %v6214
      %v6217 = vshrl.u32 %v6199, %v6215
      %v6218 = vor.u32 %v6216, %v6217
      %v6219 = vsub.s32 4294967266, %v6214
      %v6220 = vadd.s32 %v6219, 127
      %v6221 = vshll.u32 %v6220, 23
      %v6222 = vor.u32 4788187, %v6221
      %v6223 = vand.u32 2147483647, %v6222
      %v6225 = vcvt.s32.f32 %v6218
      %v6226 = vmul.f32 %v6225, %v6223
      %v6227 = vxor.u32 %v6226, 2147483648
      %v6228 = vsel %vm6145, %v6227, %v6226
      %v6229 = vsub.s32 4, %v6205
      %v6230 = vsel %vm6145, %v6229, %v6205
      %v6231 = vsel %vm6144, %v414, %v6228
      %v6232 = vsel %vm6144, 0, %v6230
      %v6233 = vcosq.f32.pop %v6231
      %v6234 = vsinq.f32.pop %v6231
      %vm6235 = vweird.f32 %v414
      %v6236 = vadd.s32 %v6232, 3
      %v6237 = vand.u32 %v6236, 3
      %vm6238 = vcmp.lt.s32.totalorder %v6237, 2
      %vm6239 = vcmp.eq.s32.totalorder %v6237, 0
      %v6240 = vxor.u32 %v6234, 2147483648
      %v6241 = vsel %vm6239, %v6233, %v6240
      %vm6242 = vcmp.eq.s32.totalorder %v6237, 2
      %v6243 = vxor.u32 %v6233, 2147483648
      %v6244 = vsel %vm6242, %v6243, %v6234
      %v6245 = vsel %vm6238, %v6241, %v6244
      %v6246 = vsel %vm6235, nan, %v6245
      %v6247 = vand.u32 2147483647, %v415
      %vm6248 = vcmp.le.f32.partialorder %v6247, 0.7853982
      %vm6249 = vcmp.lt.s32.totalorder %v415, 0
      %v6250 = vand.u32 %v415, 2139095040
      %v6251 = vshrl.u32 %v6250, 23
      %v6252 = vsub.s32 %v6251, 127
      %v6253 = vand.u32 2147483647, %v415
      %v6254 = vand.u32 %v6253, 8388607
      %v6255 = vor.u32 %v6254, 8388608
      %v6256 = vsub.s32 0, %v6255
      %v6257 = vadd.s32 %v6252, 1
      %vm6258 = vcmp.gt.s32.totalorder %v6257, 0
      %v6259 = vsel %vm6258, %v6257, 0
      %v6260 = vshrl.u32 %v6259, 5
      %v6261 = vand.u32 %v6259, 31
      %v6262 = vsub.s32 32, %v6261
      %v6263 = vshrl.u32 683565275, %v6262
      %v6264 = vshll.u32 683565275, %v6261
      %v6265 = vshrl.u32 2475754826, %v6262
      %v6266 = vor.u32 %v6264, %v6265
      %v6267 = vshll.u32 2475754826, %v6261
      %v6268 = vshrl.u32 2131351028, %v6262
      %v6269 = vor.u32 %v6267, %v6268
      %v6270 = vshll.u32 2131351028, %v6261
      %v6271 = vshrl.u32 2102212464, %v6262
      %v6272 = vor.u32 %v6270, %v6271
      %v6273 = vshll.u32 2102212464, %v6261
      %v6274 = vshrl.u32 920167782, %v6262
      %v6275 = vor.u32 %v6273, %v6274
      %v6276 = vshll.u32 920167782, %v6261
      %v6277 = vshrl.u32 1326507024, %v6262
      %v6278 = vor.u32 %v6276, %v6277
      %vm6279 = vcmp.lt.s32.totalorder %v6260, 1
      %vm6280 = vcmp.lt.s32.totalorder %v6260, 2
      %vm6281 = vcmp.lt.s32.totalorder %v6260, 3
      %vm6282 = vcmp.lt.s32.totalorder %v6260, 4
      %v6283 = vsel %vm6279, %v6263, %v6266
      %v6284 = vsel %vm6282, %v6272, 2102212464
      %v6285 = vsel %vm6281, %v6269, %v6284
      %v6286 = vsel %vm6280, %v6283, %v6285
      %v6287 = vsel %vm6279, %v6266, %v6269
      %v6288 = vsel %vm6282, %v6275, 920167782
      %v6289 = vsel %vm6281, %v6272, %v6288
      %v6290 = vsel %vm6280, %v6287, %v6289
      %v6291 = vsel %vm6279, %v6269, %v6272
      %v6292 = vsel %vm6282, %v6278, 1326507024
      %v6293 = vsel %vm6281, %v6275, %v6292
      %v6294 = vsel %vm6280, %v6291, %v6293
      %v6295 = vshll.u32 %v6255, 8
      %v6296 = vmul.u32.u64.compose %v6295, %v6294
      %v6297 = vextract.low.u32 %v6296
      %v6298 = vextract.high.u32 %v6296
      %v6299 = vmul.u32.u64.compose %v6295, %v6290
      %v6300 = vextract.low.u32 %v6299
      %v6301 = vextract.high.u32 %v6299
      %v6302 = vmul.u32 %v6295, %v6286
      %v6303 = vadd.s32 %v6298, %v6300
      %vm6304 = vc.u32 %v6298, %v6300
      %v6305 = vadd.s32 %v6301, 1
      %v6306 = vsel %vm6304, %v6305, %v6301
      %v6307 = vadd.s32 %v6302, %v6306
      %v6308 = vadd.s32 %v6307, 536870912
      %v6309 = vshrl.u32 %v6308, 30
      %v6310 = vshll.u32 %v6309, 30
      %v6311 = vsub.s32 %v6307, %v6310
      %vm6312 = vcmp.lt.s32.totalorder %v6311, 0
      %v6313 = vsub.s32 0, %v6311
      %v6314 = vsel %vm6312, %v6313, %v6311
      %v6315 = vclz %v6314
      %v6316 = vsub.s32 %v6315, 2
      %vm6317 = vcmp.gt.s32.totalorder 0, %v6316
      %v6318 = vsel %vm6317, 0, %v6316
      %v6319 = vsub.s32 32, %v6318
      %v6320 = vshll.u32 %v6311, %v6318
      %v6321 = vshrl.u32 %v6303, %v6319
      %v6322 = vor.u32 %v6320, %v6321
      %v6323 = vsub.s32 4294967266, %v6318
      %v6324 = vadd.s32 %v6323, 127
      %v6325 = vshll.u32 %v6324, 23
      %v6326 = vor.u32 4788187, %v6325
      %v6327 = vand.u32 2147483647, %v6326
      %v6329 = vcvt.s32.f32 %v6322
      %v6330 = vmul.f32 %v6329, %v6327
      %v6331 = vxor.u32 %v6330, 2147483648
      %v6332 = vsel %vm6249, %v6331, %v6330
      %v6333 = vsub.s32 4, %v6309
      %v6334 = vsel %vm6249, %v6333, %v6309
      %v6335 = vsel %vm6248, %v415, %v6332
      %v6336 = vsel %vm6248, 0, %v6334
      %v6337 = vcosq.f32.pop %v6335
      %v6338 = vsinq.f32.pop %v6335
      %vm6339 = vweird.f32 %v415
      %v6340 = vadd.s32 %v6336, 3
      %v6341 = vand.u32 %v6340, 3
      %vm6342 = vcmp.lt.s32.totalorder %v6341, 2
      %vm6343 = vcmp.eq.s32.totalorder %v6341, 0
      %v6344 = vxor.u32 %v6338, 2147483648
      %v6345 = vsel %vm6343, %v6337, %v6344
      %vm6346 = vcmp.eq.s32.totalorder %v6341, 2
      %v6347 = vxor.u32 %v6337, 2147483648
      %v6348 = vsel %vm6346, %v6347, %v6338
      %v6349 = vsel %vm6342, %v6345, %v6348
      %v6350 = vsel %vm6339, nan, %v6349
      %v6351 = vand.u32 2147483647, %v416
      %vm6352 = vcmp.le.f32.partialorder %v6351, 0.7853982
      %vm6353 = vcmp.lt.s32.totalorder %v416, 0
      %v6354 = vand.u32 %v416, 2139095040
      %v6355 = vshrl.u32 %v6354, 23
      %v6356 = vsub.s32 %v6355, 127
      %v6357 = vand.u32 2147483647, %v416
      %v6358 = vand.u32 %v6357, 8388607
      %v6359 = vor.u32 %v6358, 8388608
      %v6360 = vsub.s32 0, %v6359
      %v6361 = vadd.s32 %v6356, 1
      %vm6362 = vcmp.gt.s32.totalorder %v6361, 0
      %v6363 = vsel %vm6362, %v6361, 0
      %v6364 = vshrl.u32 %v6363, 5
      %v6365 = vand.u32 %v6363, 31
      %v6366 = vsub.s32 32, %v6365
      %v6367 = vshrl.u32 683565275, %v6366
      %v6368 = vshll.u32 683565275, %v6365
      %v6369 = vshrl.u32 2475754826, %v6366
      %v6370 = vor.u32 %v6368, %v6369
      %v6371 = vshll.u32 2475754826, %v6365
      %v6372 = vshrl.u32 2131351028, %v6366
      %v6373 = vor.u32 %v6371, %v6372
      %v6374 = vshll.u32 2131351028, %v6365
      %v6375 = vshrl.u32 2102212464, %v6366
      %v6376 = vor.u32 %v6374, %v6375
      %v6377 = vshll.u32 2102212464, %v6365
      %v6378 = vshrl.u32 920167782, %v6366
      %v6379 = vor.u32 %v6377, %v6378
      %v6380 = vshll.u32 920167782, %v6365
      %v6381 = vshrl.u32 1326507024, %v6366
      %v6382 = vor.u32 %v6380, %v6381
      %vm6383 = vcmp.lt.s32.totalorder %v6364, 1
      %vm6384 = vcmp.lt.s32.totalorder %v6364, 2
      %vm6385 = vcmp.lt.s32.totalorder %v6364, 3
      %vm6386 = vcmp.lt.s32.totalorder %v6364, 4
      %v6387 = vsel %vm6383, %v6367, %v6370
      %v6388 = vsel %vm6386, %v6376, 2102212464
      %v6389 = vsel %vm6385, %v6373, %v6388
      %v6390 = vsel %vm6384, %v6387, %v6389
      %v6391 = vsel %vm6383, %v6370, %v6373
      %v6392 = vsel %vm6386, %v6379, 920167782
      %v6393 = vsel %vm6385, %v6376, %v6392
      %v6394 = vsel %vm6384, %v6391, %v6393
      %v6395 = vsel %vm6383, %v6373, %v6376
      %v6396 = vsel %vm6386, %v6382, 1326507024
      %v6397 = vsel %vm6385, %v6379, %v6396
      %v6398 = vsel %vm6384, %v6395, %v6397
      %v6399 = vshll.u32 %v6359, 8
      %v6400 = vmul.u32.u64.compose %v6399, %v6398
      %v6401 = vextract.low.u32 %v6400
      %v6402 = vextract.high.u32 %v6400
      %v6403 = vmul.u32.u64.compose %v6399, %v6394
      %v6404 = vextract.low.u32 %v6403
      %v6405 = vextract.high.u32 %v6403
      %v6406 = vmul.u32 %v6399, %v6390
      %v6407 = vadd.s32 %v6402, %v6404
      %vm6408 = vc.u32 %v6402, %v6404
      %v6409 = vadd.s32 %v6405, 1
      %v6410 = vsel %vm6408, %v6409, %v6405
      %v6411 = vadd.s32 %v6406, %v6410
      %v6412 = vadd.s32 %v6411, 536870912
      %v6413 = vshrl.u32 %v6412, 30
      %v6414 = vshll.u32 %v6413, 30
      %v6415 = vsub.s32 %v6411, %v6414
      %vm6416 = vcmp.lt.s32.totalorder %v6415, 0
      %v6417 = vsub.s32 0, %v6415
      %v6418 = vsel %vm6416, %v6417, %v6415
      %v6419 = vclz %v6418
      %v6420 = vsub.s32 %v6419, 2
      %vm6421 = vcmp.gt.s32.totalorder 0, %v6420
      %v6422 = vsel %vm6421, 0, %v6420
      %v6423 = vsub.s32 32, %v6422
      %v6424 = vshll.u32 %v6415, %v6422
      %v6425 = vshrl.u32 %v6407, %v6423
      %v6426 = vor.u32 %v6424, %v6425
      %v6427 = vsub.s32 4294967266, %v6422
      %v6428 = vadd.s32 %v6427, 127
      %v6429 = vshll.u32 %v6428, 23
      %v6430 = vor.u32 4788187, %v6429
      %v6431 = vand.u32 2147483647, %v6430
      %v6433 = vcvt.s32.f32 %v6426
      %v6434 = vmul.f32 %v6433, %v6431
      %v6435 = vxor.u32 %v6434, 2147483648
      %v6436 = vsel %vm6353, %v6435, %v6434
      %v6437 = vsub.s32 4, %v6413
      %v6438 = vsel %vm6353, %v6437, %v6413
      %v6439 = vsel %vm6352, %v416, %v6436
      %v6440 = vsel %vm6352, 0, %v6438
      %v6441 = vcosq.f32.pop %v6439
      %v6442 = vsinq.f32.pop %v6439
      %vm6443 = vweird.f32 %v416
      %v6444 = vadd.s32 %v6440, 3
      %v6445 = vand.u32 %v6444, 3
      %vm6446 = vcmp.lt.s32.totalorder %v6445, 2
      %vm6447 = vcmp.eq.s32.totalorder %v6445, 0
      %v6448 = vxor.u32 %v6442, 2147483648
      %v6449 = vsel %vm6447, %v6441, %v6448
      %vm6450 = vcmp.eq.s32.totalorder %v6445, 2
      %v6451 = vxor.u32 %v6441, 2147483648
      %v6452 = vsel %vm6450, %v6451, %v6442
      %v6453 = vsel %vm6446, %v6449, %v6452
      %v6454 = vsel %vm6443, nan, %v6453
      %v6455 = vand.u32 2147483647, %v417
      %vm6456 = vcmp.le.f32.partialorder %v6455, 0.7853982
      %vm6457 = vcmp.lt.s32.totalorder %v417, 0
      %v6458 = vand.u32 %v417, 2139095040
      %v6459 = vshrl.u32 %v6458, 23
      %v6460 = vsub.s32 %v6459, 127
      %v6461 = vand.u32 2147483647, %v417
      %v6462 = vand.u32 %v6461, 8388607
      %v6463 = vor.u32 %v6462, 8388608
      %v6464 = vsub.s32 0, %v6463
      %v6465 = vadd.s32 %v6460, 1
      %vm6466 = vcmp.gt.s32.totalorder %v6465, 0
      %v6467 = vsel %vm6466, %v6465, 0
      %v6468 = vshrl.u32 %v6467, 5
      %v6469 = vand.u32 %v6467, 31
      %v6470 = vsub.s32 32, %v6469
      %v6471 = vshrl.u32 683565275, %v6470
      %v6472 = vshll.u32 683565275, %v6469
      %v6473 = vshrl.u32 2475754826, %v6470
      %v6474 = vor.u32 %v6472, %v6473
      %v6475 = vshll.u32 2475754826, %v6469
      %v6476 = vshrl.u32 2131351028, %v6470
      %v6477 = vor.u32 %v6475, %v6476
      %v6478 = vshll.u32 2131351028, %v6469
      %v6479 = vshrl.u32 2102212464, %v6470
      %v6480 = vor.u32 %v6478, %v6479
      %v6481 = vshll.u32 2102212464, %v6469
      %v6482 = vshrl.u32 920167782, %v6470
      %v6483 = vor.u32 %v6481, %v6482
      %v6484 = vshll.u32 920167782, %v6469
      %v6485 = vshrl.u32 1326507024, %v6470
      %v6486 = vor.u32 %v6484, %v6485
      %vm6487 = vcmp.lt.s32.totalorder %v6468, 1
      %vm6488 = vcmp.lt.s32.totalorder %v6468, 2
      %vm6489 = vcmp.lt.s32.totalorder %v6468, 3
      %vm6490 = vcmp.lt.s32.totalorder %v6468, 4
      %v6491 = vsel %vm6487, %v6471, %v6474
      %v6492 = vsel %vm6490, %v6480, 2102212464
      %v6493 = vsel %vm6489, %v6477, %v6492
      %v6494 = vsel %vm6488, %v6491, %v6493
      %v6495 = vsel %vm6487, %v6474, %v6477
      %v6496 = vsel %vm6490, %v6483, 920167782
      %v6497 = vsel %vm6489, %v6480, %v6496
      %v6498 = vsel %vm6488, %v6495, %v6497
      %v6499 = vsel %vm6487, %v6477, %v6480
      %v6500 = vsel %vm6490, %v6486, 1326507024
      %v6501 = vsel %vm6489, %v6483, %v6500
      %v6502 = vsel %vm6488, %v6499, %v6501
      %v6503 = vshll.u32 %v6463, 8
      %v6504 = vmul.u32.u64.compose %v6503, %v6502
      %v6505 = vextract.low.u32 %v6504
      %v6506 = vextract.high.u32 %v6504
      %v6507 = vmul.u32.u64.compose %v6503, %v6498
      %v6508 = vextract.low.u32 %v6507
      %v6509 = vextract.high.u32 %v6507
      %v6510 = vmul.u32 %v6503, %v6494
      %v6511 = vadd.s32 %v6506, %v6508
      %vm6512 = vc.u32 %v6506, %v6508
      %v6513 = vadd.s32 %v6509, 1
      %v6514 = vsel %vm6512, %v6513, %v6509
      %v6515 = vadd.s32 %v6510, %v6514
      %v6516 = vadd.s32 %v6515, 536870912
      %v6517 = vshrl.u32 %v6516, 30
      %v6518 = vshll.u32 %v6517, 30
      %v6519 = vsub.s32 %v6515, %v6518
      %vm6520 = vcmp.lt.s32.totalorder %v6519, 0
      %v6521 = vsub.s32 0, %v6519
      %v6522 = vsel %vm6520, %v6521, %v6519
      %v6523 = vclz %v6522
      %v6524 = vsub.s32 %v6523, 2
      %vm6525 = vcmp.gt.s32.totalorder 0, %v6524
      %v6526 = vsel %vm6525, 0, %v6524
      %v6527 = vsub.s32 32, %v6526
      %v6528 = vshll.u32 %v6519, %v6526
      %v6529 = vshrl.u32 %v6511, %v6527
      %v6530 = vor.u32 %v6528, %v6529
      %v6531 = vsub.s32 4294967266, %v6526
      %v6532 = vadd.s32 %v6531, 127
      %v6533 = vshll.u32 %v6532, 23
      %v6534 = vor.u32 4788187, %v6533
      %v6535 = vand.u32 2147483647, %v6534
      %v6537 = vcvt.s32.f32 %v6530
      %v6538 = vmul.f32 %v6537, %v6535
      %v6539 = vxor.u32 %v6538, 2147483648
      %v6540 = vsel %vm6457, %v6539, %v6538
      %v6541 = vsub.s32 4, %v6517
      %v6542 = vsel %vm6457, %v6541, %v6517
      %v6543 = vsel %vm6456, %v417, %v6540
      %v6544 = vsel %vm6456, 0, %v6542
      %v6545 = vcosq.f32.pop %v6543
      %v6546 = vsinq.f32.pop %v6543
      %vm6547 = vweird.f32 %v417
      %v6548 = vadd.s32 %v6544, 3
      %v6549 = vand.u32 %v6548, 3
      %vm6550 = vcmp.lt.s32.totalorder %v6549, 2
      %vm6551 = vcmp.eq.s32.totalorder %v6549, 0
      %v6552 = vxor.u32 %v6546, 2147483648
      %v6553 = vsel %vm6551, %v6545, %v6552
      %vm6554 = vcmp.eq.s32.totalorder %v6549, 2
      %v6555 = vxor.u32 %v6545, 2147483648
      %v6556 = vsel %vm6554, %v6555, %v6546
      %v6557 = vsel %vm6550, %v6553, %v6556
      %v6558 = vsel %vm6547, nan, %v6557
      %v6559 = vand.u32 2147483647, %v418
      %vm6560 = vcmp.le.f32.partialorder %v6559, 0.7853982
      %vm6561 = vcmp.lt.s32.totalorder %v418, 0
      %v6562 = vand.u32 %v418, 2139095040
      %v6563 = vshrl.u32 %v6562, 23
      %v6564 = vsub.s32 %v6563, 127
      %v6565 = vand.u32 2147483647, %v418
      %v6566 = vand.u32 %v6565, 8388607
      %v6567 = vor.u32 %v6566, 8388608
      %v6568 = vsub.s32 0, %v6567
      %v6569 = vadd.s32 %v6564, 1
      %vm6570 = vcmp.gt.s32.totalorder %v6569, 0
      %v6571 = vsel %vm6570, %v6569, 0
      %v6572 = vshrl.u32 %v6571, 5
      %v6573 = vand.u32 %v6571, 31
      %v6574 = vsub.s32 32, %v6573
      %v6575 = vshrl.u32 683565275, %v6574
      %v6576 = vshll.u32 683565275, %v6573
      %v6577 = vshrl.u32 2475754826, %v6574
      %v6578 = vor.u32 %v6576, %v6577
      %v6579 = vshll.u32 2475754826, %v6573
      %v6580 = vshrl.u32 2131351028, %v6574
      %v6581 = vor.u32 %v6579, %v6580
      %v6582 = vshll.u32 2131351028, %v6573
      %v6583 = vshrl.u32 2102212464, %v6574
      %v6584 = vor.u32 %v6582, %v6583
      %v6585 = vshll.u32 2102212464, %v6573
      %v6586 = vshrl.u32 920167782, %v6574
      %v6587 = vor.u32 %v6585, %v6586
      %v6588 = vshll.u32 920167782, %v6573
      %v6589 = vshrl.u32 1326507024, %v6574
      %v6590 = vor.u32 %v6588, %v6589
      %vm6591 = vcmp.lt.s32.totalorder %v6572, 1
      %vm6592 = vcmp.lt.s32.totalorder %v6572, 2
      %vm6593 = vcmp.lt.s32.totalorder %v6572, 3
      %vm6594 = vcmp.lt.s32.totalorder %v6572, 4
      %v6595 = vsel %vm6591, %v6575, %v6578
      %v6596 = vsel %vm6594, %v6584, 2102212464
      %v6597 = vsel %vm6593, %v6581, %v6596
      %v6598 = vsel %vm6592, %v6595, %v6597
      %v6599 = vsel %vm6591, %v6578, %v6581
      %v6600 = vsel %vm6594, %v6587, 920167782
      %v6601 = vsel %vm6593, %v6584, %v6600
      %v6602 = vsel %vm6592, %v6599, %v6601
      %v6603 = vsel %vm6591, %v6581, %v6584
      %v6604 = vsel %vm6594, %v6590, 1326507024
      %v6605 = vsel %vm6593, %v6587, %v6604
      %v6606 = vsel %vm6592, %v6603, %v6605
      %v6607 = vshll.u32 %v6567, 8
      %v6608 = vmul.u32.u64.compose %v6607, %v6606
      %v6609 = vextract.low.u32 %v6608
      %v6610 = vextract.high.u32 %v6608
      %v6611 = vmul.u32.u64.compose %v6607, %v6602
      %v6612 = vextract.low.u32 %v6611
      %v6613 = vextract.high.u32 %v6611
      %v6614 = vmul.u32 %v6607, %v6598
      %v6615 = vadd.s32 %v6610, %v6612
      %vm6616 = vc.u32 %v6610, %v6612
      %v6617 = vadd.s32 %v6613, 1
      %v6618 = vsel %vm6616, %v6617, %v6613
      %v6619 = vadd.s32 %v6614, %v6618
      %v6620 = vadd.s32 %v6619, 536870912
      %v6621 = vshrl.u32 %v6620, 30
      %v6622 = vshll.u32 %v6621, 30
      %v6623 = vsub.s32 %v6619, %v6622
      %vm6624 = vcmp.lt.s32.totalorder %v6623, 0
      %v6625 = vsub.s32 0, %v6623
      %v6626 = vsel %vm6624, %v6625, %v6623
      %v6627 = vclz %v6626
      %v6628 = vsub.s32 %v6627, 2
      %vm6629 = vcmp.gt.s32.totalorder 0, %v6628
      %v6630 = vsel %vm6629, 0, %v6628
      %v6631 = vsub.s32 32, %v6630
      %v6632 = vshll.u32 %v6623, %v6630
      %v6633 = vshrl.u32 %v6615, %v6631
      %v6634 = vor.u32 %v6632, %v6633
      %v6635 = vsub.s32 4294967266, %v6630
      %v6636 = vadd.s32 %v6635, 127
      %v6637 = vshll.u32 %v6636, 23
      %v6638 = vor.u32 4788187, %v6637
      %v6639 = vand.u32 2147483647, %v6638
      %v6641 = vcvt.s32.f32 %v6634
      %v6642 = vmul.f32 %v6641, %v6639
      %v6643 = vxor.u32 %v6642, 2147483648
      %v6644 = vsel %vm6561, %v6643, %v6642
      %v6645 = vsub.s32 4, %v6621
      %v6646 = vsel %vm6561, %v6645, %v6621
      %v6647 = vsel %vm6560, %v418, %v6644
      %v6648 = vsel %vm6560, 0, %v6646
      %v6649 = vcosq.f32.pop %v6647
      %v6650 = vsinq.f32.pop %v6647
      %vm6651 = vweird.f32 %v418
      %v6652 = vadd.s32 %v6648, 3
      %v6653 = vand.u32 %v6652, 3
      %vm6654 = vcmp.lt.s32.totalorder %v6653, 2
      %vm6655 = vcmp.eq.s32.totalorder %v6653, 0
      %v6656 = vxor.u32 %v6650, 2147483648
      %v6657 = vsel %vm6655, %v6649, %v6656
      %vm6658 = vcmp.eq.s32.totalorder %v6653, 2
      %v6659 = vxor.u32 %v6649, 2147483648
      %v6660 = vsel %vm6658, %v6659, %v6650
      %v6661 = vsel %vm6654, %v6657, %v6660
      %v6662 = vsel %vm6651, nan, %v6661
      %v6663 = vand.u32 2147483647, %v419
      %vm6664 = vcmp.le.f32.partialorder %v6663, 0.7853982
      %vm6665 = vcmp.lt.s32.totalorder %v419, 0
      %v6666 = vand.u32 %v419, 2139095040
      %v6667 = vshrl.u32 %v6666, 23
      %v6668 = vsub.s32 %v6667, 127
      %v6669 = vand.u32 2147483647, %v419
      %v6670 = vand.u32 %v6669, 8388607
      %v6671 = vor.u32 %v6670, 8388608
      %v6672 = vsub.s32 0, %v6671
      %v6673 = vadd.s32 %v6668, 1
      %vm6674 = vcmp.gt.s32.totalorder %v6673, 0
      %v6675 = vsel %vm6674, %v6673, 0
      %v6676 = vshrl.u32 %v6675, 5
      %v6677 = vand.u32 %v6675, 31
      %v6678 = vsub.s32 32, %v6677
      %v6679 = vshrl.u32 683565275, %v6678
      %v6680 = vshll.u32 683565275, %v6677
      %v6681 = vshrl.u32 2475754826, %v6678
      %v6682 = vor.u32 %v6680, %v6681
      %v6683 = vshll.u32 2475754826, %v6677
      %v6684 = vshrl.u32 2131351028, %v6678
      %v6685 = vor.u32 %v6683, %v6684
      %v6686 = vshll.u32 2131351028, %v6677
      %v6687 = vshrl.u32 2102212464, %v6678
      %v6688 = vor.u32 %v6686, %v6687
      %v6689 = vshll.u32 2102212464, %v6677
      %v6690 = vshrl.u32 920167782, %v6678
      %v6691 = vor.u32 %v6689, %v6690
      %v6692 = vshll.u32 920167782, %v6677
      %v6693 = vshrl.u32 1326507024, %v6678
      %v6694 = vor.u32 %v6692, %v6693
      %vm6695 = vcmp.lt.s32.totalorder %v6676, 1
      %vm6696 = vcmp.lt.s32.totalorder %v6676, 2
      %vm6697 = vcmp.lt.s32.totalorder %v6676, 3
      %vm6698 = vcmp.lt.s32.totalorder %v6676, 4
      %v6699 = vsel %vm6695, %v6679, %v6682
      %v6700 = vsel %vm6698, %v6688, 2102212464
      %v6701 = vsel %vm6697, %v6685, %v6700
      %v6702 = vsel %vm6696, %v6699, %v6701
      %v6703 = vsel %vm6695, %v6682, %v6685
      %v6704 = vsel %vm6698, %v6691, 920167782
      %v6705 = vsel %vm6697, %v6688, %v6704
      %v6706 = vsel %vm6696, %v6703, %v6705
      %v6707 = vsel %vm6695, %v6685, %v6688
      %v6708 = vsel %vm6698, %v6694, 1326507024
      %v6709 = vsel %vm6697, %v6691, %v6708
      %v6710 = vsel %vm6696, %v6707, %v6709
      %v6711 = vshll.u32 %v6671, 8
      %v6712 = vmul.u32.u64.compose %v6711, %v6710
      %v6713 = vextract.low.u32 %v6712
      %v6714 = vextract.high.u32 %v6712
      %v6715 = vmul.u32.u64.compose %v6711, %v6706
      %v6716 = vextract.low.u32 %v6715
      %v6717 = vextract.high.u32 %v6715
      %v6718 = vmul.u32 %v6711, %v6702
      %v6719 = vadd.s32 %v6714, %v6716
      %vm6720 = vc.u32 %v6714, %v6716
      %v6721 = vadd.s32 %v6717, 1
      %v6722 = vsel %vm6720, %v6721, %v6717
      %v6723 = vadd.s32 %v6718, %v6722
      %v6724 = vadd.s32 %v6723, 536870912
      %v6725 = vshrl.u32 %v6724, 30
      %v6726 = vshll.u32 %v6725, 30
      %v6727 = vsub.s32 %v6723, %v6726
      %vm6728 = vcmp.lt.s32.totalorder %v6727, 0
      %v6729 = vsub.s32 0, %v6727
      %v6730 = vsel %vm6728, %v6729, %v6727
      %v6731 = vclz %v6730
      %v6732 = vsub.s32 %v6731, 2
      %vm6733 = vcmp.gt.s32.totalorder 0, %v6732
      %v6734 = vsel %vm6733, 0, %v6732
      %v6735 = vsub.s32 32, %v6734
      %v6736 = vshll.u32 %v6727, %v6734
      %v6737 = vshrl.u32 %v6719, %v6735
      %v6738 = vor.u32 %v6736, %v6737
      %v6739 = vsub.s32 4294967266, %v6734
      %v6740 = vadd.s32 %v6739, 127
      %v6741 = vshll.u32 %v6740, 23
      %v6742 = vor.u32 4788187, %v6741
      %v6743 = vand.u32 2147483647, %v6742
      %v6745 = vcvt.s32.f32 %v6738
      %v6746 = vmul.f32 %v6745, %v6743
      %v6747 = vxor.u32 %v6746, 2147483648
      %v6748 = vsel %vm6665, %v6747, %v6746
      %v6749 = vsub.s32 4, %v6725
      %v6750 = vsel %vm6665, %v6749, %v6725
      %v6751 = vsel %vm6664, %v419, %v6748
      %v6752 = vsel %vm6664, 0, %v6750
      %v6753 = vcosq.f32.pop %v6751
      %v6754 = vsinq.f32.pop %v6751
      %vm6755 = vweird.f32 %v419
      %v6756 = vadd.s32 %v6752, 3
      %v6757 = vand.u32 %v6756, 3
      %vm6758 = vcmp.lt.s32.totalorder %v6757, 2
      %vm6759 = vcmp.eq.s32.totalorder %v6757, 0
      %v6760 = vxor.u32 %v6754, 2147483648
      %v6761 = vsel %vm6759, %v6753, %v6760
      %vm6762 = vcmp.eq.s32.totalorder %v6757, 2
      %v6763 = vxor.u32 %v6753, 2147483648
      %v6764 = vsel %vm6762, %v6763, %v6754
      %v6765 = vsel %vm6758, %v6761, %v6764
      %v6766 = vsel %vm6755, nan, %v6765
      %v6767 = vand.u32 2147483647, %v420
      %vm6768 = vcmp.le.f32.partialorder %v6767, 0.7853982
      %vm6769 = vcmp.lt.s32.totalorder %v420, 0
      %v6770 = vand.u32 %v420, 2139095040
      %v6771 = vshrl.u32 %v6770, 23
      %v6772 = vsub.s32 %v6771, 127
      %v6773 = vand.u32 2147483647, %v420
      %v6774 = vand.u32 %v6773, 8388607
      %v6775 = vor.u32 %v6774, 8388608
      %v6776 = vsub.s32 0, %v6775
      %v6777 = vadd.s32 %v6772, 1
      %vm6778 = vcmp.gt.s32.totalorder %v6777, 0
      %v6779 = vsel %vm6778, %v6777, 0
      %v6780 = vshrl.u32 %v6779, 5
      %v6781 = vand.u32 %v6779, 31
      %v6782 = vsub.s32 32, %v6781
      %v6783 = vshrl.u32 683565275, %v6782
      %v6784 = vshll.u32 683565275, %v6781
      %v6785 = vshrl.u32 2475754826, %v6782
      %v6786 = vor.u32 %v6784, %v6785
      %v6787 = vshll.u32 2475754826, %v6781
      %v6788 = vshrl.u32 2131351028, %v6782
      %v6789 = vor.u32 %v6787, %v6788
      %v6790 = vshll.u32 2131351028, %v6781
      %v6791 = vshrl.u32 2102212464, %v6782
      %v6792 = vor.u32 %v6790, %v6791
      %v6793 = vshll.u32 2102212464, %v6781
      %v6794 = vshrl.u32 920167782, %v6782
      %v6795 = vor.u32 %v6793, %v6794
      %v6796 = vshll.u32 920167782, %v6781
      %v6797 = vshrl.u32 1326507024, %v6782
      %v6798 = vor.u32 %v6796, %v6797
      %vm6799 = vcmp.lt.s32.totalorder %v6780, 1
      %vm6800 = vcmp.lt.s32.totalorder %v6780, 2
      %vm6801 = vcmp.lt.s32.totalorder %v6780, 3
      %vm6802 = vcmp.lt.s32.totalorder %v6780, 4
      %v6803 = vsel %vm6799, %v6783, %v6786
      %v6804 = vsel %vm6802, %v6792, 2102212464
      %v6805 = vsel %vm6801, %v6789, %v6804
      %v6806 = vsel %vm6800, %v6803, %v6805
      %v6807 = vsel %vm6799, %v6786, %v6789
      %v6808 = vsel %vm6802, %v6795, 920167782
      %v6809 = vsel %vm6801, %v6792, %v6808
      %v6810 = vsel %vm6800, %v6807, %v6809
      %v6811 = vsel %vm6799, %v6789, %v6792
      %v6812 = vsel %vm6802, %v6798, 1326507024
      %v6813 = vsel %vm6801, %v6795, %v6812
      %v6814 = vsel %vm6800, %v6811, %v6813
      %v6815 = vshll.u32 %v6775, 8
      %v6816 = vmul.u32.u64.compose %v6815, %v6814
      %v6817 = vextract.low.u32 %v6816
      %v6818 = vextract.high.u32 %v6816
      %v6819 = vmul.u32.u64.compose %v6815, %v6810
      %v6820 = vextract.low.u32 %v6819
      %v6821 = vextract.high.u32 %v6819
      %v6822 = vmul.u32 %v6815, %v6806
      %v6823 = vadd.s32 %v6818, %v6820
      %vm6824 = vc.u32 %v6818, %v6820
      %v6825 = vadd.s32 %v6821, 1
      %v6826 = vsel %vm6824, %v6825, %v6821
      %v6827 = vadd.s32 %v6822, %v6826
      %v6828 = vadd.s32 %v6827, 536870912
      %v6829 = vshrl.u32 %v6828, 30
      %v6830 = vshll.u32 %v6829, 30
      %v6831 = vsub.s32 %v6827, %v6830
      %vm6832 = vcmp.lt.s32.totalorder %v6831, 0
      %v6833 = vsub.s32 0, %v6831
      %v6834 = vsel %vm6832, %v6833, %v6831
      %v6835 = vclz %v6834
      %v6836 = vsub.s32 %v6835, 2
      %vm6837 = vcmp.gt.s32.totalorder 0, %v6836
      %v6838 = vsel %vm6837, 0, %v6836
      %v6839 = vsub.s32 32, %v6838
      %v6840 = vshll.u32 %v6831, %v6838
      %v6841 = vshrl.u32 %v6823, %v6839
      %v6842 = vor.u32 %v6840, %v6841
      %v6843 = vsub.s32 4294967266, %v6838
      %v6844 = vadd.s32 %v6843, 127
      %v6845 = vshll.u32 %v6844, 23
      %v6846 = vor.u32 4788187, %v6845
      %v6847 = vand.u32 2147483647, %v6846
      %v6849 = vcvt.s32.f32 %v6842
      %v6850 = vmul.f32 %v6849, %v6847
      %v6851 = vxor.u32 %v6850, 2147483648
      %v6852 = vsel %vm6769, %v6851, %v6850
      %v6853 = vsub.s32 4, %v6829
      %v6854 = vsel %vm6769, %v6853, %v6829
      %v6855 = vsel %vm6768, %v420, %v6852
      %v6856 = vsel %vm6768, 0, %v6854
      %v6857 = vcosq.f32.pop %v6855
      %v6858 = vsinq.f32.pop %v6855
      %vm6859 = vweird.f32 %v420
      %v6860 = vadd.s32 %v6856, 3
      %v6861 = vand.u32 %v6860, 3
      %vm6862 = vcmp.lt.s32.totalorder %v6861, 2
      %vm6863 = vcmp.eq.s32.totalorder %v6861, 0
      %v6864 = vxor.u32 %v6858, 2147483648
      %v6865 = vsel %vm6863, %v6857, %v6864
      %vm6866 = vcmp.eq.s32.totalorder %v6861, 2
      %v6867 = vxor.u32 %v6857, 2147483648
      %v6868 = vsel %vm6866, %v6867, %v6858
      %v6869 = vsel %vm6862, %v6865, %v6868
      %v6870 = vsel %vm6859, nan, %v6869
      %v6871 = vand.u32 2147483647, %v421
      %vm6872 = vcmp.le.f32.partialorder %v6871, 0.7853982
      %vm6873 = vcmp.lt.s32.totalorder %v421, 0
      %v6874 = vand.u32 %v421, 2139095040
      %v6875 = vshrl.u32 %v6874, 23
      %v6876 = vsub.s32 %v6875, 127
      %v6877 = vand.u32 2147483647, %v421
      %v6878 = vand.u32 %v6877, 8388607
      %v6879 = vor.u32 %v6878, 8388608
      %v6880 = vsub.s32 0, %v6879
      %v6881 = vadd.s32 %v6876, 1
      %vm6882 = vcmp.gt.s32.totalorder %v6881, 0
      %v6883 = vsel %vm6882, %v6881, 0
      %v6884 = vshrl.u32 %v6883, 5
      %v6885 = vand.u32 %v6883, 31
      %v6886 = vsub.s32 32, %v6885
      %v6887 = vshrl.u32 683565275, %v6886
      %v6888 = vshll.u32 683565275, %v6885
      %v6889 = vshrl.u32 2475754826, %v6886
      %v6890 = vor.u32 %v6888, %v6889
      %v6891 = vshll.u32 2475754826, %v6885
      %v6892 = vshrl.u32 2131351028, %v6886
      %v6893 = vor.u32 %v6891, %v6892
      %v6894 = vshll.u32 2131351028, %v6885
      %v6895 = vshrl.u32 2102212464, %v6886
      %v6896 = vor.u32 %v6894, %v6895
      %v6897 = vshll.u32 2102212464, %v6885
      %v6898 = vshrl.u32 920167782, %v6886
      %v6899 = vor.u32 %v6897, %v6898
      %v6900 = vshll.u32 920167782, %v6885
      %v6901 = vshrl.u32 1326507024, %v6886
      %v6902 = vor.u32 %v6900, %v6901
      %vm6903 = vcmp.lt.s32.totalorder %v6884, 1
      %vm6904 = vcmp.lt.s32.totalorder %v6884, 2
      %vm6905 = vcmp.lt.s32.totalorder %v6884, 3
      %vm6906 = vcmp.lt.s32.totalorder %v6884, 4
      %v6907 = vsel %vm6903, %v6887, %v6890
      %v6908 = vsel %vm6906, %v6896, 2102212464
      %v6909 = vsel %vm6905, %v6893, %v6908
      %v6910 = vsel %vm6904, %v6907, %v6909
      %v6911 = vsel %vm6903, %v6890, %v6893
      %v6912 = vsel %vm6906, %v6899, 920167782
      %v6913 = vsel %vm6905, %v6896, %v6912
      %v6914 = vsel %vm6904, %v6911, %v6913
      %v6915 = vsel %vm6903, %v6893, %v6896
      %v6916 = vsel %vm6906, %v6902, 1326507024
      %v6917 = vsel %vm6905, %v6899, %v6916
      %v6918 = vsel %vm6904, %v6915, %v6917
      %v6919 = vshll.u32 %v6879, 8
      %v6920 = vmul.u32.u64.compose %v6919, %v6918
      %v6921 = vextract.low.u32 %v6920
      %v6922 = vextract.high.u32 %v6920
      %v6923 = vmul.u32.u64.compose %v6919, %v6914
      %v6924 = vextract.low.u32 %v6923
      %v6925 = vextract.high.u32 %v6923
      %v6926 = vmul.u32 %v6919, %v6910
      %v6927 = vadd.s32 %v6922, %v6924
      %vm6928 = vc.u32 %v6922, %v6924
      %v6929 = vadd.s32 %v6925, 1
      %v6930 = vsel %vm6928, %v6929, %v6925
      %v6931 = vadd.s32 %v6926, %v6930
      %v6932 = vadd.s32 %v6931, 536870912
      %v6933 = vshrl.u32 %v6932, 30
      %v6934 = vshll.u32 %v6933, 30
      %v6935 = vsub.s32 %v6931, %v6934
      %vm6936 = vcmp.lt.s32.totalorder %v6935, 0
      %v6937 = vsub.s32 0, %v6935
      %v6938 = vsel %vm6936, %v6937, %v6935
      %v6939 = vclz %v6938
      %v6940 = vsub.s32 %v6939, 2
      %vm6941 = vcmp.gt.s32.totalorder 0, %v6940
      %v6942 = vsel %vm6941, 0, %v6940
      %v6943 = vsub.s32 32, %v6942
      %v6944 = vshll.u32 %v6935, %v6942
      %v6945 = vshrl.u32 %v6927, %v6943
      %v6946 = vor.u32 %v6944, %v6945
      %v6947 = vsub.s32 4294967266, %v6942
      %v6948 = vadd.s32 %v6947, 127
      %v6949 = vshll.u32 %v6948, 23
      %v6950 = vor.u32 4788187, %v6949
      %v6951 = vand.u32 2147483647, %v6950
      %v6953 = vcvt.s32.f32 %v6946
      %v6954 = vmul.f32 %v6953, %v6951
      %v6955 = vxor.u32 %v6954, 2147483648
      %v6956 = vsel %vm6873, %v6955, %v6954
      %v6957 = vsub.s32 4, %v6933
      %v6958 = vsel %vm6873, %v6957, %v6933
      %v6959 = vsel %vm6872, %v421, %v6956
      %v6960 = vsel %vm6872, 0, %v6958
      %v6961 = vcosq.f32.pop %v6959
      %v6962 = vsinq.f32.pop %v6959
      %vm6963 = vweird.f32 %v421
      %v6964 = vadd.s32 %v6960, 3
      %v6965 = vand.u32 %v6964, 3
      %vm6966 = vcmp.lt.s32.totalorder %v6965, 2
      %vm6967 = vcmp.eq.s32.totalorder %v6965, 0
      %v6968 = vxor.u32 %v6962, 2147483648
      %v6969 = vsel %vm6967, %v6961, %v6968
      %vm6970 = vcmp.eq.s32.totalorder %v6965, 2
      %v6971 = vxor.u32 %v6961, 2147483648
      %v6972 = vsel %vm6970, %v6971, %v6962
      %v6973 = vsel %vm6966, %v6969, %v6972
      %v6974 = vsel %vm6963, nan, %v6973
      %v6975 = vand.u32 2147483647, %v422
      %vm6976 = vcmp.le.f32.partialorder %v6975, 0.7853982
      %vm6977 = vcmp.lt.s32.totalorder %v422, 0
      %v6978 = vand.u32 %v422, 2139095040
      %v6979 = vshrl.u32 %v6978, 23
      %v6980 = vsub.s32 %v6979, 127
      %v6981 = vand.u32 2147483647, %v422
      %v6982 = vand.u32 %v6981, 8388607
      %v6983 = vor.u32 %v6982, 8388608
      %v6984 = vsub.s32 0, %v6983
      %v6985 = vadd.s32 %v6980, 1
      %vm6986 = vcmp.gt.s32.totalorder %v6985, 0
      %v6987 = vsel %vm6986, %v6985, 0
      %v6988 = vshrl.u32 %v6987, 5
      %v6989 = vand.u32 %v6987, 31
      %v6990 = vsub.s32 32, %v6989
      %v6991 = vshrl.u32 683565275, %v6990
      %v6992 = vshll.u32 683565275, %v6989
      %v6993 = vshrl.u32 2475754826, %v6990
      %v6994 = vor.u32 %v6992, %v6993
      %v6995 = vshll.u32 2475754826, %v6989
      %v6996 = vshrl.u32 2131351028, %v6990
      %v6997 = vor.u32 %v6995, %v6996
      %v6998 = vshll.u32 2131351028, %v6989
      %v6999 = vshrl.u32 2102212464, %v6990
      %v7000 = vor.u32 %v6998, %v6999
      %v7001 = vshll.u32 2102212464, %v6989
      %v7002 = vshrl.u32 920167782, %v6990
      %v7003 = vor.u32 %v7001, %v7002
      %v7004 = vshll.u32 920167782, %v6989
      %v7005 = vshrl.u32 1326507024, %v6990
      %v7006 = vor.u32 %v7004, %v7005
      %vm7007 = vcmp.lt.s32.totalorder %v6988, 1
      %vm7008 = vcmp.lt.s32.totalorder %v6988, 2
      %vm7009 = vcmp.lt.s32.totalorder %v6988, 3
      %vm7010 = vcmp.lt.s32.totalorder %v6988, 4
      %v7011 = vsel %vm7007, %v6991, %v6994
      %v7012 = vsel %vm7010, %v7000, 2102212464
      %v7013 = vsel %vm7009, %v6997, %v7012
      %v7014 = vsel %vm7008, %v7011, %v7013
      %v7015 = vsel %vm7007, %v6994, %v6997
      %v7016 = vsel %vm7010, %v7003, 920167782
      %v7017 = vsel %vm7009, %v7000, %v7016
      %v7018 = vsel %vm7008, %v7015, %v7017
      %v7019 = vsel %vm7007, %v6997, %v7000
      %v7020 = vsel %vm7010, %v7006, 1326507024
      %v7021 = vsel %vm7009, %v7003, %v7020
      %v7022 = vsel %vm7008, %v7019, %v7021
      %v7023 = vshll.u32 %v6983, 8
      %v7024 = vmul.u32.u64.compose %v7023, %v7022
      %v7025 = vextract.low.u32 %v7024
      %v7026 = vextract.high.u32 %v7024
      %v7027 = vmul.u32.u64.compose %v7023, %v7018
      %v7028 = vextract.low.u32 %v7027
      %v7029 = vextract.high.u32 %v7027
      %v7030 = vmul.u32 %v7023, %v7014
      %v7031 = vadd.s32 %v7026, %v7028
      %vm7032 = vc.u32 %v7026, %v7028
      %v7033 = vadd.s32 %v7029, 1
      %v7034 = vsel %vm7032, %v7033, %v7029
      %v7035 = vadd.s32 %v7030, %v7034
      %v7036 = vadd.s32 %v7035, 536870912
      %v7037 = vshrl.u32 %v7036, 30
      %v7038 = vshll.u32 %v7037, 30
      %v7039 = vsub.s32 %v7035, %v7038
      %vm7040 = vcmp.lt.s32.totalorder %v7039, 0
      %v7041 = vsub.s32 0, %v7039
      %v7042 = vsel %vm7040, %v7041, %v7039
      %v7043 = vclz %v7042
      %v7044 = vsub.s32 %v7043, 2
      %vm7045 = vcmp.gt.s32.totalorder 0, %v7044
      %v7046 = vsel %vm7045, 0, %v7044
      %v7047 = vsub.s32 32, %v7046
      %v7048 = vshll.u32 %v7039, %v7046
      %v7049 = vshrl.u32 %v7031, %v7047
      %v7050 = vor.u32 %v7048, %v7049
      %v7051 = vsub.s32 4294967266, %v7046
      %v7052 = vadd.s32 %v7051, 127
      %v7053 = vshll.u32 %v7052, 23
      %v7054 = vor.u32 4788187, %v7053
      %v7055 = vand.u32 2147483647, %v7054
      %v7057 = vcvt.s32.f32 %v7050
      %v7058 = vmul.f32 %v7057, %v7055
      %v7059 = vxor.u32 %v7058, 2147483648
      %v7060 = vsel %vm6977, %v7059, %v7058
      %v7061 = vsub.s32 4, %v7037
      %v7062 = vsel %vm6977, %v7061, %v7037
      %v7063 = vsel %vm6976, %v422, %v7060
      %v7064 = vsel %vm6976, 0, %v7062
      %v7065 = vcosq.f32.pop %v7063
      %v7066 = vsinq.f32.pop %v7063
      %vm7067 = vweird.f32 %v422
      %v7068 = vadd.s32 %v7064, 3
      %v7069 = vand.u32 %v7068, 3
      %vm7070 = vcmp.lt.s32.totalorder %v7069, 2
      %vm7071 = vcmp.eq.s32.totalorder %v7069, 0
      %v7072 = vxor.u32 %v7066, 2147483648
      %v7073 = vsel %vm7071, %v7065, %v7072
      %vm7074 = vcmp.eq.s32.totalorder %v7069, 2
      %v7075 = vxor.u32 %v7065, 2147483648
      %v7076 = vsel %vm7074, %v7075, %v7066
      %v7077 = vsel %vm7070, %v7073, %v7076
      %v7078 = vsel %vm7067, nan, %v7077
      %v7079 = vpack.c.bf16 %v630, %v526
      %v7080 = vpack.c.bf16 %v838, %v734
      %v7081 = vpack.c.bf16 %v1046, %v942
      %v7082 = vpack.c.bf16 %v1254, %v1150
      %v7083 = vpack.c.bf16 %v1462, %v1358
      %v7084 = vpack.c.bf16 %v1670, %v1566
      %v7085 = vpack.c.bf16 %v1878, %v1774
      %v7086 = vpack.c.bf16 %v2086, %v1982
      %v7087 = vpack.c.bf16 %v2294, %v2190
      %v7088 = vpack.c.bf16 %v2502, %v2398
      %v7089 = vpack.c.bf16 %v2710, %v2606
      %v7090 = vpack.c.bf16 %v2918, %v2814
      %v7091 = vpack.c.bf16 %v3126, %v3022
      %v7092 = vpack.c.bf16 %v3334, %v3230
      %v7093 = vpack.c.bf16 %v3542, %v3438
      %v7094 = vpack.c.bf16 %v3750, %v3646
      %v7095 = vpack.c.bf16 %v3958, %v3854
      %v7096 = vpack.c.bf16 %v4166, %v4062
      %v7097 = vpack.c.bf16 %v4374, %v4270
      %v7098 = vpack.c.bf16 %v4582, %v4478
      %v7099 = vpack.c.bf16 %v4790, %v4686
      %v7100 = vpack.c.bf16 %v4998, %v4894
      %v7101 = vpack.c.bf16 %v5206, %v5102
      %v7102 = vpack.c.bf16 %v5414, %v5310
      %v7103 = vpack.c.bf16 %v5622, %v5518
      %v7104 = vpack.c.bf16 %v5830, %v5726
      %v7105 = vpack.c.bf16 %v6038, %v5934
      %v7106 = vpack.c.bf16 %v6246, %v6142
      %v7107 = vpack.c.bf16 %v6454, %v6350
      %v7108 = vpack.c.bf16 %v6662, %v6558
      %v7109 = vpack.c.bf16 %v6870, %v6766
      %v7110 = vpack.c.bf16 %v7078, %v6974
      %v7111 = vld [vmem:[%s2] sm:$0xf]
      %v7112 = vld [vmem:[%s2 + $0x4] sm:$0x7]
      %v7113 = vld [vmem:[%s3] sm:$0x1]
      %v7115 = vlaneseq
      %v7116 = vshrl.u32 %v7115, 7
      %v7117 = vsub.s32 0, %v7116
      %v7118 = vrot.slane %v7113, %v7117
      %v7122 = vunpack.c.l.b16 %v7111
      %v7123 = vunpack.c.l.b16 %v7112
      %v7124 = vpack.c.b16 %v7123, %v7122
      %vm7125 = vcmask 105472
      %v7127 = vsel %vm7125, %v7079, 0
      %v7130 = vsel %vm7125, %v7080, 0
      %v7133 = vsel %vm7125, %v7081, 0
      %v7136 = vsel %vm7125, %v7082, 0
      %v7139 = vsel %vm7125, %v7083, 0
      %v7142 = vsel %vm7125, %v7084, 0
      %v7145 = vsel %vm7125, %v7085, 0
      %v7148 = vsel %vm7125, %v7086, 0
      %v7151 = vsel %vm7125, %v7087, 0
      %v7154 = vsel %vm7125, %v7088, 0
      %v7157 = vsel %vm7125, %v7089, 0
      %v7160 = vsel %vm7125, %v7090, 0
      %v7163 = vsel %vm7125, %v7091, 0
      %v7166 = vsel %vm7125, %v7092, 0
      %v7169 = vsel %vm7125, %v7093, 0
      %v7172 = vsel %vm7125, %v7094, 0
      %v7175 = vsel %vm7125, %v7095, 0
      %v7178 = vsel %vm7125, %v7096, 0
      %v7181 = vsel %vm7125, %v7097, 0
      %v7184 = vsel %vm7125, %v7098, 0
      %v7187 = vsel %vm7125, %v7099, 0
      %v7190 = vsel %vm7125, %v7100, 0
      %v7193 = vsel %vm7125, %v7101, 0
      %v7196 = vsel %vm7125, %v7102, 0
      %v7199 = vsel %vm7125, %v7103, 0
      %v7202 = vsel %vm7125, %v7104, 0
      %v7205 = vsel %vm7125, %v7105, 0
      %v7208 = vsel %vm7125, %v7106, 0
      %v7211 = vsel %vm7125, %v7107, 0
      %v7214 = vsel %vm7125, %v7108, 0
      %v7217 = vsel %vm7125, %v7109, 0
      %v7220 = vsel %vm7125, %v7110, 0
      %vm7222 = vcmask 1045504
      %vm7223 = vcmask 1046528
      %v7224 = vsel %vm7222, 4294967295, 65535
      %v7225 = vsel %vm7223, %v7224, 0
      %v7227 = vand.u32 %v7124, %v7225
      %7229 = vmatprep.subr.bf16.mxu0 0
      %7230 = vmatpush1.bf16.msra.mxu0 %v7227
      %7231 = vmatprep.subr.bf16.mxu0 0
      %7232 = vmatpush1.bf16.msra.mxu0 0
      %7233 = vmatprep.subr.bf16.mxu0 0
      %7234 = vmatpush1.bf16.msra.mxu0 0
      %7235 = vmatprep.subr.bf16.mxu0 0
      %7236 = vmatpush1.bf16.msra.mxu0 0
      %7237 = vmatprep.subr.bf16.mxu0 0
      %7238 = vmatpush1.bf16.msra.mxu0 0
      %7239 = vmatprep.subr.bf16.mxu0 0
      %7240 = vmatpush1.bf16.msra.mxu0 0
      %7241 = vmatprep.subr.bf16.mxu0 0
      %7242 = vmatpush1.bf16.msra.mxu0 0
      %7243 = vmatprep.subr.bf16.mxu0 0
      %7244 = vmatpush1.bf16.msra.mxu0 0
      %7245 = vmatprep.subr.bf16.mxu0 0
      %7246 = vmatpush1.bf16.msra.mxu0 0
      %7247 = vmatprep.subr.bf16.mxu0 0
      %7248 = vmatpush1.bf16.msra.mxu0 0
      %7249 = vmatprep.subr.bf16.mxu0 0
      %7250 = vmatpush1.bf16.msra.mxu0 0
      %7251 = vmatprep.subr.bf16.mxu0 0
      %7252 = vmatpush1.bf16.msra.mxu0 0
      %7253 = vmatprep.subr.bf16.mxu0 0
      %7254 = vmatpush1.bf16.msra.mxu0 0
      %7255 = vmatprep.subr.bf16.mxu0 0
      %7256 = vmatpush1.bf16.msra.mxu0 0
      %7257 = vmatprep.subr.bf16.mxu0 0
      %7258 = vmatpush1.bf16.msra.mxu0 0
      %7259 = vmatprep.subr.bf16.mxu0 0
      %7260 = vmatpush1.bf16.msra.mxu0 0
      %7261 = vmatprep.mubr.bf16.mxu0 0
      %7262 = vmatmul.mubr.bf16.gmra.mrb[0].mxu0 %v7127
      %v7263 = vpop.f32.mrb[0].mxu0
      %v7264 = vadd.f32 %v7118, %v7263
      %v7265 = vpop.f32.mrb[0].mxu0
      %v7266 = vpop.f32.mrb[0].mxu0
      %v7267 = vadd.f32 %v7118, %v7266
      %v7268 = vpop.f32.mrb[0].mxu0
      %7269 = vmatprep.mubr.bf16.mxu0 0
      %7270 = vmatmul.mubr.bf16.gmra.mrb[0].mxu0 %v7130
      %v7271 = vpop.f32.mrb[0].mxu0
      %v7272 = vadd.f32 %v7118, %v7271
      %v7273 = vpop.f32.mrb[0].mxu0
      %v7274 = vpop.f32.mrb[0].mxu0
      %v7275 = vadd.f32 %v7118, %v7274
      %v7276 = vpop.f32.mrb[0].mxu0
      %7277 = vmatprep.mubr.bf16.mxu0 0
      %7278 = vmatmul.mubr.bf16.gmra.mrb[0].mxu0 %v7133
      %v7279 = vpop.f32.mrb[0].mxu0
      %v7280 = vadd.f32 %v7118, %v7279
      %v7281 = vpop.f32.mrb[0].mxu0
      %v7282 = vpop.f32.mrb[0].mxu0
      %v7283 = vadd.f32 %v7118, %v7282
      %v7284 = vpop.f32.mrb[0].mxu0
      %7285 = vmatprep.mubr.bf16.mxu0 0
      %7286 = vmatmul.mubr.bf16.gmra.mrb[0].mxu0 %v7136
      %v7287 = vpop.f32.mrb[0].mxu0
      %v7288 = vadd.f32 %v7118, %v7287
      %v7289 = vpop.f32.mrb[0].mxu0
      %v7290 = vpop.f32.mrb[0].mxu0
      %v7291 = vadd.f32 %v7118, %v7290
      %v7292 = vpop.f32.mrb[0].mxu0
      %7293 = vmatprep.mubr.bf16.mxu0 0
      %7294 = vmatmul.mubr.bf16.gmra.mrb[0].mxu0 %v7139
      %v7295 = vpop.f32.mrb[0].mxu0
      %v7296 = vadd.f32 %v7118, %v7295
      %v7297 = vpop.f32.mrb[0].mxu0
      %v7298 = vpop.f32.mrb[0].mxu0
      %v7299 = vadd.f32 %v7118, %v7298
      %v7300 = vpop.f32.mrb[0].mxu0
      %7301 = vmatprep.mubr.bf16.mxu0 0
      %7302 = vmatmul.mubr.bf16.gmra.mrb[0].mxu0 %v7142
      %v7303 = vpop.f32.mrb[0].mxu0
      %v7304 = vadd.f32 %v7118, %v7303
      %v7305 = vpop.f32.mrb[0].mxu0
      %v7306 = vpop.f32.mrb[0].mxu0
      %v7307 = vadd.f32 %v7118, %v7306
      %v7308 = vpop.f32.mrb[0].mxu0
      %7309 = vmatprep.mubr.bf16.mxu0 0
      %7310 = vmatmul.mubr.bf16.gmra.mrb[0].mxu0 %v7145
      %v7311 = vpop.f32.mrb[0].mxu0
      %v7312 = vadd.f32 %v7118, %v7311
      %v7313 = vpop.f32.mrb[0].mxu0
      %v7314 = vpop.f32.mrb[0].mxu0
      %v7315 = vadd.f32 %v7118, %v7314
      %v7316 = vpop.f32.mrb[0].mxu0
      %7317 = vmatprep.mubr.bf16.mxu0 0
      %7318 = vmatmul.mubr.bf16.gmra.mrb[0].mxu0 %v7148
      %v7319 = vpop.f32.mrb[0].mxu0
      %v7320 = vadd.f32 %v7118, %v7319
      %v7321 = vpop.f32.mrb[0].mxu0
      %v7322 = vpop.f32.mrb[0].mxu0
      %v7323 = vadd.f32 %v7118, %v7322
      %v7324 = vpop.f32.mrb[0].mxu0
      %7325 = vmatprep.mubr.bf16.mxu0 0
      %7326 = vmatmul.mubr.bf16.gmra.mrb[0].mxu0 %v7151
      %v7327 = vpop.f32.mrb[0].mxu0
      %v7328 = vadd.f32 %v7118, %v7327
      %v7329 = vpop.f32.mrb[0].mxu0
      %v7330 = vpop.f32.mrb[0].mxu0
      %v7331 = vadd.f32 %v7118, %v7330
      %v7332 = vpop.f32.mrb[0].mxu0
      %7333 = vmatprep.mubr.bf16.mxu0 0
      %7334 = vmatmul.mubr.bf16.gmra.mrb[0].mxu0 %v7154
      %v7335 = vpop.f32.mrb[0].mxu0
      %v7336 = vadd.f32 %v7118, %v7335
      %v7337 = vpop.f32.mrb[0].mxu0
      %v7338 = vpop.f32.mrb[0].mxu0
      %v7339 = vadd.f32 %v7118, %v7338
      %v7340 = vpop.f32.mrb[0].mxu0
      %7341 = vmatprep.mubr.bf16.mxu0 0
      %7342 = vmatmul.mubr.bf16.gmra.mrb[0].mxu0 %v7157
      %v7343 = vpop.f32.mrb[0].mxu0
      %v7344 = vadd.f32 %v7118, %v7343
      %v7345 = vpop.f32.mrb[0].mxu0
      %v7346 = vpop.f32.mrb[0].mxu0
      %v7347 = vadd.f32 %v7118, %v7346
      %v7348 = vpop.f32.mrb[0].mxu0
      %7349 = vmatprep.mubr.bf16.mxu0 0
      %7350 = vmatmul.mubr.bf16.gmra.mrb[0].mxu0 %v7160
      %v7351 = vpop.f32.mrb[0].mxu0
      %v7352 = vadd.f32 %v7118, %v7351
      %v7353 = vpop.f32.mrb[0].mxu0
      %v7354 = vpop.f32.mrb[0].mxu0
      %v7355 = vadd.f32 %v7118, %v7354
      %v7356 = vpop.f32.mrb[0].mxu0
      %7357 = vmatprep.mubr.bf16.mxu0 0
      %7358 = vmatmul.mubr.bf16.gmra.mrb[0].mxu0 %v7163
      %v7359 = vpop.f32.mrb[0].mxu0
      %v7360 = vadd.f32 %v7118, %v7359
      %v7361 = vpop.f32.mrb[0].mxu0
      %v7362 = vpop.f32.mrb[0].mxu0
      %v7363 = vadd.f32 %v7118, %v7362
      %v7364 = vpop.f32.mrb[0].mxu0
      %7365 = vmatprep.mubr.bf16.mxu0 0
      %7366 = vmatmul.mubr.bf16.gmra.mrb[0].mxu0 %v7166
      %v7367 = vpop.f32.mrb[0].mxu0
      %v7368 = vadd.f32 %v7118, %v7367
      %v7369 = vpop.f32.mrb[0].mxu0
      %v7370 = vpop.f32.mrb[0].mxu0
      %v7371 = vadd.f32 %v7118, %v7370
      %v7372 = vpop.f32.mrb[0].mxu0
      %7373 = vmatprep.mubr.bf16.mxu0 0
      %7374 = vmatmul.mubr.bf16.gmra.mrb[0].mxu0 %v7169
      %v7375 = vpop.f32.mrb[0].mxu0
      %v7376 = vadd.f32 %v7118, %v7375
      %v7377 = vpop.f32.mrb[0].mxu0
      %v7378 = vpop.f32.mrb[0].mxu0
      %v7379 = vadd.f32 %v7118, %v7378
      %v7380 = vpop.f32.mrb[0].mxu0
      %7381 = vmatprep.mubr.bf16.mxu0 0
      %7382 = vmatmul.mubr.bf16.gmra.mrb[0].mxu0 %v7172
      %v7383 = vpop.f32.mrb[0].mxu0
      %v7384 = vadd.f32 %v7118, %v7383
      %v7385 = vpop.f32.mrb[0].mxu0
      %v7386 = vpop.f32.mrb[0].mxu0
      %v7387 = vadd.f32 %v7118, %v7386
      %v7388 = vpop.f32.mrb[0].mxu0
      %7389 = vmatprep.mubr.bf16.mxu0 0
      %7390 = vmatmul.mubr.bf16.gmra.mrb[0].mxu0 %v7175
      %v7391 = vpop.f32.mrb[0].mxu0
      %v7392 = vadd.f32 %v7118, %v7391
      %v7393 = vpop.f32.mrb[0].mxu0
      %v7394 = vpop.f32.mrb[0].mxu0
      %v7395 = vadd.f32 %v7118, %v7394
      %v7396 = vpop.f32.mrb[0].mxu0
      %7397 = vmatprep.mubr.bf16.mxu0 0
      %7398 = vmatmul.mubr.bf16.gmra.mrb[0].mxu0 %v7178
      %v7399 = vpop.f32.mrb[0].mxu0
      %v7400 = vadd.f32 %v7118, %v7399
      %v7401 = vpop.f32.mrb[0].mxu0
      %v7402 = vpop.f32.mrb[0].mxu0
      %v7403 = vadd.f32 %v7118, %v7402
      %v7404 = vpop.f32.mrb[0].mxu0
      %7405 = vmatprep.mubr.bf16.mxu0 0
      %7406 = vmatmul.mubr.bf16.gmra.mrb[0].mxu0 %v7181
      %v7407 = vpop.f32.mrb[0].mxu0
      %v7408 = vadd.f32 %v7118, %v7407
      %v7409 = vpop.f32.mrb[0].mxu0
      %v7410 = vpop.f32.mrb[0].mxu0
      %v7411 = vadd.f32 %v7118, %v7410
      %v7412 = vpop.f32.mrb[0].mxu0
      %7413 = vmatprep.mubr.bf16.mxu0 0
      %7414 = vmatmul.mubr.bf16.gmra.mrb[0].mxu0 %v7184
      %v7415 = vpop.f32.mrb[0].mxu0
      %v7416 = vadd.f32 %v7118, %v7415
      %v7417 = vpop.f32.mrb[0].mxu0
      %v7418 = vpop.f32.mrb[0].mxu0
      %v7419 = vadd.f32 %v7118, %v7418
      %v7420 = vpop.f32.mrb[0].mxu0
      %7421 = vmatprep.mubr.bf16.mxu0 0
      %7422 = vmatmul.mubr.bf16.gmra.mrb[0].mxu0 %v7187
      %v7423 = vpop.f32.mrb[0].mxu0
      %v7424 = vadd.f32 %v7118, %v7423
      %v7425 = vpop.f32.mrb[0].mxu0
      %v7426 = vpop.f32.mrb[0].mxu0
      %v7427 = vadd.f32 %v7118, %v7426
      %v7428 = vpop.f32.mrb[0].mxu0
      %7429 = vmatprep.mubr.bf16.mxu0 0
      %7430 = vmatmul.mubr.bf16.gmra.mrb[0].mxu0 %v7190
      %v7431 = vpop.f32.mrb[0].mxu0
      %v7432 = vadd.f32 %v7118, %v7431
      %v7433 = vpop.f32.mrb[0].mxu0
      %v7434 = vpop.f32.mrb[0].mxu0
      %v7435 = vadd.f32 %v7118, %v7434
      %v7436 = vpop.f32.mrb[0].mxu0
      %7437 = vmatprep.mubr.bf16.mxu0 0
      %7438 = vmatmul.mubr.bf16.gmra.mrb[0].mxu0 %v7193
      %v7439 = vpop.f32.mrb[0].mxu0
      %v7440 = vadd.f32 %v7118, %v7439
      %v7441 = vpop.f32.mrb[0].mxu0
      %v7442 = vpop.f32.mrb[0].mxu0
      %v7443 = vadd.f32 %v7118, %v7442
      %v7444 = vpop.f32.mrb[0].mxu0
      %7445 = vmatprep.mubr.bf16.mxu0 0
      %7446 = vmatmul.mubr.bf16.gmra.mrb[0].mxu0 %v7196
      %v7447 = vpop.f32.mrb[0].mxu0
      %v7448 = vadd.f32 %v7118, %v7447
      %v7449 = vpop.f32.mrb[0].mxu0
      %v7450 = vpop.f32.mrb[0].mxu0
      %v7451 = vadd.f32 %v7118, %v7450
      %v7452 = vpop.f32.mrb[0].mxu0
      %7453 = vmatprep.mubr.bf16.mxu0 0
      %7454 = vmatmul.mubr.bf16.gmra.mrb[0].mxu0 %v7199
      %v7455 = vpop.f32.mrb[0].mxu0
      %v7456 = vadd.f32 %v7118, %v7455
      %v7457 = vpop.f32.mrb[0].mxu0
      %v7458 = vpop.f32.mrb[0].mxu0
      %v7459 = vadd.f32 %v7118, %v7458
      %v7460 = vpop.f32.mrb[0].mxu0
      %7461 = vmatprep.mubr.bf16.mxu0 0
      %7462 = vmatmul.mubr.bf16.gmra.mrb[0].mxu0 %v7202
      %v7463 = vpop.f32.mrb[0].mxu0
      %v7464 = vadd.f32 %v7118, %v7463
      %v7465 = vpop.f32.mrb[0].mxu0
      %v7466 = vpop.f32.mrb[0].mxu0
      %v7467 = vadd.f32 %v7118, %v7466
      %v7468 = vpop.f32.mrb[0].mxu0
      %7469 = vmatprep.mubr.bf16.mxu0 0
      %7470 = vmatmul.mubr.bf16.gmra.mrb[0].mxu0 %v7205
      %v7471 = vpop.f32.mrb[0].mxu0
      %v7472 = vadd.f32 %v7118, %v7471
      %v7473 = vpop.f32.mrb[0].mxu0
      %v7474 = vpop.f32.mrb[0].mxu0
      %v7475 = vadd.f32 %v7118, %v7474
      %v7476 = vpop.f32.mrb[0].mxu0
      %7477 = vmatprep.mubr.bf16.mxu0 0
      %7478 = vmatmul.mubr.bf16.gmra.mrb[0].mxu0 %v7208
      %v7479 = vpop.f32.mrb[0].mxu0
      %v7480 = vadd.f32 %v7118, %v7479
      %v7481 = vpop.f32.mrb[0].mxu0
      %v7482 = vpop.f32.mrb[0].mxu0
      %v7483 = vadd.f32 %v7118, %v7482
      %v7484 = vpop.f32.mrb[0].mxu0
      %7485 = vmatprep.mubr.bf16.mxu0 0
      %7486 = vmatmul.mubr.bf16.gmra.mrb[0].mxu0 %v7211
      %v7487 = vpop.f32.mrb[0].mxu0
      %v7488 = vadd.f32 %v7118, %v7487
      %v7489 = vpop.f32.mrb[0].mxu0
      %v7490 = vpop.f32.mrb[0].mxu0
      %v7491 = vadd.f32 %v7118, %v7490
      %v7492 = vpop.f32.mrb[0].mxu0
      %7493 = vmatprep.mubr.bf16.mxu0 0
      %7494 = vmatmul.mubr.bf16.gmra.mrb[0].mxu0 %v7214
      %v7495 = vpop.f32.mrb[0].mxu0
      %v7496 = vadd.f32 %v7118, %v7495
      %v7497 = vpop.f32.mrb[0].mxu0
      %v7498 = vpop.f32.mrb[0].mxu0
      %v7499 = vadd.f32 %v7118, %v7498
      %v7500 = vpop.f32.mrb[0].mxu0
      %7501 = vmatprep.mubr.bf16.mxu0 0
      %7502 = vmatmul.mubr.bf16.gmra.mrb[0].mxu0 %v7217
      %v7503 = vpop.f32.mrb[0].mxu0
      %v7504 = vadd.f32 %v7118, %v7503
      %v7505 = vpop.f32.mrb[0].mxu0
      %v7506 = vpop.f32.mrb[0].mxu0
      %v7507 = vadd.f32 %v7118, %v7506
      %v7508 = vpop.f32.mrb[0].mxu0
      %7509 = vmatprep.mubr.bf16.mxu0 0
      %7510 = vmatmul.mubr.bf16.gmra.mrb[0].mxu0 %v7220
      %v7511 = vpop.f32.mrb[0].mxu0
      %v7512 = vadd.f32 %v7118, %v7511
      %v7513 = vpop.f32.mrb[0].mxu0
      %v7514 = vpop.f32.mrb[0].mxu0
      %v7515 = vadd.f32 %v7118, %v7514
      %v7516 = vpop.f32.mrb[0].mxu0
      %7517 = vdwg.mxu0
      %v7518 = vmul.f32 %v7264, 0.5
      %v7519 = vmul.f32 %v7267, 0.5
      %v7520 = vmul.f32 %v7272, 0.5
      %v7521 = vmul.f32 %v7275, 0.5
      %v7522 = vmul.f32 %v7280, 0.5
      %v7523 = vmul.f32 %v7283, 0.5
      %v7524 = vmul.f32 %v7288, 0.5
      %v7525 = vmul.f32 %v7291, 0.5
      %v7526 = vmul.f32 %v7296, 0.5
      %v7527 = vmul.f32 %v7299, 0.5
      %v7528 = vmul.f32 %v7304, 0.5
      %v7529 = vmul.f32 %v7307, 0.5
      %v7530 = vmul.f32 %v7312, 0.5
      %v7531 = vmul.f32 %v7315, 0.5
      %v7532 = vmul.f32 %v7320, 0.5
      %v7533 = vmul.f32 %v7323, 0.5
      %v7534 = vmul.f32 %v7328, 0.5
      %v7535 = vmul.f32 %v7331, 0.5
      %v7536 = vmul.f32 %v7336, 0.5
      %v7537 = vmul.f32 %v7339, 0.5
      %v7538 = vmul.f32 %v7344, 0.5
      %v7539 = vmul.f32 %v7347, 0.5
      %v7540 = vmul.f32 %v7352, 0.5
      %v7541 = vmul.f32 %v7355, 0.5
      %v7542 = vmul.f32 %v7360, 0.5
      %v7543 = vmul.f32 %v7363, 0.5
      %v7544 = vmul.f32 %v7368, 0.5
      %v7545 = vmul.f32 %v7371, 0.5
      %v7546 = vmul.f32 %v7376, 0.5
      %v7547 = vmul.f32 %v7379, 0.5
      %v7548 = vmul.f32 %v7384, 0.5
      %v7549 = vmul.f32 %v7387, 0.5
      %v7550 = vmul.f32 %v7392, 0.5
      %v7551 = vmul.f32 %v7395, 0.5
      %v7552 = vmul.f32 %v7400, 0.5
      %v7553 = vmul.f32 %v7403, 0.5
      %v7554 = vmul.f32 %v7408, 0.5
      %v7555 = vmul.f32 %v7411, 0.5
      %v7556 = vmul.f32 %v7416, 0.5
      %v7557 = vmul.f32 %v7419, 0.5
      %v7558 = vmul.f32 %v7424, 0.5
      %v7559 = vmul.f32 %v7427, 0.5
      %v7560 = vmul.f32 %v7432, 0.5
      %v7561 = vmul.f32 %v7435, 0.5
      %v7562 = vmul.f32 %v7440, 0.5
      %v7563 = vmul.f32 %v7443, 0.5
      %v7564 = vmul.f32 %v7448, 0.5
      %v7565 = vmul.f32 %v7451, 0.5
      %v7566 = vmul.f32 %v7456, 0.5
      %v7567 = vmul.f32 %v7459, 0.5
      %v7568 = vmul.f32 %v7464, 0.5
      %v7569 = vmul.f32 %v7467, 0.5
      %v7570 = vmul.f32 %v7472, 0.5
      %v7571 = vmul.f32 %v7475, 0.5
      %v7572 = vmul.f32 %v7480, 0.5
      %v7573 = vmul.f32 %v7483, 0.5
      %v7574 = vmul.f32 %v7488, 0.5
      %v7575 = vmul.f32 %v7491, 0.5
      %v7576 = vmul.f32 %v7496, 0.5
      %v7577 = vmul.f32 %v7499, 0.5
      %v7578 = vmul.f32 %v7504, 0.5
      %v7579 = vmul.f32 %v7507, 0.5
      %v7580 = vmul.f32 %v7512, 0.5
      %v7581 = vmul.f32 %v7515, 0.5
      %v7582 = vtanh.pop %v7518
      %v7583 = vtanh.pop %v7519
      %v7584 = vtanh.pop %v7520
      %v7585 = vtanh.pop %v7521
      %v7586 = vtanh.pop %v7522
      %v7587 = vtanh.pop %v7523
      %v7588 = vtanh.pop %v7524
      %v7589 = vtanh.pop %v7525
      %v7590 = vtanh.pop %v7526
      %v7591 = vtanh.pop %v7527
      %v7592 = vtanh.pop %v7528
      %v7593 = vtanh.pop %v7529
      %v7594 = vtanh.pop %v7530
      %v7595 = vtanh.pop %v7531
      %v7596 = vtanh.pop %v7532
      %v7597 = vtanh.pop %v7533
      %v7598 = vtanh.pop %v7534
      %v7599 = vtanh.pop %v7535
      %v7600 = vtanh.pop %v7536
      %v7601 = vtanh.pop %v7537
      %v7602 = vtanh.pop %v7538
      %v7603 = vtanh.pop %v7539
      %v7604 = vtanh.pop %v7540
      %v7605 = vtanh.pop %v7541
      %v7606 = vtanh.pop %v7542
      %v7607 = vtanh.pop %v7543
      %v7608 = vtanh.pop %v7544
      %v7609 = vtanh.pop %v7545
      %v7610 = vtanh.pop %v7546
      %v7611 = vtanh.pop %v7547
      %v7612 = vtanh.pop %v7548
      %v7613 = vtanh.pop %v7549
      %v7614 = vtanh.pop %v7550
      %v7615 = vtanh.pop %v7551
      %v7616 = vtanh.pop %v7552
      %v7617 = vtanh.pop %v7553
      %v7618 = vtanh.pop %v7554
      %v7619 = vtanh.pop %v7555
      %v7620 = vtanh.pop %v7556
      %v7621 = vtanh.pop %v7557
      %v7622 = vtanh.pop %v7558
      %v7623 = vtanh.pop %v7559
      %v7624 = vtanh.pop %v7560
      %v7625 = vtanh.pop %v7561
      %v7626 = vtanh.pop %v7562
      %v7627 = vtanh.pop %v7563
      %v7628 = vtanh.pop %v7564
      %v7629 = vtanh.pop %v7565
      %v7630 = vtanh.pop %v7566
      %v7631 = vtanh.pop %v7567
      %v7632 = vtanh.pop %v7568
      %v7633 = vtanh.pop %v7569
      %v7634 = vtanh.pop %v7570
      %v7635 = vtanh.pop %v7571
      %v7636 = vtanh.pop %v7572
      %v7637 = vtanh.pop %v7573
      %v7638 = vtanh.pop %v7574
      %v7639 = vtanh.pop %v7575
      %v7640 = vtanh.pop %v7576
      %v7641 = vtanh.pop %v7577
      %v7642 = vtanh.pop %v7578
      %v7643 = vtanh.pop %v7579
      %v7644 = vtanh.pop %v7580
      %v7645 = vtanh.pop %v7581
      %v7646 = vmul.f32 %v7582, 0.5
      %v7647 = vmul.f32 %v7583, 0.5
      %v7648 = vmul.f32 %v7584, 0.5
      %v7649 = vmul.f32 %v7585, 0.5
      %v7650 = vmul.f32 %v7586, 0.5
      %v7651 = vmul.f32 %v7587, 0.5
      %v7652 = vmul.f32 %v7588, 0.5
      %v7653 = vmul.f32 %v7589, 0.5
      %v7654 = vmul.f32 %v7590, 0.5
      %v7655 = vmul.f32 %v7591, 0.5
      %v7656 = vmul.f32 %v7592, 0.5
      %v7657 = vmul.f32 %v7593, 0.5
      %v7658 = vmul.f32 %v7594, 0.5
      %v7659 = vmul.f32 %v7595, 0.5
      %v7660 = vmul.f32 %v7596, 0.5
      %v7661 = vmul.f32 %v7597, 0.5
      %v7662 = vmul.f32 %v7598, 0.5
      %v7663 = vmul.f32 %v7599, 0.5
      %v7664 = vmul.f32 %v7600, 0.5
      %v7665 = vmul.f32 %v7601, 0.5
      %v7666 = vmul.f32 %v7602, 0.5
      %v7667 = vmul.f32 %v7603, 0.5
      %v7668 = vmul.f32 %v7604, 0.5
      %v7669 = vmul.f32 %v7605, 0.5
      %v7670 = vmul.f32 %v7606, 0.5
      %v7671 = vmul.f32 %v7607, 0.5
      %v7672 = vmul.f32 %v7608, 0.5
      %v7673 = vmul.f32 %v7609, 0.5
      %v7674 = vmul.f32 %v7610, 0.5
      %v7675 = vmul.f32 %v7611, 0.5
      %v7676 = vmul.f32 %v7612, 0.5
      %v7677 = vmul.f32 %v7613, 0.5
      %v7678 = vmul.f32 %v7614, 0.5
      %v7679 = vmul.f32 %v7615, 0.5
      %v7680 = vmul.f32 %v7616, 0.5
      %v7681 = vmul.f32 %v7617, 0.5
      %v7682 = vmul.f32 %v7618, 0.5
      %v7683 = vmul.f32 %v7619, 0.5
      %v7684 = vmul.f32 %v7620, 0.5
      %v7685 = vmul.f32 %v7621, 0.5
      %v7686 = vmul.f32 %v7622, 0.5
      %v7687 = vmul.f32 %v7623, 0.5
      %v7688 = vmul.f32 %v7624, 0.5
      %v7689 = vmul.f32 %v7625, 0.5
      %v7690 = vmul.f32 %v7626, 0.5
      %v7691 = vmul.f32 %v7627, 0.5
      %v7692 = vmul.f32 %v7628, 0.5
      %v7693 = vmul.f32 %v7629, 0.5
      %v7694 = vmul.f32 %v7630, 0.5
      %v7695 = vmul.f32 %v7631, 0.5
      %v7696 = vmul.f32 %v7632, 0.5
      %v7697 = vmul.f32 %v7633, 0.5
      %v7698 = vmul.f32 %v7634, 0.5
      %v7699 = vmul.f32 %v7635, 0.5
      %v7700 = vmul.f32 %v7636, 0.5
      %v7701 = vmul.f32 %v7637, 0.5
      %v7702 = vmul.f32 %v7638, 0.5
      %v7703 = vmul.f32 %v7639, 0.5
      %v7704 = vmul.f32 %v7640, 0.5
      %v7705 = vmul.f32 %v7641, 0.5
      %v7706 = vmul.f32 %v7642, 0.5
      %v7707 = vmul.f32 %v7643, 0.5
      %v7708 = vmul.f32 %v7644, 0.5
      %v7709 = vmul.f32 %v7645, 0.5
      %v7710 = vadd.f32 %v7646, 0.5
      %v7711 = vadd.f32 %v7647, 0.5
      %v7712 = vadd.f32 %v7648, 0.5
      %v7713 = vadd.f32 %v7649, 0.5
      %v7714 = vadd.f32 %v7650, 0.5
      %v7715 = vadd.f32 %v7651, 0.5
      %v7716 = vadd.f32 %v7652, 0.5
      %v7717 = vadd.f32 %v7653, 0.5
      %v7718 = vadd.f32 %v7654, 0.5
      %v7719 = vadd.f32 %v7655, 0.5
      %v7720 = vadd.f32 %v7656, 0.5
      %v7721 = vadd.f32 %v7657, 0.5
      %v7722 = vadd.f32 %v7658, 0.5
      %v7723 = vadd.f32 %v7659, 0.5
      %v7724 = vadd.f32 %v7660, 0.5
      %v7725 = vadd.f32 %v7661, 0.5
      %v7726 = vadd.f32 %v7662, 0.5
      %v7727 = vadd.f32 %v7663, 0.5
      %v7728 = vadd.f32 %v7664, 0.5
      %v7729 = vadd.f32 %v7665, 0.5
      %v7730 = vadd.f32 %v7666, 0.5
      %v7731 = vadd.f32 %v7667, 0.5
      %v7732 = vadd.f32 %v7668, 0.5
      %v7733 = vadd.f32 %v7669, 0.5
      %v7734 = vadd.f32 %v7670, 0.5
      %v7735 = vadd.f32 %v7671, 0.5
      %v7736 = vadd.f32 %v7672, 0.5
      %v7737 = vadd.f32 %v7673, 0.5
      %v7738 = vadd.f32 %v7674, 0.5
      %v7739 = vadd.f32 %v7675, 0.5
      %v7740 = vadd.f32 %v7676, 0.5
      %v7741 = vadd.f32 %v7677, 0.5
      %v7742 = vadd.f32 %v7678, 0.5
      %v7743 = vadd.f32 %v7679, 0.5
      %v7744 = vadd.f32 %v7680, 0.5
      %v7745 = vadd.f32 %v7681, 0.5
      %v7746 = vadd.f32 %v7682, 0.5
      %v7747 = vadd.f32 %v7683, 0.5
      %v7748 = vadd.f32 %v7684, 0.5
      %v7749 = vadd.f32 %v7685, 0.5
      %v7750 = vadd.f32 %v7686, 0.5
      %v7751 = vadd.f32 %v7687, 0.5
      %v7752 = vadd.f32 %v7688, 0.5
      %v7753 = vadd.f32 %v7689, 0.5
      %v7754 = vadd.f32 %v7690, 0.5
      %v7755 = vadd.f32 %v7691, 0.5
      %v7756 = vadd.f32 %v7692, 0.5
      %v7757 = vadd.f32 %v7693, 0.5
      %v7758 = vadd.f32 %v7694, 0.5
      %v7759 = vadd.f32 %v7695, 0.5
      %v7760 = vadd.f32 %v7696, 0.5
      %v7761 = vadd.f32 %v7697, 0.5
      %v7762 = vadd.f32 %v7698, 0.5
      %v7763 = vadd.f32 %v7699, 0.5
      %v7764 = vadd.f32 %v7700, 0.5
      %v7765 = vadd.f32 %v7701, 0.5
      %v7766 = vadd.f32 %v7702, 0.5
      %v7767 = vadd.f32 %v7703, 0.5
      %v7768 = vadd.f32 %v7704, 0.5
      %v7769 = vadd.f32 %v7705, 0.5
      %v7770 = vadd.f32 %v7706, 0.5
      %v7771 = vadd.f32 %v7707, 0.5
      %v7772 = vadd.f32 %v7708, 0.5
      %v7773 = vadd.f32 %v7709, 0.5
      %v7774 = vpack.c.bf16 %v7711, %v7710
      %v7775 = vpack.c.bf16 %v7713, %v7712
      %v7776 = vpack.c.bf16 %v7715, %v7714
      %v7777 = vpack.c.bf16 %v7717, %v7716
      %v7778 = vpack.c.bf16 %v7719, %v7718
      %v7779 = vpack.c.bf16 %v7721, %v7720
      %v7780 = vpack.c.bf16 %v7723, %v7722
      %v7781 = vpack.c.bf16 %v7725, %v7724
      %v7782 = vpack.c.bf16 %v7727, %v7726
      %v7783 = vpack.c.bf16 %v7729, %v7728
      %v7784 = vpack.c.bf16 %v7731, %v7730
      %v7785 = vpack.c.bf16 %v7733, %v7732
      %v7786 = vpack.c.bf16 %v7735, %v7734
      %v7787 = vpack.c.bf16 %v7737, %v7736
      %v7788 = vpack.c.bf16 %v7739, %v7738
      %v7789 = vpack.c.bf16 %v7741, %v7740
      %v7790 = vpack.c.bf16 %v7743, %v7742
      %v7791 = vpack.c.bf16 %v7745, %v7744
      %v7792 = vpack.c.bf16 %v7747, %v7746
      %v7793 = vpack.c.bf16 %v7749, %v7748
      %v7794 = vpack.c.bf16 %v7751, %v7750
      %v7795 = vpack.c.bf16 %v7753, %v7752
      %v7796 = vpack.c.bf16 %v7755, %v7754
      %v7797 = vpack.c.bf16 %v7757, %v7756
      %v7798 = vpack.c.bf16 %v7759, %v7758
      %v7799 = vpack.c.bf16 %v7761, %v7760
      %v7800 = vpack.c.bf16 %v7763, %v7762
      %v7801 = vpack.c.bf16 %v7765, %v7764
      %v7802 = vpack.c.bf16 %v7767, %v7766
      %v7803 = vpack.c.bf16 %v7769, %v7768
      %v7804 = vpack.c.bf16 %v7771, %v7770
      %v7805 = vpack.c.bf16 %v7773, %v7772
      %v7806 = vld [vmem:[%s4] sm:$0xf]
      %v7807 = vld [vmem:[%s4 + $0x4] sm:$0xf]
      %v7808 = vld [vmem:[%s4 + $0x8] sm:$0xf]
      %v7809 = vld [vmem:[%s4 + $0xc] sm:$0xf]
      %v7810 = vld [vmem:[%s4 + $0x10] sm:$0xf]
      %v7811 = vld [vmem:[%s4 + $0x14] sm:$0xf]
      %v7812 = vld [vmem:[%s4 + $0x18] sm:$0xf]
      %v7813 = vld [vmem:[%s4 + $0x1c] sm:$0xf]
      %v7822 = vunpack.c.l.b16 %v7806
      %v7823 = vunpack.c.l.b16 %v7807
      %v7824 = vunpack.c.l.b16 %v7808
      %v7825 = vunpack.c.l.b16 %v7809
      %v7826 = vunpack.c.l.b16 %v7810
      %v7827 = vunpack.c.l.b16 %v7811
      %v7828 = vunpack.c.l.b16 %v7812
      %v7829 = vunpack.c.l.b16 %v7813
      %v7830 = vpack.c.b16 %v7823, %v7822
      %v7831 = vpack.c.b16 %v7825, %v7824
      %v7832 = vpack.c.b16 %v7827, %v7826
      %v7833 = vpack.c.b16 %v7829, %v7828
      %vm7838 = vcmask 523264
      %v7840 = vsel %vm7838, %v7774, 0
      %v7843 = vsel %vm7838, %v7775, 0
      %v7846 = vsel %vm7838, %v7776, 0
      %v7849 = vsel %vm7838, %v7777, 0
      %v7852 = vsel %vm7838, %v7778, 0
      %v7855 = vsel %vm7838, %v7779, 0
      %v7858 = vsel %vm7838, %v7780, 0
      %v7861 = vsel %vm7838, %v7781, 0
      %v7864 = vsel %vm7838, %v7782, 0
      %v7867 = vsel %vm7838, %v7783, 0
      %v7870 = vsel %vm7838, %v7784, 0
      %v7873 = vsel %vm7838, %v7785, 0
      %v7876 = vsel %vm7838, %v7786, 0
      %v7879 = vsel %vm7838, %v7787, 0
      %v7882 = vsel %vm7838, %v7788, 0
      %v7885 = vsel %vm7838, %v7789, 0
      %v7888 = vsel %vm7838, %v7790, 0
      %v7891 = vsel %vm7838, %v7791, 0
      %v7894 = vsel %vm7838, %v7792, 0
      %v7897 = vsel %vm7838, %v7793, 0
      %v7900 = vsel %vm7838, %v7794, 0
      %v7903 = vsel %vm7838, %v7795, 0
      %v7906 = vsel %vm7838, %v7796, 0
      %v7909 = vsel %vm7838, %v7797, 0
      %v7912 = vsel %vm7838, %v7798, 0
      %v7915 = vsel %vm7838, %v7799, 0
      %v7918 = vsel %vm7838, %v7800, 0
      %v7921 = vsel %vm7838, %v7801, 0
      %v7924 = vsel %vm7838, %v7802, 0
      %v7927 = vsel %vm7838, %v7803, 0
      %v7930 = vsel %vm7838, %v7804, 0
      %v7933 = vsel %vm7838, %v7805, 0
      %7935 = vmatprep.subr.bf16.mxu0 0
      %7936 = vmatpush1.bf16.msra.mxu0 %v7830
      %7937 = vmatprep.subr.bf16.mxu0 0
      %7938 = vmatpush1.bf16.msra.mxu0 %v7831
      %7939 = vmatprep.subr.bf16.mxu0 0
      %7940 = vmatpush1.bf16.msra.mxu0 %v7832
      %7941 = vmatprep.subr.bf16.mxu0 0
      %7942 = vmatpush1.bf16.msra.mxu0 %v7833
      %7943 = vmatprep.subr.bf16.mxu0 0
      %7944 = vmatpush1.bf16.msra.mxu0 0
      %7945 = vmatprep.subr.bf16.mxu0 0
      %7946 = vmatpush1.bf16.msra.mxu0 0
      %7947 = vmatprep.subr.bf16.mxu0 0
      %7948 = vmatpush1.bf16.msra.mxu0 0
      %7949 = vmatprep.subr.bf16.mxu0 0
      %7950 = vmatpush1.bf16.msra.mxu0 0
      %7951 = vmatprep.subr.bf16.mxu0 0
      %7952 = vmatpush1.bf16.msra.mxu0 0
      %7953 = vmatprep.subr.bf16.mxu0 0
      %7954 = vmatpush1.bf16.msra.mxu0 0
      %7955 = vmatprep.subr.bf16.mxu0 0
      %7956 = vmatpush1.bf16.msra.mxu0 0
      %7957 = vmatprep.subr.bf16.mxu0 0
      %7958 = vmatpush1.bf16.msra.mxu0 0
      %7959 = vmatprep.subr.bf16.mxu0 0
      %7960 = vmatpush1.bf16.msra.mxu0 0
      %7961 = vmatprep.subr.bf16.mxu0 0
      %7962 = vmatpush1.bf16.msra.mxu0 0
      %7963 = vmatprep.subr.bf16.mxu0 0
      %7964 = vmatpush1.bf16.msra.mxu0 0
      %7965 = vmatprep.subr.bf16.mxu0 0
      %7966 = vmatpush1.bf16.msra.mxu0 0
      %7967 = vmatprep.mubr.bf16.mxu0 0
      %7968 = vmatmul.mubr.bf16.gmra.mrb[0].mxu0 %v7840
      %v7969 = vpop.f32.mrb[0].mxu0
      %v7970 = vadd.f32 0.0, %v7969
      %v7971 = vpop.f32.mrb[0].mxu0
      %v7972 = vpop.f32.mrb[0].mxu0
      %v7973 = vadd.f32 0.0, %v7972
      %v7974 = vpop.f32.mrb[0].mxu0
      %7975 = vmatprep.mubr.bf16.mxu0 0
      %7976 = vmatmul.mubr.bf16.gmra.mrb[0].mxu0 %v7843
      %v7977 = vpop.f32.mrb[0].mxu0
      %v7978 = vadd.f32 0.0, %v7977
      %v7979 = vpop.f32.mrb[0].mxu0
      %v7980 = vpop.f32.mrb[0].mxu0
      %v7981 = vadd.f32 0.0, %v7980
      %v7982 = vpop.f32.mrb[0].mxu0
      %7983 = vmatprep.mubr.bf16.mxu0 0
      %7984 = vmatmul.mubr.bf16.gmra.mrb[0].mxu0 %v7846
      %v7985 = vpop.f32.mrb[0].mxu0
      %v7986 = vadd.f32 0.0, %v7985
      %v7987 = vpop.f32.mrb[0].mxu0
      %v7988 = vpop.f32.mrb[0].mxu0
      %v7989 = vadd.f32 0.0, %v7988
      %v7990 = vpop.f32.mrb[0].mxu0
      %7991 = vmatprep.mubr.bf16.mxu0 0
      %7992 = vmatmul.mubr.bf16.gmra.mrb[0].mxu0 %v7849
      %v7993 = vpop.f32.mrb[0].mxu0
      %v7994 = vadd.f32 0.0, %v7993
      %v7995 = vpop.f32.mrb[0].mxu0
      %v7996 = vpop.f32.mrb[0].mxu0
      %v7997 = vadd.f32 0.0, %v7996
      %v7998 = vpop.f32.mrb[0].mxu0
      %7999 = vmatprep.mubr.bf16.mxu0 0
      %8000 = vmatmul.mubr.bf16.gmra.mrb[0].mxu0 %v7852
      %v8001 = vpop.f32.mrb[0].mxu0
      %v8002 = vadd.f32 0.0, %v8001
      %v8003 = vpop.f32.mrb[0].mxu0
      %v8004 = vpop.f32.mrb[0].mxu0
      %v8005 = vadd.f32 0.0, %v8004
      %v8006 = vpop.f32.mrb[0].mxu0
      %8007 = vmatprep.mubr.bf16.mxu0 0
      %8008 = vmatmul.mubr.bf16.gmra.mrb[0].mxu0 %v7855
      %v8009 = vpop.f32.mrb[0].mxu0
      %v8010 = vadd.f32 0.0, %v8009
      %v8011 = vpop.f32.mrb[0].mxu0
      %v8012 = vpop.f32.mrb[0].mxu0
      %v8013 = vadd.f32 0.0, %v8012
      %v8014 = vpop.f32.mrb[0].mxu0
      %8015 = vmatprep.mubr.bf16.mxu0 0
      %8016 = vmatmul.mubr.bf16.gmra.mrb[0].mxu0 %v7858
      %v8017 = vpop.f32.mrb[0].mxu0
      %v8018 = vadd.f32 0.0, %v8017
      %v8019 = vpop.f32.mrb[0].mxu0
      %v8020 = vpop.f32.mrb[0].mxu0
      %v8021 = vadd.f32 0.0, %v8020
      %v8022 = vpop.f32.mrb[0].mxu0
      %8023 = vmatprep.mubr.bf16.mxu0 0
      %8024 = vmatmul.mubr.bf16.gmra.mrb[0].mxu0 %v7861
      %v8025 = vpop.f32.mrb[0].mxu0
      %v8026 = vadd.f32 0.0, %v8025
      %v8027 = vpop.f32.mrb[0].mxu0
      %v8028 = vpop.f32.mrb[0].mxu0
      %v8029 = vadd.f32 0.0, %v8028
      %v8030 = vpop.f32.mrb[0].mxu0
      %8031 = vmatprep.mubr.bf16.mxu0 0
      %8032 = vmatmul.mubr.bf16.gmra.mrb[0].mxu0 %v7864
      %v8033 = vpop.f32.mrb[0].mxu0
      %v8034 = vadd.f32 0.0, %v8033
      %v8035 = vpop.f32.mrb[0].mxu0
      %v8036 = vpop.f32.mrb[0].mxu0
      %v8037 = vadd.f32 0.0, %v8036
      %v8038 = vpop.f32.mrb[0].mxu0
      %8039 = vmatprep.mubr.bf16.mxu0 0
      %8040 = vmatmul.mubr.bf16.gmra.mrb[0].mxu0 %v7867
      %v8041 = vpop.f32.mrb[0].mxu0
      %v8042 = vadd.f32 0.0, %v8041
      %v8043 = vpop.f32.mrb[0].mxu0
      %v8044 = vpop.f32.mrb[0].mxu0
      %v8045 = vadd.f32 0.0, %v8044
      %v8046 = vpop.f32.mrb[0].mxu0
      %8047 = vmatprep.mubr.bf16.mxu0 0
      %8048 = vmatmul.mubr.bf16.gmra.mrb[0].mxu0 %v7870
      %v8049 = vpop.f32.mrb[0].mxu0
      %v8050 = vadd.f32 0.0, %v8049
      %v8051 = vpop.f32.mrb[0].mxu0
      %v8052 = vpop.f32.mrb[0].mxu0
      %v8053 = vadd.f32 0.0, %v8052
      %v8054 = vpop.f32.mrb[0].mxu0
      %8055 = vmatprep.mubr.bf16.mxu0 0
      %8056 = vmatmul.mubr.bf16.gmra.mrb[0].mxu0 %v7873
      %v8057 = vpop.f32.mrb[0].mxu0
      %v8058 = vadd.f32 0.0, %v8057
      %v8059 = vpop.f32.mrb[0].mxu0
      %v8060 = vpop.f32.mrb[0].mxu0
      %v8061 = vadd.f32 0.0, %v8060
      %v8062 = vpop.f32.mrb[0].mxu0
      %8063 = vmatprep.mubr.bf16.mxu0 0
      %8064 = vmatmul.mubr.bf16.gmra.mrb[0].mxu0 %v7876
      %v8065 = vpop.f32.mrb[0].mxu0
      %v8066 = vadd.f32 0.0, %v8065
      %v8067 = vpop.f32.mrb[0].mxu0
      %v8068 = vpop.f32.mrb[0].mxu0
      %v8069 = vadd.f32 0.0, %v8068
      %v8070 = vpop.f32.mrb[0].mxu0
      %8071 = vmatprep.mubr.bf16.mxu0 0
      %8072 = vmatmul.mubr.bf16.gmra.mrb[0].mxu0 %v7879
      %v8073 = vpop.f32.mrb[0].mxu0
      %v8074 = vadd.f32 0.0, %v8073
      %v8075 = vpop.f32.mrb[0].mxu0
      %v8076 = vpop.f32.mrb[0].mxu0
      %v8077 = vadd.f32 0.0, %v8076
      %v8078 = vpop.f32.mrb[0].mxu0
      %8079 = vmatprep.mubr.bf16.mxu0 0
      %8080 = vmatmul.mubr.bf16.gmra.mrb[0].mxu0 %v7882
      %v8081 = vpop.f32.mrb[0].mxu0
      %v8082 = vadd.f32 0.0, %v8081
      %v8083 = vpop.f32.mrb[0].mxu0
      %v8084 = vpop.f32.mrb[0].mxu0
      %v8085 = vadd.f32 0.0, %v8084
      %v8086 = vpop.f32.mrb[0].mxu0
      %8087 = vmatprep.mubr.bf16.mxu0 0
      %8088 = vmatmul.mubr.bf16.gmra.mrb[0].mxu0 %v7885
      %v8089 = vpop.f32.mrb[0].mxu0
      %v8090 = vadd.f32 0.0, %v8089
      %v8091 = vpop.f32.mrb[0].mxu0
      %v8092 = vpop.f32.mrb[0].mxu0
      %v8093 = vadd.f32 0.0, %v8092
      %v8094 = vpop.f32.mrb[0].mxu0
      %8095 = vmatprep.mubr.bf16.mxu0 0
      %8096 = vmatmul.mubr.bf16.gmra.mrb[0].mxu0 %v7888
      %v8097 = vpop.f32.mrb[0].mxu0
      %v8098 = vadd.f32 0.0, %v8097
      %v8099 = vpop.f32.mrb[0].mxu0
      %v8100 = vpop.f32.mrb[0].mxu0
      %v8101 = vadd.f32 0.0, %v8100
      %v8102 = vpop.f32.mrb[0].mxu0
      %8103 = vmatprep.mubr.bf16.mxu0 0
      %8104 = vmatmul.mubr.bf16.gmra.mrb[0].mxu0 %v7891
      %v8105 = vpop.f32.mrb[0].mxu0
      %v8106 = vadd.f32 0.0, %v8105
      %v8107 = vpop.f32.mrb[0].mxu0
      %v8108 = vpop.f32.mrb[0].mxu0
      %v8109 = vadd.f32 0.0, %v8108
      %v8110 = vpop.f32.mrb[0].mxu0
      %8111 = vmatprep.mubr.bf16.mxu0 0
      %8112 = vmatmul.mubr.bf16.gmra.mrb[0].mxu0 %v7894
      %v8113 = vpop.f32.mrb[0].mxu0
      %v8114 = vadd.f32 0.0, %v8113
      %v8115 = vpop.f32.mrb[0].mxu0
      %v8116 = vpop.f32.mrb[0].mxu0
      %v8117 = vadd.f32 0.0, %v8116
      %v8118 = vpop.f32.mrb[0].mxu0
      %8119 = vmatprep.mubr.bf16.mxu0 0
      %8120 = vmatmul.mubr.bf16.gmra.mrb[0].mxu0 %v7897
      %v8121 = vpop.f32.mrb[0].mxu0
      %v8122 = vadd.f32 0.0, %v8121
      %v8123 = vpop.f32.mrb[0].mxu0
      %v8124 = vpop.f32.mrb[0].mxu0
      %v8125 = vadd.f32 0.0, %v8124
      %v8126 = vpop.f32.mrb[0].mxu0
      %8127 = vmatprep.mubr.bf16.mxu0 0
      %8128 = vmatmul.mubr.bf16.gmra.mrb[0].mxu0 %v7900
      %v8129 = vpop.f32.mrb[0].mxu0
      %v8130 = vadd.f32 0.0, %v8129
      %v8131 = vpop.f32.mrb[0].mxu0
      %v8132 = vpop.f32.mrb[0].mxu0
      %v8133 = vadd.f32 0.0, %v8132
      %v8134 = vpop.f32.mrb[0].mxu0
      %8135 = vmatprep.mubr.bf16.mxu0 0
      %8136 = vmatmul.mubr.bf16.gmra.mrb[0].mxu0 %v7903
      %v8137 = vpop.f32.mrb[0].mxu0
      %v8138 = vadd.f32 0.0, %v8137
      %v8139 = vpop.f32.mrb[0].mxu0
      %v8140 = vpop.f32.mrb[0].mxu0
      %v8141 = vadd.f32 0.0, %v8140
      %v8142 = vpop.f32.mrb[0].mxu0
      %8143 = vmatprep.mubr.bf16.mxu0 0
      %8144 = vmatmul.mubr.bf16.gmra.mrb[0].mxu0 %v7906
      %v8145 = vpop.f32.mrb[0].mxu0
      %v8146 = vadd.f32 0.0, %v8145
      %v8147 = vpop.f32.mrb[0].mxu0
      %v8148 = vpop.f32.mrb[0].mxu0
      %v8149 = vadd.f32 0.0, %v8148
      %v8150 = vpop.f32.mrb[0].mxu0
      %8151 = vmatprep.mubr.bf16.mxu0 0
      %8152 = vmatmul.mubr.bf16.gmra.mrb[0].mxu0 %v7909
      %v8153 = vpop.f32.mrb[0].mxu0
      %v8154 = vadd.f32 0.0, %v8153
      %v8155 = vpop.f32.mrb[0].mxu0
      %v8156 = vpop.f32.mrb[0].mxu0
      %v8157 = vadd.f32 0.0, %v8156
      %v8158 = vpop.f32.mrb[0].mxu0
      %8159 = vmatprep.mubr.bf16.mxu0 0
      %8160 = vmatmul.mubr.bf16.gmra.mrb[0].mxu0 %v7912
      %v8161 = vpop.f32.mrb[0].mxu0
      %v8162 = vadd.f32 0.0, %v8161
      %v8163 = vpop.f32.mrb[0].mxu0
      %v8164 = vpop.f32.mrb[0].mxu0
      %v8165 = vadd.f32 0.0, %v8164
      %v8166 = vpop.f32.mrb[0].mxu0
      %8167 = vmatprep.mubr.bf16.mxu0 0
      %8168 = vmatmul.mubr.bf16.gmra.mrb[0].mxu0 %v7915
      %v8169 = vpop.f32.mrb[0].mxu0
      %v8170 = vadd.f32 0.0, %v8169
      %v8171 = vpop.f32.mrb[0].mxu0
      %v8172 = vpop.f32.mrb[0].mxu0
      %v8173 = vadd.f32 0.0, %v8172
      %v8174 = vpop.f32.mrb[0].mxu0
      %8175 = vmatprep.mubr.bf16.mxu0 0
      %8176 = vmatmul.mubr.bf16.gmra.mrb[0].mxu0 %v7918
      %v8177 = vpop.f32.mrb[0].mxu0
      %v8178 = vadd.f32 0.0, %v8177
      %v8179 = vpop.f32.mrb[0].mxu0
      %v8180 = vpop.f32.mrb[0].mxu0
      %v8181 = vadd.f32 0.0, %v8180
      %v8182 = vpop.f32.mrb[0].mxu0
      %8183 = vmatprep.mubr.bf16.mxu0 0
      %8184 = vmatmul.mubr.bf16.gmra.mrb[0].mxu0 %v7921
      %v8185 = vpop.f32.mrb[0].mxu0
      %v8186 = vadd.f32 0.0, %v8185
      %v8187 = vpop.f32.mrb[0].mxu0
      %v8188 = vpop.f32.mrb[0].mxu0
      %v8189 = vadd.f32 0.0, %v8188
      %v8190 = vpop.f32.mrb[0].mxu0
      %8191 = vmatprep.mubr.bf16.mxu0 0
      %8192 = vmatmul.mubr.bf16.gmra.mrb[0].mxu0 %v7924
      %v8193 = vpop.f32.mrb[0].mxu0
      %v8194 = vadd.f32 0.0, %v8193
      %v8195 = vpop.f32.mrb[0].mxu0
      %v8196 = vpop.f32.mrb[0].mxu0
      %v8197 = vadd.f32 0.0, %v8196
      %v8198 = vpop.f32.mrb[0].mxu0
      %8199 = vmatprep.mubr.bf16.mxu0 0
      %8200 = vmatmul.mubr.bf16.gmra.mrb[0].mxu0 %v7927
      %v8201 = vpop.f32.mrb[0].mxu0
      %v8202 = vadd.f32 0.0, %v8201
      %v8203 = vpop.f32.mrb[0].mxu0
      %v8204 = vpop.f32.mrb[0].mxu0
      %v8205 = vadd.f32 0.0, %v8204
      %v8206 = vpop.f32.mrb[0].mxu0
      %8207 = vmatprep.mubr.bf16.mxu0 0
      %8208 = vmatmul.mubr.bf16.gmra.mrb[0].mxu0 %v7930
      %v8209 = vpop.f32.mrb[0].mxu0
      %v8210 = vadd.f32 0.0, %v8209
      %v8211 = vpop.f32.mrb[0].mxu0
      %v8212 = vpop.f32.mrb[0].mxu0
      %v8213 = vadd.f32 0.0, %v8212
      %v8214 = vpop.f32.mrb[0].mxu0
      %8215 = vmatprep.mubr.bf16.mxu0 0
      %8216 = vmatmul.mubr.bf16.gmra.mrb[0].mxu0 %v7933
      %v8217 = vpop.f32.mrb[0].mxu0
      %v8218 = vadd.f32 0.0, %v8217
      %v8219 = vpop.f32.mrb[0].mxu0
      %v8220 = vpop.f32.mrb[0].mxu0
      %v8221 = vadd.f32 0.0, %v8220
      %v8222 = vpop.f32.mrb[0].mxu0
      %8223 = vdwg.mxu0
      %v8224 = vmul.f32 %v7970, 0.5
      %v8225 = vmul.f32 %v7973, 0.5
      %v8226 = vmul.f32 %v7978, 0.5
      %v8227 = vmul.f32 %v7981, 0.5
      %v8228 = vmul.f32 %v7986, 0.5
      %v8229 = vmul.f32 %v7989, 0.5
      %v8230 = vmul.f32 %v7994, 0.5
      %v8231 = vmul.f32 %v7997, 0.5
      %v8232 = vmul.f32 %v8002, 0.5
      %v8233 = vmul.f32 %v8005, 0.5
      %v8234 = vmul.f32 %v8010, 0.5
      %v8235 = vmul.f32 %v8013, 0.5
      %v8236 = vmul.f32 %v8018, 0.5
      %v8237 = vmul.f32 %v8021, 0.5
      %v8238 = vmul.f32 %v8026, 0.5
      %v8239 = vmul.f32 %v8029, 0.5
      %v8240 = vmul.f32 %v8034, 0.5
      %v8241 = vmul.f32 %v8037, 0.5
      %v8242 = vmul.f32 %v8042, 0.5
      %v8243 = vmul.f32 %v8045, 0.5
      %v8244 = vmul.f32 %v8050, 0.5
      %v8245 = vmul.f32 %v8053, 0.5
      %v8246 = vmul.f32 %v8058, 0.5
      %v8247 = vmul.f32 %v8061, 0.5
      %v8248 = vmul.f32 %v8066, 0.5
      %v8249 = vmul.f32 %v8069, 0.5
      %v8250 = vmul.f32 %v8074, 0.5
      %v8251 = vmul.f32 %v8077, 0.5
      %v8252 = vmul.f32 %v8082, 0.5
      %v8253 = vmul.f32 %v8085, 0.5
      %v8254 = vmul.f32 %v8090, 0.5
      %v8255 = vmul.f32 %v8093, 0.5
      %v8256 = vmul.f32 %v8098, 0.5
      %v8257 = vmul.f32 %v8101, 0.5
      %v8258 = vmul.f32 %v8106, 0.5
      %v8259 = vmul.f32 %v8109, 0.5
      %v8260 = vmul.f32 %v8114, 0.5
      %v8261 = vmul.f32 %v8117, 0.5
      %v8262 = vmul.f32 %v8122, 0.5
      %v8263 = vmul.f32 %v8125, 0.5
      %v8264 = vmul.f32 %v8130, 0.5
      %v8265 = vmul.f32 %v8133, 0.5
      %v8266 = vmul.f32 %v8138, 0.5
      %v8267 = vmul.f32 %v8141, 0.5
      %v8268 = vmul.f32 %v8146, 0.5
      %v8269 = vmul.f32 %v8149, 0.5
      %v8270 = vmul.f32 %v8154, 0.5
      %v8271 = vmul.f32 %v8157, 0.5
      %v8272 = vmul.f32 %v8162, 0.5
      %v8273 = vmul.f32 %v8165, 0.5
      %v8274 = vmul.f32 %v8170, 0.5
      %v8275 = vmul.f32 %v8173, 0.5
      %v8276 = vmul.f32 %v8178, 0.5
      %v8277 = vmul.f32 %v8181, 0.5
      %v8278 = vmul.f32 %v8186, 0.5
      %v8279 = vmul.f32 %v8189, 0.5
      %v8280 = vmul.f32 %v8194, 0.5
      %v8281 = vmul.f32 %v8197, 0.5
      %v8282 = vmul.f32 %v8202, 0.5
      %v8283 = vmul.f32 %v8205, 0.5
      %v8284 = vmul.f32 %v8210, 0.5
      %v8285 = vmul.f32 %v8213, 0.5
      %v8286 = vmul.f32 %v8218, 0.5
      %v8287 = vmul.f32 %v8221, 0.5
      %v8288 = vtanh.pop %v8224
      %v8289 = vtanh.pop %v8225
      %v8290 = vtanh.pop %v8226
      %v8291 = vtanh.pop %v8227
      %v8292 = vtanh.pop %v8228
      %v8293 = vtanh.pop %v8229
      %v8294 = vtanh.pop %v8230
      %v8295 = vtanh.pop %v8231
      %v8296 = vtanh.pop %v8232
      %v8297 = vtanh.pop %v8233
      %v8298 = vtanh.pop %v8234
      %v8299 = vtanh.pop %v8235
      %v8300 = vtanh.pop %v8236
      %v8301 = vtanh.pop %v8237
      %v8302 = vtanh.pop %v8238
      %v8303 = vtanh.pop %v8239
      %v8304 = vtanh.pop %v8240
      %v8305 = vtanh.pop %v8241
      %v8306 = vtanh.pop %v8242
      %v8307 = vtanh.pop %v8243
      %v8308 = vtanh.pop %v8244
      %v8309 = vtanh.pop %v8245
      %v8310 = vtanh.pop %v8246
      %v8311 = vtanh.pop %v8247
      %v8312 = vtanh.pop %v8248
      %v8313 = vtanh.pop %v8249
      %v8314 = vtanh.pop %v8250
      %v8315 = vtanh.pop %v8251
      %v8316 = vtanh.pop %v8252
      %v8317 = vtanh.pop %v8253
      %v8318 = vtanh.pop %v8254
      %v8319 = vtanh.pop %v8255
      %v8320 = vtanh.pop %v8256
      %v8321 = vtanh.pop %v8257
      %v8322 = vtanh.pop %v8258
      %v8323 = vtanh.pop %v8259
      %v8324 = vtanh.pop %v8260
      %v8325 = vtanh.pop %v8261
      %v8326 = vtanh.pop %v8262
      %v8327 = vtanh.pop %v8263
      %v8328 = vtanh.pop %v8264
      %v8329 = vtanh.pop %v8265
      %v8330 = vtanh.pop %v8266
      %v8331 = vtanh.pop %v8267
      %v8332 = vtanh.pop %v8268
      %v8333 = vtanh.pop %v8269
      %v8334 = vtanh.pop %v8270
      %v8335 = vtanh.pop %v8271
      %v8336 = vtanh.pop %v8272
      %v8337 = vtanh.pop %v8273
      %v8338 = vtanh.pop %v8274
      %v8339 = vtanh.pop %v8275
      %v8340 = vtanh.pop %v8276
      %v8341 = vtanh.pop %v8277
      %v8342 = vtanh.pop %v8278
      %v8343 = vtanh.pop %v8279
      %v8344 = vtanh.pop %v8280
      %v8345 = vtanh.pop %v8281
      %v8346 = vtanh.pop %v8282
      %v8347 = vtanh.pop %v8283
      %v8348 = vtanh.pop %v8284
      %v8349 = vtanh.pop %v8285
      %v8350 = vtanh.pop %v8286
      %v8351 = vtanh.pop %v8287
      %v8352 = vmul.f32 %v8288, 0.5
      %v8353 = vmul.f32 %v8289, 0.5
      %v8354 = vmul.f32 %v8290, 0.5
      %v8355 = vmul.f32 %v8291, 0.5
      %v8356 = vmul.f32 %v8292, 0.5
      %v8357 = vmul.f32 %v8293, 0.5
      %v8358 = vmul.f32 %v8294, 0.5
      %v8359 = vmul.f32 %v8295, 0.5
      %v8360 = vmul.f32 %v8296, 0.5
      %v8361 = vmul.f32 %v8297, 0.5
      %v8362 = vmul.f32 %v8298, 0.5
      %v8363 = vmul.f32 %v8299, 0.5
      %v8364 = vmul.f32 %v8300, 0.5
      %v8365 = vmul.f32 %v8301, 0.5
      %v8366 = vmul.f32 %v8302, 0.5
      %v8367 = vmul.f32 %v8303, 0.5
      %v8368 = vmul.f32 %v8304, 0.5
      %v8369 = vmul.f32 %v8305, 0.5
      %v8370 = vmul.f32 %v8306, 0.5
      %v8371 = vmul.f32 %v8307, 0.5
      %v8372 = vmul.f32 %v8308, 0.5
      %v8373 = vmul.f32 %v8309, 0.5
      %v8374 = vmul.f32 %v8310, 0.5
      %v8375 = vmul.f32 %v8311, 0.5
      %v8376 = vmul.f32 %v8312, 0.5
      %v8377 = vmul.f32 %v8313, 0.5
      %v8378 = vmul.f32 %v8314, 0.5
      %v8379 = vmul.f32 %v8315, 0.5
      %v8380 = vmul.f32 %v8316, 0.5
      %v8381 = vmul.f32 %v8317, 0.5
      %v8382 = vmul.f32 %v8318, 0.5
      %v8383 = vmul.f32 %v8319, 0.5
      %v8384 = vmul.f32 %v8320, 0.5
      %v8385 = vmul.f32 %v8321, 0.5
      %v8386 = vmul.f32 %v8322, 0.5
      %v8387 = vmul.f32 %v8323, 0.5
      %v8388 = vmul.f32 %v8324, 0.5
      %v8389 = vmul.f32 %v8325, 0.5
      %v8390 = vmul.f32 %v8326, 0.5
      %v8391 = vmul.f32 %v8327, 0.5
      %v8392 = vmul.f32 %v8328, 0.5
      %v8393 = vmul.f32 %v8329, 0.5
      %v8394 = vmul.f32 %v8330, 0.5
      %v8395 = vmul.f32 %v8331, 0.5
      %v8396 = vmul.f32 %v8332, 0.5
      %v8397 = vmul.f32 %v8333, 0.5
      %v8398 = vmul.f32 %v8334, 0.5
      %v8399 = vmul.f32 %v8335, 0.5
      %v8400 = vmul.f32 %v8336, 0.5
      %v8401 = vmul.f32 %v8337, 0.5
      %v8402 = vmul.f32 %v8338, 0.5
      %v8403 = vmul.f32 %v8339, 0.5
      %v8404 = vmul.f32 %v8340, 0.5
      %v8405 = vmul.f32 %v8341, 0.5
      %v8406 = vmul.f32 %v8342, 0.5
      %v8407 = vmul.f32 %v8343, 0.5
      %v8408 = vmul.f32 %v8344, 0.5
      %v8409 = vmul.f32 %v8345, 0.5
      %v8410 = vmul.f32 %v8346, 0.5
      %v8411 = vmul.f32 %v8347, 0.5
      %v8412 = vmul.f32 %v8348, 0.5
      %v8413 = vmul.f32 %v8349, 0.5
      %v8414 = vmul.f32 %v8350, 0.5
      %v8415 = vmul.f32 %v8351, 0.5
      %v8416 = vadd.f32 %v8352, 0.5
      %v8417 = vadd.f32 %v8353, 0.5
      %v8418 = vadd.f32 %v8354, 0.5
      %v8419 = vadd.f32 %v8355, 0.5
      %v8420 = vadd.f32 %v8356, 0.5
      %v8421 = vadd.f32 %v8357, 0.5
      %v8422 = vadd.f32 %v8358, 0.5
      %v8423 = vadd.f32 %v8359, 0.5
      %v8424 = vadd.f32 %v8360, 0.5
      %v8425 = vadd.f32 %v8361, 0.5
      %v8426 = vadd.f32 %v8362, 0.5
      %v8427 = vadd.f32 %v8363, 0.5
      %v8428 = vadd.f32 %v8364, 0.5
      %v8429 = vadd.f32 %v8365, 0.5
      %v8430 = vadd.f32 %v8366, 0.5
      %v8431 = vadd.f32 %v8367, 0.5
      %v8432 = vadd.f32 %v8368, 0.5
      %v8433 = vadd.f32 %v8369, 0.5
      %v8434 = vadd.f32 %v8370, 0.5
      %v8435 = vadd.f32 %v8371, 0.5
      %v8436 = vadd.f32 %v8372, 0.5
      %v8437 = vadd.f32 %v8373, 0.5
      %v8438 = vadd.f32 %v8374, 0.5
      %v8439 = vadd.f32 %v8375, 0.5
      %v8440 = vadd.f32 %v8376, 0.5
      %v8441 = vadd.f32 %v8377, 0.5
      %v8442 = vadd.f32 %v8378, 0.5
      %v8443 = vadd.f32 %v8379, 0.5
      %v8444 = vadd.f32 %v8380, 0.5
      %v8445 = vadd.f32 %v8381, 0.5
      %v8446 = vadd.f32 %v8382, 0.5
      %v8447 = vadd.f32 %v8383, 0.5
      %v8448 = vadd.f32 %v8384, 0.5
      %v8449 = vadd.f32 %v8385, 0.5
      %v8450 = vadd.f32 %v8386, 0.5
      %v8451 = vadd.f32 %v8387, 0.5
      %v8452 = vadd.f32 %v8388, 0.5
      %v8453 = vadd.f32 %v8389, 0.5
      %v8454 = vadd.f32 %v8390, 0.5
      %v8455 = vadd.f32 %v8391, 0.5
      %v8456 = vadd.f32 %v8392, 0.5
      %v8457 = vadd.f32 %v8393, 0.5
      %v8458 = vadd.f32 %v8394, 0.5
      %v8459 = vadd.f32 %v8395, 0.5
      %v8460 = vadd.f32 %v8396, 0.5
      %v8461 = vadd.f32 %v8397, 0.5
      %v8462 = vadd.f32 %v8398, 0.5
      %v8463 = vadd.f32 %v8399, 0.5
      %v8464 = vadd.f32 %v8400, 0.5
      %v8465 = vadd.f32 %v8401, 0.5
      %v8466 = vadd.f32 %v8402, 0.5
      %v8467 = vadd.f32 %v8403, 0.5
      %v8468 = vadd.f32 %v8404, 0.5
      %v8469 = vadd.f32 %v8405, 0.5
      %v8470 = vadd.f32 %v8406, 0.5
      %v8471 = vadd.f32 %v8407, 0.5
      %v8472 = vadd.f32 %v8408, 0.5
      %v8473 = vadd.f32 %v8409, 0.5
      %v8474 = vadd.f32 %v8410, 0.5
      %v8475 = vadd.f32 %v8411, 0.5
      %v8476 = vadd.f32 %v8412, 0.5
      %v8477 = vadd.f32 %v8413, 0.5
      %v8478 = vadd.f32 %v8414, 0.5
      %v8479 = vadd.f32 %v8415, 0.5
      %v8480 = vld [vmem:[%s350] sm:$0xf]
      %v8481 = vld [vmem:[%s350 + $0x4] sm:$0xf]
      %v8482 = vld [vmem:[%s350 + $0x8] sm:$0xf]
      %v8483 = vld [vmem:[%s350 + $0xc] sm:$0xf]
      %v8484 = vld [vmem:[%s350 + $0x10] sm:$0xf]
      %v8485 = vld [vmem:[%s350 + $0x14] sm:$0xf]
      %v8486 = vld [vmem:[%s350 + $0x18] sm:$0xf]
      %v8487 = vld [vmem:[%s350 + $0x1c] sm:$0xf]
      %v8488 = vld [vmem:[%s350 + $0x20] sm:$0xf]
      %v8489 = vld [vmem:[%s350 + $0x24] sm:$0xf]
      %v8490 = vld [vmem:[%s350 + $0x28] sm:$0xf]
      %v8491 = vld [vmem:[%s350 + $0x2c] sm:$0xf]
      %v8492 = vld [vmem:[%s350 + $0x30] sm:$0xf]
      %v8493 = vld [vmem:[%s350 + $0x34] sm:$0xf]
      %v8494 = vld [vmem:[%s350 + $0x38] sm:$0xf]
      %v8495 = vld [vmem:[%s350 + $0x3c] sm:$0xf]
      %v8496 = vld [vmem:[%s350 + $0x40] sm:$0xf]
      %v8497 = vld [vmem:[%s350 + $0x44] sm:$0xf]
      %v8498 = vld [vmem:[%s350 + $0x48] sm:$0xf]
      %v8499 = vld [vmem:[%s350 + $0x4c] sm:$0xf]
      %v8500 = vld [vmem:[%s350 + $0x50] sm:$0xf]
      %v8501 = vld [vmem:[%s350 + $0x54] sm:$0xf]
      %v8502 = vld [vmem:[%s350 + $0x58] sm:$0xf]
      %v8503 = vld [vmem:[%s350 + $0x5c] sm:$0xf]
      %v8504 = vld [vmem:[%s350 + $0x60] sm:$0xf]
      %v8505 = vld [vmem:[%s350 + $0x64] sm:$0xf]
      %v8506 = vld [vmem:[%s350 + $0x68] sm:$0xf]
      %v8507 = vld [vmem:[%s350 + $0x6c] sm:$0xf]
      %v8508 = vld [vmem:[%s350 + $0x70] sm:$0xf]
      %v8509 = vld [vmem:[%s350 + $0x74] sm:$0xf]
      %v8510 = vld [vmem:[%s350 + $0x78] sm:$0xf]
      %v8511 = vld [vmem:[%s350 + $0x7c] sm:$0xf]
      %v8512 = vld [vmem:[%s350 + $0x80] sm:$0xf]
      %v8513 = vld [vmem:[%s350 + $0x84] sm:$0xf]
      %v8514 = vld [vmem:[%s350 + $0x88] sm:$0xf]
      %v8515 = vld [vmem:[%s350 + $0x8c] sm:$0xf]
      %v8516 = vld [vmem:[%s350 + $0x90] sm:$0xf]
      %v8517 = vld [vmem:[%s350 + $0x94] sm:$0xf]
      %v8518 = vld [vmem:[%s350 + $0x98] sm:$0xf]
      %v8519 = vld [vmem:[%s350 + $0x9c] sm:$0xf]
      %v8520 = vld [vmem:[%s350 + $0xa0] sm:$0xf]
      %v8521 = vld [vmem:[%s350 + $0xa4] sm:$0xf]
      %v8522 = vld [vmem:[%s350 + $0xa8] sm:$0xf]
      %v8523 = vld [vmem:[%s350 + $0xac] sm:$0xf]
      %v8524 = vld [vmem:[%s350 + $0xb0] sm:$0xf]
      %v8525 = vld [vmem:[%s350 + $0xb4] sm:$0xf]
      %v8526 = vld [vmem:[%s350 + $0xb8] sm:$0xf]
      %v8527 = vld [vmem:[%s350 + $0xbc] sm:$0xf]
      %v8528 = vld [vmem:[%s350 + $0xc0] sm:$0xf]
      %v8529 = vld [vmem:[%s350 + $0xc4] sm:$0xf]
      %v8530 = vld [vmem:[%s350 + $0xc8] sm:$0xf]
      %v8531 = vld [vmem:[%s350 + $0xcc] sm:$0xf]
      %v8532 = vld [vmem:[%s350 + $0xd0] sm:$0xf]
      %v8533 = vld [vmem:[%s350 + $0xd4] sm:$0xf]
      %v8534 = vld [vmem:[%s350 + $0xd8] sm:$0xf]
      %v8535 = vld [vmem:[%s350 + $0xdc] sm:$0xf]
      %v8536 = vld [vmem:[%s350 + $0xe0] sm:$0xf]
      %v8537 = vld [vmem:[%s350 + $0xe4] sm:$0xf]
      %v8538 = vld [vmem:[%s350 + $0xe8] sm:$0xf]
      %v8539 = vld [vmem:[%s350 + $0xec] sm:$0xf]
      %v8540 = vld [vmem:[%s350 + $0xf0] sm:$0xf]
      %v8541 = vld [vmem:[%s350 + $0xf4] sm:$0xf]
      %v8542 = vld [vmem:[%s350 + $0xf8] sm:$0xf]
      %v8543 = vld [vmem:[%s350 + $0xfc] sm:$0xf]
      %v8544 = vld [vmem:[%s6] sm:$0xf]
      %v8545 = vld [vmem:[%s6 + $0x4] sm:$0xf]
      %v8546 = vld [vmem:[%s6 + $0x8] sm:$0xf]
      %v8547 = vld [vmem:[%s6 + $0xc] sm:$0xf]
      %v8548 = vpack.c.bf16 %v8417, %v8416
      %v8549 = vpack.c.bf16 %v8419, %v8418
      %v8550 = vpack.c.bf16 %v8421, %v8420
      %v8551 = vpack.c.bf16 %v8423, %v8422
      %v8552 = vpack.c.bf16 %v8425, %v8424
      %v8553 = vpack.c.bf16 %v8427, %v8426
      %v8554 = vpack.c.bf16 %v8429, %v8428
      %v8555 = vpack.c.bf16 %v8431, %v8430
      %v8556 = vpack.c.bf16 %v8433, %v8432
      %v8557 = vpack.c.bf16 %v8435, %v8434
      %v8558 = vpack.c.bf16 %v8437, %v8436
      %v8559 = vpack.c.bf16 %v8439, %v8438
      %v8560 = vpack.c.bf16 %v8441, %v8440
      %v8561 = vpack.c.bf16 %v8443, %v8442
      %v8562 = vpack.c.bf16 %v8445, %v8444
      %v8563 = vpack.c.bf16 %v8447, %v8446
      %v8564 = vpack.c.bf16 %v8449, %v8448
      %v8565 = vpack.c.bf16 %v8451, %v8450
      %v8566 = vpack.c.bf16 %v8453, %v8452
      %v8567 = vpack.c.bf16 %v8455, %v8454
      %v8568 = vpack.c.bf16 %v8457, %v8456
      %v8569 = vpack.c.bf16 %v8459, %v8458
      %v8570 = vpack.c.bf16 %v8461, %v8460
      %v8571 = vpack.c.bf16 %v8463, %v8462
      %v8572 = vpack.c.bf16 %v8465, %v8464
      %v8573 = vpack.c.bf16 %v8467, %v8466
      %v8574 = vpack.c.bf16 %v8469, %v8468
      %v8575 = vpack.c.bf16 %v8471, %v8470
      %v8576 = vpack.c.bf16 %v8473, %v8472
      %v8577 = vpack.c.bf16 %v8475, %v8474
      %v8578 = vpack.c.bf16 %v8477, %v8476
      %v8579 = vpack.c.bf16 %v8479, %v8478
      %v8580 = vld [vmem:[%s5] sm:$0xf]
      %v8581 = vld [vmem:[%s5 + $0x4] sm:$0xf]
      %v8582 = vld [vmem:[%s5 + $0x8] sm:$0xf]
      %v8583 = vld [vmem:[%s5 + $0xc] sm:$0xf]
      %v8584 = vld [vmem:[%s5 + $0x10] sm:$0xf]
      %v8585 = vld [vmem:[%s5 + $0x14] sm:$0xf]
      %v8586 = vld [vmem:[%s5 + $0x18] sm:$0xf]
      %v8587 = vld [vmem:[%s5 + $0x1c] sm:$0xf]
      %v8596 = vunpack.c.l.b16 %v8580
      %v8597 = vunpack.c.l.b16 %v8581
      %v8598 = vunpack.c.l.b16 %v8582
      %v8599 = vunpack.c.l.b16 %v8583
      %v8600 = vunpack.c.l.b16 %v8584
      %v8601 = vunpack.c.l.b16 %v8585
      %v8602 = vunpack.c.l.b16 %v8586
      %v8603 = vunpack.c.l.b16 %v8587
      %v8604 = vpack.c.b16 %v8597, %v8596
      %v8605 = vpack.c.b16 %v8599, %v8598
      %v8606 = vpack.c.b16 %v8601, %v8600
      %v8607 = vpack.c.b16 %v8603, %v8602
      %v8613 = vsel %vm7838, %v8548, 0
      %v8616 = vsel %vm7838, %v8549, 0
      %v8619 = vsel %vm7838, %v8550, 0
      %v8622 = vsel %vm7838, %v8551, 0
      %v8625 = vsel %vm7838, %v8552, 0
      %v8628 = vsel %vm7838, %v8553, 0
      %v8631 = vsel %vm7838, %v8554, 0
      %v8634 = vsel %vm7838, %v8555, 0
      %v8637 = vsel %vm7838, %v8556, 0
      %v8640 = vsel %vm7838, %v8557, 0
      %v8643 = vsel %vm7838, %v8558, 0
      %v8646 = vsel %vm7838, %v8559, 0
      %v8649 = vsel %vm7838, %v8560, 0
      %v8652 = vsel %vm7838, %v8561, 0
      %v8655 = vsel %vm7838, %v8562, 0
      %v8658 = vsel %vm7838, %v8563, 0
      %v8661 = vsel %vm7838, %v8564, 0
      %v8664 = vsel %vm7838, %v8565, 0
      %v8667 = vsel %vm7838, %v8566, 0
      %v8670 = vsel %vm7838, %v8567, 0
      %v8673 = vsel %vm7838, %v8568, 0
      %v8676 = vsel %vm7838, %v8569, 0
      %v8679 = vsel %vm7838, %v8570, 0
      %v8682 = vsel %vm7838, %v8571, 0
      %v8685 = vsel %vm7838, %v8572, 0
      %v8688 = vsel %vm7838, %v8573, 0
      %v8691 = vsel %vm7838, %v8574, 0
      %v8694 = vsel %vm7838, %v8575, 0
      %v8697 = vsel %vm7838, %v8576, 0
      %v8700 = vsel %vm7838, %v8577, 0
      %v8703 = vsel %vm7838, %v8578, 0
      %v8706 = vsel %vm7838, %v8579, 0
      %8708 = vmatprep.subr.bf16.mxu0 0
      %8709 = vmatpush1.bf16.msra.mxu0 %v8604
      %8710 = vmatprep.subr.bf16.mxu0 0
      %8711 = vmatpush1.bf16.msra.mxu0 %v8605
      %8712 = vmatprep.subr.bf16.mxu0 0
      %8713 = vmatpush1.bf16.msra.mxu0 %v8606
      %8714 = vmatprep.subr.bf16.mxu0 0
      %8715 = vmatpush1.bf16.msra.mxu0 %v8607
      %8716 = vmatprep.subr.bf16.mxu0 0
      %8717 = vmatpush1.bf16.msra.mxu0 0
      %8718 = vmatprep.subr.bf16.mxu0 0
      %8719 = vmatpush1.bf16.msra.mxu0 0
      %8720 = vmatprep.subr.bf16.mxu0 0
      %8721 = vmatpush1.bf16.msra.mxu0 0
      %8722 = vmatprep.subr.bf16.mxu0 0
      %8723 = vmatpush1.bf16.msra.mxu0 0
      %8724 = vmatprep.subr.bf16.mxu0 0
      %8725 = vmatpush1.bf16.msra.mxu0 0
      %8726 = vmatprep.subr.bf16.mxu0 0
      %8727 = vmatpush1.bf16.msra.mxu0 0
      %8728 = vmatprep.subr.bf16.mxu0 0
      %8729 = vmatpush1.bf16.msra.mxu0 0
      %8730 = vmatprep.subr.bf16.mxu0 0
      %8731 = vmatpush1.bf16.msra.mxu0 0
      %8732 = vmatprep.subr.bf16.mxu0 0
      %8733 = vmatpush1.bf16.msra.mxu0 0
      %8734 = vmatprep.subr.bf16.mxu0 0
      %8735 = vmatpush1.bf16.msra.mxu0 0
      %8736 = vmatprep.subr.bf16.mxu0 0
      %8737 = vmatpush1.bf16.msra.mxu0 0
      %8738 = vmatprep.subr.bf16.mxu0 0
      %8739 = vmatpush1.bf16.msra.mxu0 0
      %8740 = vmatprep.mubr.bf16.mxu0 0
      %8741 = vmatmul.mubr.bf16.gmra.mrb[0].mxu0 %v8613
      %v8742 = vpop.f32.mrb[0].mxu0
      %v8743 = vadd.f32 0.0, %v8742
      %v8744 = vpop.f32.mrb[0].mxu0
      %v8745 = vpop.f32.mrb[0].mxu0
      %v8746 = vadd.f32 0.0, %v8745
      %v8747 = vpop.f32.mrb[0].mxu0
      %8748 = vmatprep.mubr.bf16.mxu0 0
      %8749 = vmatmul.mubr.bf16.gmra.mrb[0].mxu0 %v8616
      %v8750 = vpop.f32.mrb[0].mxu0
      %v8751 = vadd.f32 0.0, %v8750
      %v8752 = vpop.f32.mrb[0].mxu0
      %v8753 = vpop.f32.mrb[0].mxu0
      %v8754 = vadd.f32 0.0, %v8753
      %v8755 = vpop.f32.mrb[0].mxu0
      %8756 = vmatprep.mubr.bf16.mxu0 0
      %8757 = vmatmul.mubr.bf16.gmra.mrb[0].mxu0 %v8619
      %v8758 = vpop.f32.mrb[0].mxu0
      %v8759 = vadd.f32 0.0, %v8758
      %v8760 = vpop.f32.mrb[0].mxu0
      %v8761 = vpop.f32.mrb[0].mxu0
      %v8762 = vadd.f32 0.0, %v8761
      %v8763 = vpop.f32.mrb[0].mxu0
      %8764 = vmatprep.mubr.bf16.mxu0 0
      %8765 = vmatmul.mubr.bf16.gmra.mrb[0].mxu0 %v8622
      %v8766 = vpop.f32.mrb[0].mxu0
      %v8767 = vadd.f32 0.0, %v8766
      %v8768 = vpop.f32.mrb[0].mxu0
      %v8769 = vpop.f32.mrb[0].mxu0
      %v8770 = vadd.f32 0.0, %v8769
      %v8771 = vpop.f32.mrb[0].mxu0
      %8772 = vmatprep.mubr.bf16.mxu0 0
      %8773 = vmatmul.mubr.bf16.gmra.mrb[0].mxu0 %v8625
      %v8774 = vpop.f32.mrb[0].mxu0
      %v8775 = vadd.f32 0.0, %v8774
      %v8776 = vpop.f32.mrb[0].mxu0
      %v8777 = vpop.f32.mrb[0].mxu0
      %v8778 = vadd.f32 0.0, %v8777
      %v8779 = vpop.f32.mrb[0].mxu0
      %8780 = vmatprep.mubr.bf16.mxu0 0
      %8781 = vmatmul.mubr.bf16.gmra.mrb[0].mxu0 %v8628
      %v8782 = vpop.f32.mrb[0].mxu0
      %v8783 = vadd.f32 0.0, %v8782
      %v8784 = vpop.f32.mrb[0].mxu0
      %v8785 = vpop.f32.mrb[0].mxu0
      %v8786 = vadd.f32 0.0, %v8785
      %v8787 = vpop.f32.mrb[0].mxu0
      %8788 = vmatprep.mubr.bf16.mxu0 0
      %8789 = vmatmul.mubr.bf16.gmra.mrb[0].mxu0 %v8631
      %v8790 = vpop.f32.mrb[0].mxu0
      %v8791 = vadd.f32 0.0, %v8790
      %v8792 = vpop.f32.mrb[0].mxu0
      %v8793 = vpop.f32.mrb[0].mxu0
      %v8794 = vadd.f32 0.0, %v8793
      %v8795 = vpop.f32.mrb[0].mxu0
      %8796 = vmatprep.mubr.bf16.mxu0 0
      %8797 = vmatmul.mubr.bf16.gmra.mrb[0].mxu0 %v8634
      %v8798 = vpop.f32.mrb[0].mxu0
      %v8799 = vadd.f32 0.0, %v8798
      %v8800 = vpop.f32.mrb[0].mxu0
      %v8801 = vpop.f32.mrb[0].mxu0
      %v8802 = vadd.f32 0.0, %v8801
      %v8803 = vpop.f32.mrb[0].mxu0
      %8804 = vmatprep.mubr.bf16.mxu0 0
      %8805 = vmatmul.mubr.bf16.gmra.mrb[0].mxu0 %v8637
      %v8806 = vpop.f32.mrb[0].mxu0
      %v8807 = vadd.f32 0.0, %v8806
      %v8808 = vpop.f32.mrb[0].mxu0
      %v8809 = vpop.f32.mrb[0].mxu0
      %v8810 = vadd.f32 0.0, %v8809
      %v8811 = vpop.f32.mrb[0].mxu0
      %8812 = vmatprep.mubr.bf16.mxu0 0
      %8813 = vmatmul.mubr.bf16.gmra.mrb[0].mxu0 %v8640
      %v8814 = vpop.f32.mrb[0].mxu0
      %v8815 = vadd.f32 0.0, %v8814
      %v8816 = vpop.f32.mrb[0].mxu0
      %v8817 = vpop.f32.mrb[0].mxu0
      %v8818 = vadd.f32 0.0, %v8817
      %v8819 = vpop.f32.mrb[0].mxu0
      %8820 = vmatprep.mubr.bf16.mxu0 0
      %8821 = vmatmul.mubr.bf16.gmra.mrb[0].mxu0 %v8643
      %v8822 = vpop.f32.mrb[0].mxu0
      %v8823 = vadd.f32 0.0, %v8822
      %v8824 = vpop.f32.mrb[0].mxu0
      %v8825 = vpop.f32.mrb[0].mxu0
      %v8826 = vadd.f32 0.0, %v8825
      %v8827 = vpop.f32.mrb[0].mxu0
      %8828 = vmatprep.mubr.bf16.mxu0 0
      %8829 = vmatmul.mubr.bf16.gmra.mrb[0].mxu0 %v8646
      %v8830 = vpop.f32.mrb[0].mxu0
      %v8831 = vadd.f32 0.0, %v8830
      %v8832 = vpop.f32.mrb[0].mxu0
      %v8833 = vpop.f32.mrb[0].mxu0
      %v8834 = vadd.f32 0.0, %v8833
      %v8835 = vpop.f32.mrb[0].mxu0
      %8836 = vmatprep.mubr.bf16.mxu0 0
      %8837 = vmatmul.mubr.bf16.gmra.mrb[0].mxu0 %v8649
      %v8838 = vpop.f32.mrb[0].mxu0
      %v8839 = vadd.f32 0.0, %v8838
      %v8840 = vpop.f32.mrb[0].mxu0
      %v8841 = vpop.f32.mrb[0].mxu0
      %v8842 = vadd.f32 0.0, %v8841
      %v8843 = vpop.f32.mrb[0].mxu0
      %8844 = vmatprep.mubr.bf16.mxu0 0
      %8845 = vmatmul.mubr.bf16.gmra.mrb[0].mxu0 %v8652
      %v8846 = vpop.f32.mrb[0].mxu0
      %v8847 = vadd.f32 0.0, %v8846
      %v8848 = vpop.f32.mrb[0].mxu0
      %v8849 = vpop.f32.mrb[0].mxu0
      %v8850 = vadd.f32 0.0, %v8849
      %v8851 = vpop.f32.mrb[0].mxu0
      %8852 = vmatprep.mubr.bf16.mxu0 0
      %8853 = vmatmul.mubr.bf16.gmra.mrb[0].mxu0 %v8655
      %v8854 = vpop.f32.mrb[0].mxu0
      %v8855 = vadd.f32 0.0, %v8854
      %v8856 = vpop.f32.mrb[0].mxu0
      %v8857 = vpop.f32.mrb[0].mxu0
      %v8858 = vadd.f32 0.0, %v8857
      %v8859 = vpop.f32.mrb[0].mxu0
      %8860 = vmatprep.mubr.bf16.mxu0 0
      %8861 = vmatmul.mubr.bf16.gmra.mrb[0].mxu0 %v8658
      %v8862 = vpop.f32.mrb[0].mxu0
      %v8863 = vadd.f32 0.0, %v8862
      %v8864 = vpop.f32.mrb[0].mxu0
      %v8865 = vpop.f32.mrb[0].mxu0
      %v8866 = vadd.f32 0.0, %v8865
      %v8867 = vpop.f32.mrb[0].mxu0
      %8868 = vmatprep.mubr.bf16.mxu0 0
      %8869 = vmatmul.mubr.bf16.gmra.mrb[0].mxu0 %v8661
      %v8870 = vpop.f32.mrb[0].mxu0
      %v8871 = vadd.f32 0.0, %v8870
      %v8872 = vpop.f32.mrb[0].mxu0
      %v8873 = vpop.f32.mrb[0].mxu0
      %v8874 = vadd.f32 0.0, %v8873
      %v8875 = vpop.f32.mrb[0].mxu0
      %8876 = vmatprep.mubr.bf16.mxu0 0
      %8877 = vmatmul.mubr.bf16.gmra.mrb[0].mxu0 %v8664
      %v8878 = vpop.f32.mrb[0].mxu0
      %v8879 = vadd.f32 0.0, %v8878
      %v8880 = vpop.f32.mrb[0].mxu0
      %v8881 = vpop.f32.mrb[0].mxu0
      %v8882 = vadd.f32 0.0, %v8881
      %v8883 = vpop.f32.mrb[0].mxu0
      %8884 = vmatprep.mubr.bf16.mxu0 0
      %8885 = vmatmul.mubr.bf16.gmra.mrb[0].mxu0 %v8667
      %v8886 = vpop.f32.mrb[0].mxu0
      %v8887 = vadd.f32 0.0, %v8886
      %v8888 = vpop.f32.mrb[0].mxu0
      %v8889 = vpop.f32.mrb[0].mxu0
      %v8890 = vadd.f32 0.0, %v8889
      %v8891 = vpop.f32.mrb[0].mxu0
      %8892 = vmatprep.mubr.bf16.mxu0 0
      %8893 = vmatmul.mubr.bf16.gmra.mrb[0].mxu0 %v8670
      %v8894 = vpop.f32.mrb[0].mxu0
      %v8895 = vadd.f32 0.0, %v8894
      %v8896 = vpop.f32.mrb[0].mxu0
      %v8897 = vpop.f32.mrb[0].mxu0
      %v8898 = vadd.f32 0.0, %v8897
      %v8899 = vpop.f32.mrb[0].mxu0
      %8900 = vmatprep.mubr.bf16.mxu0 0
      %8901 = vmatmul.mubr.bf16.gmra.mrb[0].mxu0 %v8673
      %v8902 = vpop.f32.mrb[0].mxu0
      %v8903 = vadd.f32 0.0, %v8902
      %v8904 = vpop.f32.mrb[0].mxu0
      %v8905 = vpop.f32.mrb[0].mxu0
      %v8906 = vadd.f32 0.0, %v8905
      %v8907 = vpop.f32.mrb[0].mxu0
      %8908 = vmatprep.mubr.bf16.mxu0 0
      %8909 = vmatmul.mubr.bf16.gmra.mrb[0].mxu0 %v8676
      %v8910 = vpop.f32.mrb[0].mxu0
      %v8911 = vadd.f32 0.0, %v8910
      %v8912 = vpop.f32.mrb[0].mxu0
      %v8913 = vpop.f32.mrb[0].mxu0
      %v8914 = vadd.f32 0.0, %v8913
      %v8915 = vpop.f32.mrb[0].mxu0
      %8916 = vmatprep.mubr.bf16.mxu0 0
      %8917 = vmatmul.mubr.bf16.gmra.mrb[0].mxu0 %v8679
      %v8918 = vpop.f32.mrb[0].mxu0
      %v8919 = vadd.f32 0.0, %v8918
      %v8920 = vpop.f32.mrb[0].mxu0
      %v8921 = vpop.f32.mrb[0].mxu0
      %v8922 = vadd.f32 0.0, %v8921
      %v8923 = vpop.f32.mrb[0].mxu0
      %8924 = vmatprep.mubr.bf16.mxu0 0
      %8925 = vmatmul.mubr.bf16.gmra.mrb[0].mxu0 %v8682
      %v8926 = vpop.f32.mrb[0].mxu0
      %v8927 = vadd.f32 0.0, %v8926
      %v8928 = vpop.f32.mrb[0].mxu0
      %v8929 = vpop.f32.mrb[0].mxu0
      %v8930 = vadd.f32 0.0, %v8929
      %v8931 = vpop.f32.mrb[0].mxu0
      %8932 = vmatprep.mubr.bf16.mxu0 0
      %8933 = vmatmul.mubr.bf16.gmra.mrb[0].mxu0 %v8685
      %v8934 = vpop.f32.mrb[0].mxu0
      %v8935 = vadd.f32 0.0, %v8934
      %v8936 = vpop.f32.mrb[0].mxu0
      %v8937 = vpop.f32.mrb[0].mxu0
      %v8938 = vadd.f32 0.0, %v8937
      %v8939 = vpop.f32.mrb[0].mxu0
      %8940 = vmatprep.mubr.bf16.mxu0 0
      %8941 = vmatmul.mubr.bf16.gmra.mrb[0].mxu0 %v8688
      %v8942 = vpop.f32.mrb[0].mxu0
      %v8943 = vadd.f32 0.0, %v8942
      %v8944 = vpop.f32.mrb[0].mxu0
      %v8945 = vpop.f32.mrb[0].mxu0
      %v8946 = vadd.f32 0.0, %v8945
      %v8947 = vpop.f32.mrb[0].mxu0
      %8948 = vmatprep.mubr.bf16.mxu0 0
      %8949 = vmatmul.mubr.bf16.gmra.mrb[0].mxu0 %v8691
      %v8950 = vpop.f32.mrb[0].mxu0
      %v8951 = vadd.f32 0.0, %v8950
      %v8952 = vpop.f32.mrb[0].mxu0
      %v8953 = vpop.f32.mrb[0].mxu0
      %v8954 = vadd.f32 0.0, %v8953
      %v8955 = vpop.f32.mrb[0].mxu0
      %8956 = vmatprep.mubr.bf16.mxu0 0
      %8957 = vmatmul.mubr.bf16.gmra.mrb[0].mxu0 %v8694
      %v8958 = vpop.f32.mrb[0].mxu0
      %v8959 = vadd.f32 0.0, %v8958
      %v8960 = vpop.f32.mrb[0].mxu0
      %v8961 = vpop.f32.mrb[0].mxu0
      %v8962 = vadd.f32 0.0, %v8961
      %v8963 = vpop.f32.mrb[0].mxu0
      %8964 = vmatprep.mubr.bf16.mxu0 0
      %8965 = vmatmul.mubr.bf16.gmra.mrb[0].mxu0 %v8697
      %v8966 = vpop.f32.mrb[0].mxu0
      %v8967 = vadd.f32 0.0, %v8966
      %v8968 = vpop.f32.mrb[0].mxu0
      %v8969 = vpop.f32.mrb[0].mxu0
      %v8970 = vadd.f32 0.0, %v8969
      %v8971 = vpop.f32.mrb[0].mxu0
      %8972 = vmatprep.mubr.bf16.mxu0 0
      %8973 = vmatmul.mubr.bf16.gmra.mrb[0].mxu0 %v8700
      %v8974 = vpop.f32.mrb[0].mxu0
      %v8975 = vadd.f32 0.0, %v8974
      %v8976 = vpop.f32.mrb[0].mxu0
      %v8977 = vpop.f32.mrb[0].mxu0
      %v8978 = vadd.f32 0.0, %v8977
      %v8979 = vpop.f32.mrb[0].mxu0
      %8980 = vmatprep.mubr.bf16.mxu0 0
      %8981 = vmatmul.mubr.bf16.gmra.mrb[0].mxu0 %v8703
      %v8982 = vpop.f32.mrb[0].mxu0
      %v8983 = vadd.f32 0.0, %v8982
      %v8984 = vpop.f32.mrb[0].mxu0
      %v8985 = vpop.f32.mrb[0].mxu0
      %v8986 = vadd.f32 0.0, %v8985
      %v8987 = vpop.f32.mrb[0].mxu0
      %8988 = vmatprep.mubr.bf16.mxu0 0
      %8989 = vmatmul.mubr.bf16.gmra.mrb[0].mxu0 %v8706
      %v8990 = vpop.f32.mrb[0].mxu0
      %v8991 = vadd.f32 0.0, %v8990
      %v8992 = vpop.f32.mrb[0].mxu0
      %v8993 = vpop.f32.mrb[0].mxu0
      %v8994 = vadd.f32 0.0, %v8993
      %v8995 = vpop.f32.mrb[0].mxu0
      %8996 = vdwg.mxu0
      %v9061 = vunpack.c.l.b16 %v8480
      %v9062 = vunpack.c.l.b16 %v8481
      %v9063 = vunpack.c.l.b16 %v8482
      %v9064 = vunpack.c.l.b16 %v8483
      %v9065 = vunpack.c.l.b16 %v8484
      %v9066 = vunpack.c.l.b16 %v8485
      %v9067 = vunpack.c.l.b16 %v8486
      %v9068 = vunpack.c.l.b16 %v8487
      %v9069 = vunpack.c.l.b16 %v8488
      %v9070 = vunpack.c.l.b16 %v8489
      %v9071 = vunpack.c.l.b16 %v8490
      %v9072 = vunpack.c.l.b16 %v8491
      %v9073 = vunpack.c.l.b16 %v8492
      %v9074 = vunpack.c.l.b16 %v8493
      %v9075 = vunpack.c.l.b16 %v8494
      %v9076 = vunpack.c.l.b16 %v8495
      %v9077 = vunpack.c.l.b16 %v8496
      %v9078 = vunpack.c.l.b16 %v8497
      %v9079 = vunpack.c.l.b16 %v8498
      %v9080 = vunpack.c.l.b16 %v8499
      %v9081 = vunpack.c.l.b16 %v8500
      %v9082 = vunpack.c.l.b16 %v8501
      %v9083 = vunpack.c.l.b16 %v8502
      %v9084 = vunpack.c.l.b16 %v8503
      %v9085 = vunpack.c.l.b16 %v8504
      %v9086 = vunpack.c.l.b16 %v8505
      %v9087 = vunpack.c.l.b16 %v8506
      %v9088 = vunpack.c.l.b16 %v8507
      %v9089 = vunpack.c.l.b16 %v8508
      %v9090 = vunpack.c.l.b16 %v8509
      %v9091 = vunpack.c.l.b16 %v8510
      %v9092 = vunpack.c.l.b16 %v8511
      %v9093 = vunpack.c.l.b16 %v8512
      %v9094 = vunpack.c.l.b16 %v8513
      %v9095 = vunpack.c.l.b16 %v8514
      %v9096 = vunpack.c.l.b16 %v8515
      %v9097 = vunpack.c.l.b16 %v8516
      %v9098 = vunpack.c.l.b16 %v8517
      %v9099 = vunpack.c.l.b16 %v8518
      %v9100 = vunpack.c.l.b16 %v8519
      %v9101 = vunpack.c.l.b16 %v8520
      %v9102 = vunpack.c.l.b16 %v8521
      %v9103 = vunpack.c.l.b16 %v8522
      %v9104 = vunpack.c.l.b16 %v8523
      %v9105 = vunpack.c.l.b16 %v8524
      %v9106 = vunpack.c.l.b16 %v8525
      %v9107 = vunpack.c.l.b16 %v8526
      %v9108 = vunpack.c.l.b16 %v8527
      %v9109 = vunpack.c.l.b16 %v8528
      %v9110 = vunpack.c.l.b16 %v8529
      %v9111 = vunpack.c.l.b16 %v8530
      %v9112 = vunpack.c.l.b16 %v8531
      %v9113 = vunpack.c.l.b16 %v8532
      %v9114 = vunpack.c.l.b16 %v8533
      %v9115 = vunpack.c.l.b16 %v8534
      %v9116 = vunpack.c.l.b16 %v8535
      %v9117 = vunpack.c.l.b16 %v8536
      %v9118 = vunpack.c.l.b16 %v8537
      %v9119 = vunpack.c.l.b16 %v8538
      %v9120 = vunpack.c.l.b16 %v8539
      %v9121 = vunpack.c.l.b16 %v8540
      %v9122 = vunpack.c.l.b16 %v8541
      %v9123 = vunpack.c.l.b16 %v8542
      %v9124 = vunpack.c.l.b16 %v8543
      %v9125 = vpack.c.b16 %v9062, %v9061
      %v9126 = vpack.c.b16 %v9064, %v9063
      %v9127 = vpack.c.b16 %v9066, %v9065
      %v9128 = vpack.c.b16 %v9068, %v9067
      %v9129 = vpack.c.b16 %v9070, %v9069
      %v9130 = vpack.c.b16 %v9072, %v9071
      %v9131 = vpack.c.b16 %v9074, %v9073
      %v9132 = vpack.c.b16 %v9076, %v9075
      %v9133 = vpack.c.b16 %v9078, %v9077
      %v9134 = vpack.c.b16 %v9080, %v9079
      %v9135 = vpack.c.b16 %v9082, %v9081
      %v9136 = vpack.c.b16 %v9084, %v9083
      %v9137 = vpack.c.b16 %v9086, %v9085
      %v9138 = vpack.c.b16 %v9088, %v9087
      %v9139 = vpack.c.b16 %v9090, %v9089
      %v9140 = vpack.c.b16 %v9092, %v9091
      %v9141 = vpack.c.b16 %v9094, %v9093
      %v9142 = vpack.c.b16 %v9096, %v9095
      %v9143 = vpack.c.b16 %v9098, %v9097
      %v9144 = vpack.c.b16 %v9100, %v9099
      %v9145 = vpack.c.b16 %v9102, %v9101
      %v9146 = vpack.c.b16 %v9104, %v9103
      %v9147 = vpack.c.b16 %v9106, %v9105
      %v9148 = vpack.c.b16 %v9108, %v9107
      %v9149 = vpack.c.b16 %v9110, %v9109
      %v9150 = vpack.c.b16 %v9112, %v9111
      %v9151 = vpack.c.b16 %v9114, %v9113
      %v9152 = vpack.c.b16 %v9116, %v9115
      %v9153 = vpack.c.b16 %v9118, %v9117
      %v9154 = vpack.c.b16 %v9120, %v9119
      %v9155 = vpack.c.b16 %v9122, %v9121
      %v9156 = vpack.c.b16 %v9124, %v9123
      %v9161 = vunpack.c.l.b16 %v8544
      %v9162 = vunpack.c.l.b16 %v8545
      %v9163 = vunpack.c.l.b16 %v8546
      %v9164 = vunpack.c.l.b16 %v8547
      %v9165 = vpack.c.b16 %v9162, %v9161
      %v9166 = vpack.c.b16 %v9164, %v9163
      %vm9169 = vcmask 261120
      %v9171 = vsel %vm9169, %v9125, 0
      %v9174 = vsel %vm9169, %v9126, 0
      %v9177 = vsel %vm9169, %v9127, 0
      %v9180 = vsel %vm9169, %v9128, 0
      %v9183 = vsel %vm9169, %v9129, 0
      %v9186 = vsel %vm9169, %v9130, 0
      %v9189 = vsel %vm9169, %v9131, 0
      %v9192 = vsel %vm9169, %v9132, 0
      %v9195 = vsel %vm9169, %v9133, 0
      %v9198 = vsel %vm9169, %v9134, 0
      %v9201 = vsel %vm9169, %v9135, 0
      %v9204 = vsel %vm9169, %v9136, 0
      %v9207 = vsel %vm9169, %v9137, 0
      %v9210 = vsel %vm9169, %v9138, 0
      %v9213 = vsel %vm9169, %v9139, 0
      %v9216 = vsel %vm9169, %v9140, 0
      %v9219 = vsel %vm9169, %v9141, 0
      %v9222 = vsel %vm9169, %v9142, 0
      %v9225 = vsel %vm9169, %v9143, 0
      %v9228 = vsel %vm9169, %v9144, 0
      %v9231 = vsel %vm9169, %v9145, 0
      %v9234 = vsel %vm9169, %v9146, 0
      %v9237 = vsel %vm9169, %v9147, 0
      %v9240 = vsel %vm9169, %v9148, 0
      %v9243 = vsel %vm9169, %v9149, 0
      %v9246 = vsel %vm9169, %v9150, 0
      %v9249 = vsel %vm9169, %v9151, 0
      %v9252 = vsel %vm9169, %v9152, 0
      %v9255 = vsel %vm9169, %v9153, 0
      %v9258 = vsel %vm9169, %v9154, 0
      %v9261 = vsel %vm9169, %v9155, 0
      %v9264 = vsel %vm9169, %v9156, 0
      %9266 = vmatprep.subr.bf16.mxu0 0
      %9267 = vmatpush1.bf16.msra.mxu0 %v9165
      %9268 = vmatprep.subr.bf16.mxu0 0
      %9269 = vmatpush1.bf16.msra.mxu0 %v9166
      %9270 = vmatprep.subr.bf16.mxu0 0
      %9271 = vmatpush1.bf16.msra.mxu0 0
      %9272 = vmatprep.subr.bf16.mxu0 0
      %9273 = vmatpush1.bf16.msra.mxu0 0
      %9274 = vmatprep.subr.bf16.mxu0 0
      %9275 = vmatpush1.bf16.msra.mxu0 0
      %9276 = vmatprep.subr.bf16.mxu0 0
      %9277 = vmatpush1.bf16.msra.mxu0 0
      %9278 = vmatprep.subr.bf16.mxu0 0
      %9279 = vmatpush1.bf16.msra.mxu0 0
      %9280 = vmatprep.subr.bf16.mxu0 0
      %9281 = vmatpush1.bf16.msra.mxu0 0
      %9282 = vmatprep.subr.bf16.mxu0 0
      %9283 = vmatpush1.bf16.msra.mxu0 0
      %9284 = vmatprep.subr.bf16.mxu0 0
      %9285 = vmatpush1.bf16.msra.mxu0 0
      %9286 = vmatprep.subr.bf16.mxu0 0
      %9287 = vmatpush1.bf16.msra.mxu0 0
      %9288 = vmatprep.subr.bf16.mxu0 0
      %9289 = vmatpush1.bf16.msra.mxu0 0
      %9290 = vmatprep.subr.bf16.mxu0 0
      %9291 = vmatpush1.bf16.msra.mxu0 0
      %9292 = vmatprep.subr.bf16.mxu0 0
      %9293 = vmatpush1.bf16.msra.mxu0 0
      %9294 = vmatprep.subr.bf16.mxu0 0
      %9295 = vmatpush1.bf16.msra.mxu0 0
      %9296 = vmatprep.subr.bf16.mxu0 0
      %9297 = vmatpush1.bf16.msra.mxu0 0
      %9298 = vmatprep.mubr.bf16.mxu0 0
      %9299 = vmatmul.mubr.bf16.gmra.mrb[0].mxu0 %v9171
      %v9300 = vpop.f32.mrb[0].mxu0
      %v9301 = vadd.f32 %v8743, %v9300
      %v9302 = vpop.f32.mrb[0].mxu0
      %v9303 = vpop.f32.mrb[0].mxu0
      %v9304 = vadd.f32 %v8746, %v9303
      %v9305 = vpop.f32.mrb[0].mxu0
      %9306 = vmatprep.mubr.bf16.mxu0 0
      %9307 = vmatmul.mubr.bf16.gmra.mrb[0].mxu0 %v9174
      %v9308 = vpop.f32.mrb[0].mxu0
      %v9309 = vadd.f32 %v8751, %v9308
      %v9310 = vpop.f32.mrb[0].mxu0
      %v9311 = vpop.f32.mrb[0].mxu0
      %v9312 = vadd.f32 %v8754, %v9311
      %v9313 = vpop.f32.mrb[0].mxu0
      %9314 = vmatprep.mubr.bf16.mxu0 0
      %9315 = vmatmul.mubr.bf16.gmra.mrb[0].mxu0 %v9177
      %v9316 = vpop.f32.mrb[0].mxu0
      %v9317 = vadd.f32 %v8759, %v9316
      %v9318 = vpop.f32.mrb[0].mxu0
      %v9319 = vpop.f32.mrb[0].mxu0
      %v9320 = vadd.f32 %v8762, %v9319
      %v9321 = vpop.f32.mrb[0].mxu0
      %9322 = vmatprep.mubr.bf16.mxu0 0
      %9323 = vmatmul.mubr.bf16.gmra.mrb[0].mxu0 %v9180
      %v9324 = vpop.f32.mrb[0].mxu0
      %v9325 = vadd.f32 %v8767, %v9324
      %v9326 = vpop.f32.mrb[0].mxu0
      %v9327 = vpop.f32.mrb[0].mxu0
      %v9328 = vadd.f32 %v8770, %v9327
      %v9329 = vpop.f32.mrb[0].mxu0
      %9330 = vmatprep.mubr.bf16.mxu0 0
      %9331 = vmatmul.mubr.bf16.gmra.mrb[0].mxu0 %v9183
      %v9332 = vpop.f32.mrb[0].mxu0
      %v9333 = vadd.f32 %v8775, %v9332
      %v9334 = vpop.f32.mrb[0].mxu0
      %v9335 = vpop.f32.mrb[0].mxu0
      %v9336 = vadd.f32 %v8778, %v9335
      %v9337 = vpop.f32.mrb[0].mxu0
      %9338 = vmatprep.mubr.bf16.mxu0 0
      %9339 = vmatmul.mubr.bf16.gmra.mrb[0].mxu0 %v9186
      %v9340 = vpop.f32.mrb[0].mxu0
      %v9341 = vadd.f32 %v8783, %v9340
      %v9342 = vpop.f32.mrb[0].mxu0
      %v9343 = vpop.f32.mrb[0].mxu0
      %v9344 = vadd.f32 %v8786, %v9343
      %v9345 = vpop.f32.mrb[0].mxu0
      %9346 = vmatprep.mubr.bf16.mxu0 0
      %9347 = vmatmul.mubr.bf16.gmra.mrb[0].mxu0 %v9189
      %v9348 = vpop.f32.mrb[0].mxu0
      %v9349 = vadd.f32 %v8791, %v9348
      %v9350 = vpop.f32.mrb[0].mxu0
      %v9351 = vpop.f32.mrb[0].mxu0
      %v9352 = vadd.f32 %v8794, %v9351
      %v9353 = vpop.f32.mrb[0].mxu0
      %9354 = vmatprep.mubr.bf16.mxu0 0
      %9355 = vmatmul.mubr.bf16.gmra.mrb[0].mxu0 %v9192
      %v9356 = vpop.f32.mrb[0].mxu0
      %v9357 = vadd.f32 %v8799, %v9356
      %v9358 = vpop.f32.mrb[0].mxu0
      %v9359 = vpop.f32.mrb[0].mxu0
      %v9360 = vadd.f32 %v8802, %v9359
      %v9361 = vpop.f32.mrb[0].mxu0
      %9362 = vmatprep.mubr.bf16.mxu0 0
      %9363 = vmatmul.mubr.bf16.gmra.mrb[0].mxu0 %v9195
      %v9364 = vpop.f32.mrb[0].mxu0
      %v9365 = vadd.f32 %v8807, %v9364
      %v9366 = vpop.f32.mrb[0].mxu0
      %v9367 = vpop.f32.mrb[0].mxu0
      %v9368 = vadd.f32 %v8810, %v9367
      %v9369 = vpop.f32.mrb[0].mxu0
      %9370 = vmatprep.mubr.bf16.mxu0 0
      %9371 = vmatmul.mubr.bf16.gmra.mrb[0].mxu0 %v9198
      %v9372 = vpop.f32.mrb[0].mxu0
      %v9373 = vadd.f32 %v8815, %v9372
      %v9374 = vpop.f32.mrb[0].mxu0
      %v9375 = vpop.f32.mrb[0].mxu0
      %v9376 = vadd.f32 %v8818, %v9375
      %v9377 = vpop.f32.mrb[0].mxu0
      %9378 = vmatprep.mubr.bf16.mxu0 0
      %9379 = vmatmul.mubr.bf16.gmra.mrb[0].mxu0 %v9201
      %v9380 = vpop.f32.mrb[0].mxu0
      %v9381 = vadd.f32 %v8823, %v9380
      %v9382 = vpop.f32.mrb[0].mxu0
      %v9383 = vpop.f32.mrb[0].mxu0
      %v9384 = vadd.f32 %v8826, %v9383
      %v9385 = vpop.f32.mrb[0].mxu0
      %9386 = vmatprep.mubr.bf16.mxu0 0
      %9387 = vmatmul.mubr.bf16.gmra.mrb[0].mxu0 %v9204
      %v9388 = vpop.f32.mrb[0].mxu0
      %v9389 = vadd.f32 %v8831, %v9388
      %v9390 = vpop.f32.mrb[0].mxu0
      %v9391 = vpop.f32.mrb[0].mxu0
      %v9392 = vadd.f32 %v8834, %v9391
      %v9393 = vpop.f32.mrb[0].mxu0
      %9394 = vmatprep.mubr.bf16.mxu0 0
      %9395 = vmatmul.mubr.bf16.gmra.mrb[0].mxu0 %v9207
      %v9396 = vpop.f32.mrb[0].mxu0
      %v9397 = vadd.f32 %v8839, %v9396
      %v9398 = vpop.f32.mrb[0].mxu0
      %v9399 = vpop.f32.mrb[0].mxu0
      %v9400 = vadd.f32 %v8842, %v9399
      %v9401 = vpop.f32.mrb[0].mxu0
      %9402 = vmatprep.mubr.bf16.mxu0 0
      %9403 = vmatmul.mubr.bf16.gmra.mrb[0].mxu0 %v9210
      %v9404 = vpop.f32.mrb[0].mxu0
      %v9405 = vadd.f32 %v8847, %v9404
      %v9406 = vpop.f32.mrb[0].mxu0
      %v9407 = vpop.f32.mrb[0].mxu0
      %v9408 = vadd.f32 %v8850, %v9407
      %v9409 = vpop.f32.mrb[0].mxu0
      %9410 = vmatprep.mubr.bf16.mxu0 0
      %9411 = vmatmul.mubr.bf16.gmra.mrb[0].mxu0 %v9213
      %v9412 = vpop.f32.mrb[0].mxu0
      %v9413 = vadd.f32 %v8855, %v9412
      %v9414 = vpop.f32.mrb[0].mxu0
      %v9415 = vpop.f32.mrb[0].mxu0
      %v9416 = vadd.f32 %v8858, %v9415
      %v9417 = vpop.f32.mrb[0].mxu0
      %9418 = vmatprep.mubr.bf16.mxu0 0
      %9419 = vmatmul.mubr.bf16.gmra.mrb[0].mxu0 %v9216
      %v9420 = vpop.f32.mrb[0].mxu0
      %v9421 = vadd.f32 %v8863, %v9420
      %v9422 = vpop.f32.mrb[0].mxu0
      %v9423 = vpop.f32.mrb[0].mxu0
      %v9424 = vadd.f32 %v8866, %v9423
      %v9425 = vpop.f32.mrb[0].mxu0
      %9426 = vmatprep.mubr.bf16.mxu0 0
      %9427 = vmatmul.mubr.bf16.gmra.mrb[0].mxu0 %v9219
      %v9428 = vpop.f32.mrb[0].mxu0
      %v9429 = vadd.f32 %v8871, %v9428
      %v9430 = vpop.f32.mrb[0].mxu0
      %v9431 = vpop.f32.mrb[0].mxu0
      %v9432 = vadd.f32 %v8874, %v9431
      %v9433 = vpop.f32.mrb[0].mxu0
      %9434 = vmatprep.mubr.bf16.mxu0 0
      %9435 = vmatmul.mubr.bf16.gmra.mrb[0].mxu0 %v9222
      %v9436 = vpop.f32.mrb[0].mxu0
      %v9437 = vadd.f32 %v8879, %v9436
      %v9438 = vpop.f32.mrb[0].mxu0
      %v9439 = vpop.f32.mrb[0].mxu0
      %v9440 = vadd.f32 %v8882, %v9439
      %v9441 = vpop.f32.mrb[0].mxu0
      %9442 = vmatprep.mubr.bf16.mxu0 0
      %9443 = vmatmul.mubr.bf16.gmra.mrb[0].mxu0 %v9225
      %v9444 = vpop.f32.mrb[0].mxu0
      %v9445 = vadd.f32 %v8887, %v9444
      %v9446 = vpop.f32.mrb[0].mxu0
      %v9447 = vpop.f32.mrb[0].mxu0
      %v9448 = vadd.f32 %v8890, %v9447
      %v9449 = vpop.f32.mrb[0].mxu0
      %9450 = vmatprep.mubr.bf16.mxu0 0
      %9451 = vmatmul.mubr.bf16.gmra.mrb[0].mxu0 %v9228
      %v9452 = vpop.f32.mrb[0].mxu0
      %v9453 = vadd.f32 %v8895, %v9452
      %v9454 = vpop.f32.mrb[0].mxu0
      %v9455 = vpop.f32.mrb[0].mxu0
      %v9456 = vadd.f32 %v8898, %v9455
      %v9457 = vpop.f32.mrb[0].mxu0
      %9458 = vmatprep.mubr.bf16.mxu0 0
      %9459 = vmatmul.mubr.bf16.gmra.mrb[0].mxu0 %v9231
      %v9460 = vpop.f32.mrb[0].mxu0
      %v9461 = vadd.f32 %v8903, %v9460
      %v9462 = vpop.f32.mrb[0].mxu0
      %v9463 = vpop.f32.mrb[0].mxu0
      %v9464 = vadd.f32 %v8906, %v9463
      %v9465 = vpop.f32.mrb[0].mxu0
      %9466 = vmatprep.mubr.bf16.mxu0 0
      %9467 = vmatmul.mubr.bf16.gmra.mrb[0].mxu0 %v9234
      %v9468 = vpop.f32.mrb[0].mxu0
      %v9469 = vadd.f32 %v8911, %v9468
      %v9470 = vpop.f32.mrb[0].mxu0
      %v9471 = vpop.f32.mrb[0].mxu0
      %v9472 = vadd.f32 %v8914, %v9471
      %v9473 = vpop.f32.mrb[0].mxu0
      %9474 = vmatprep.mubr.bf16.mxu0 0
      %9475 = vmatmul.mubr.bf16.gmra.mrb[0].mxu0 %v9237
      %v9476 = vpop.f32.mrb[0].mxu0
      %v9477 = vadd.f32 %v8919, %v9476
      %v9478 = vpop.f32.mrb[0].mxu0
      %v9479 = vpop.f32.mrb[0].mxu0
      %v9480 = vadd.f32 %v8922, %v9479
      %v9481 = vpop.f32.mrb[0].mxu0
      %9482 = vmatprep.mubr.bf16.mxu0 0
      %9483 = vmatmul.mubr.bf16.gmra.mrb[0].mxu0 %v9240
      %v9484 = vpop.f32.mrb[0].mxu0
      %v9485 = vadd.f32 %v8927, %v9484
      %v9486 = vpop.f32.mrb[0].mxu0
      %v9487 = vpop.f32.mrb[0].mxu0
      %v9488 = vadd.f32 %v8930, %v9487
      %v9489 = vpop.f32.mrb[0].mxu0
      %9490 = vmatprep.mubr.bf16.mxu0 0
      %9491 = vmatmul.mubr.bf16.gmra.mrb[0].mxu0 %v9243
      %v9492 = vpop.f32.mrb[0].mxu0
      %v9493 = vadd.f32 %v8935, %v9492
      %v9494 = vpop.f32.mrb[0].mxu0
      %v9495 = vpop.f32.mrb[0].mxu0
      %v9496 = vadd.f32 %v8938, %v9495
      %v9497 = vpop.f32.mrb[0].mxu0
      %9498 = vmatprep.mubr.bf16.mxu0 0
      %9499 = vmatmul.mubr.bf16.gmra.mrb[0].mxu0 %v9246
      %v9500 = vpop.f32.mrb[0].mxu0
      %v9501 = vadd.f32 %v8943, %v9500
      %v9502 = vpop.f32.mrb[0].mxu0
      %v9503 = vpop.f32.mrb[0].mxu0
      %v9504 = vadd.f32 %v8946, %v9503
      %v9505 = vpop.f32.mrb[0].mxu0
      %9506 = vmatprep.mubr.bf16.mxu0 0
      %9507 = vmatmul.mubr.bf16.gmra.mrb[0].mxu0 %v9249
      %v9508 = vpop.f32.mrb[0].mxu0
      %v9509 = vadd.f32 %v8951, %v9508
      %v9510 = vpop.f32.mrb[0].mxu0
      %v9511 = vpop.f32.mrb[0].mxu0
      %v9512 = vadd.f32 %v8954, %v9511
      %v9513 = vpop.f32.mrb[0].mxu0
      %9514 = vmatprep.mubr.bf16.mxu0 0
      %9515 = vmatmul.mubr.bf16.gmra.mrb[0].mxu0 %v9252
      %v9516 = vpop.f32.mrb[0].mxu0
      %v9517 = vadd.f32 %v8959, %v9516
      %v9518 = vpop.f32.mrb[0].mxu0
      %v9519 = vpop.f32.mrb[0].mxu0
      %v9520 = vadd.f32 %v8962, %v9519
      %v9521 = vpop.f32.mrb[0].mxu0
      %9522 = vmatprep.mubr.bf16.mxu0 0
      %9523 = vmatmul.mubr.bf16.gmra.mrb[0].mxu0 %v9255
      %v9524 = vpop.f32.mrb[0].mxu0
      %v9525 = vadd.f32 %v8967, %v9524
      %v9526 = vpop.f32.mrb[0].mxu0
      %v9527 = vpop.f32.mrb[0].mxu0
      %v9528 = vadd.f32 %v8970, %v9527
      %v9529 = vpop.f32.mrb[0].mxu0
      %9530 = vmatprep.mubr.bf16.mxu0 0
      %9531 = vmatmul.mubr.bf16.gmra.mrb[0].mxu0 %v9258
      %v9532 = vpop.f32.mrb[0].mxu0
      %v9533 = vadd.f32 %v8975, %v9532
      %v9534 = vpop.f32.mrb[0].mxu0
      %v9535 = vpop.f32.mrb[0].mxu0
      %v9536 = vadd.f32 %v8978, %v9535
      %v9537 = vpop.f32.mrb[0].mxu0
      %9538 = vmatprep.mubr.bf16.mxu0 0
      %9539 = vmatmul.mubr.bf16.gmra.mrb[0].mxu0 %v9261
      %v9540 = vpop.f32.mrb[0].mxu0
      %v9541 = vadd.f32 %v8983, %v9540
      %v9542 = vpop.f32.mrb[0].mxu0
      %v9543 = vpop.f32.mrb[0].mxu0
      %v9544 = vadd.f32 %v8986, %v9543
      %v9545 = vpop.f32.mrb[0].mxu0
      %9546 = vmatprep.mubr.bf16.mxu0 0
      %9547 = vmatmul.mubr.bf16.gmra.mrb[0].mxu0 %v9264
      %v9548 = vpop.f32.mrb[0].mxu0
      %v9549 = vadd.f32 %v8991, %v9548
      %v9550 = vpop.f32.mrb[0].mxu0
      %v9551 = vpop.f32.mrb[0].mxu0
      %v9552 = vadd.f32 %v8994, %v9551
      %v9553 = vpop.f32.mrb[0].mxu0
      %9554 = vdwg.mxu0
      %v9555 = vld [vmem:[%s7] sm:$0x1]
      %v9557 = vlaneseq
      %v9558 = vshrl.u32 %v9557, 7
      %v9559 = vsub.s32 0, %v9558
      %v9560 = vrot.slane %v9555, %v9559
      %v9562 = vadd.f32 %v9301, %v9560
      %v9563 = vadd.f32 %v9304, %v9560
      %v9564 = vadd.f32 %v9309, %v9560
      %v9565 = vadd.f32 %v9312, %v9560
      %v9566 = vadd.f32 %v9317, %v9560
      %v9567 = vadd.f32 %v9320, %v9560
      %v9568 = vadd.f32 %v9325, %v9560
      %v9569 = vadd.f32 %v9328, %v9560
      %v9570 = vadd.f32 %v9333, %v9560
      %v9571 = vadd.f32 %v9336, %v9560
      %v9572 = vadd.f32 %v9341, %v9560
      %v9573 = vadd.f32 %v9344, %v9560
      %v9574 = vadd.f32 %v9349, %v9560
      %v9575 = vadd.f32 %v9352, %v9560
      %v9576 = vadd.f32 %v9357, %v9560
      %v9577 = vadd.f32 %v9360, %v9560
      %v9578 = vadd.f32 %v9365, %v9560
      %v9579 = vadd.f32 %v9368, %v9560
      %v9580 = vadd.f32 %v9373, %v9560
      %v9581 = vadd.f32 %v9376, %v9560
      %v9582 = vadd.f32 %v9381, %v9560
      %v9583 = vadd.f32 %v9384, %v9560
      %v9584 = vadd.f32 %v9389, %v9560
      %v9585 = vadd.f32 %v9392, %v9560
      %v9586 = vadd.f32 %v9397, %v9560
      %v9587 = vadd.f32 %v9400, %v9560
      %v9588 = vadd.f32 %v9405, %v9560
      %v9589 = vadd.f32 %v9408, %v9560
      %v9590 = vadd.f32 %v9413, %v9560
      %v9591 = vadd.f32 %v9416, %v9560
      %v9592 = vadd.f32 %v9421, %v9560
      %v9593 = vadd.f32 %v9424, %v9560
      %v9594 = vadd.f32 %v9429, %v9560
      %v9595 = vadd.f32 %v9432, %v9560
      %v9596 = vadd.f32 %v9437, %v9560
      %v9597 = vadd.f32 %v9440, %v9560
      %v9598 = vadd.f32 %v9445, %v9560
      %v9599 = vadd.f32 %v9448, %v9560
      %v9600 = vadd.f32 %v9453, %v9560
      %v9601 = vadd.f32 %v9456, %v9560
      %v9602 = vadd.f32 %v9461, %v9560
      %v9603 = vadd.f32 %v9464, %v9560
      %v9604 = vadd.f32 %v9469, %v9560
      %v9605 = vadd.f32 %v9472, %v9560
      %v9606 = vadd.f32 %v9477, %v9560
      %v9607 = vadd.f32 %v9480, %v9560
      %v9608 = vadd.f32 %v9485, %v9560
      %v9609 = vadd.f32 %v9488, %v9560
      %v9610 = vadd.f32 %v9493, %v9560
      %v9611 = vadd.f32 %v9496, %v9560
      %v9612 = vadd.f32 %v9501, %v9560
      %v9613 = vadd.f32 %v9504, %v9560
      %v9614 = vadd.f32 %v9509, %v9560
      %v9615 = vadd.f32 %v9512, %v9560
      %v9616 = vadd.f32 %v9517, %v9560
      %v9617 = vadd.f32 %v9520, %v9560
      %v9618 = vadd.f32 %v9525, %v9560
      %v9619 = vadd.f32 %v9528, %v9560
      %v9620 = vadd.f32 %v9533, %v9560
      %v9621 = vadd.f32 %v9536, %v9560
      %v9622 = vadd.f32 %v9541, %v9560
      %v9623 = vadd.f32 %v9544, %v9560
      %v9624 = vadd.f32 %v9549, %v9560
      %v9625 = vadd.f32 %v9552, %v9560
      %v9626 = vld [vmem:[%s8] sm:$0x1]
      %9628 = vset.pattern.permute.xlu0 12
      %9629 = vperm.xlu0 %9628, %v359
      %v9630 = vpop.permute.xlu0 %9629
      %9633 = vset.pattern.permute.xlu0 12
      %9634 = vperm.xlu0 %9633, %v360
      %v9635 = vpop.permute.xlu0 %9634
      %9638 = vset.pattern.permute.xlu0 12
      %9639 = vperm.xlu0 %9638, %v361
      %v9640 = vpop.permute.xlu0 %9639
      %9643 = vset.pattern.permute.xlu0 12
      %9644 = vperm.xlu0 %9643, %v362
      %v9645 = vpop.permute.xlu0 %9644
      %9648 = vset.pattern.permute.xlu0 12
      %9649 = vperm.xlu0 %9648, %v363
      %v9650 = vpop.permute.xlu0 %9649
      %9653 = vset.pattern.permute.xlu0 12
      %9654 = vperm.xlu0 %9653, %v364
      %v9655 = vpop.permute.xlu0 %9654
      %9658 = vset.pattern.permute.xlu0 12
      %9659 = vperm.xlu0 %9658, %v365
      %v9660 = vpop.permute.xlu0 %9659
      %9663 = vset.pattern.permute.xlu0 12
      %9664 = vperm.xlu0 %9663, %v366
      %v9665 = vpop.permute.xlu0 %9664
      %9668 = vset.pattern.permute.xlu0 12
      %9669 = vperm.xlu0 %9668, %v367
      %v9670 = vpop.permute.xlu0 %9669
      %9673 = vset.pattern.permute.xlu0 12
      %9674 = vperm.xlu0 %9673, %v368
      %v9675 = vpop.permute.xlu0 %9674
      %9678 = vset.pattern.permute.xlu0 12
      %9679 = vperm.xlu0 %9678, %v369
      %v9680 = vpop.permute.xlu0 %9679
      %9683 = vset.pattern.permute.xlu0 12
      %9684 = vperm.xlu0 %9683, %v370
      %v9685 = vpop.permute.xlu0 %9684
      %9688 = vset.pattern.permute.xlu0 12
      %9689 = vperm.xlu0 %9688, %v371
      %v9690 = vpop.permute.xlu0 %9689
      %9693 = vset.pattern.permute.xlu0 12
      %9694 = vperm.xlu0 %9693, %v372
      %v9695 = vpop.permute.xlu0 %9694
      %9698 = vset.pattern.permute.xlu0 12
      %9699 = vperm.xlu0 %9698, %v373
      %v9700 = vpop.permute.xlu0 %9699
      %9703 = vset.pattern.permute.xlu0 12
      %9704 = vperm.xlu0 %9703, %v374
      %v9705 = vpop.permute.xlu0 %9704
      %9708 = vset.pattern.permute.xlu0 12
      %9709 = vperm.xlu0 %9708, %v375
      %v9710 = vpop.permute.xlu0 %9709
      %9713 = vset.pattern.permute.xlu0 12
      %9714 = vperm.xlu0 %9713, %v376
      %v9715 = vpop.permute.xlu0 %9714
      %9718 = vset.pattern.permute.xlu0 12
      %9719 = vperm.xlu0 %9718, %v377
      %v9720 = vpop.permute.xlu0 %9719
      %9723 = vset.pattern.permute.xlu0 12
      %9724 = vperm.xlu0 %9723, %v378
      %v9725 = vpop.permute.xlu0 %9724
      %9728 = vset.pattern.permute.xlu0 12
      %9729 = vperm.xlu0 %9728, %v379
      %v9730 = vpop.permute.xlu0 %9729
      %9733 = vset.pattern.permute.xlu0 12
      %9734 = vperm.xlu0 %9733, %v380
      %v9735 = vpop.permute.xlu0 %9734
      %9738 = vset.pattern.permute.xlu0 12
      %9739 = vperm.xlu0 %9738, %v381
      %v9740 = vpop.permute.xlu0 %9739
      %9743 = vset.pattern.permute.xlu0 12
      %9744 = vperm.xlu0 %9743, %v382
      %v9745 = vpop.permute.xlu0 %9744
      %9748 = vset.pattern.permute.xlu0 12
      %9749 = vperm.xlu0 %9748, %v383
      %v9750 = vpop.permute.xlu0 %9749
      %9753 = vset.pattern.permute.xlu0 12
      %9754 = vperm.xlu0 %9753, %v384
      %v9755 = vpop.permute.xlu0 %9754
      %9758 = vset.pattern.permute.xlu0 12
      %9759 = vperm.xlu0 %9758, %v385
      %v9760 = vpop.permute.xlu0 %9759
      %9763 = vset.pattern.permute.xlu0 12
      %9764 = vperm.xlu0 %9763, %v386
      %v9765 = vpop.permute.xlu0 %9764
      %9768 = vset.pattern.permute.xlu0 12
      %9769 = vperm.xlu0 %9768, %v387
      %v9770 = vpop.permute.xlu0 %9769
      %9773 = vset.pattern.permute.xlu0 12
      %9774 = vperm.xlu0 %9773, %v388
      %v9775 = vpop.permute.xlu0 %9774
      %9778 = vset.pattern.permute.xlu0 12
      %9779 = vperm.xlu0 %9778, %v389
      %v9780 = vpop.permute.xlu0 %9779
      %9783 = vset.pattern.permute.xlu0 12
      %9784 = vperm.xlu0 %9783, %v390
      %v9785 = vpop.permute.xlu0 %9784
      %9788 = vset.pattern.permute.xlu0 12
      %9789 = vperm.xlu0 %9788, %v391
      %v9790 = vpop.permute.xlu0 %9789
      %9793 = vset.pattern.permute.xlu0 12
      %9794 = vperm.xlu0 %9793, %v392
      %v9795 = vpop.permute.xlu0 %9794
      %9798 = vset.pattern.permute.xlu0 12
      %9799 = vperm.xlu0 %9798, %v393
      %v9800 = vpop.permute.xlu0 %9799
      %9803 = vset.pattern.permute.xlu0 12
      %9804 = vperm.xlu0 %9803, %v394
      %v9805 = vpop.permute.xlu0 %9804
      %9808 = vset.pattern.permute.xlu0 12
      %9809 = vperm.xlu0 %9808, %v395
      %v9810 = vpop.permute.xlu0 %9809
      %9813 = vset.pattern.permute.xlu0 12
      %9814 = vperm.xlu0 %9813, %v396
      %v9815 = vpop.permute.xlu0 %9814
      %9818 = vset.pattern.permute.xlu0 12
      %9819 = vperm.xlu0 %9818, %v397
      %v9820 = vpop.permute.xlu0 %9819
      %9823 = vset.pattern.permute.xlu0 12
      %9824 = vperm.xlu0 %9823, %v398
      %v9825 = vpop.permute.xlu0 %9824
      %9828 = vset.pattern.permute.xlu0 12
      %9829 = vperm.xlu0 %9828, %v399
      %v9830 = vpop.permute.xlu0 %9829
      %9833 = vset.pattern.permute.xlu0 12
      %9834 = vperm.xlu0 %9833, %v400
      %v9835 = vpop.permute.xlu0 %9834
      %9838 = vset.pattern.permute.xlu0 12
      %9839 = vperm.xlu0 %9838, %v401
      %v9840 = vpop.permute.xlu0 %9839
      %9843 = vset.pattern.permute.xlu0 12
      %9844 = vperm.xlu0 %9843, %v402
      %v9845 = vpop.permute.xlu0 %9844
      %9848 = vset.pattern.permute.xlu0 12
      %9849 = vperm.xlu0 %9848, %v403
      %v9850 = vpop.permute.xlu0 %9849
      %9853 = vset.pattern.permute.xlu0 12
      %9854 = vperm.xlu0 %9853, %v404
      %v9855 = vpop.permute.xlu0 %9854
      %9858 = vset.pattern.permute.xlu0 12
      %9859 = vperm.xlu0 %9858, %v405
      %v9860 = vpop.permute.xlu0 %9859
      %9863 = vset.pattern.permute.xlu0 12
      %9864 = vperm.xlu0 %9863, %v406
      %v9865 = vpop.permute.xlu0 %9864
      %9868 = vset.pattern.permute.xlu0 12
      %9869 = vperm.xlu0 %9868, %v407
      %v9870 = vpop.permute.xlu0 %9869
      %9873 = vset.pattern.permute.xlu0 12
      %9874 = vperm.xlu0 %9873, %v408
      %v9875 = vpop.permute.xlu0 %9874
      %9878 = vset.pattern.permute.xlu0 12
      %9879 = vperm.xlu0 %9878, %v409
      %v9880 = vpop.permute.xlu0 %9879
      %9883 = vset.pattern.permute.xlu0 12
      %9884 = vperm.xlu0 %9883, %v410
      %v9885 = vpop.permute.xlu0 %9884
      %9888 = vset.pattern.permute.xlu0 12
      %9889 = vperm.xlu0 %9888, %v411
      %v9890 = vpop.permute.xlu0 %9889
      %9893 = vset.pattern.permute.xlu0 12
      %9894 = vperm.xlu0 %9893, %v412
      %v9895 = vpop.permute.xlu0 %9894
      %9898 = vset.pattern.permute.xlu0 12
      %9899 = vperm.xlu0 %9898, %v413
      %v9900 = vpop.permute.xlu0 %9899
      %9903 = vset.pattern.permute.xlu0 12
      %9904 = vperm.xlu0 %9903, %v414
      %v9905 = vpop.permute.xlu0 %9904
      %9908 = vset.pattern.permute.xlu0 12
      %9909 = vperm.xlu0 %9908, %v415
      %v9910 = vpop.permute.xlu0 %9909
      %9913 = vset.pattern.permute.xlu0 12
      %9914 = vperm.xlu0 %9913, %v416
      %v9915 = vpop.permute.xlu0 %9914
      %9918 = vset.pattern.permute.xlu0 12
      %9919 = vperm.xlu0 %9918, %v417
      %v9920 = vpop.permute.xlu0 %9919
      %9923 = vset.pattern.permute.xlu0 12
      %9924 = vperm.xlu0 %9923, %v418
      %v9925 = vpop.permute.xlu0 %9924
      %9928 = vset.pattern.permute.xlu0 12
      %9929 = vperm.xlu0 %9928, %v419
      %v9930 = vpop.permute.xlu0 %9929
      %9933 = vset.pattern.permute.xlu0 12
      %9934 = vperm.xlu0 %9933, %v420
      %v9935 = vpop.permute.xlu0 %9934
      %9938 = vset.pattern.permute.xlu0 12
      %9939 = vperm.xlu0 %9938, %v421
      %v9940 = vpop.permute.xlu0 %9939
      %9943 = vset.pattern.permute.xlu0 12
      %9944 = vperm.xlu0 %9943, %v422
      %v9945 = vpop.permute.xlu0 %9944
      %v9948 = vlaneseq
      %v9949 = vshrl.u32 %v9948, 7
      %v9950 = vsub.s32 0, %v9949
      %v9951 = vrot.slane %v9626, %v9950
      %v9953 = vmul.f32 %v9630, %v9951
      %v9954 = vmul.f32 %v9635, %v9951
      %v9955 = vmul.f32 %v9640, %v9951
      %v9956 = vmul.f32 %v9645, %v9951
      %v9957 = vmul.f32 %v9650, %v9951
      %v9958 = vmul.f32 %v9655, %v9951
      %v9959 = vmul.f32 %v9660, %v9951
      %v9960 = vmul.f32 %v9665, %v9951
      %v9961 = vmul.f32 %v9670, %v9951
      %v9962 = vmul.f32 %v9675, %v9951
      %v9963 = vmul.f32 %v9680, %v9951
      %v9964 = vmul.f32 %v9685, %v9951
      %v9965 = vmul.f32 %v9690, %v9951
      %v9966 = vmul.f32 %v9695, %v9951
      %v9967 = vmul.f32 %v9700, %v9951
      %v9968 = vmul.f32 %v9705, %v9951
      %v9969 = vmul.f32 %v9710, %v9951
      %v9970 = vmul.f32 %v9715, %v9951
      %v9971 = vmul.f32 %v9720, %v9951
      %v9972 = vmul.f32 %v9725, %v9951
      %v9973 = vmul.f32 %v9730, %v9951
      %v9974 = vmul.f32 %v9735, %v9951
      %v9975 = vmul.f32 %v9740, %v9951
      %v9976 = vmul.f32 %v9745, %v9951
      %v9977 = vmul.f32 %v9750, %v9951
      %v9978 = vmul.f32 %v9755, %v9951
      %v9979 = vmul.f32 %v9760, %v9951
      %v9980 = vmul.f32 %v9765, %v9951
      %v9981 = vmul.f32 %v9770, %v9951
      %v9982 = vmul.f32 %v9775, %v9951
      %v9983 = vmul.f32 %v9780, %v9951
      %v9984 = vmul.f32 %v9785, %v9951
      %v9985 = vmul.f32 %v9790, %v9951
      %v9986 = vmul.f32 %v9795, %v9951
      %v9987 = vmul.f32 %v9800, %v9951
      %v9988 = vmul.f32 %v9805, %v9951
      %v9989 = vmul.f32 %v9810, %v9951
      %v9990 = vmul.f32 %v9815, %v9951
      %v9991 = vmul.f32 %v9820, %v9951
      %v9992 = vmul.f32 %v9825, %v9951
      %v9993 = vmul.f32 %v9830, %v9951
      %v9994 = vmul.f32 %v9835, %v9951
      %v9995 = vmul.f32 %v9840, %v9951
      %v9996 = vmul.f32 %v9845, %v9951
      %v9997 = vmul.f32 %v9850, %v9951
      %v9998 = vmul.f32 %v9855, %v9951
      %v9999 = vmul.f32 %v9860, %v9951
      %v10000 = vmul.f32 %v9865, %v9951
      %v10001 = vmul.f32 %v9870, %v9951
      %v10002 = vmul.f32 %v9875, %v9951
      %v10003 = vmul.f32 %v9880, %v9951
      %v10004 = vmul.f32 %v9885, %v9951
      %v10005 = vmul.f32 %v9890, %v9951
      %v10006 = vmul.f32 %v9895, %v9951
      %v10007 = vmul.f32 %v9900, %v9951
      %v10008 = vmul.f32 %v9905, %v9951
      %v10009 = vmul.f32 %v9910, %v9951
      %v10010 = vmul.f32 %v9915, %v9951
      %v10011 = vmul.f32 %v9920, %v9951
      %v10012 = vmul.f32 %v9925, %v9951
      %v10013 = vmul.f32 %v9930, %v9951
      %v10014 = vmul.f32 %v9935, %v9951
      %v10015 = vmul.f32 %v9940, %v9951
      %v10016 = vmul.f32 %v9945, %v9951
      %v10017 = vadd.f32 %v9562, %v9953
      %v10018 = vadd.f32 %v9563, %v9954
      %v10019 = vadd.f32 %v9564, %v9955
      %v10020 = vadd.f32 %v9565, %v9956
      %v10021 = vadd.f32 %v9566, %v9957
      %v10022 = vadd.f32 %v9567, %v9958
      %v10023 = vadd.f32 %v9568, %v9959
      %v10024 = vadd.f32 %v9569, %v9960
      %v10025 = vadd.f32 %v9570, %v9961
      %v10026 = vadd.f32 %v9571, %v9962
      %v10027 = vadd.f32 %v9572, %v9963
      %v10028 = vadd.f32 %v9573, %v9964
      %v10029 = vadd.f32 %v9574, %v9965
      %v10030 = vadd.f32 %v9575, %v9966
      %v10031 = vadd.f32 %v9576, %v9967
      %v10032 = vadd.f32 %v9577, %v9968
      %v10033 = vadd.f32 %v9578, %v9969
      %v10034 = vadd.f32 %v9579, %v9970
      %v10035 = vadd.f32 %v9580, %v9971
      %v10036 = vadd.f32 %v9581, %v9972
      %v10037 = vadd.f32 %v9582, %v9973
      %v10038 = vadd.f32 %v9583, %v9974
      %v10039 = vadd.f32 %v9584, %v9975
      %v10040 = vadd.f32 %v9585, %v9976
      %v10041 = vadd.f32 %v9586, %v9977
      %v10042 = vadd.f32 %v9587, %v9978
      %v10043 = vadd.f32 %v9588, %v9979
      %v10044 = vadd.f32 %v9589, %v9980
      %v10045 = vadd.f32 %v9590, %v9981
      %v10046 = vadd.f32 %v9591, %v9982
      %v10047 = vadd.f32 %v9592, %v9983
      %v10048 = vadd.f32 %v9593, %v9984
      %v10049 = vadd.f32 %v9594, %v9985
      %v10050 = vadd.f32 %v9595, %v9986
      %v10051 = vadd.f32 %v9596, %v9987
      %v10052 = vadd.f32 %v9597, %v9988
      %v10053 = vadd.f32 %v9598, %v9989
      %v10054 = vadd.f32 %v9599, %v9990
      %v10055 = vadd.f32 %v9600, %v9991
      %v10056 = vadd.f32 %v9601, %v9992
      %v10057 = vadd.f32 %v9602, %v9993
      %v10058 = vadd.f32 %v9603, %v9994
      %v10059 = vadd.f32 %v9604, %v9995
      %v10060 = vadd.f32 %v9605, %v9996
      %v10061 = vadd.f32 %v9606, %v9997
      %v10062 = vadd.f32 %v9607, %v9998
      %v10063 = vadd.f32 %v9608, %v9999
      %v10064 = vadd.f32 %v9609, %v10000
      %v10065 = vadd.f32 %v9610, %v10001
      %v10066 = vadd.f32 %v9611, %v10002
      %v10067 = vadd.f32 %v9612, %v10003
      %v10068 = vadd.f32 %v9613, %v10004
      %v10069 = vadd.f32 %v9614, %v10005
      %v10070 = vadd.f32 %v9615, %v10006
      %v10071 = vadd.f32 %v9616, %v10007
      %v10072 = vadd.f32 %v9617, %v10008
      %v10073 = vadd.f32 %v9618, %v10009
      %v10074 = vadd.f32 %v9619, %v10010
      %v10075 = vadd.f32 %v9620, %v10011
      %v10076 = vadd.f32 %v9621, %v10012
      %v10077 = vadd.f32 %v9622, %v10013
      %v10078 = vadd.f32 %v9623, %v10014
      %v10079 = vadd.f32 %v9624, %v10015
      %v10080 = vadd.f32 %v9625, %v10016
      %vm10081 = vcmask 531456
      %10082 = vst.msk [vmem:[%s356] sm:$0xff] %vm10081, %v10017
      %10083 = vst.msk [vmem:[%s356 + $0x8] sm:$0xff] %vm10081, %v10018
      %10084 = vst.msk [vmem:[%s356 + $0x10] sm:$0xff] %vm10081, %v10019
      %10085 = vst.msk [vmem:[%s356 + $0x18] sm:$0xff] %vm10081, %v10020
      %10086 = vst.msk [vmem:[%s356 + $0x20] sm:$0xff] %vm10081, %v10021
      %10087 = vst.msk [vmem:[%s356 + $0x28] sm:$0xff] %vm10081, %v10022
      %10088 = vst.msk [vmem:[%s356 + $0x30] sm:$0xff] %vm10081, %v10023
      %10089 = vst.msk [vmem:[%s356 + $0x38] sm:$0xff] %vm10081, %v10024
      %10090 = vst.msk [vmem:[%s356 + $0x40] sm:$0xff] %vm10081, %v10025
      %10091 = vst.msk [vmem:[%s356 + $0x48] sm:$0xff] %vm10081, %v10026
      %10092 = vst.msk [vmem:[%s356 + $0x50] sm:$0xff] %vm10081, %v10027
      %10093 = vst.msk [vmem:[%s356 + $0x58] sm:$0xff] %vm10081, %v10028
      %10094 = vst.msk [vmem:[%s356 + $0x60] sm:$0xff] %vm10081, %v10029
      %10095 = vst.msk [vmem:[%s356 + $0x68] sm:$0xff] %vm10081, %v10030
      %10096 = vst.msk [vmem:[%s356 + $0x70] sm:$0xff] %vm10081, %v10031
      %10097 = vst.msk [vmem:[%s356 + $0x78] sm:$0xff] %vm10081, %v10032
      %10098 = vst.msk [vmem:[%s356 + $0x80] sm:$0xff] %vm10081, %v10033
      %10099 = vst.msk [vmem:[%s356 + $0x88] sm:$0xff] %vm10081, %v10034
      %10100 = vst.msk [vmem:[%s356 + $0x90] sm:$0xff] %vm10081, %v10035
      %10101 = vst.msk [vmem:[%s356 + $0x98] sm:$0xff] %vm10081, %v10036
      %10102 = vst.msk [vmem:[%s356 + $0xa0] sm:$0xff] %vm10081, %v10037
      %10103 = vst.msk [vmem:[%s356 + $0xa8] sm:$0xff] %vm10081, %v10038
      %10104 = vst.msk [vmem:[%s356 + $0xb0] sm:$0xff] %vm10081, %v10039
      %10105 = vst.msk [vmem:[%s356 + $0xb8] sm:$0xff] %vm10081, %v10040
      %10106 = vst.msk [vmem:[%s356 + $0xc0] sm:$0xff] %vm10081, %v10041
      %10107 = vst.msk [vmem:[%s356 + $0xc8] sm:$0xff] %vm10081, %v10042
      %10108 = vst.msk [vmem:[%s356 + $0xd0] sm:$0xff] %vm10081, %v10043
      %10109 = vst.msk [vmem:[%s356 + $0xd8] sm:$0xff] %vm10081, %v10044
      %10110 = vst.msk [vmem:[%s356 + $0xe0] sm:$0xff] %vm10081, %v10045
      %10111 = vst.msk [vmem:[%s356 + $0xe8] sm:$0xff] %vm10081, %v10046
      %10112 = vst.msk [vmem:[%s356 + $0xf0] sm:$0xff] %vm10081, %v10047
      %10113 = vst.msk [vmem:[%s356 + $0xf8] sm:$0xff] %vm10081, %v10048
      %10114 = vst.msk [vmem:[%s356 + $0x100] sm:$0xff] %vm10081, %v10049
      %10115 = vst.msk [vmem:[%s356 + $0x108] sm:$0xff] %vm10081, %v10050
      %10116 = vst.msk [vmem:[%s356 + $0x110] sm:$0xff] %vm10081, %v10051
      %10117 = vst.msk [vmem:[%s356 + $0x118] sm:$0xff] %vm10081, %v10052
      %10118 = vst.msk [vmem:[%s356 + $0x120] sm:$0xff] %vm10081, %v10053
      %10119 = vst.msk [vmem:[%s356 + $0x128] sm:$0xff] %vm10081, %v10054
      %10120 = vst.msk [vmem:[%s356 + $0x130] sm:$0xff] %vm10081, %v10055
      %10121 = vst.msk [vmem:[%s356 + $0x138] sm:$0xff] %vm10081, %v10056
      %10122 = vst.msk [vmem:[%s356 + $0x140] sm:$0xff] %vm10081, %v10057
      %10123 = vst.msk [vmem:[%s356 + $0x148] sm:$0xff] %vm10081, %v10058
      %10124 = vst.msk [vmem:[%s356 + $0x150] sm:$0xff] %vm10081, %v10059
      %10125 = vst.msk [vmem:[%s356 + $0x158] sm:$0xff] %vm10081, %v10060
      %10126 = vst.msk [vmem:[%s356 + $0x160] sm:$0xff] %vm10081, %v10061
      %10127 = vst.msk [vmem:[%s356 + $0x168] sm:$0xff] %vm10081, %v10062
      %10128 = vst.msk [vmem:[%s356 + $0x170] sm:$0xff] %vm10081, %v10063
      %10129 = vst.msk [vmem:[%s356 + $0x178] sm:$0xff] %vm10081, %v10064
      %10130 = vst.msk [vmem:[%s356 + $0x180] sm:$0xff] %vm10081, %v10065
      %10131 = vst.msk [vmem:[%s356 + $0x188] sm:$0xff] %vm10081, %v10066
      %10132 = vst.msk [vmem:[%s356 + $0x190] sm:$0xff] %vm10081, %v10067
      %10133 = vst.msk [vmem:[%s356 + $0x198] sm:$0xff] %vm10081, %v10068
      %10134 = vst.msk [vmem:[%s356 + $0x1a0] sm:$0xff] %vm10081, %v10069
      %10135 = vst.msk [vmem:[%s356 + $0x1a8] sm:$0xff] %vm10081, %v10070
      %10136 = vst.msk [vmem:[%s356 + $0x1b0] sm:$0xff] %vm10081, %v10071
      %10137 = vst.msk [vmem:[%s356 + $0x1b8] sm:$0xff] %vm10081, %v10072
      %10138 = vst.msk [vmem:[%s356 + $0x1c0] sm:$0xff] %vm10081, %v10073
      %10139 = vst.msk [vmem:[%s356 + $0x1c8] sm:$0xff] %vm10081, %v10074
      %10140 = vst.msk [vmem:[%s356 + $0x1d0] sm:$0xff] %vm10081, %v10075
      %10141 = vst.msk [vmem:[%s356 + $0x1d8] sm:$0xff] %vm10081, %v10076
      %10142 = vst.msk [vmem:[%s356 + $0x1e0] sm:$0xff] %vm10081, %v10077
      %10143 = vst.msk [vmem:[%s356 + $0x1e8] sm:$0xff] %vm10081, %v10078
      %10144 = vst.msk [vmem:[%s356 + $0x1f0] sm:$0xff] %vm10081, %v10079
      %10145 = vst.msk [vmem:[%s356 + $0x1f8] sm:$0xff] %vm10081, %v10080
      %s10146 = smul.u32 64, %s20
      %p10147 = scmp.lt.s32.totalorder %s10146, 255
      %s10148 = scalar_select %p10147, %s10146, 255
      %s10149 = smul.addr %s10148, 8
      %s10150 = scalar_lea.vmem %s9, %s10149
      // Predicated region
      $region57: #{tpu_custom_call.1} parent=55 // pred_check
        %p10151 = pneg %p237
      $region58: #{tpu_custom_call.1} parent=55 // pred_check_branch
        %10153 = sbr.rel (%p10151) target = $region60
      $region59: #{tpu_custom_call.1} parent=55 // pred_region
        %s10154 = smul.u32 64, %s20
      $region60: #{tpu_custom_call.1} parent=55 // pred_fallthru
        _
    $region56: #{tpu_custom_call.1} parent=5 // pred_fallthru
      _
    %p10155 = scmp.le.s32.totalorder 2, %s15
    // Predicated region
    $region61: #{tpu_custom_call.1} parent=5 // pred_check
      %p10156 = pneg %p10155
    $region62: #{tpu_custom_call.1} parent=5 // pred_check_branch
      %10158 = sbr.rel (%p10156) target = $region64
    $region63: #{tpu_custom_call.1} parent=5 // pred_region
      %s10159 = ssub.s32 %s15, 2
      // Predicated region
      $region65: #{tpu_custom_call.1} parent=63 // pred_check
        %p10160 = pneg %p243
      $region66: #{tpu_custom_call.1} parent=63 // pred_check_branch
        %10162 = sbr.rel (%p10160) target = $region68
      $region67: #{tpu_custom_call.1} parent=63 // pred_region
        %s10163 = smul.u32 64, %s21
        %p10164 = scmp.lt.s32.totalorder %s10163, 255
        %s10165 = scalar_select %p10164, %s10163, 255
        %s10166 = smul.addr %s10165, 8
        %s10167 = scalar_lea.vmem %s9, %s10166
      $region68: #{tpu_custom_call.1} parent=63 // pred_fallthru
        _
    $region64: #{tpu_custom_call.1} parent=5 // pred_fallthru
      _
  $region6: #{tpu_custom_call.1} parent=0 // loop_footer
    %s19 = sadd.s32 1, %s15
  $region7: #{tpu_custom_call.1} parent=0 // loop_footer_branch
    %14 = sbr.rel target = $region3
  $region8: #{tpu_custom_call.1} parent=0 // loop_exit
    _

</llo_original>
